<compile_context>
chip_gen: v7x
topology: tpu7x:2x2x1
jax: 0.10.0
libtpu: 0.0.40
codegen_flags: <defaults>
</compile_context>

<pallas_src>
import functools

import jax
import jax.numpy as jnp
from jax.experimental import pallas as pl
from jax.experimental.pallas import tpu as pltpu


def _round_up(x, m):
    return ((x + m - 1) // m) * m


# ---------------------------------------------------------------------------
# Pallas kernel 1: shifted-tap conv with in-kernel im2col.
#   out[p, m] = bias[p] + sum_t sum_c W[p, t*Cin + c] * x[c, m + shifts[t]]
# The image is row-padded, flattened and tail-padded so every tap is a pure
# constant lane shift of the same flat buffer (the "shift trick").
# ---------------------------------------------------------------------------
def _tap_conv_kernel(x_ref, w_ref, b_ref, o_ref, *, shifts, cin, relu):
    # x_ref: (Cin, Lp)  w_ref: (P, T*Cin)  b_ref: (P, 1)  o_ref: (P, M)
    P, M = o_ref.shape
    x = x_ref[...]
    w = w_ref[...]
    acc = jnp.zeros((P, M), jnp.float32)
    for t, s in enumerate(shifts):                    # static, unrolled
        patch = x[:, s:s + M]                         # in-kernel im2col slice
        w_tap = w[:, t * cin:(t + 1) * cin]           # (P, Cin)
        acc = acc + jnp.dot(w_tap, patch, preferred_element_type=jnp.float32)
    acc = acc + b_ref[...]                            # (P, 1) broadcast
    if relu:
        acc = jnp.maximum(acc, 0.0)
    o_ref[...] = acc.astype(o_ref.dtype)


def tap_conv(xflat, weight, bias, *, shifts, cin, m, relu, out_dtype):
    """Grid over batch; weights/bias stay VMEM-resident (constant index_map);
    one lane-dense (P, M) store per image."""
    N, C, Lp = xflat.shape
    P, KW = weight.shape
    assert C == cin and KW == len(shifts) * cin, (weight.shape, len(shifts), cin)
    kern = functools.partial(_tap_conv_kernel, shifts=tuple(shifts), cin=cin,
                             relu=relu)
    return pl.pallas_call(
        kern,
        out_shape=jax.ShapeDtypeStruct((N, P, m), out_dtype),
        grid=(N,),
        in_specs=[
            pl.BlockSpec((None, C, Lp), lambda n: (n, 0, 0)),   # one image / step
            pl.BlockSpec((P, KW), lambda n: (0, 0)),            # weights resident
            pl.BlockSpec((P, 1), lambda n: (0, 0)),             # bias resident
        ],
        out_specs=pl.BlockSpec((None, P, m), lambda n: (n, 0, 0)),
        compiler_params=pltpu.CompilerParams(
            dimension_semantics=("parallel",),                  # v7x: 2 TCs over batch
            vmem_limit_bytes=32 * 1024 * 1024,
        ),
    )(xflat.astype(jnp.bfloat16), weight.astype(jnp.bfloat16),
      bias.reshape(P, 1).astype(jnp.float32))


# ---------------------------------------------------------------------------
# Pallas kernel 2: lane-dense GEMM  out[P, M] = lhs[P, K] @ rhs[K, M] + b
# (used by the separable bilinear resize).
# ---------------------------------------------------------------------------
def _gemm_bias_kernel(lhs_ref, rhs_ref, b_ref, o_ref, *, relu):
    acc = jnp.dot(lhs_ref[...], rhs_ref[...], preferred_element_type=jnp.float32)
    acc = acc + b_ref[...]
    if relu:
        acc = jnp.maximum(acc, 0.0)
    o_ref[...] = acc.astype(o_ref.dtype)


def gemm_T(lhs, rhs, bias, *, relu, in_dtype=jnp.bfloat16,
           out_dtype=jnp.bfloat16, max_lane_tile=4096):
    P, K = lhs.shape
    K2, M = rhs.shape
    assert K == K2, (lhs.shape, rhs.shape)
    # Lane-tile policy: big tiles (amortize ~0.35us/step), but keep >=2
    # balanced grid steps whenever M > 128 so v7x can use both TensorCores.
    half = (M + 1) // 2
    tn = max(min(_round_up(half, 128), max_lane_tile), 128)
    Mp = _round_up(M, tn)
    if Mp != M:
        rhs = jnp.pad(rhs, ((0, 0), (0, Mp - M)))
    lhs = lhs.astype(in_dtype)
    rhs = rhs.astype(in_dtype)
    b2 = bias.reshape(P, 1).astype(jnp.float32)
    out = pl.pallas_call(
        functools.partial(_gemm_bias_kernel, relu=relu),
        out_shape=jax.ShapeDtypeStruct((P, Mp), out_dtype),
        grid=(Mp // tn,),
        in_specs=[
            pl.BlockSpec((P, K), lambda i: (0, 0)),    # weights resident
            pl.BlockSpec((K, tn), lambda i: (0, i)),   # activations pipelined
            pl.BlockSpec((P, 1), lambda i: (0, 0)),    # bias resident
        ],
        out_specs=pl.BlockSpec((P, tn), lambda i: (0, i)),
        compiler_params=pltpu.CompilerParams(
            dimension_semantics=("parallel",),
            vmem_limit_bytes=32 * 1024 * 1024,
        ),
    )(lhs, rhs, b2)
    return out[:, :M]


# ---------------------------------------------------------------------------
# Layers lowered onto the tap-conv kernel (channel-major NCHW throughout)
# ---------------------------------------------------------------------------
def conv2d_relu(x_nchw, w_torch, b):
    """3x3 stride-1 pad-1 Conv2d (PyTorch semantics) + ReLU, channel-major."""
    N, Cin, H, W = x_nchw.shape
    Cout = w_torch.shape[0]
    Cin_p = _round_up(Cin, 8)                          # pad contraction to >=8
    Wp = W + 2
    M = H * Wp                                         # width-padded flat output
    shifts = [kh * Wp + kw for kh in range(3) for kw in range(3)]
    need = M + max(shifts)
    xp = jnp.pad(x_nchw, ((0, 0), (0, Cin_p - Cin), (1, 1), (1, 1)))
    flat_len = (H + 2) * Wp
    xflat = xp.reshape(N, Cin_p, flat_len)
    if need > flat_len:
        xflat = jnp.pad(xflat, ((0, 0), (0, 0), (0, need - flat_len)))
    # (Cout, Cin, kh, kw) -> (Cout, kh, kw, Cin_p) -> (Cout, 9*Cin_p), tap-major
    wT = jnp.transpose(w_torch, (0, 2, 3, 1))
    wT = jnp.pad(wT, ((0, 0), (0, 0), (0, 0), (0, Cin_p - Cin))).reshape(Cout, 9 * Cin_p)
    out = tap_conv(xflat, wT, b, shifts=shifts, cin=Cin_p, m=M, relu=True,
                   out_dtype=jnp.bfloat16)             # (N, Cout, M)
    return out.reshape(N, Cout, H, Wp)[:, :, :, :W]    # drop garbage columns


def conv_transpose2d_subpixel(x_nchw, w_torch, b, *, out_dtype=jnp.bfloat16):
    """PyTorch ConvTranspose2d(kernel=8, stride=2, padding=1) via subpixel
    decomposition, with all four parities merged into ONE tap-conv call.
    Returns the parity-packed output yp with shape (N, 2, 2, Cout, Hq, Wq)
    where full_out[n, o, 2q+rh, 2p+rw] = yp[n, rh, rw, o, q, p]."""
    N, Cin, H, W = x_nchw.shape
    Cout = w_torch.shape[1]                            # weight: (Cin, Cout, 8, 8)
    Cin_p = _round_up(Cin, 8)
    Hq, Wq = H + 2, W + 2                              # per-parity output size
    Hpad, Wpad = H + 6, W + 6                          # input padded by 3 each side
    M = Hq * Wpad
    taps = [(th, tw) for th in range(5) for tw in range(5)]
    shifts = [th * Wpad + tw for th, tw in taps]
    need = M + max(shifts)
    xp = jnp.pad(x_nchw, ((0, 0), (0, Cin_p - Cin), (3, 3), (3, 3)))
    flat_len = Hpad * Wpad
    xflat = xp.reshape(N, Cin_p, flat_len)
    if need > flat_len:
        xflat = jnp.pad(xflat, ((0, 0), (0, 0), (0, need - flat_len)))
    # Stacked weight: rows = (rh*2+rw)*Cout + o ; cols = tap*Cin_p + c ;
    # unused taps of a parity stay zero.
    w_flip = w_torch[:, :, ::-1, ::-1]
    Wst = jnp.zeros((4 * Cout, 25 * Cin_p), jnp.float32)
    for rh in range(2):
        for rw in range(2):
            r0 = (rh * 2 + rw) * Cout
            for ti, (th, tw) in enumerate(taps):
                mh, mw = th - rh, tw - rw
                if 0 <= mh <= 3 and 0 <= mw <= 3:
                    blk = jnp.transpose(w_flip[:, :, 2 * mh + rh, 2 * mw + rw])
                    Wst = Wst.at[r0:r0 + Cout, ti * Cin_p:ti * Cin_p + Cin].set(blk)
    bst = jnp.tile(b, 4)                               # bias per (parity, channel) row
    out = tap_conv(xflat, Wst, bst, shifts=shifts, cin=Cin_p, m=M, relu=False,
                   out_dtype=out_dtype)                # (N, 4*Cout, M)
    out = out.reshape(N, 2, 2, Cout, Hq, Wpad)[..., :Wq]
    return out


def pixel_shuffle(yp):
    """(N, r, r, C, Hq, Wq) -> (N, C, r*Hq, r*Wq); only used between stacked
    deconv layers (the last one feeds the resize in parity-packed form)."""
    N, r, _, C, Hq, Wq = yp.shape
    y = jnp.transpose(yp, (0, 3, 4, 1, 5, 2))          # (N, C, q, rh, p, rw)
    return y.reshape(N, C, r * Hq, r * Wq)


def _bilinear_matrix(out_size, in_size):
    """Row-stochastic matrix matching F.interpolate(bilinear, align_corners=False)."""
    scale = in_size / out_size
    dst = jnp.arange(out_size, dtype=jnp.float32)
    src = jnp.maximum((dst + 0.5) * scale - 0.5, 0.0)
    i0 = jnp.minimum(jnp.floor(src).astype(jnp.int32), in_size - 1)
    i1 = jnp.minimum(i0 + 1, in_size - 1)
    w1 = src - i0.astype(jnp.float32)
    w0 = 1.0 - w1
    rows = jnp.arange(out_size)
    A = jnp.zeros((out_size, in_size), jnp.float32)
    A = A.at[rows, i0].add(w0)
    A = A.at[rows, i1].add(w1)
    return A


def bilinear_resize_grouped(yp, out_hw):
    """Separable bilinear resize consuming the parity-packed tensor directly:
    the pixel-shuffle is folded into the column ordering of Ah / Aw, so the
    upsampled tensor is never materialized.  bf16 GEMM inputs, f32 final store."""
    N, r, r2, C, Hq, Wq = yp.shape
    assert r == r2
    Ho, Wo = out_hw
    Ah = _bilinear_matrix(Ho, r * Hq)
    Aw = _bilinear_matrix(Wo, r * Wq)
    # Column (rh*Hq + q) of AhP multiplies logical input row (r*q + rh).
    AhP = jnp.transpose(Ah.reshape(Ho, Hq, r), (0, 2, 1)).reshape(Ho, r * Hq)
    AwP = jnp.transpose(Aw.reshape(Wo, Wq, r), (0, 2, 1)).reshape(Wo, r * Wq)
    # contract over (rh, q): lanes = (n, rw, c, p)
    y1 = jnp.transpose(yp, (1, 4, 0, 2, 3, 5)).reshape(r * Hq, N * r * C * Wq)
    z = gemm_T(AhP, y1, jnp.zeros((Ho,), jnp.float32), relu=False,
               out_dtype=jnp.bfloat16)
    z = z.reshape(Ho, N, r, C, Wq)
    # contract over (rw, p): lanes = (n, c, i)
    z2 = jnp.transpose(z, (2, 4, 1, 3, 0)).reshape(r * Wq, N * C * Ho)
    o = gemm_T(AwP, z2, jnp.zeros((Wo,), jnp.float32), relu=False,
               out_dtype=jnp.float32)
    return jnp.transpose(o.reshape(Wo, N, C, Ho), (1, 2, 3, 0))   # (N, C, Ho, Wo)


# ---------------------------------------------------------------------------
# Module: parameters + forward
# ---------------------------------------------------------------------------
def init_params(key, in_channels, conv_out_channels, deconv_out_channels):
    """Deterministic kaiming_normal(mode='fan_out') weights, zero biases."""
    conv_params, deconv_params = [], []
    c = in_channels
    for cout in conv_out_channels:
        key, sub = jax.random.split(key)
        fan_out = cout * 3 * 3
        w = jax.random.normal(sub, (cout, c, 3, 3), jnp.float32) * (2.0 / fan_out) ** 0.5
        conv_params.append((w, jnp.zeros((cout,), jnp.float32)))
        c = cout
    for cout in deconv_out_channels:
        key, sub = jax.random.split(key)
        fan_out = c * 8 * 8          # torch fan_out for weight shape (Cin, Cout, 8, 8)
        w = jax.random.normal(sub, (c, cout, 8, 8), jnp.float32) * (2.0 / fan_out) ** 0.5
        deconv_params.append((w, jnp.zeros((cout,), jnp.float32)))
        c = cout
    return conv_params, deconv_params


def forward(x_nchw, conv_params, deconv_params, output_size):
    x = x_nchw.astype(jnp.bfloat16)                    # NCHW stays channel-major
    for w, b in conv_params:
        x = conv2d_relu(x, w, b)
    if deconv_params:
        yp = None
        for idx, (w, b) in enumerate(deconv_params):
            yp = conv_transpose2d_subpixel(x, w, b)    # parity-packed, bf16
            if idx < len(deconv_params) - 1:
                x = pixel_shuffle(yp)                  # only between stacked deconvs
        return bilinear_resize_grouped(yp, output_size)
    # No deconv blocks: resize the conv output directly (r = 1 "parity").
    return bilinear_resize_grouped(x[:, None, None], output_size)


# ---------------------------------------------------------------------------
# Pure-JAX (XLA, f32) reference for a sanity check
# ---------------------------------------------------------------------------
def reference_forward(x_nchw, conv_params, deconv_params, output_size):
    dn = ("NHWC", "HWIO", "NHWC")
    x = jnp.transpose(x_nchw, (0, 2, 3, 1))
    for w, b in conv_params:
        w_hwio = jnp.transpose(w, (2, 3, 1, 0))
        x = jax.lax.conv_general_dilated(
            x, w_hwio, (1, 1), [(1, 1), (1, 1)], dimension_numbers=dn,
            precision=jax.lax.Precision.HIGHEST)
        x = jax.nn.relu(x + b)
    for w, b in deconv_params:
        K = w.shape[2]
        w_hwio = jnp.transpose(jnp.flip(w, (2, 3)), (2, 3, 0, 1))
        pad = K - 1 - 1
        x = jax.lax.conv_general_dilated(
            x, w_hwio, (1, 1), [(pad, pad), (pad, pad)], lhs_dilation=(2, 2),
            dimension_numbers=dn, precision=jax.lax.Precision.HIGHEST)
        x = x + b
    Ah = _bilinear_matrix(output_size[0], x.shape[1])
    Aw = _bilinear_matrix(output_size[1], x.shape[2])
    y = jnp.einsum("oh,nhwc->nowc", Ah, x, precision=jax.lax.Precision.HIGHEST)
    z = jnp.einsum("pw,nowc->nopc", Aw, y, precision=jax.lax.Precision.HIGHEST)
    return jnp.transpose(z, (0, 3, 1, 2))


if __name__ == "__main__":
    # Small, deterministic configuration consistent with the module defaults:
    #   conv blocks:  Conv2d(k=3, s=1, p=1) + ReLU, out_channels = 8, 8
    #   deconv block: ConvTranspose2d(k=8, s=2, p=1), out_channels = 6
    #   output_size = (24, 24)
    key = jax.random.PRNGKey(0)
    key, xkey = jax.random.split(key)
    x = jax.random.normal(xkey, (2, 4, 16, 16), jnp.float32)  # NCHW

    conv_params, deconv_params = init_params(
        key, in_channels=4, conv_out_channels=[8, 8], deconv_out_channels=[6])
    output_size = (24, 24)

    fwd = jax.jit(functools.partial(forward, output_size=output_size))
    out = jax.block_until_ready(fwd(x, conv_params, deconv_params))
    assert out.shape == (2, 6, 24, 24), out.shape
    assert bool(jnp.all(jnp.isfinite(out)))

    ref = jax.block_until_ready(
        reference_forward(x, conv_params, deconv_params, output_size))
    max_err = float(jnp.max(jnp.abs(out.astype(jnp.float32) - ref)))
    denom = float(jnp.max(jnp.abs(ref))) + 1e-6
    # bf16 MXU inputs with f32 accumulation throughout (incl. the bf16 resize
    # GEMMs): typical normalized max error ~1e-2; 3e-2 catches structural bugs.
    if max_err / denom > 3e-2:
        raise AssertionError(
            f"mismatch vs reference: max_err={max_err}, rel={max_err / denom}")

    print("KERNEL_OK")
</pallas_src>

<mosaic_0001>
module attributes {stable_mosaic.version = 11 : i64} {
  func.func @_tap_conv_kernel(%arg0: i32, %arg1: memref<1x8x326xbf16, #tpu.memory_space<vmem>>, %arg2: memref<8x72xbf16, #tpu.memory_space<vmem>>, %arg3: memref<8x1xf32, #tpu.memory_space<vmem>>, %arg4: memref<1x8x288xbf16, #tpu.memory_space<vmem>>) attributes {dimension_semantics = [#tpu.dimension_semantics<parallel>], iteration_bounds = array<i64: 2>, scalar_prefetch = 0 : i64, scratch_operands = 0 : i64, tpu.core_type = #tpu.core_type<tc>, window_params = [{transform_indices = @transform_0, window_bounds = array<i64: 1, 8, 326>}, {pipeline_mode = #tpu.pipeline_mode<synchronous>, transform_indices = @transform_1, window_bounds = array<i64: 8, 72>}, {pipeline_mode = #tpu.pipeline_mode<synchronous>, transform_indices = @transform_2, window_bounds = array<i64: 8, 1>}, {transform_indices = @transform_3, window_bounds = array<i64: 1, 8, 288>}]} {
    %c0 = arith.constant 0 : index
    %c0_0 = arith.constant 0 : index
    %c0_1 = arith.constant 0 : index
    %0 = vector.load %arg1[%c0, %c0_0, %c0_1] : memref<1x8x326xbf16, #tpu.memory_space<vmem>>, vector<1x8x326xbf16>
    %1 = vector.shape_cast %0 : vector<1x8x326xbf16> to vector<8x326xbf16>
    %c0_2 = arith.constant 0 : index
    %c0_3 = arith.constant 0 : index
    %2 = vector.load %arg2[%c0_2, %c0_3] : memref<8x72xbf16, #tpu.memory_space<vmem>>, vector<8x72xbf16>
    %cst = arith.constant 0.000000e+00 : f32
    %3 = vector.broadcast %cst : f32 to vector<8x288xf32>
    %4 = vector.extract_strided_slice %1 {offsets = [0, 0], sizes = [8, 288], strides = [1, 1]} : vector<8x326xbf16> to vector<8x288xbf16>
    %5 = vector.extract_strided_slice %2 {offsets = [0, 0], sizes = [8, 8], strides = [1, 1]} : vector<8x72xbf16> to vector<8x8xbf16>
    %cst_4 = arith.constant dense<0.000000e+00> : vector<8x288xf32>
    %6 = tpu.matmul %5, %4, %cst_4 {dimension_numbers = #tpu.dot_dimension_numbers<[1], [0], [0], [1], [0, 0, 1, 1], [], []>} : vector<8x8xbf16>, vector<8x288xbf16>, vector<8x288xf32> -> vector<8x288xf32>
    %7 = arith.addf %3, %6 : vector<8x288xf32>
    %8 = vector.extract_strided_slice %1 {offsets = [0, 1], sizes = [8, 288], strides = [1, 1]} : vector<8x326xbf16> to vector<8x288xbf16>
    %9 = vector.extract_strided_slice %2 {offsets = [0, 8], sizes = [8, 8], strides = [1, 1]} : vector<8x72xbf16> to vector<8x8xbf16>
    %cst_5 = arith.constant dense<0.000000e+00> : vector<8x288xf32>
    %10 = tpu.matmul %9, %8, %cst_5 {dimension_numbers = #tpu.dot_dimension_numbers<[1], [0], [0], [1], [0, 0, 1, 1], [], []>} : vector<8x8xbf16>, vector<8x288xbf16>, vector<8x288xf32> -> vector<8x288xf32>
    %11 = arith.addf %7, %10 : vector<8x288xf32>
    %12 = vector.extract_strided_slice %1 {offsets = [0, 2], sizes = [8, 288], strides = [1, 1]} : vector<8x326xbf16> to vector<8x288xbf16>
    %13 = vector.extract_strided_slice %2 {offsets = [0, 16], sizes = [8, 8], strides = [1, 1]} : vector<8x72xbf16> to vector<8x8xbf16>
    %cst_6 = arith.constant dense<0.000000e+00> : vector<8x288xf32>
    %14 = tpu.matmul %13, %12, %cst_6 {dimension_numbers = #tpu.dot_dimension_numbers<[1], [0], [0], [1], [0, 0, 1, 1], [], []>} : vector<8x8xbf16>, vector<8x288xbf16>, vector<8x288xf32> -> vector<8x288xf32>
    %15 = arith.addf %11, %14 : vector<8x288xf32>
    %16 = vector.extract_strided_slice %1 {offsets = [0, 18], sizes = [8, 288], strides = [1, 1]} : vector<8x326xbf16> to vector<8x288xbf16>
    %17 = vector.extract_strided_slice %2 {offsets = [0, 24], sizes = [8, 8], strides = [1, 1]} : vector<8x72xbf16> to vector<8x8xbf16>
    %cst_7 = arith.constant dense<0.000000e+00> : vector<8x288xf32>
    %18 = tpu.matmul %17, %16, %cst_7 {dimension_numbers = #tpu.dot_dimension_numbers<[1], [0], [0], [1], [0, 0, 1, 1], [], []>} : vector<8x8xbf16>, vector<8x288xbf16>, vector<8x288xf32> -> vector<8x288xf32>
    %19 = arith.addf %15, %18 : vector<8x288xf32>
    %20 = vector.extract_strided_slice %1 {offsets = [0, 19], sizes = [8, 288], strides = [1, 1]} : vector<8x326xbf16> to vector<8x288xbf16>
    %21 = vector.extract_strided_slice %2 {offsets = [0, 32], sizes = [8, 8], strides = [1, 1]} : vector<8x72xbf16> to vector<8x8xbf16>
    %cst_8 = arith.constant dense<0.000000e+00> : vector<8x288xf32>
    %22 = tpu.matmul %21, %20, %cst_8 {dimension_numbers = #tpu.dot_dimension_numbers<[1], [0], [0], [1], [0, 0, 1, 1], [], []>} : vector<8x8xbf16>, vector<8x288xbf16>, vector<8x288xf32> -> vector<8x288xf32>
    %23 = arith.addf %19, %22 : vector<8x288xf32>
    %24 = vector.extract_strided_slice %1 {offsets = [0, 20], sizes = [8, 288], strides = [1, 1]} : vector<8x326xbf16> to vector<8x288xbf16>
    %25 = vector.extract_strided_slice %2 {offsets = [0, 40], sizes = [8, 8], strides = [1, 1]} : vector<8x72xbf16> to vector<8x8xbf16>
    %cst_9 = arith.constant dense<0.000000e+00> : vector<8x288xf32>
    %26 = tpu.matmul %25, %24, %cst_9 {dimension_numbers = #tpu.dot_dimension_numbers<[1], [0], [0], [1], [0, 0, 1, 1], [], []>} : vector<8x8xbf16>, vector<8x288xbf16>, vector<8x288xf32> -> vector<8x288xf32>
    %27 = arith.addf %23, %26 : vector<8x288xf32>
    %28 = vector.extract_strided_slice %1 {offsets = [0, 36], sizes = [8, 288], strides = [1, 1]} : vector<8x326xbf16> to vector<8x288xbf16>
    %29 = vector.extract_strided_slice %2 {offsets = [0, 48], sizes = [8, 8], strides = [1, 1]} : vector<8x72xbf16> to vector<8x8xbf16>
    %cst_10 = arith.constant dense<0.000000e+00> : vector<8x288xf32>
    %30 = tpu.matmul %29, %28, %cst_10 {dimension_numbers = #tpu.dot_dimension_numbers<[1], [0], [0], [1], [0, 0, 1, 1], [], []>} : vector<8x8xbf16>, vector<8x288xbf16>, vector<8x288xf32> -> vector<8x288xf32>
    %31 = arith.addf %27, %30 : vector<8x288xf32>
    %32 = vector.extract_strided_slice %1 {offsets = [0, 37], sizes = [8, 288], strides = [1, 1]} : vector<8x326xbf16> to vector<8x288xbf16>
    %33 = vector.extract_strided_slice %2 {offsets = [0, 56], sizes = [8, 8], strides = [1, 1]} : vector<8x72xbf16> to vector<8x8xbf16>
    %cst_11 = arith.constant dense<0.000000e+00> : vector<8x288xf32>
    %34 = tpu.matmul %33, %32, %cst_11 {dimension_numbers = #tpu.dot_dimension_numbers<[1], [0], [0], [1], [0, 0, 1, 1], [], []>} : vector<8x8xbf16>, vector<8x288xbf16>, vector<8x288xf32> -> vector<8x288xf32>
    %35 = arith.addf %31, %34 : vector<8x288xf32>
    %36 = vector.extract_strided_slice %1 {offsets = [0, 38], sizes = [8, 288], strides = [1, 1]} : vector<8x326xbf16> to vector<8x288xbf16>
    %37 = vector.extract_strided_slice %2 {offsets = [0, 64], sizes = [8, 8], strides = [1, 1]} : vector<8x72xbf16> to vector<8x8xbf16>
    %cst_12 = arith.constant dense<0.000000e+00> : vector<8x288xf32>
    %38 = tpu.matmul %37, %36, %cst_12 {dimension_numbers = #tpu.dot_dimension_numbers<[1], [0], [0], [1], [0, 0, 1, 1], [], []>} : vector<8x8xbf16>, vector<8x288xbf16>, vector<8x288xf32> -> vector<8x288xf32>
    %39 = arith.addf %35, %38 : vector<8x288xf32>
    %c0_13 = arith.constant 0 : index
    %c0_14 = arith.constant 0 : index
    %40 = vector.load %arg3[%c0_13, %c0_14] : memref<8x1xf32, #tpu.memory_space<vmem>>, vector<8x1xf32>
    %41 = vector.broadcast %40 : vector<8x1xf32> to vector<8x288xf32>
    %42 = arith.addf %39, %41 : vector<8x288xf32>
    %cst_15 = arith.constant 0.000000e+00 : f32
    %43 = vector.broadcast %cst_15 : f32 to vector<8x288xf32>
    %44 = arith.maximumf %42, %43 : vector<8x288xf32>
    %45 = arith.truncf %44 : vector<8x288xf32> to vector<8x288xbf16>
    %c0_16 = arith.constant 0 : index
    %c0_17 = arith.constant 0 : index
    %c0_18 = arith.constant 0 : index
    %46 = vector.load %arg4[%c0_16, %c0_17, %c0_18] : memref<1x8x288xbf16, #tpu.memory_space<vmem>>, vector<1x8x288xbf16>
    %47 = vector.shape_cast %46 : vector<1x8x288xbf16> to vector<8x288xbf16>
    %48 = vector.shape_cast %45 : vector<8x288xbf16> to vector<1x8x288xbf16>
    tpu.vector_store %arg4[%c0_16, %c0_17, %c0_18], %48 {strides = array<i32>} : memref<1x8x288xbf16, #tpu.memory_space<vmem>>, vector<1x8x288xbf16>,
    return
  }
  func.func @transform_0(%arg0: i32) -> (i32, i32, i32) {
    %c0_i32 = arith.constant 0 : i32
    %c0_i32_0 = arith.constant 0 : i32
    %c0_i32_1 = arith.constant 0 : i32
    return %arg0, %c0_i32, %c0_i32_0 : i32, i32, i32
  }
  func.func @transform_1(%arg0: i32) -> (i32, i32) {
    %c0_i32 = arith.constant 0 : i32
    %c0_i32_0 = arith.constant 0 : i32
    %c0_i32_1 = arith.constant 0 : i32
    return %c0_i32, %c0_i32_0 : i32, i32
  }
  func.func @transform_2(%arg0: i32) -> (i32, i32) {
    %c0_i32 = arith.constant 0 : i32
    %c0_i32_0 = arith.constant 0 : i32
    %c0_i32_1 = arith.constant 0 : i32
    return %c0_i32, %c0_i32_0 : i32, i32
  }
  func.func @transform_3(%arg0: i32) -> (i32, i32, i32) {
    %c0_i32 = arith.constant 0 : i32
    %c0_i32_0 = arith.constant 0 : i32
    %c0_i32_1 = arith.constant 0 : i32
    return %arg0, %c0_i32, %c0_i32_0 : i32, i32, i32
  }
}

module attributes {stable_mosaic.version = 11 : i64} {
  func.func @_tap_conv_kernel(%arg0: i32, %arg1: memref<1x8x488xbf16, #tpu.memory_space<vmem>>, %arg2: memref<24x200xbf16, #tpu.memory_space<vmem>>, %arg3: memref<24x1xf32, #tpu.memory_space<vmem>>, %arg4: memref<1x24x396xbf16, #tpu.memory_space<vmem>>) attributes {dimension_semantics = [#tpu.dimension_semantics<parallel>], iteration_bounds = array<i64: 2>, scalar_prefetch = 0 : i64, scratch_operands = 0 : i64, tpu.core_type = #tpu.core_type<tc>, window_params = [{transform_indices = @transform_0, window_bounds = array<i64: 1, 8, 488>}, {pipeline_mode = #tpu.pipeline_mode<synchronous>, transform_indices = @transform_1, window_bounds = array<i64: 24, 200>}, {pipeline_mode = #tpu.pipeline_mode<synchronous>, transform_indices = @transform_2, window_bounds = array<i64: 24, 1>}, {transform_indices = @transform_3, window_bounds = array<i64: 1, 24, 396>}]} {
    %c0 = arith.constant 0 : index
    %c0_0 = arith.constant 0 : index
    %c0_1 = arith.constant 0 : index
    %0 = vector.load %arg1[%c0, %c0_0, %c0_1] : memref<1x8x488xbf16, #tpu.memory_space<vmem>>, vector<1x8x488xbf16>
    %1 = vector.shape_cast %0 : vector<1x8x488xbf16> to vector<8x488xbf16>
    %c0_2 = arith.constant 0 : index
    %c0_3 = arith.constant 0 : index
    %2 = vector.load %arg2[%c0_2, %c0_3] : memref<24x200xbf16, #tpu.memory_space<vmem>>, vector<24x200xbf16>
    %cst = arith.constant 0.000000e+00 : f32
    %3 = vector.broadcast %cst : f32 to vector<24x396xf32>
    %4 = vector.extract_strided_slice %1 {offsets = [0, 0], sizes = [8, 396], strides = [1, 1]} : vector<8x488xbf16> to vector<8x396xbf16>
    %5 = vector.extract_strided_slice %2 {offsets = [0, 0], sizes = [24, 8], strides = [1, 1]} : vector<24x200xbf16> to vector<24x8xbf16>
    %cst_4 = arith.constant dense<0.000000e+00> : vector<24x396xf32>
    %6 = tpu.matmul %5, %4, %cst_4 {dimension_numbers = #tpu.dot_dimension_numbers<[1], [0], [0], [1], [0, 0, 1, 1], [], []>} : vector<24x8xbf16>, vector<8x396xbf16>, vector<24x396xf32> -> vector<24x396xf32>
    %7 = arith.addf %3, %6 : vector<24x396xf32>
    %8 = vector.extract_strided_slice %1 {offsets = [0, 1], sizes = [8, 396], strides = [1, 1]} : vector<8x488xbf16> to vector<8x396xbf16>
    %9 = vector.extract_strided_slice %2 {offsets = [0, 8], sizes = [24, 8], strides = [1, 1]} : vector<24x200xbf16> to vector<24x8xbf16>
    %cst_5 = arith.constant dense<0.000000e+00> : vector<24x396xf32>
    %10 = tpu.matmul %9, %8, %cst_5 {dimension_numbers = #tpu.dot_dimension_numbers<[1], [0], [0], [1], [0, 0, 1, 1], [], []>} : vector<24x8xbf16>, vector<8x396xbf16>, vector<24x396xf32> -> vector<24x396xf32>
    %11 = arith.addf %7, %10 : vector<24x396xf32>
    %12 = vector.extract_strided_slice %1 {offsets = [0, 2], sizes = [8, 396], strides = [1, 1]} : vector<8x488xbf16> to vector<8x396xbf16>
    %13 = vector.extract_strided_slice %2 {offsets = [0, 16], sizes = [24, 8], strides = [1, 1]} : vector<24x200xbf16> to vector<24x8xbf16>
    %cst_6 = arith.constant dense<0.000000e+00> : vector<24x396xf32>
    %14 = tpu.matmul %13, %12, %cst_6 {dimension_numbers = #tpu.dot_dimension_numbers<[1], [0], [0], [1], [0, 0, 1, 1], [], []>} : vector<24x8xbf16>, vector<8x396xbf16>, vector<24x396xf32> -> vector<24x396xf32>
    %15 = arith.addf %11, %14 : vector<24x396xf32>
    %16 = vector.extract_strided_slice %1 {offsets = [0, 3], sizes = [8, 396], strides = [1, 1]} : vector<8x488xbf16> to vector<8x396xbf16>
    %17 = vector.extract_strided_slice %2 {offsets = [0, 24], sizes = [24, 8], strides = [1, 1]} : vector<24x200xbf16> to vector<24x8xbf16>
    %cst_7 = arith.constant dense<0.000000e+00> : vector<24x396xf32>
    %18 = tpu.matmul %17, %16, %cst_7 {dimension_numbers = #tpu.dot_dimension_numbers<[1], [0], [0], [1], [0, 0, 1, 1], [], []>} : vector<24x8xbf16>, vector<8x396xbf16>, vector<24x396xf32> -> vector<24x396xf32>
    %19 = arith.addf %15, %18 : vector<24x396xf32>
    %20 = vector.extract_strided_slice %1 {offsets = [0, 4], sizes = [8, 396], strides = [1, 1]} : vector<8x488xbf16> to vector<8x396xbf16>
    %21 = vector.extract_strided_slice %2 {offsets = [0, 32], sizes = [24, 8], strides = [1, 1]} : vector<24x200xbf16> to vector<24x8xbf16>
    %cst_8 = arith.constant dense<0.000000e+00> : vector<24x396xf32>
    %22 = tpu.matmul %21, %20, %cst_8 {dimension_numbers = #tpu.dot_dimension_numbers<[1], [0], [0], [1], [0, 0, 1, 1], [], []>} : vector<24x8xbf16>, vector<8x396xbf16>, vector<24x396xf32> -> vector<24x396xf32>
    %23 = arith.addf %19, %22 : vector<24x396xf32>
    %24 = vector.extract_strided_slice %1 {offsets = [0, 22], sizes = [8, 396], strides = [1, 1]} : vector<8x488xbf16> to vector<8x396xbf16>
    %25 = vector.extract_strided_slice %2 {offsets = [0, 40], sizes = [24, 8], strides = [1, 1]} : vector<24x200xbf16> to vector<24x8xbf16>
    %cst_9 = arith.constant dense<0.000000e+00> : vector<24x396xf32>
    %26 = tpu.matmul %25, %24, %cst_9 {dimension_numbers = #tpu.dot_dimension_numbers<[1], [0], [0], [1], [0, 0, 1, 1], [], []>} : vector<24x8xbf16>, vector<8x396xbf16>, vector<24x396xf32> -> vector<24x396xf32>
    %27 = arith.addf %23, %26 : vector<24x396xf32>
    %28 = vector.extract_strided_slice %1 {offsets = [0, 23], sizes = [8, 396], strides = [1, 1]} : vector<8x488xbf16> to vector<8x396xbf16>
    %29 = vector.extract_strided_slice %2 {offsets = [0, 48], sizes = [24, 8], strides = [1, 1]} : vector<24x200xbf16> to vector<24x8xbf16>
    %cst_10 = arith.constant dense<0.000000e+00> : vector<24x396xf32>
    %30 = tpu.matmul %29, %28, %cst_10 {dimension_numbers = #tpu.dot_dimension_numbers<[1], [0], [0], [1], [0, 0, 1, 1], [], []>} : vector<24x8xbf16>, vector<8x396xbf16>, vector<24x396xf32> -> vector<24x396xf32>
    %31 = arith.addf %27, %30 : vector<24x396xf32>
    %32 = vector.extract_strided_slice %1 {offsets = [0, 24], sizes = [8, 396], strides = [1, 1]} : vector<8x488xbf16> to vector<8x396xbf16>
    %33 = vector.extract_strided_slice %2 {offsets = [0, 56], sizes = [24, 8], strides = [1, 1]} : vector<24x200xbf16> to vector<24x8xbf16>
    %cst_11 = arith.constant dense<0.000000e+00> : vector<24x396xf32>
    %34 = tpu.matmul %33, %32, %cst_11 {dimension_numbers = #tpu.dot_dimension_numbers<[1], [0], [0], [1], [0, 0, 1, 1], [], []>} : vector<24x8xbf16>, vector<8x396xbf16>, vector<24x396xf32> -> vector<24x396xf32>
    %35 = arith.addf %31, %34 : vector<24x396xf32>
    %36 = vector.extract_strided_slice %1 {offsets = [0, 25], sizes = [8, 396], strides = [1, 1]} : vector<8x488xbf16> to vector<8x396xbf16>
    %37 = vector.extract_strided_slice %2 {offsets = [0, 64], sizes = [24, 8], strides = [1, 1]} : vector<24x200xbf16> to vector<24x8xbf16>
    %cst_12 = arith.constant dense<0.000000e+00> : vector<24x396xf32>
    %38 = tpu.matmul %37, %36, %cst_12 {dimension_numbers = #tpu.dot_dimension_numbers<[1], [0], [0], [1], [0, 0, 1, 1], [], []>} : vector<24x8xbf16>, vector<8x396xbf16>, vector<24x396xf32> -> vector<24x396xf32>
    %39 = arith.addf %35, %38 : vector<24x396xf32>
    %40 = vector.extract_strided_slice %1 {offsets = [0, 26], sizes = [8, 396], strides = [1, 1]} : vector<8x488xbf16> to vector<8x396xbf16>
    %41 = vector.extract_strided_slice %2 {offsets = [0, 72], sizes = [24, 8], strides = [1, 1]} : vector<24x200xbf16> to vector<24x8xbf16>
    %cst_13 = arith.constant dense<0.000000e+00> : vector<24x396xf32>
    %42 = tpu.matmul %41, %40, %cst_13 {dimension_numbers = #tpu.dot_dimension_numbers<[1], [0], [0], [1], [0, 0, 1, 1], [], []>} : vector<24x8xbf16>, vector<8x396xbf16>, vector<24x396xf32> -> vector<24x396xf32>
    %43 = arith.addf %39, %42 : vector<24x396xf32>
    %44 = vector.extract_strided_slice %1 {offsets = [0, 44], sizes = [8, 396], strides = [1, 1]} : vector<8x488xbf16> to vector<8x396xbf16>
    %45 = vector.extract_strided_slice %2 {offsets = [0, 80], sizes = [24, 8], strides = [1, 1]} : vector<24x200xbf16> to vector<24x8xbf16>
    %cst_14 = arith.constant dense<0.000000e+00> : vector<24x396xf32>
    %46 = tpu.matmul %45, %44, %cst_14 {dimension_numbers = #tpu.dot_dimension_numbers<[1], [0], [0], [1], [0, 0, 1, 1], [], []>} : vector<24x8xbf16>, vector<8x396xbf16>, vector<24x396xf32> -> vector<24x396xf32>
    %47 = arith.addf %43, %46 : vector<24x396xf32>
    %48 = vector.extract_strided_slice %1 {offsets = [0, 45], sizes = [8, 396], strides = [1, 1]} : vector<8x488xbf16> to vector<8x396xbf16>
    %49 = vector.extract_strided_slice %2 {offsets = [0, 88], sizes = [24, 8], strides = [1, 1]} : vector<24x200xbf16> to vector<24x8xbf16>
    %cst_15 = arith.constant dense<0.000000e+00> : vector<24x396xf32>
    %50 = tpu.matmul %49, %48, %cst_15 {dimension_numbers = #tpu.dot_dimension_numbers<[1], [0], [0], [1], [0, 0, 1, 1], [], []>} : vector<24x8xbf16>, vector<8x396xbf16>, vector<24x396xf32> -> vector<24x396xf32>
    %51 = arith.addf %47, %50 : vector<24x396xf32>
    %52 = vector.extract_strided_slice %1 {offsets = [0, 46], sizes = [8, 396], strides = [1, 1]} : vector<8x488xbf16> to vector<8x396xbf16>
    %53 = vector.extract_strided_slice %2 {offsets = [0, 96], sizes = [24, 8], strides = [1, 1]} : vector<24x200xbf16> to vector<24x8xbf16>
    %cst_16 = arith.constant dense<0.000000e+00> : vector<24x396xf32>
    %54 = tpu.matmul %53, %52, %cst_16 {dimension_numbers = #tpu.dot_dimension_numbers<[1], [0], [0], [1], [0, 0, 1, 1], [], []>} : vector<24x8xbf16>, vector<8x396xbf16>, vector<24x396xf32> -> vector<24x396xf32>
    %55 = arith.addf %51, %54 : vector<24x396xf32>
    %56 = vector.extract_strided_slice %1 {offsets = [0, 47], sizes = [8, 396], strides = [1, 1]} : vector<8x488xbf16> to vector<8x396xbf16>
    %57 = vector.extract_strided_slice %2 {offsets = [0, 104], sizes = [24, 8], strides = [1, 1]} : vector<24x200xbf16> to vector<24x8xbf16>
    %cst_17 = arith.constant dense<0.000000e+00> : vector<24x396xf32>
    %58 = tpu.matmul %57, %56, %cst_17 {dimension_numbers = #tpu.dot_dimension_numbers<[1], [0], [0], [1], [0, 0, 1, 1], [], []>} : vector<24x8xbf16>, vector<8x396xbf16>, vector<24x396xf32> -> vector<24x396xf32>
    %59 = arith.addf %55, %58 : vector<24x396xf32>
    %60 = vector.extract_strided_slice %1 {offsets = [0, 48], sizes = [8, 396], strides = [1, 1]} : vector<8x488xbf16> to vector<8x396xbf16>
    %61 = vector.extract_strided_slice %2 {offsets = [0, 112], sizes = [24, 8], strides = [1, 1]} : vector<24x200xbf16> to vector<24x8xbf16>
    %cst_18 = arith.constant dense<0.000000e+00> : vector<24x396xf32>
    %62 = tpu.matmul %61, %60, %cst_18 {dimension_numbers = #tpu.dot_dimension_numbers<[1], [0], [0], [1], [0, 0, 1, 1], [], []>} : vector<24x8xbf16>, vector<8x396xbf16>, vector<24x396xf32> -> vector<24x396xf32>
    %63 = arith.addf %59, %62 : vector<24x396xf32>
    %64 = vector.extract_strided_slice %1 {offsets = [0, 66], sizes = [8, 396], strides = [1, 1]} : vector<8x488xbf16> to vector<8x396xbf16>
    %65 = vector.extract_strided_slice %2 {offsets = [0, 120], sizes = [24, 8], strides = [1, 1]} : vector<24x200xbf16> to vector<24x8xbf16>
    %cst_19 = arith.constant dense<0.000000e+00> : vector<24x396xf32>
    %66 = tpu.matmul %65, %64, %cst_19 {dimension_numbers = #tpu.dot_dimension_numbers<[1], [0], [0], [1], [0, 0, 1, 1], [], []>} : vector<24x8xbf16>, vector<8x396xbf16>, vector<24x396xf32> -> vector<24x396xf32>
    %67 = arith.addf %63, %66 : vector<24x396xf32>
    %68 = vector.extract_strided_slice %1 {offsets = [0, 67], sizes = [8, 396], strides = [1, 1]} : vector<8x488xbf16> to vector<8x396xbf16>
    %69 = vector.extract_strided_slice %2 {offsets = [0, 128], sizes = [24, 8], strides = [1, 1]} : vector<24x200xbf16> to vector<24x8xbf16>
    %cst_20 = arith.constant dense<0.000000e+00> : vector<24x396xf32>
    %70 = tpu.matmul %69, %68, %cst_20 {dimension_numbers = #tpu.dot_dimension_numbers<[1], [0], [0], [1], [0, 0, 1, 1], [], []>} : vector<24x8xbf16>, vector<8x396xbf16>, vector<24x396xf32> -> vector<24x396xf32>
    %71 = arith.addf %67, %70 : vector<24x396xf32>
    %72 = vector.extract_strided_slice %1 {offsets = [0, 68], sizes = [8, 396], strides = [1, 1]} : vector<8x488xbf16> to vector<8x396xbf16>
    %73 = vector.extract_strided_slice %2 {offsets = [0, 136], sizes = [24, 8], strides = [1, 1]} : vector<24x200xbf16> to vector<24x8xbf16>
    %cst_21 = arith.constant dense<0.000000e+00> : vector<24x396xf32>
    %74 = tpu.matmul %73, %72, %cst_21 {dimension_numbers = #tpu.dot_dimension_numbers<[1], [0], [0], [1], [0, 0, 1, 1], [], []>} : vector<24x8xbf16>, vector<8x396xbf16>, vector<24x396xf32> -> vector<24x396xf32>
    %75 = arith.addf %71, %74 : vector<24x396xf32>
    %76 = vector.extract_strided_slice %1 {offsets = [0, 69], sizes = [8, 396], strides = [1, 1]} : vector<8x488xbf16> to vector<8x396xbf16>
    %77 = vector.extract_strided_slice %2 {offsets = [0, 144], sizes = [24, 8], strides = [1, 1]} : vector<24x200xbf16> to vector<24x8xbf16>
    %cst_22 = arith.constant dense<0.000000e+00> : vector<24x396xf32>
    %78 = tpu.matmul %77, %76, %cst_22 {dimension_numbers = #tpu.dot_dimension_numbers<[1], [0], [0], [1], [0, 0, 1, 1], [], []>} : vector<24x8xbf16>, vector<8x396xbf16>, vector<24x396xf32> -> vector<24x396xf32>
    %79 = arith.addf %75, %78 : vector<24x396xf32>
    %80 = vector.extract_strided_slice %1 {offsets = [0, 70], sizes = [8, 396], strides = [1, 1]} : vector<8x488xbf16> to vector<8x396xbf16>
    %81 = vector.extract_strided_slice %2 {offsets = [0, 152], sizes = [24, 8], strides = [1, 1]} : vector<24x200xbf16> to vector<24x8xbf16>
    %cst_23 = arith.constant dense<0.000000e+00> : vector<24x396xf32>
    %82 = tpu.matmul %81, %80, %cst_23 {dimension_numbers = #tpu.dot_dimension_numbers<[1], [0], [0], [1], [0, 0, 1, 1], [], []>} : vector<24x8xbf16>, vector<8x396xbf16>, vector<24x396xf32> -> vector<24x396xf32>
    %83 = arith.addf %79, %82 : vector<24x396xf32>
    %84 = vector.extract_strided_slice %1 {offsets = [0, 88], sizes = [8, 396], strides = [1, 1]} : vector<8x488xbf16> to vector<8x396xbf16>
    %85 = vector.extract_strided_slice %2 {offsets = [0, 160], sizes = [24, 8], strides = [1, 1]} : vector<24x200xbf16> to vector<24x8xbf16>
    %cst_24 = arith.constant dense<0.000000e+00> : vector<24x396xf32>
    %86 = tpu.matmul %85, %84, %cst_24 {dimension_numbers = #tpu.dot_dimension_numbers<[1], [0], [0], [1], [0, 0, 1, 1], [], []>} : vector<24x8xbf16>, vector<8x396xbf16>, vector<24x396xf32> -> vector<24x396xf32>
    %87 = arith.addf %83, %86 : vector<24x396xf32>
    %88 = vector.extract_strided_slice %1 {offsets = [0, 89], sizes = [8, 396], strides = [1, 1]} : vector<8x488xbf16> to vector<8x396xbf16>
    %89 = vector.extract_strided_slice %2 {offsets = [0, 168], sizes = [24, 8], strides = [1, 1]} : vector<24x200xbf16> to vector<24x8xbf16>
    %cst_25 = arith.constant dense<0.000000e+00> : vector<24x396xf32>
    %90 = tpu.matmul %89, %88, %cst_25 {dimension_numbers = #tpu.dot_dimension_numbers<[1], [0], [0], [1], [0, 0, 1, 1], [], []>} : vector<24x8xbf16>, vector<8x396xbf16>, vector<24x396xf32> -> vector<24x396xf32>
    %91 = arith.addf %87, %90 : vector<24x396xf32>
    %92 = vector.extract_strided_slice %1 {offsets = [0, 90], sizes = [8, 396], strides = [1, 1]} : vector<8x488xbf16> to vector<8x396xbf16>
    %93 = vector.extract_strided_slice %2 {offsets = [0, 176], sizes = [24, 8], strides = [1, 1]} : vector<24x200xbf16> to vector<24x8xbf16>
    %cst_26 = arith.constant dense<0.000000e+00> : vector<24x396xf32>
    %94 = tpu.matmul %93, %92, %cst_26 {dimension_numbers = #tpu.dot_dimension_numbers<[1], [0], [0], [1], [0, 0, 1, 1], [], []>} : vector<24x8xbf16>, vector<8x396xbf16>, vector<24x396xf32> -> vector<24x396xf32>
    %95 = arith.addf %91, %94 : vector<24x396xf32>
    %96 = vector.extract_strided_slice %1 {offsets = [0, 91], sizes = [8, 396], strides = [1, 1]} : vector<8x488xbf16> to vector<8x396xbf16>
    %97 = vector.extract_strided_slice %2 {offsets = [0, 184], sizes = [24, 8], strides = [1, 1]} : vector<24x200xbf16> to vector<24x8xbf16>
    %cst_27 = arith.constant dense<0.000000e+00> : vector<24x396xf32>
    %98 = tpu.matmul %97, %96, %cst_27 {dimension_numbers = #tpu.dot_dimension_numbers<[1], [0], [0], [1], [0, 0, 1, 1], [], []>} : vector<24x8xbf16>, vector<8x396xbf16>, vector<24x396xf32> -> vector<24x396xf32>
    %99 = arith.addf %95, %98 : vector<24x396xf32>
    %100 = vector.extract_strided_slice %1 {offsets = [0, 92], sizes = [8, 396], strides = [1, 1]} : vector<8x488xbf16> to vector<8x396xbf16>
    %101 = vector.extract_strided_slice %2 {offsets = [0, 192], sizes = [24, 8], strides = [1, 1]} : vector<24x200xbf16> to vector<24x8xbf16>
    %cst_28 = arith.constant dense<0.000000e+00> : vector<24x396xf32>
    %102 = tpu.matmul %101, %100, %cst_28 {dimension_numbers = #tpu.dot_dimension_numbers<[1], [0], [0], [1], [0, 0, 1, 1], [], []>} : vector<24x8xbf16>, vector<8x396xbf16>, vector<24x396xf32> -> vector<24x396xf32>
    %103 = arith.addf %99, %102 : vector<24x396xf32>
    %c0_29 = arith.constant 0 : index
    %c0_30 = arith.constant 0 : index
    %104 = vector.load %arg3[%c0_29, %c0_30] : memref<24x1xf32, #tpu.memory_space<vmem>>, vector<24x1xf32>
    %105 = vector.broadcast %104 : vector<24x1xf32> to vector<24x396xf32>
    %106 = arith.addf %103, %105 : vector<24x396xf32>
    %107 = arith.truncf %106 : vector<24x396xf32> to vector<24x396xbf16>
    %c0_31 = arith.constant 0 : index
    %c0_32 = arith.constant 0 : index
    %c0_33 = arith.constant 0 : index
    %108 = vector.load %arg4[%c0_31, %c0_32, %c0_33] : memref<1x24x396xbf16, #tpu.memory_space<vmem>>, vector<1x24x396xbf16>
    %109 = vector.shape_cast %108 : vector<1x24x396xbf16> to vector<24x396xbf16>
    %110 = vector.shape_cast %107 : vector<24x396xbf16> to vector<1x24x396xbf16>
    tpu.vector_store %arg4[%c0_31, %c0_32, %c0_33], %110 {strides = array<i32>} : memref<1x24x396xbf16, #tpu.memory_space<vmem>>, vector<1x24x396xbf16>,
    return
  }
  func.func @transform_0(%arg0: i32) -> (i32, i32, i32) {
    %c0_i32 = arith.constant 0 : i32
    %c0_i32_0 = arith.constant 0 : i32
    %c0_i32_1 = arith.constant 0 : i32
    return %arg0, %c0_i32, %c0_i32_0 : i32, i32, i32
  }
  func.func @transform_1(%arg0: i32) -> (i32, i32) {
    %c0_i32 = arith.constant 0 : i32
    %c0_i32_0 = arith.constant 0 : i32
    %c0_i32_1 = arith.constant 0 : i32
    return %c0_i32, %c0_i32_0 : i32, i32
  }
  func.func @transform_2(%arg0: i32) -> (i32, i32) {
    %c0_i32 = arith.constant 0 : i32
    %c0_i32_0 = arith.constant 0 : i32
    %c0_i32_1 = arith.constant 0 : i32
    return %c0_i32, %c0_i32_0 : i32, i32
  }
  func.func @transform_3(%arg0: i32) -> (i32, i32, i32) {
    %c0_i32 = arith.constant 0 : i32
    %c0_i32_0 = arith.constant 0 : i32
    %c0_i32_1 = arith.constant 0 : i32
    return %arg0, %c0_i32, %c0_i32_0 : i32, i32, i32
  }
}

module attributes {stable_mosaic.version = 11 : i64} {
  func.func @_gemm_bias_kernel(%arg0: i32, %arg1: memref<24x36xbf16, #tpu.memory_space<vmem>>, %arg2: memref<36x256xbf16, #tpu.memory_space<vmem>>, %arg3: memref<24x1xf32, #tpu.memory_space<vmem>>, %arg4: memref<24x256xbf16, #tpu.memory_space<vmem>>) attributes {dimension_semantics = [#tpu.dimension_semantics<parallel>], iteration_bounds = array<i64: 2>, scalar_prefetch = 0 : i64, scratch_operands = 0 : i64, tpu.core_type = #tpu.core_type<tc>, window_params = [{pipeline_mode = #tpu.pipeline_mode<synchronous>, transform_indices = @transform_0, window_bounds = array<i64: 24, 36>}, {transform_indices = @transform_1, window_bounds = array<i64: 36, 256>}, {pipeline_mode = #tpu.pipeline_mode<synchronous>, transform_indices = @transform_2, window_bounds = array<i64: 24, 1>}, {transform_indices = @transform_3, window_bounds = array<i64: 24, 256>}]} {
    %c0 = arith.constant 0 : index
    %c0_0 = arith.constant 0 : index
    %0 = vector.load %arg1[%c0, %c0_0] : memref<24x36xbf16, #tpu.memory_space<vmem>>, vector<24x36xbf16>
    %c0_1 = arith.constant 0 : index
    %c0_2 = arith.constant 0 : index
    %1 = vector.load %arg2[%c0_1, %c0_2] : memref<36x256xbf16, #tpu.memory_space<vmem>>, vector<36x256xbf16>
    %cst = arith.constant dense<0.000000e+00> : vector<24x256xf32>
    %2 = tpu.matmul %0, %1, %cst {dimension_numbers = #tpu.dot_dimension_numbers<[1], [0], [0], [1], [0, 0, 1, 1], [], []>} : vector<24x36xbf16>, vector<36x256xbf16>, vector<24x256xf32> -> vector<24x256xf32>
    %c0_3 = arith.constant 0 : index
    %c0_4 = arith.constant 0 : index
    %3 = vector.load %arg3[%c0_3, %c0_4] : memref<24x1xf32, #tpu.memory_space<vmem>>, vector<24x1xf32>
    %4 = vector.broadcast %3 : vector<24x1xf32> to vector<24x256xf32>
    %5 = arith.addf %2, %4 : vector<24x256xf32>
    %6 = arith.truncf %5 : vector<24x256xf32> to vector<24x256xbf16>
    %c0_5 = arith.constant 0 : index
    %c0_6 = arith.constant 0 : index
    %7 = vector.load %arg4[%c0_5, %c0_6] : memref<24x256xbf16, #tpu.memory_space<vmem>>, vector<24x256xbf16>
    tpu.vector_store %arg4[%c0_5, %c0_6], %6 {strides = array<i32>} : memref<24x256xbf16, #tpu.memory_space<vmem>>, vector<24x256xbf16>,
    return
  }
  func.func @transform_0(%arg0: i32) -> (i32, i32) {
    %c0_i32 = arith.constant 0 : i32
    %c0_i32_0 = arith.constant 0 : i32
    %c0_i32_1 = arith.constant 0 : i32
    return %c0_i32, %c0_i32_0 : i32, i32
  }
  func.func @transform_1(%arg0: i32) -> (i32, i32) {
    %c0_i32 = arith.constant 0 : i32
    %c0_i32_0 = arith.constant 0 : i32
    return %c0_i32, %arg0 : i32, i32
  }
  func.func @transform_2(%arg0: i32) -> (i32, i32) {
    %c0_i32 = arith.constant 0 : i32
    %c0_i32_0 = arith.constant 0 : i32
    %c0_i32_1 = arith.constant 0 : i32
    return %c0_i32, %c0_i32_0 : i32, i32
  }
  func.func @transform_3(%arg0: i32) -> (i32, i32) {
    %c0_i32 = arith.constant 0 : i32
    %c0_i32_0 = arith.constant 0 : i32
    return %c0_i32, %arg0 : i32, i32
  }
}

module attributes {stable_mosaic.version = 11 : i64} {
  func.func @_gemm_bias_kernel(%arg0: i32, %arg1: memref<24x36xbf16, #tpu.memory_space<vmem>>, %arg2: memref<36x256xbf16, #tpu.memory_space<vmem>>, %arg3: memref<24x1xf32, #tpu.memory_space<vmem>>, %arg4: memref<24x256xf32, #tpu.memory_space<vmem>>) attributes {dimension_semantics = [#tpu.dimension_semantics<parallel>], iteration_bounds = array<i64: 2>, scalar_prefetch = 0 : i64, scratch_operands = 0 : i64, tpu.core_type = #tpu.core_type<tc>, window_params = [{pipeline_mode = #tpu.pipeline_mode<synchronous>, transform_indices = @transform_0, window_bounds = array<i64: 24, 36>}, {transform_indices = @transform_1, window_bounds = array<i64: 36, 256>}, {pipeline_mode = #tpu.pipeline_mode<synchronous>, transform_indices = @transform_2, window_bounds = array<i64: 24, 1>}, {transform_indices = @transform_3, window_bounds = array<i64: 24, 256>}]} {
    %c0 = arith.constant 0 : index
    %c0_0 = arith.constant 0 : index
    %0 = vector.load %arg1[%c0, %c0_0] : memref<24x36xbf16, #tpu.memory_space<vmem>>, vector<24x36xbf16>
    %c0_1 = arith.constant 0 : index
    %c0_2 = arith.constant 0 : index
    %1 = vector.load %arg2[%c0_1, %c0_2] : memref<36x256xbf16, #tpu.memory_space<vmem>>, vector<36x256xbf16>
    %cst = arith.constant dense<0.000000e+00> : vector<24x256xf32>
    %2 = tpu.matmul %0, %1, %cst {dimension_numbers = #tpu.dot_dimension_numbers<[1], [0], [0], [1], [0, 0, 1, 1], [], []>} : vector<24x36xbf16>, vector<36x256xbf16>, vector<24x256xf32> -> vector<24x256xf32>
    %c0_3 = arith.constant 0 : index
    %c0_4 = arith.constant 0 : index
    %3 = vector.load %arg3[%c0_3, %c0_4] : memref<24x1xf32, #tpu.memory_space<vmem>>, vector<24x1xf32>
    %4 = vector.broadcast %3 : vector<24x1xf32> to vector<24x256xf32>
    %5 = arith.addf %2, %4 : vector<24x256xf32>
    %c0_5 = arith.constant 0 : index
    %c0_6 = arith.constant 0 : index
    %6 = vector.load %arg4[%c0_5, %c0_6] : memref<24x256xf32, #tpu.memory_space<vmem>>, vector<24x256xf32>
    tpu.vector_store %arg4[%c0_5, %c0_6], %5 {strides = array<i32>} : memref<24x256xf32, #tpu.memory_space<vmem>>, vector<24x256xf32>,
    return
  }
  func.func @transform_0(%arg0: i32) -> (i32, i32) {
    %c0_i32 = arith.constant 0 : i32
    %c0_i32_0 = arith.constant 0 : i32
    %c0_i32_1 = arith.constant 0 : i32
    return %c0_i32, %c0_i32_0 : i32, i32
  }
  func.func @transform_1(%arg0: i32) -> (i32, i32) {
    %c0_i32 = arith.constant 0 : i32
    %c0_i32_0 = arith.constant 0 : i32
    return %c0_i32, %arg0 : i32, i32
  }
  func.func @transform_2(%arg0: i32) -> (i32, i32) {
    %c0_i32 = arith.constant 0 : i32
    %c0_i32_0 = arith.constant 0 : i32
    %c0_i32_1 = arith.constant 0 : i32
    return %c0_i32, %c0_i32_0 : i32, i32
  }
  func.func @transform_3(%arg0: i32) -> (i32, i32) {
    %c0_i32 = arith.constant 0 : i32
    %c0_i32_0 = arith.constant 0 : i32
    return %c0_i32, %arg0 : i32, i32
  }
}

</mosaic_0001>

<llo_original>
// kernel: tile.8
$region0: #{tile.8}
  #allocation0 [shape = 's32[1]{0}', space=sflag, size = 0x4, scoped, tag = 'scoped memory for tile.8']
  %s0 = inlined_call_operand.vmem [shape: f32[6], index: 0, kind: input, shape index: {}]
  %s1 = inlined_call_operand.vmem [shape: f32[4,6], index: 1, kind: output, shape index: {}]
  // Predicated region
  $region2: #{tile.8} parent=0 // pred_check
    _
  $region3: #{tile.8} parent=0 // pred_check_branch
    %3 = sbr.rel (0) target = $region5
  $region4: #{tile.8} parent=0 // pred_region
    _
  $region5: #{tile.8} parent=0 // pred_fallthru
    _
  %v4 = vld [vmem:[%s0] ss:$0 sm:$0xff]
  %5 = vst [vmem:[%s1] sm:$0xf] %v4

// kernel: tile.0
$region0: #{tile.0}
  %s0 = inlined_call_operand.vmem [shape: f32[4,6], index: 0, kind: input, shape index: {}]
  %s1 = inlined_call_operand.vmem [shape: f32[24,1], index: 1, kind: output, shape index: {}]
  $region1: #{tile.0} parent=0
    #allocation0 [shape = 'u8[4096]{0}', space=vmem, size = 0x1000, scoped, tag = 'scoped mem for input reshape']
    %s3 = sshllo.u32 0, 4
    %v4 = vld [vmem:[%s0] sm:%s3]
    %5 = vst [vmem:[#allocation0] sm:%s3] %v4
    %v6 = vld [vmem:[#allocation0] sm:$0xf]
    %vm7 = vcmask 7168
    %8 = vst.msk [vmem:[%s1] ss:$6 sm:$0xf] %vm7, %v6
    %v9 = vld [vmem:[#allocation0] sm:$0xf]
    %10 = vrot.lane.b32.xlu0 %v9, 127
    %v11 = vpop.permute.xlu0 %10
    %vm12 = vcmask 7168
    %s13 = scalar_lea.vmem %s1, 1
    %14 = vst.msk [vmem:[%s13] ss:$6 sm:$0xf] %vm12, %v11
    %v15 = vld [vmem:[#allocation0] sm:$0xf]
    %16 = vrot.lane.b32.xlu0 %v15, 126
    %v17 = vpop.permute.xlu0 %16
    %vm18 = vcmask 7168
    %s19 = scalar_lea.vmem %s1, 2
    %20 = vst.msk [vmem:[%s19] ss:$6 sm:$0xf] %vm18, %v17
    %v21 = vld [vmem:[#allocation0] sm:$0xf]
    %22 = vrot.lane.b32.xlu0 %v21, 125
    %v23 = vpop.permute.xlu0 %22
    %vm24 = vcmask 7168
    %s25 = scalar_lea.vmem %s1, 3
    %26 = vst.msk [vmem:[%s25] ss:$6 sm:$0xf] %vm24, %v23
    %v27 = vld [vmem:[#allocation0] sm:$0xf]
    %28 = vrot.lane.b32.xlu0 %v27, 124
    %v29 = vpop.permute.xlu0 %28
    %vm30 = vcmask 7168
    %s31 = scalar_lea.vmem %s1, 4
    %32 = vst.msk [vmem:[%s31] ss:$6 sm:$0xf] %vm30, %v29
    %v33 = vld [vmem:[#allocation0] sm:$0xf]
    %34 = vrot.lane.b32.xlu0 %v33, 123
    %v35 = vpop.permute.xlu0 %34
    %vm36 = vcmask 7168
    %s37 = scalar_lea.vmem %s1, 5
    %38 = vst.msk [vmem:[%s37] ss:$6 sm:$0xf] %vm36, %v35

// kernel: forward.5
$region0: #{forward.5}
  #allocation0 [shape = 'u32[]', space=smem, size = 0x4, offset = 0x4, fixed_abs, tag = 'smem constant byte address 0x4 - core index']
  #allocation1 [shape = 'u32[144,128]{1,0:T(1,128)}', space=vmem, size = 0x12000, scoped, tag = 'internal scratch']
  %s0 = inlined_call_operand.vmem [shape: bf16[2,8,326], index: 0, kind: input, shape index: {}]
  %s1 = inlined_call_operand.vmem [shape: bf16[8,72], index: 1, kind: input, shape index: {}]
  %s2 = inlined_call_operand.vmem [shape: f32[8,1], index: 2, kind: input, shape index: {}]
  %s3 = inlined_call_operand.vmem [shape: bf16[2,8,288], index: 3, kind: output, shape index: {}]
  %s4 = sld [smem:[#allocation0]]
  $region45: #{forward.5} parent=0
    _
  %s6 = ssub.s32 1, %s4
  %s7 = scalar_select 0, %s6, %s4
  loop: start=0, step=1, limit=4
  $region2: #{forward.5} parent=0 // loop_pre_header
    _
  $region3: #{forward.5} parent=0 // loop_header
    %s9 = sphi 0, %s13
    %p10 = scmp.ge.s32.totalorder %s9, 4
    %s19 = sphi 0, %s21
    %s22 = sphi 0, %s19
    %s23 = sphi 0, %s22
    %s39 = sphi 0, %s23
    %s43 = sphi 0, %s43
    %s45 = sphi 0, %s43
    %s46 = sphi 0, %s45
    %s60 = sphi 0, %s46
    %s64 = sphi 0, %s64
    %s66 = sphi 0, %s64
    %s67 = sphi 0, %s66
    %s81 = sphi 0, %s67
    %s87 = sphi 0, %s89
    %s90 = sphi 0, %s87
    %s91 = sphi 0, %s90
    %s107 = sphi 0, %s91
  $region4: #{forward.5} parent=0 // loop_header_branch
    %12 = sbr.rel (%p10) target = $region8
  $region5: #{forward.5} parent=0 // loop_body
    %s14 = ssub.s32 %s9, 1
    %s15 = ssub.s32 %s9, 2
    %s16 = sadd.s32 %s9, 1
    %s17 = ssub.s32 %s9, %s16
    %p18 = scmp.eq.s32.totalorder %s17, 0
    %s20 = sadd.s32 %s19, 1
    %s21 = scalar_select %p18, %s19, %s20
    %p24 = pneg %p18
    %p25 = scmp.eq.s32.totalorder %s9, 1
    %p26 = por %p24, %p25
    %p27 = scmp.ne.s32.totalorder %s19, %s22
    %p28 = scmp.eq.s32.totalorder %s9, 0
    %p29 = por %p27, %p28
    %p30 = scmp.ne.s32.totalorder %s19, %s22
    %p31 = scmp.eq.s32.totalorder %s14, 1
    %p32 = por %p30, %p31
    %p33 = scmp.ne.s32.totalorder %s22, %s23
    %p34 = scmp.eq.s32.totalorder %s14, 0
    %p35 = por %p33, %p34
    %p36 = scmp.ne.s32.totalorder %s22, %s23
    %p37 = scmp.eq.s32.totalorder %s15, 1
    %p38 = por %p36, %p37
    %p40 = scmp.ne.s32.totalorder %s23, %s39
    %p41 = scmp.eq.s32.totalorder %s15, 0
    %p42 = por %p40, %p41
    %s44 = sadd.s32 %s43, 1
    %p47 = scmp.eq.s32.totalorder %s9, 1
    %p48 = scmp.ne.s32.totalorder %s43, %s45
    %p49 = scmp.eq.s32.totalorder %s9, 0
    %p50 = por %p48, %p49
    %p51 = scmp.ne.s32.totalorder %s43, %s45
    %p52 = scmp.eq.s32.totalorder %s14, 1
    %p53 = por %p51, %p52
    %p54 = scmp.ne.s32.totalorder %s45, %s46
    %p55 = scmp.eq.s32.totalorder %s14, 0
    %p56 = por %p54, %p55
    %p57 = scmp.ne.s32.totalorder %s45, %s46
    %p58 = scmp.eq.s32.totalorder %s15, 1
    %p59 = por %p57, %p58
    %p61 = scmp.ne.s32.totalorder %s46, %s60
    %p62 = scmp.eq.s32.totalorder %s15, 0
    %p63 = por %p61, %p62
    %s65 = sadd.s32 %s64, 1
    %p68 = scmp.eq.s32.totalorder %s9, 1
    %p69 = scmp.ne.s32.totalorder %s64, %s66
    %p70 = scmp.eq.s32.totalorder %s9, 0
    %p71 = por %p69, %p70
    %p72 = scmp.ne.s32.totalorder %s64, %s66
    %p73 = scmp.eq.s32.totalorder %s14, 1
    %p74 = por %p72, %p73
    %p75 = scmp.ne.s32.totalorder %s66, %s67
    %p76 = scmp.eq.s32.totalorder %s14, 0
    %p77 = por %p75, %p76
    %p78 = scmp.ne.s32.totalorder %s66, %s67
    %p79 = scmp.eq.s32.totalorder %s15, 1
    %p80 = por %p78, %p79
    %p82 = scmp.ne.s32.totalorder %s67, %s81
    %p83 = scmp.eq.s32.totalorder %s15, 0
    %p84 = por %p82, %p83
    %s85 = ssub.s32 %s9, %s16
    %p86 = scmp.eq.s32.totalorder %s85, 0
    %s88 = sadd.s32 %s87, 1
    %s89 = scalar_select %p86, %s87, %s88
    %p92 = pneg %p86
    %p93 = scmp.eq.s32.totalorder %s9, 1
    %p94 = por %p92, %p93
    %p95 = scmp.ne.s32.totalorder %s87, %s90
    %p96 = scmp.eq.s32.totalorder %s9, 0
    %p97 = por %p95, %p96
    %p98 = scmp.ne.s32.totalorder %s87, %s90
    %p99 = scmp.eq.s32.totalorder %s14, 1
    %p100 = por %p98, %p99
    %p101 = scmp.ne.s32.totalorder %s90, %s91
    %p102 = scmp.eq.s32.totalorder %s14, 0
    %p103 = por %p101, %p102
    %p104 = scmp.ne.s32.totalorder %s90, %s91
    %p105 = scmp.eq.s32.totalorder %s15, 1
    %p106 = por %p104, %p105
    %p108 = scmp.ne.s32.totalorder %s91, %s107
    %p109 = scmp.eq.s32.totalorder %s15, 0
    %p110 = por %p108, %p109
    %p111 = scmp.le.s32.totalorder 1, %s9
    %p112 = scmp.lt.s32.totalorder %s9, 3
    %p113 = pnand %p111, %p112
    %p114 = pneg %p113
    // Predicated region
    $region9: #{forward.5} parent=5 // pred_check
      _
    $region10: #{forward.5} parent=5 // pred_check_branch
      %116 = sbr.rel (%p113) target = $region12
    $region11: #{forward.5} parent=5 // pred_region
      %s117 = ssub.s32 %s9, 1
      // Predicated region
      $region13: #{forward.5} parent=11 // pred_check
        %p118 = pneg %p56
      $region14: #{forward.5} parent=11 // pred_check_branch
        %120 = sbr.rel (%p118) target = $region16
      $region15: #{forward.5} parent=11 // pred_region
        _
      $region16: #{forward.5} parent=11 // pred_fallthru
        _
      // Predicated region
      $region17: #{forward.5} parent=11 // pred_check
        %p121 = pneg %p77
      $region18: #{forward.5} parent=11 // pred_check_branch
        %123 = sbr.rel (%p121) target = $region20
      $region19: #{forward.5} parent=11 // pred_region
        _
      $region20: #{forward.5} parent=11 // pred_fallthru
        _
    $region12: #{forward.5} parent=5 // pred_fallthru
      _
    %p124 = scmp.lt.s32.totalorder %s9, 2
    // Predicated region
    $region21: #{forward.5} parent=5 // pred_check
      %p125 = pneg %p124
    $region22: #{forward.5} parent=5 // pred_check_branch
      %127 = sbr.rel (%p125) target = $region24
    $region23: #{forward.5} parent=5 // pred_region
      // Predicated region
      $region25: #{forward.5} parent=23 // pred_check
        %p128 = pneg %p29
      $region26: #{forward.5} parent=23 // pred_check_branch
        %130 = sbr.rel (%p128) target = $region28
      $region27: #{forward.5} parent=23 // pred_region
        %p131 = scmp.lt.s32.totalorder %s9, 1
        %s132 = scalar_select %p131, %s9, 1
        %s133 = smul.addr %s132, 3
        %s134 = smul.addr %s133, 4
        %s135 = scalar_lea.vmem %s0, %s134
      $region28: #{forward.5} parent=23 // pred_fallthru
        _
    $region24: #{forward.5} parent=5 // pred_fallthru
      _
    %p136 = scmp.le.s32.totalorder 1, %s9
    %p137 = scmp.lt.s32.totalorder %s9, 3
    %p138 = pnand %p136, %p137
    %p139 = pneg %p138
    // Predicated region
    $region29: #{forward.5} parent=5 // pred_check
      _
    $region30: #{forward.5} parent=5 // pred_check_branch
      %141 = sbr.rel (%p138) target = $region32
    $region31: #{forward.5} parent=5 // pred_region
      %s142 = ssub.s32 %s9, 1
      %p143 = scmp.lt.s32.totalorder %s14, 1
      %s144 = scalar_select %p143, %s14, 1
      %s145 = smul.addr %s144, 3
      %s146 = smul.addr %s145, 4
      %s147 = scalar_lea.vmem %s0, %s146
      %p148 = pneg %p35
      %p149 = pneg %p32
      %p150 = pneg %p56
      %p151 = pneg %p53
      %p152 = pneg %p77
      %p153 = pneg %p74
      %p154 = pneg %p103
      %p155 = pneg %p100
      %p156 = scmp.lt.s32.totalorder %s14, 1
      %s157 = scalar_select %p156, %s14, 1
      %s158 = smul.addr %s157, 3
      %s159 = smul.addr %s158, 4
      %s160 = scalar_lea.vmem %s3, %s159
      %p161 = scmp.lt.s32.totalorder %s14, 1
      %s162 = scalar_select %p161, %s14, 1
      %s163 = smul.addr %s162, 3
      %s164 = smul.addr %s163, 4
      %s165 = scalar_lea.vmem %s0, %s164
      %p166 = scmp.lt.s32.totalorder %s14, 1
      %s167 = scalar_select %p166, %s14, 1
      %s168 = smul.addr %s167, 3
      %s169 = smul.addr %s168, 4
      %s170 = scalar_lea.vmem %s3, %s169
      %v172 = vld [vmem:[%s165] sm:$0xff]
      %v173 = vld [vmem:[%s165 + $0x8] sm:$0xf]
      %v174 = vld [vmem:[%s1] sm:$0xf]
      %v176 = vunpack.c.l.b16 %v174
      %v177 = vpack.c.b16 %v176, %v176
      %178 = vrot.lane.b32.xlu0 %v177, 120
      %v179 = vpop.permute.xlu0 %178
      %v182 = vunpack.c.l.b16 %v172
      %v183 = vunpack.c.h.b16 %v172
      %v184 = vunpack.c.l.b16 %v173
      %v185 = vpack.c.b16 %v182, %v182
      %v186 = vpack.c.b16 %v183, %v183
      %v187 = vpack.c.b16 %v184, %v184
      %188 = vrot.lane.b32.xlu0 %v185, 127
      %v189 = vpop.permute.xlu0 %188
      %190 = vrot.lane.b32.xlu0 %v186, 127
      %v191 = vpop.permute.xlu0 %190
      %192 = vrot.lane.b32.xlu0 %v187, 127
      %v193 = vpop.permute.xlu0 %192
      %vm194 = vcmask 1039360
      %v195 = vsel %vm194, %v189, %v191
      %v196 = vsel %vm194, %v191, %v193
      %vm197 = vcmask 64512
      %v199 = vsel %vm197, %v179, 0
      %vm201 = vcmask 1043456
      %v203 = vsel %vm201, %v195, 0
      %v206 = vsel %vm201, %v196, 0
      %v209 = vsel %vm201, %v193, 0
      %211 = vmatprep.subr.bf16.mxu0 %v206
      %212 = vmatpush1.bf16.msra.mxu0 %v203
      %213 = vmatprep.subr.bf16.mxu0 0
      %214 = vmatpush1.bf16.msra.mxu0 0
      %215 = vmatprep.subr.bf16.mxu0 0
      %216 = vmatpush1.bf16.msra.mxu0 0
      %217 = vmatprep.subr.bf16.mxu0 0
      %218 = vmatpush1.bf16.msra.mxu0 0
      %219 = vmatprep.subr.bf16.mxu0 0
      %220 = vmatpush1.bf16.msra.mxu0 0
      %221 = vmatprep.subr.bf16.mxu0 0
      %222 = vmatpush1.bf16.msra.mxu0 0
      %223 = vmatprep.subr.bf16.mxu0 0
      %224 = vmatpush1.bf16.msra.mxu0 0
      %225 = vmatprep.subr.bf16.mxu0 0
      %226 = vmatpush1.bf16.msra.mxu0 0
      %227 = vmatprep.subr.bf16.mxu0 0
      %228 = vmatpush1.bf16.msra.mxu0 0
      %229 = vmatprep.subr.bf16.mxu0 0
      %230 = vmatpush1.bf16.msra.mxu0 0
      %231 = vmatprep.subr.bf16.mxu0 0
      %232 = vmatpush1.bf16.msra.mxu0 0
      %233 = vmatprep.subr.bf16.mxu0 0
      %234 = vmatpush1.bf16.msra.mxu0 0
      %235 = vmatprep.subr.bf16.mxu0 0
      %236 = vmatpush1.bf16.msra.mxu0 0
      %237 = vmatprep.subr.bf16.mxu0 0
      %238 = vmatpush1.bf16.msra.mxu0 0
      %239 = vmatprep.subr.bf16.mxu0 0
      %240 = vmatpush1.bf16.msra.mxu0 0
      %241 = vmatprep.subr.bf16.mxu0 0
      %242 = vmatpush1.bf16.msra.mxu0 0
      %243 = vmatprep.mubr.bf16.mxu0 0
      %244 = vmatmul.mubr.bf16.gmra.mrb[0].mxu0 %v199
      %v245 = vpop.f32.mrb[0].mxu0
      %v246 = vadd.f32 0.0, %v245
      %v247 = vpop.f32.mrb[0].mxu0
      %v248 = vadd.f32 0.0, %v247
      %v249 = vpop.f32.mrb[0].mxu0
      %v250 = vpop.f32.mrb[0].mxu0
      %251 = vdwg.mxu0
      %252 = vmatprep.subr.bf16.mxu0 0
      %253 = vmatpush1.bf16.msra.mxu0 %v209
      %254 = vmatprep.subr.bf16.mxu0 0
      %255 = vmatpush1.bf16.msra.mxu0 0
      %256 = vmatprep.subr.bf16.mxu0 0
      %257 = vmatpush1.bf16.msra.mxu0 0
      %258 = vmatprep.subr.bf16.mxu0 0
      %259 = vmatpush1.bf16.msra.mxu0 0
      %260 = vmatprep.subr.bf16.mxu0 0
      %261 = vmatpush1.bf16.msra.mxu0 0
      %262 = vmatprep.subr.bf16.mxu0 0
      %263 = vmatpush1.bf16.msra.mxu0 0
      %264 = vmatprep.subr.bf16.mxu0 0
      %265 = vmatpush1.bf16.msra.mxu0 0
      %266 = vmatprep.subr.bf16.mxu0 0
      %267 = vmatpush1.bf16.msra.mxu0 0
      %268 = vmatprep.subr.bf16.mxu0 0
      %269 = vmatpush1.bf16.msra.mxu0 0
      %270 = vmatprep.subr.bf16.mxu0 0
      %271 = vmatpush1.bf16.msra.mxu0 0
      %272 = vmatprep.subr.bf16.mxu0 0
      %273 = vmatpush1.bf16.msra.mxu0 0
      %274 = vmatprep.subr.bf16.mxu0 0
      %275 = vmatpush1.bf16.msra.mxu0 0
      %276 = vmatprep.subr.bf16.mxu0 0
      %277 = vmatpush1.bf16.msra.mxu0 0
      %278 = vmatprep.subr.bf16.mxu0 0
      %279 = vmatpush1.bf16.msra.mxu0 0
      %280 = vmatprep.subr.bf16.mxu0 0
      %281 = vmatpush1.bf16.msra.mxu0 0
      %282 = vmatprep.subr.bf16.mxu0 0
      %283 = vmatpush1.bf16.msra.mxu0 0
      %284 = vmatprep.mubr.bf16.mxu0 0
      %285 = vmatmul.mubr.bf16.gmra.mrb[0].mxu0 %v199
      %v286 = vpop.f32.mrb[0].mxu0
      %v287 = vadd.f32 0.0, %v286
      %v288 = vpop.f32.mrb[0].mxu0
      %v289 = vpop.f32.mrb[0].mxu0
      %v290 = vpop.f32.mrb[0].mxu0
      %291 = vdwg.mxu0
      %v293 = vsel %vm197, %v174, 0
      %v296 = vsel %vm201, %v185, 0
      %v299 = vsel %vm201, %v186, 0
      %v302 = vsel %vm201, %v187, 0
      %304 = vmatprep.subr.bf16.mxu0 %v299
      %305 = vmatpush1.bf16.msra.mxu0 %v296
      %306 = vmatprep.subr.bf16.mxu0 0
      %307 = vmatpush1.bf16.msra.mxu0 0
      %308 = vmatprep.subr.bf16.mxu0 0
      %309 = vmatpush1.bf16.msra.mxu0 0
      %310 = vmatprep.subr.bf16.mxu0 0
      %311 = vmatpush1.bf16.msra.mxu0 0
      %312 = vmatprep.subr.bf16.mxu0 0
      %313 = vmatpush1.bf16.msra.mxu0 0
      %314 = vmatprep.subr.bf16.mxu0 0
      %315 = vmatpush1.bf16.msra.mxu0 0
      %316 = vmatprep.subr.bf16.mxu0 0
      %317 = vmatpush1.bf16.msra.mxu0 0
      %318 = vmatprep.subr.bf16.mxu0 0
      %319 = vmatpush1.bf16.msra.mxu0 0
      %320 = vmatprep.subr.bf16.mxu0 0
      %321 = vmatpush1.bf16.msra.mxu0 0
      %322 = vmatprep.subr.bf16.mxu0 0
      %323 = vmatpush1.bf16.msra.mxu0 0
      %324 = vmatprep.subr.bf16.mxu0 0
      %325 = vmatpush1.bf16.msra.mxu0 0
      %326 = vmatprep.subr.bf16.mxu0 0
      %327 = vmatpush1.bf16.msra.mxu0 0
      %328 = vmatprep.subr.bf16.mxu0 0
      %329 = vmatpush1.bf16.msra.mxu0 0
      %330 = vmatprep.subr.bf16.mxu0 0
      %331 = vmatpush1.bf16.msra.mxu0 0
      %332 = vmatprep.subr.bf16.mxu0 0
      %333 = vmatpush1.bf16.msra.mxu0 0
      %334 = vmatprep.subr.bf16.mxu0 0
      %335 = vmatpush1.bf16.msra.mxu0 0
      %336 = vmatprep.mubr.bf16.mxu0 0
      %337 = vmatmul.mubr.bf16.gmra.mrb[0].mxu0 %v293
      %v338 = vpop.f32.mrb[0].mxu0
      %v339 = vadd.f32 %v246, %v338
      %v340 = vpop.f32.mrb[0].mxu0
      %v341 = vadd.f32 %v248, %v340
      %v342 = vpop.f32.mrb[0].mxu0
      %v343 = vpop.f32.mrb[0].mxu0
      %344 = vdwg.mxu0
      %345 = vmatprep.subr.bf16.mxu0 0
      %346 = vmatpush1.bf16.msra.mxu0 %v302
      %347 = vmatprep.subr.bf16.mxu0 0
      %348 = vmatpush1.bf16.msra.mxu0 0
      %349 = vmatprep.subr.bf16.mxu0 0
      %350 = vmatpush1.bf16.msra.mxu0 0
      %351 = vmatprep.subr.bf16.mxu0 0
      %352 = vmatpush1.bf16.msra.mxu0 0
      %353 = vmatprep.subr.bf16.mxu0 0
      %354 = vmatpush1.bf16.msra.mxu0 0
      %355 = vmatprep.subr.bf16.mxu0 0
      %356 = vmatpush1.bf16.msra.mxu0 0
      %357 = vmatprep.subr.bf16.mxu0 0
      %358 = vmatpush1.bf16.msra.mxu0 0
      %359 = vmatprep.subr.bf16.mxu0 0
      %360 = vmatpush1.bf16.msra.mxu0 0
      %361 = vmatprep.subr.bf16.mxu0 0
      %362 = vmatpush1.bf16.msra.mxu0 0
      %363 = vmatprep.subr.bf16.mxu0 0
      %364 = vmatpush1.bf16.msra.mxu0 0
      %365 = vmatprep.subr.bf16.mxu0 0
      %366 = vmatpush1.bf16.msra.mxu0 0
      %367 = vmatprep.subr.bf16.mxu0 0
      %368 = vmatpush1.bf16.msra.mxu0 0
      %369 = vmatprep.subr.bf16.mxu0 0
      %370 = vmatpush1.bf16.msra.mxu0 0
      %371 = vmatprep.subr.bf16.mxu0 0
      %372 = vmatpush1.bf16.msra.mxu0 0
      %373 = vmatprep.subr.bf16.mxu0 0
      %374 = vmatpush1.bf16.msra.mxu0 0
      %375 = vmatprep.subr.bf16.mxu0 0
      %376 = vmatpush1.bf16.msra.mxu0 0
      %377 = vmatprep.mubr.bf16.mxu0 0
      %378 = vmatmul.mubr.bf16.gmra.mrb[0].mxu0 %v293
      %v379 = vpop.f32.mrb[0].mxu0
      %v380 = vadd.f32 %v287, %v379
      %v381 = vpop.f32.mrb[0].mxu0
      %v382 = vpop.f32.mrb[0].mxu0
      %v383 = vpop.f32.mrb[0].mxu0
      %384 = vdwg.mxu0
      %385 = vrot.lane.b32.xlu0 %v177, 112
      %v386 = vpop.permute.xlu0 %385
      %387 = vrot.lane.b32.xlu0 %v185, 126
      %v388 = vpop.permute.xlu0 %387
      %389 = vrot.lane.b32.xlu0 %v186, 126
      %v390 = vpop.permute.xlu0 %389
      %391 = vrot.lane.b32.xlu0 %v187, 126
      %v392 = vpop.permute.xlu0 %391
      %vm393 = vcmask 1031168
      %v394 = vsel %vm393, %v388, %v390
      %v395 = vsel %vm393, %v390, %v392
      %v397 = vsel %vm197, %v386, 0
      %v400 = vsel %vm201, %v394, 0
      %v403 = vsel %vm201, %v395, 0
      %v406 = vsel %vm201, %v392, 0
      %408 = vmatprep.subr.bf16.mxu0 %v403
      %409 = vmatpush1.bf16.msra.mxu0 %v400
      %410 = vmatprep.subr.bf16.mxu0 0
      %411 = vmatpush1.bf16.msra.mxu0 0
      %412 = vmatprep.subr.bf16.mxu0 0
      %413 = vmatpush1.bf16.msra.mxu0 0
      %414 = vmatprep.subr.bf16.mxu0 0
      %415 = vmatpush1.bf16.msra.mxu0 0
      %416 = vmatprep.subr.bf16.mxu0 0
      %417 = vmatpush1.bf16.msra.mxu0 0
      %418 = vmatprep.subr.bf16.mxu0 0
      %419 = vmatpush1.bf16.msra.mxu0 0
      %420 = vmatprep.subr.bf16.mxu0 0
      %421 = vmatpush1.bf16.msra.mxu0 0
      %422 = vmatprep.subr.bf16.mxu0 0
      %423 = vmatpush1.bf16.msra.mxu0 0
      %424 = vmatprep.subr.bf16.mxu0 0
      %425 = vmatpush1.bf16.msra.mxu0 0
      %426 = vmatprep.subr.bf16.mxu0 0
      %427 = vmatpush1.bf16.msra.mxu0 0
      %428 = vmatprep.subr.bf16.mxu0 0
      %429 = vmatpush1.bf16.msra.mxu0 0
      %430 = vmatprep.subr.bf16.mxu0 0
      %431 = vmatpush1.bf16.msra.mxu0 0
      %432 = vmatprep.subr.bf16.mxu0 0
      %433 = vmatpush1.bf16.msra.mxu0 0
      %434 = vmatprep.subr.bf16.mxu0 0
      %435 = vmatpush1.bf16.msra.mxu0 0
      %436 = vmatprep.subr.bf16.mxu0 0
      %437 = vmatpush1.bf16.msra.mxu0 0
      %438 = vmatprep.subr.bf16.mxu0 0
      %439 = vmatpush1.bf16.msra.mxu0 0
      %440 = vmatprep.mubr.bf16.mxu0 0
      %441 = vmatmul.mubr.bf16.gmra.mrb[0].mxu0 %v397
      %v442 = vpop.f32.mrb[0].mxu0
      %v443 = vadd.f32 0.0, %v442
      %v444 = vpop.f32.mrb[0].mxu0
      %v445 = vadd.f32 0.0, %v444
      %v446 = vpop.f32.mrb[0].mxu0
      %v447 = vpop.f32.mrb[0].mxu0
      %448 = vdwg.mxu0
      %449 = vmatprep.subr.bf16.mxu0 0
      %450 = vmatpush1.bf16.msra.mxu0 %v406
      %451 = vmatprep.subr.bf16.mxu0 0
      %452 = vmatpush1.bf16.msra.mxu0 0
      %453 = vmatprep.subr.bf16.mxu0 0
      %454 = vmatpush1.bf16.msra.mxu0 0
      %455 = vmatprep.subr.bf16.mxu0 0
      %456 = vmatpush1.bf16.msra.mxu0 0
      %457 = vmatprep.subr.bf16.mxu0 0
      %458 = vmatpush1.bf16.msra.mxu0 0
      %459 = vmatprep.subr.bf16.mxu0 0
      %460 = vmatpush1.bf16.msra.mxu0 0
      %461 = vmatprep.subr.bf16.mxu0 0
      %462 = vmatpush1.bf16.msra.mxu0 0
      %463 = vmatprep.subr.bf16.mxu0 0
      %464 = vmatpush1.bf16.msra.mxu0 0
      %465 = vmatprep.subr.bf16.mxu0 0
      %466 = vmatpush1.bf16.msra.mxu0 0
      %467 = vmatprep.subr.bf16.mxu0 0
      %468 = vmatpush1.bf16.msra.mxu0 0
      %469 = vmatprep.subr.bf16.mxu0 0
      %470 = vmatpush1.bf16.msra.mxu0 0
      %471 = vmatprep.subr.bf16.mxu0 0
      %472 = vmatpush1.bf16.msra.mxu0 0
      %473 = vmatprep.subr.bf16.mxu0 0
      %474 = vmatpush1.bf16.msra.mxu0 0
      %475 = vmatprep.subr.bf16.mxu0 0
      %476 = vmatpush1.bf16.msra.mxu0 0
      %477 = vmatprep.subr.bf16.mxu0 0
      %478 = vmatpush1.bf16.msra.mxu0 0
      %479 = vmatprep.subr.bf16.mxu0 0
      %480 = vmatpush1.bf16.msra.mxu0 0
      %481 = vmatprep.mubr.bf16.mxu0 0
      %482 = vmatmul.mubr.bf16.gmra.mrb[0].mxu0 %v397
      %v483 = vpop.f32.mrb[0].mxu0
      %v484 = vadd.f32 0.0, %v483
      %v485 = vpop.f32.mrb[0].mxu0
      %v486 = vpop.f32.mrb[0].mxu0
      %v487 = vpop.f32.mrb[0].mxu0
      %488 = vdwg.mxu0
      %v489 = vadd.f32 %v339, %v443
      %v490 = vadd.f32 %v341, %v445
      %v491 = vadd.f32 %v380, %v484
      %492 = vrot.lane.b32.xlu0 %v177, 104
      %v493 = vpop.permute.xlu0 %492
      %494 = vrot.lane.b32.xlu0 %v185, 110
      %v495 = vpop.permute.xlu0 %494
      %496 = vrot.lane.b32.xlu0 %v186, 110
      %v497 = vpop.permute.xlu0 %496
      %498 = vrot.lane.b32.xlu0 %v187, 110
      %v499 = vpop.permute.xlu0 %498
      %vm500 = vcmask 900096
      %v501 = vsel %vm500, %v495, %v497
      %v502 = vsel %vm500, %v497, %v499
      %v504 = vsel %vm197, %v493, 0
      %v507 = vsel %vm201, %v501, 0
      %v510 = vsel %vm201, %v502, 0
      %v513 = vsel %vm201, %v499, 0
      %515 = vmatprep.subr.bf16.mxu0 %v510
      %516 = vmatpush1.bf16.msra.mxu0 %v507
      %517 = vmatprep.subr.bf16.mxu0 0
      %518 = vmatpush1.bf16.msra.mxu0 0
      %519 = vmatprep.subr.bf16.mxu0 0
      %520 = vmatpush1.bf16.msra.mxu0 0
      %521 = vmatprep.subr.bf16.mxu0 0
      %522 = vmatpush1.bf16.msra.mxu0 0
      %523 = vmatprep.subr.bf16.mxu0 0
      %524 = vmatpush1.bf16.msra.mxu0 0
      %525 = vmatprep.subr.bf16.mxu0 0
      %526 = vmatpush1.bf16.msra.mxu0 0
      %527 = vmatprep.subr.bf16.mxu0 0
      %528 = vmatpush1.bf16.msra.mxu0 0
      %529 = vmatprep.subr.bf16.mxu0 0
      %530 = vmatpush1.bf16.msra.mxu0 0
      %531 = vmatprep.subr.bf16.mxu0 0
      %532 = vmatpush1.bf16.msra.mxu0 0
      %533 = vmatprep.subr.bf16.mxu0 0
      %534 = vmatpush1.bf16.msra.mxu0 0
      %535 = vmatprep.subr.bf16.mxu0 0
      %536 = vmatpush1.bf16.msra.mxu0 0
      %537 = vmatprep.subr.bf16.mxu0 0
      %538 = vmatpush1.bf16.msra.mxu0 0
      %539 = vmatprep.subr.bf16.mxu0 0
      %540 = vmatpush1.bf16.msra.mxu0 0
      %541 = vmatprep.subr.bf16.mxu0 0
      %542 = vmatpush1.bf16.msra.mxu0 0
      %543 = vmatprep.subr.bf16.mxu0 0
      %544 = vmatpush1.bf16.msra.mxu0 0
      %545 = vmatprep.subr.bf16.mxu0 0
      %546 = vmatpush1.bf16.msra.mxu0 0
      %547 = vmatprep.mubr.bf16.mxu0 0
      %548 = vmatmul.mubr.bf16.gmra.mrb[0].mxu0 %v504
      %v549 = vpop.f32.mrb[0].mxu0
      %v550 = vadd.f32 0.0, %v549
      %v551 = vpop.f32.mrb[0].mxu0
      %v552 = vadd.f32 0.0, %v551
      %v553 = vpop.f32.mrb[0].mxu0
      %v554 = vpop.f32.mrb[0].mxu0
      %555 = vdwg.mxu0
      %556 = vmatprep.subr.bf16.mxu0 0
      %557 = vmatpush1.bf16.msra.mxu0 %v513
      %558 = vmatprep.subr.bf16.mxu0 0
      %559 = vmatpush1.bf16.msra.mxu0 0
      %560 = vmatprep.subr.bf16.mxu0 0
      %561 = vmatpush1.bf16.msra.mxu0 0
      %562 = vmatprep.subr.bf16.mxu0 0
      %563 = vmatpush1.bf16.msra.mxu0 0
      %564 = vmatprep.subr.bf16.mxu0 0
      %565 = vmatpush1.bf16.msra.mxu0 0
      %566 = vmatprep.subr.bf16.mxu0 0
      %567 = vmatpush1.bf16.msra.mxu0 0
      %568 = vmatprep.subr.bf16.mxu0 0
      %569 = vmatpush1.bf16.msra.mxu0 0
      %570 = vmatprep.subr.bf16.mxu0 0
      %571 = vmatpush1.bf16.msra.mxu0 0
      %572 = vmatprep.subr.bf16.mxu0 0
      %573 = vmatpush1.bf16.msra.mxu0 0
      %574 = vmatprep.subr.bf16.mxu0 0
      %575 = vmatpush1.bf16.msra.mxu0 0
      %576 = vmatprep.subr.bf16.mxu0 0
      %577 = vmatpush1.bf16.msra.mxu0 0
      %578 = vmatprep.subr.bf16.mxu0 0
      %579 = vmatpush1.bf16.msra.mxu0 0
      %580 = vmatprep.subr.bf16.mxu0 0
      %581 = vmatpush1.bf16.msra.mxu0 0
      %582 = vmatprep.subr.bf16.mxu0 0
      %583 = vmatpush1.bf16.msra.mxu0 0
      %584 = vmatprep.subr.bf16.mxu0 0
      %585 = vmatpush1.bf16.msra.mxu0 0
      %586 = vmatprep.subr.bf16.mxu0 0
      %587 = vmatpush1.bf16.msra.mxu0 0
      %588 = vmatprep.mubr.bf16.mxu0 0
      %589 = vmatmul.mubr.bf16.gmra.mrb[0].mxu0 %v504
      %v590 = vpop.f32.mrb[0].mxu0
      %v591 = vadd.f32 0.0, %v590
      %v592 = vpop.f32.mrb[0].mxu0
      %v593 = vpop.f32.mrb[0].mxu0
      %v594 = vpop.f32.mrb[0].mxu0
      %595 = vdwg.mxu0
      %v596 = vadd.f32 %v489, %v550
      %v597 = vadd.f32 %v490, %v552
      %v598 = vadd.f32 %v491, %v591
      %599 = vrot.lane.b32.xlu0 %v177, 96
      %v600 = vpop.permute.xlu0 %599
      %601 = vrot.lane.b32.xlu0 %v185, 109
      %v602 = vpop.permute.xlu0 %601
      %603 = vrot.lane.b32.xlu0 %v186, 109
      %v604 = vpop.permute.xlu0 %603
      %605 = vrot.lane.b32.xlu0 %v187, 109
      %v606 = vpop.permute.xlu0 %605
      %vm607 = vcmask 891904
      %v608 = vsel %vm607, %v602, %v604
      %v609 = vsel %vm607, %v604, %v606
      %v611 = vsel %vm197, %v600, 0
      %v614 = vsel %vm201, %v608, 0
      %v617 = vsel %vm201, %v609, 0
      %v620 = vsel %vm201, %v606, 0
      %622 = vmatprep.subr.bf16.mxu0 %v617
      %623 = vmatpush1.bf16.msra.mxu0 %v614
      %624 = vmatprep.subr.bf16.mxu0 0
      %625 = vmatpush1.bf16.msra.mxu0 0
      %626 = vmatprep.subr.bf16.mxu0 0
      %627 = vmatpush1.bf16.msra.mxu0 0
      %628 = vmatprep.subr.bf16.mxu0 0
      %629 = vmatpush1.bf16.msra.mxu0 0
      %630 = vmatprep.subr.bf16.mxu0 0
      %631 = vmatpush1.bf16.msra.mxu0 0
      %632 = vmatprep.subr.bf16.mxu0 0
      %633 = vmatpush1.bf16.msra.mxu0 0
      %634 = vmatprep.subr.bf16.mxu0 0
      %635 = vmatpush1.bf16.msra.mxu0 0
      %636 = vmatprep.subr.bf16.mxu0 0
      %637 = vmatpush1.bf16.msra.mxu0 0
      %638 = vmatprep.subr.bf16.mxu0 0
      %639 = vmatpush1.bf16.msra.mxu0 0
      %640 = vmatprep.subr.bf16.mxu0 0
      %641 = vmatpush1.bf16.msra.mxu0 0
      %642 = vmatprep.subr.bf16.mxu0 0
      %643 = vmatpush1.bf16.msra.mxu0 0
      %644 = vmatprep.subr.bf16.mxu0 0
      %645 = vmatpush1.bf16.msra.mxu0 0
      %646 = vmatprep.subr.bf16.mxu0 0
      %647 = vmatpush1.bf16.msra.mxu0 0
      %648 = vmatprep.subr.bf16.mxu0 0
      %649 = vmatpush1.bf16.msra.mxu0 0
      %650 = vmatprep.subr.bf16.mxu0 0
      %651 = vmatpush1.bf16.msra.mxu0 0
      %652 = vmatprep.subr.bf16.mxu0 0
      %653 = vmatpush1.bf16.msra.mxu0 0
      %654 = vmatprep.mubr.bf16.mxu0 0
      %655 = vmatmul.mubr.bf16.gmra.mrb[0].mxu0 %v611
      %v656 = vpop.f32.mrb[0].mxu0
      %v657 = vadd.f32 0.0, %v656
      %v658 = vpop.f32.mrb[0].mxu0
      %v659 = vadd.f32 0.0, %v658
      %v660 = vpop.f32.mrb[0].mxu0
      %v661 = vpop.f32.mrb[0].mxu0
      %662 = vdwg.mxu0
      %663 = vmatprep.subr.bf16.mxu0 0
      %664 = vmatpush1.bf16.msra.mxu0 %v620
      %665 = vmatprep.subr.bf16.mxu0 0
      %666 = vmatpush1.bf16.msra.mxu0 0
      %667 = vmatprep.subr.bf16.mxu0 0
      %668 = vmatpush1.bf16.msra.mxu0 0
      %669 = vmatprep.subr.bf16.mxu0 0
      %670 = vmatpush1.bf16.msra.mxu0 0
      %671 = vmatprep.subr.bf16.mxu0 0
      %672 = vmatpush1.bf16.msra.mxu0 0
      %673 = vmatprep.subr.bf16.mxu0 0
      %674 = vmatpush1.bf16.msra.mxu0 0
      %675 = vmatprep.subr.bf16.mxu0 0
      %676 = vmatpush1.bf16.msra.mxu0 0
      %677 = vmatprep.subr.bf16.mxu0 0
      %678 = vmatpush1.bf16.msra.mxu0 0
      %679 = vmatprep.subr.bf16.mxu0 0
      %680 = vmatpush1.bf16.msra.mxu0 0
      %681 = vmatprep.subr.bf16.mxu0 0
      %682 = vmatpush1.bf16.msra.mxu0 0
      %683 = vmatprep.subr.bf16.mxu0 0
      %684 = vmatpush1.bf16.msra.mxu0 0
      %685 = vmatprep.subr.bf16.mxu0 0
      %686 = vmatpush1.bf16.msra.mxu0 0
      %687 = vmatprep.subr.bf16.mxu0 0
      %688 = vmatpush1.bf16.msra.mxu0 0
      %689 = vmatprep.subr.bf16.mxu0 0
      %690 = vmatpush1.bf16.msra.mxu0 0
      %691 = vmatprep.subr.bf16.mxu0 0
      %692 = vmatpush1.bf16.msra.mxu0 0
      %693 = vmatprep.subr.bf16.mxu0 0
      %694 = vmatpush1.bf16.msra.mxu0 0
      %695 = vmatprep.mubr.bf16.mxu0 0
      %696 = vmatmul.mubr.bf16.gmra.mrb[0].mxu0 %v611
      %v697 = vpop.f32.mrb[0].mxu0
      %v698 = vadd.f32 0.0, %v697
      %v699 = vpop.f32.mrb[0].mxu0
      %v700 = vpop.f32.mrb[0].mxu0
      %v701 = vpop.f32.mrb[0].mxu0
      %702 = vdwg.mxu0
      %v703 = vadd.f32 %v596, %v657
      %v704 = vadd.f32 %v597, %v659
      %v705 = vadd.f32 %v598, %v698
      %706 = vrot.lane.b32.xlu0 %v177, 88
      %v707 = vpop.permute.xlu0 %706
      %708 = vrot.lane.b32.xlu0 %v185, 108
      %v709 = vpop.permute.xlu0 %708
      %710 = vrot.lane.b32.xlu0 %v186, 108
      %v711 = vpop.permute.xlu0 %710
      %712 = vrot.lane.b32.xlu0 %v187, 108
      %v713 = vpop.permute.xlu0 %712
      %vm714 = vcmask 883712
      %v715 = vsel %vm714, %v709, %v711
      %v716 = vsel %vm714, %v711, %v713
      %v718 = vsel %vm197, %v707, 0
      %v721 = vsel %vm201, %v715, 0
      %v724 = vsel %vm201, %v716, 0
      %v727 = vsel %vm201, %v713, 0
      %729 = vmatprep.subr.bf16.mxu0 %v724
      %730 = vmatpush1.bf16.msra.mxu0 %v721
      %731 = vmatprep.subr.bf16.mxu0 0
      %732 = vmatpush1.bf16.msra.mxu0 0
      %733 = vmatprep.subr.bf16.mxu0 0
      %734 = vmatpush1.bf16.msra.mxu0 0
      %735 = vmatprep.subr.bf16.mxu0 0
      %736 = vmatpush1.bf16.msra.mxu0 0
      %737 = vmatprep.subr.bf16.mxu0 0
      %738 = vmatpush1.bf16.msra.mxu0 0
      %739 = vmatprep.subr.bf16.mxu0 0
      %740 = vmatpush1.bf16.msra.mxu0 0
      %741 = vmatprep.subr.bf16.mxu0 0
      %742 = vmatpush1.bf16.msra.mxu0 0
      %743 = vmatprep.subr.bf16.mxu0 0
      %744 = vmatpush1.bf16.msra.mxu0 0
      %745 = vmatprep.subr.bf16.mxu0 0
      %746 = vmatpush1.bf16.msra.mxu0 0
      %747 = vmatprep.subr.bf16.mxu0 0
      %748 = vmatpush1.bf16.msra.mxu0 0
      %749 = vmatprep.subr.bf16.mxu0 0
      %750 = vmatpush1.bf16.msra.mxu0 0
      %751 = vmatprep.subr.bf16.mxu0 0
      %752 = vmatpush1.bf16.msra.mxu0 0
      %753 = vmatprep.subr.bf16.mxu0 0
      %754 = vmatpush1.bf16.msra.mxu0 0
      %755 = vmatprep.subr.bf16.mxu0 0
      %756 = vmatpush1.bf16.msra.mxu0 0
      %757 = vmatprep.subr.bf16.mxu0 0
      %758 = vmatpush1.bf16.msra.mxu0 0
      %759 = vmatprep.subr.bf16.mxu0 0
      %760 = vmatpush1.bf16.msra.mxu0 0
      %761 = vmatprep.mubr.bf16.mxu0 0
      %762 = vmatmul.mubr.bf16.gmra.mrb[0].mxu0 %v718
      %v763 = vpop.f32.mrb[0].mxu0
      %v764 = vadd.f32 0.0, %v763
      %v765 = vpop.f32.mrb[0].mxu0
      %v766 = vadd.f32 0.0, %v765
      %v767 = vpop.f32.mrb[0].mxu0
      %v768 = vpop.f32.mrb[0].mxu0
      %769 = vdwg.mxu0
      %770 = vmatprep.subr.bf16.mxu0 0
      %771 = vmatpush1.bf16.msra.mxu0 %v727
      %772 = vmatprep.subr.bf16.mxu0 0
      %773 = vmatpush1.bf16.msra.mxu0 0
      %774 = vmatprep.subr.bf16.mxu0 0
      %775 = vmatpush1.bf16.msra.mxu0 0
      %776 = vmatprep.subr.bf16.mxu0 0
      %777 = vmatpush1.bf16.msra.mxu0 0
      %778 = vmatprep.subr.bf16.mxu0 0
      %779 = vmatpush1.bf16.msra.mxu0 0
      %780 = vmatprep.subr.bf16.mxu0 0
      %781 = vmatpush1.bf16.msra.mxu0 0
      %782 = vmatprep.subr.bf16.mxu0 0
      %783 = vmatpush1.bf16.msra.mxu0 0
      %784 = vmatprep.subr.bf16.mxu0 0
      %785 = vmatpush1.bf16.msra.mxu0 0
      %786 = vmatprep.subr.bf16.mxu0 0
      %787 = vmatpush1.bf16.msra.mxu0 0
      %788 = vmatprep.subr.bf16.mxu0 0
      %789 = vmatpush1.bf16.msra.mxu0 0
      %790 = vmatprep.subr.bf16.mxu0 0
      %791 = vmatpush1.bf16.msra.mxu0 0
      %792 = vmatprep.subr.bf16.mxu0 0
      %793 = vmatpush1.bf16.msra.mxu0 0
      %794 = vmatprep.subr.bf16.mxu0 0
      %795 = vmatpush1.bf16.msra.mxu0 0
      %796 = vmatprep.subr.bf16.mxu0 0
      %797 = vmatpush1.bf16.msra.mxu0 0
      %798 = vmatprep.subr.bf16.mxu0 0
      %799 = vmatpush1.bf16.msra.mxu0 0
      %800 = vmatprep.subr.bf16.mxu0 0
      %801 = vmatpush1.bf16.msra.mxu0 0
      %802 = vmatprep.mubr.bf16.mxu0 0
      %803 = vmatmul.mubr.bf16.gmra.mrb[0].mxu0 %v718
      %v804 = vpop.f32.mrb[0].mxu0
      %v805 = vadd.f32 0.0, %v804
      %v806 = vpop.f32.mrb[0].mxu0
      %v807 = vpop.f32.mrb[0].mxu0
      %v808 = vpop.f32.mrb[0].mxu0
      %809 = vdwg.mxu0
      %v810 = vadd.f32 %v703, %v764
      %v811 = vadd.f32 %v704, %v766
      %v812 = vadd.f32 %v705, %v805
      %813 = vrot.lane.b32.xlu0 %v177, 80
      %v814 = vpop.permute.xlu0 %813
      %815 = vrot.lane.b32.xlu0 %v185, 92
      %v816 = vpop.permute.xlu0 %815
      %817 = vrot.lane.b32.xlu0 %v186, 92
      %v818 = vpop.permute.xlu0 %817
      %819 = vrot.lane.b32.xlu0 %v187, 92
      %v820 = vpop.permute.xlu0 %819
      %vm821 = vcmask 752640
      %v822 = vsel %vm821, %v816, %v818
      %v823 = vsel %vm821, %v818, %v820
      %v825 = vsel %vm197, %v814, 0
      %v828 = vsel %vm201, %v822, 0
      %v831 = vsel %vm201, %v823, 0
      %v834 = vsel %vm201, %v820, 0
      %836 = vmatprep.subr.bf16.mxu0 %v831
      %837 = vmatpush1.bf16.msra.mxu0 %v828
      %838 = vmatprep.subr.bf16.mxu0 0
      %839 = vmatpush1.bf16.msra.mxu0 0
      %840 = vmatprep.subr.bf16.mxu0 0
      %841 = vmatpush1.bf16.msra.mxu0 0
      %842 = vmatprep.subr.bf16.mxu0 0
      %843 = vmatpush1.bf16.msra.mxu0 0
      %844 = vmatprep.subr.bf16.mxu0 0
      %845 = vmatpush1.bf16.msra.mxu0 0
      %846 = vmatprep.subr.bf16.mxu0 0
      %847 = vmatpush1.bf16.msra.mxu0 0
      %848 = vmatprep.subr.bf16.mxu0 0
      %849 = vmatpush1.bf16.msra.mxu0 0
      %850 = vmatprep.subr.bf16.mxu0 0
      %851 = vmatpush1.bf16.msra.mxu0 0
      %852 = vmatprep.subr.bf16.mxu0 0
      %853 = vmatpush1.bf16.msra.mxu0 0
      %854 = vmatprep.subr.bf16.mxu0 0
      %855 = vmatpush1.bf16.msra.mxu0 0
      %856 = vmatprep.subr.bf16.mxu0 0
      %857 = vmatpush1.bf16.msra.mxu0 0
      %858 = vmatprep.subr.bf16.mxu0 0
      %859 = vmatpush1.bf16.msra.mxu0 0
      %860 = vmatprep.subr.bf16.mxu0 0
      %861 = vmatpush1.bf16.msra.mxu0 0
      %862 = vmatprep.subr.bf16.mxu0 0
      %863 = vmatpush1.bf16.msra.mxu0 0
      %864 = vmatprep.subr.bf16.mxu0 0
      %865 = vmatpush1.bf16.msra.mxu0 0
      %866 = vmatprep.subr.bf16.mxu0 0
      %867 = vmatpush1.bf16.msra.mxu0 0
      %868 = vmatprep.mubr.bf16.mxu0 0
      %869 = vmatmul.mubr.bf16.gmra.mrb[0].mxu0 %v825
      %v870 = vpop.f32.mrb[0].mxu0
      %v871 = vadd.f32 0.0, %v870
      %v872 = vpop.f32.mrb[0].mxu0
      %v873 = vadd.f32 0.0, %v872
      %v874 = vpop.f32.mrb[0].mxu0
      %v875 = vpop.f32.mrb[0].mxu0
      %876 = vdwg.mxu0
      %877 = vmatprep.subr.bf16.mxu0 0
      %878 = vmatpush1.bf16.msra.mxu0 %v834
      %879 = vmatprep.subr.bf16.mxu0 0
      %880 = vmatpush1.bf16.msra.mxu0 0
      %881 = vmatprep.subr.bf16.mxu0 0
      %882 = vmatpush1.bf16.msra.mxu0 0
      %883 = vmatprep.subr.bf16.mxu0 0
      %884 = vmatpush1.bf16.msra.mxu0 0
      %885 = vmatprep.subr.bf16.mxu0 0
      %886 = vmatpush1.bf16.msra.mxu0 0
      %887 = vmatprep.subr.bf16.mxu0 0
      %888 = vmatpush1.bf16.msra.mxu0 0
      %889 = vmatprep.subr.bf16.mxu0 0
      %890 = vmatpush1.bf16.msra.mxu0 0
      %891 = vmatprep.subr.bf16.mxu0 0
      %892 = vmatpush1.bf16.msra.mxu0 0
      %893 = vmatprep.subr.bf16.mxu0 0
      %894 = vmatpush1.bf16.msra.mxu0 0
      %895 = vmatprep.subr.bf16.mxu0 0
      %896 = vmatpush1.bf16.msra.mxu0 0
      %897 = vmatprep.subr.bf16.mxu0 0
      %898 = vmatpush1.bf16.msra.mxu0 0
      %899 = vmatprep.subr.bf16.mxu0 0
      %900 = vmatpush1.bf16.msra.mxu0 0
      %901 = vmatprep.subr.bf16.mxu0 0
      %902 = vmatpush1.bf16.msra.mxu0 0
      %903 = vmatprep.subr.bf16.mxu0 0
      %904 = vmatpush1.bf16.msra.mxu0 0
      %905 = vmatprep.subr.bf16.mxu0 0
      %906 = vmatpush1.bf16.msra.mxu0 0
      %907 = vmatprep.subr.bf16.mxu0 0
      %908 = vmatpush1.bf16.msra.mxu0 0
      %909 = vmatprep.mubr.bf16.mxu0 0
      %910 = vmatmul.mubr.bf16.gmra.mrb[0].mxu0 %v825
      %v911 = vpop.f32.mrb[0].mxu0
      %v912 = vadd.f32 0.0, %v911
      %v913 = vpop.f32.mrb[0].mxu0
      %v914 = vpop.f32.mrb[0].mxu0
      %v915 = vpop.f32.mrb[0].mxu0
      %916 = vdwg.mxu0
      %v917 = vadd.f32 %v810, %v871
      %v918 = vadd.f32 %v811, %v873
      %v919 = vadd.f32 %v812, %v912
      %920 = vrot.lane.b32.xlu0 %v177, 72
      %v921 = vpop.permute.xlu0 %920
      %922 = vrot.lane.b32.xlu0 %v185, 91
      %v923 = vpop.permute.xlu0 %922
      %924 = vrot.lane.b32.xlu0 %v186, 91
      %v925 = vpop.permute.xlu0 %924
      %926 = vrot.lane.b32.xlu0 %v187, 91
      %v927 = vpop.permute.xlu0 %926
      %vm928 = vcmask 744448
      %v929 = vsel %vm928, %v923, %v925
      %v930 = vsel %vm928, %v925, %v927
      %v932 = vsel %vm197, %v921, 0
      %v935 = vsel %vm201, %v929, 0
      %v938 = vsel %vm201, %v930, 0
      %v941 = vsel %vm201, %v927, 0
      %943 = vmatprep.subr.bf16.mxu0 %v938
      %944 = vmatpush1.bf16.msra.mxu0 %v935
      %945 = vmatprep.subr.bf16.mxu0 0
      %946 = vmatpush1.bf16.msra.mxu0 0
      %947 = vmatprep.subr.bf16.mxu0 0
      %948 = vmatpush1.bf16.msra.mxu0 0
      %949 = vmatprep.subr.bf16.mxu0 0
      %950 = vmatpush1.bf16.msra.mxu0 0
      %951 = vmatprep.subr.bf16.mxu0 0
      %952 = vmatpush1.bf16.msra.mxu0 0
      %953 = vmatprep.subr.bf16.mxu0 0
      %954 = vmatpush1.bf16.msra.mxu0 0
      %955 = vmatprep.subr.bf16.mxu0 0
      %956 = vmatpush1.bf16.msra.mxu0 0
      %957 = vmatprep.subr.bf16.mxu0 0
      %958 = vmatpush1.bf16.msra.mxu0 0
      %959 = vmatprep.subr.bf16.mxu0 0
      %960 = vmatpush1.bf16.msra.mxu0 0
      %961 = vmatprep.subr.bf16.mxu0 0
      %962 = vmatpush1.bf16.msra.mxu0 0
      %963 = vmatprep.subr.bf16.mxu0 0
      %964 = vmatpush1.bf16.msra.mxu0 0
      %965 = vmatprep.subr.bf16.mxu0 0
      %966 = vmatpush1.bf16.msra.mxu0 0
      %967 = vmatprep.subr.bf16.mxu0 0
      %968 = vmatpush1.bf16.msra.mxu0 0
      %969 = vmatprep.subr.bf16.mxu0 0
      %970 = vmatpush1.bf16.msra.mxu0 0
      %971 = vmatprep.subr.bf16.mxu0 0
      %972 = vmatpush1.bf16.msra.mxu0 0
      %973 = vmatprep.subr.bf16.mxu0 0
      %974 = vmatpush1.bf16.msra.mxu0 0
      %975 = vmatprep.mubr.bf16.mxu0 0
      %976 = vmatmul.mubr.bf16.gmra.mrb[0].mxu0 %v932
      %v977 = vpop.f32.mrb[0].mxu0
      %v978 = vadd.f32 0.0, %v977
      %v979 = vpop.f32.mrb[0].mxu0
      %v980 = vadd.f32 0.0, %v979
      %v981 = vpop.f32.mrb[0].mxu0
      %v982 = vpop.f32.mrb[0].mxu0
      %983 = vdwg.mxu0
      %984 = vmatprep.subr.bf16.mxu0 0
      %985 = vmatpush1.bf16.msra.mxu0 %v941
      %986 = vmatprep.subr.bf16.mxu0 0
      %987 = vmatpush1.bf16.msra.mxu0 0
      %988 = vmatprep.subr.bf16.mxu0 0
      %989 = vmatpush1.bf16.msra.mxu0 0
      %990 = vmatprep.subr.bf16.mxu0 0
      %991 = vmatpush1.bf16.msra.mxu0 0
      %992 = vmatprep.subr.bf16.mxu0 0
      %993 = vmatpush1.bf16.msra.mxu0 0
      %994 = vmatprep.subr.bf16.mxu0 0
      %995 = vmatpush1.bf16.msra.mxu0 0
      %996 = vmatprep.subr.bf16.mxu0 0
      %997 = vmatpush1.bf16.msra.mxu0 0
      %998 = vmatprep.subr.bf16.mxu0 0
      %999 = vmatpush1.bf16.msra.mxu0 0
      %1000 = vmatprep.subr.bf16.mxu0 0
      %1001 = vmatpush1.bf16.msra.mxu0 0
      %1002 = vmatprep.subr.bf16.mxu0 0
      %1003 = vmatpush1.bf16.msra.mxu0 0
      %1004 = vmatprep.subr.bf16.mxu0 0
      %1005 = vmatpush1.bf16.msra.mxu0 0
      %1006 = vmatprep.subr.bf16.mxu0 0
      %1007 = vmatpush1.bf16.msra.mxu0 0
      %1008 = vmatprep.subr.bf16.mxu0 0
      %1009 = vmatpush1.bf16.msra.mxu0 0
      %1010 = vmatprep.subr.bf16.mxu0 0
      %1011 = vmatpush1.bf16.msra.mxu0 0
      %1012 = vmatprep.subr.bf16.mxu0 0
      %1013 = vmatpush1.bf16.msra.mxu0 0
      %1014 = vmatprep.subr.bf16.mxu0 0
      %1015 = vmatpush1.bf16.msra.mxu0 0
      %1016 = vmatprep.mubr.bf16.mxu0 0
      %1017 = vmatmul.mubr.bf16.gmra.mrb[0].mxu0 %v932
      %v1018 = vpop.f32.mrb[0].mxu0
      %v1019 = vadd.f32 0.0, %v1018
      %v1020 = vpop.f32.mrb[0].mxu0
      %v1021 = vpop.f32.mrb[0].mxu0
      %v1022 = vpop.f32.mrb[0].mxu0
      %1023 = vdwg.mxu0
      %v1024 = vadd.f32 %v917, %v978
      %v1025 = vadd.f32 %v918, %v980
      %v1026 = vadd.f32 %v919, %v1019
      %1027 = vrot.lane.b32.xlu0 %v177, 64
      %v1028 = vpop.permute.xlu0 %1027
      %1029 = vrot.lane.b32.xlu0 %v185, 90
      %v1030 = vpop.permute.xlu0 %1029
      %1031 = vrot.lane.b32.xlu0 %v186, 90
      %v1032 = vpop.permute.xlu0 %1031
      %1033 = vrot.lane.b32.xlu0 %v187, 90
      %v1034 = vpop.permute.xlu0 %1033
      %vm1035 = vcmask 736256
      %v1036 = vsel %vm1035, %v1030, %v1032
      %v1037 = vsel %vm1035, %v1032, %v1034
      %v1039 = vsel %vm197, %v1028, 0
      %v1042 = vsel %vm201, %v1036, 0
      %v1045 = vsel %vm201, %v1037, 0
      %v1048 = vsel %vm201, %v1034, 0
      %1050 = vmatprep.subr.bf16.mxu0 %v1045
      %1051 = vmatpush1.bf16.msra.mxu0 %v1042
      %1052 = vmatprep.subr.bf16.mxu0 0
      %1053 = vmatpush1.bf16.msra.mxu0 0
      %1054 = vmatprep.subr.bf16.mxu0 0
      %1055 = vmatpush1.bf16.msra.mxu0 0
      %1056 = vmatprep.subr.bf16.mxu0 0
      %1057 = vmatpush1.bf16.msra.mxu0 0
      %1058 = vmatprep.subr.bf16.mxu0 0
      %1059 = vmatpush1.bf16.msra.mxu0 0
      %1060 = vmatprep.subr.bf16.mxu0 0
      %1061 = vmatpush1.bf16.msra.mxu0 0
      %1062 = vmatprep.subr.bf16.mxu0 0
      %1063 = vmatpush1.bf16.msra.mxu0 0
      %1064 = vmatprep.subr.bf16.mxu0 0
      %1065 = vmatpush1.bf16.msra.mxu0 0
      %1066 = vmatprep.subr.bf16.mxu0 0
      %1067 = vmatpush1.bf16.msra.mxu0 0
      %1068 = vmatprep.subr.bf16.mxu0 0
      %1069 = vmatpush1.bf16.msra.mxu0 0
      %1070 = vmatprep.subr.bf16.mxu0 0
      %1071 = vmatpush1.bf16.msra.mxu0 0
      %1072 = vmatprep.subr.bf16.mxu0 0
      %1073 = vmatpush1.bf16.msra.mxu0 0
      %1074 = vmatprep.subr.bf16.mxu0 0
      %1075 = vmatpush1.bf16.msra.mxu0 0
      %1076 = vmatprep.subr.bf16.mxu0 0
      %1077 = vmatpush1.bf16.msra.mxu0 0
      %1078 = vmatprep.subr.bf16.mxu0 0
      %1079 = vmatpush1.bf16.msra.mxu0 0
      %1080 = vmatprep.subr.bf16.mxu0 0
      %1081 = vmatpush1.bf16.msra.mxu0 0
      %1082 = vmatprep.mubr.bf16.mxu0 0
      %1083 = vmatmul.mubr.bf16.gmra.mrb[0].mxu0 %v1039
      %v1084 = vpop.f32.mrb[0].mxu0
      %v1085 = vadd.f32 0.0, %v1084
      %v1086 = vpop.f32.mrb[0].mxu0
      %v1087 = vadd.f32 0.0, %v1086
      %v1088 = vpop.f32.mrb[0].mxu0
      %v1089 = vpop.f32.mrb[0].mxu0
      %1090 = vdwg.mxu0
      %1091 = vmatprep.subr.bf16.mxu0 0
      %1092 = vmatpush1.bf16.msra.mxu0 %v1048
      %1093 = vmatprep.subr.bf16.mxu0 0
      %1094 = vmatpush1.bf16.msra.mxu0 0
      %1095 = vmatprep.subr.bf16.mxu0 0
      %1096 = vmatpush1.bf16.msra.mxu0 0
      %1097 = vmatprep.subr.bf16.mxu0 0
      %1098 = vmatpush1.bf16.msra.mxu0 0
      %1099 = vmatprep.subr.bf16.mxu0 0
      %1100 = vmatpush1.bf16.msra.mxu0 0
      %1101 = vmatprep.subr.bf16.mxu0 0
      %1102 = vmatpush1.bf16.msra.mxu0 0
      %1103 = vmatprep.subr.bf16.mxu0 0
      %1104 = vmatpush1.bf16.msra.mxu0 0
      %1105 = vmatprep.subr.bf16.mxu0 0
      %1106 = vmatpush1.bf16.msra.mxu0 0
      %1107 = vmatprep.subr.bf16.mxu0 0
      %1108 = vmatpush1.bf16.msra.mxu0 0
      %1109 = vmatprep.subr.bf16.mxu0 0
      %1110 = vmatpush1.bf16.msra.mxu0 0
      %1111 = vmatprep.subr.bf16.mxu0 0
      %1112 = vmatpush1.bf16.msra.mxu0 0
      %1113 = vmatprep.subr.bf16.mxu0 0
      %1114 = vmatpush1.bf16.msra.mxu0 0
      %1115 = vmatprep.subr.bf16.mxu0 0
      %1116 = vmatpush1.bf16.msra.mxu0 0
      %1117 = vmatprep.subr.bf16.mxu0 0
      %1118 = vmatpush1.bf16.msra.mxu0 0
      %1119 = vmatprep.subr.bf16.mxu0 0
      %1120 = vmatpush1.bf16.msra.mxu0 0
      %1121 = vmatprep.subr.bf16.mxu0 0
      %1122 = vmatpush1.bf16.msra.mxu0 0
      %1123 = vmatprep.mubr.bf16.mxu0 0
      %1124 = vmatmul.mubr.bf16.gmra.mrb[0].mxu0 %v1039
      %v1125 = vpop.f32.mrb[0].mxu0
      %v1126 = vadd.f32 0.0, %v1125
      %v1127 = vpop.f32.mrb[0].mxu0
      %v1128 = vpop.f32.mrb[0].mxu0
      %v1129 = vpop.f32.mrb[0].mxu0
      %1130 = vdwg.mxu0
      %v1131 = vadd.f32 %v1024, %v1085
      %v1132 = vadd.f32 %v1025, %v1087
      %v1133 = vadd.f32 %v1026, %v1126
      %v1134 = vld [vmem:[%s2] sm:$0xff]
      %1136 = vset.pattern.permute.xlu0 0
      %1137 = vperm.xlu0 %1136, %v1134
      %v1138 = vpop.permute.xlu0 %1137
      %v1140 = vadd.f32 %v1131, %v1138
      %v1141 = vadd.f32 %v1132, %v1138
      %v1142 = vadd.f32 %v1133, %v1138
      %v1143 = vmax.f32 %v1140, 0.0
      %v1144 = vmax.f32 %v1141, 0.0
      %v1145 = vmax.f32 %v1142, 0.0
      %v1146 = vpack.c.bf16 %v1143, %v1143
      %v1147 = vpack.c.bf16 %v1144, %v1144
      %v1148 = vpack.c.bf16 %v1145, %v1145
      %v1152 = vunpack.c.l.b16 %v1146
      %v1153 = vunpack.c.l.b16 %v1147
      %v1154 = vunpack.c.l.b16 %v1148
      %v1155 = vpack.c.b16 %v1153, %v1152
      %v1156 = vpack.c.b16 %v1154, %v1154
      %1159 = vst [vmem:[%s170] sm:$0xff] %v1155
      %vm1160 = vcmask 257024
      %1161 = vst.msk [vmem:[%s170 + $0x8] sm:$0xf] %vm1160, %v1156
      %p1162 = scmp.lt.s32.totalorder %s14, 1
      %s1163 = scalar_select %p1162, %s14, 1
      %s1164 = smul.addr %s1163, 3
      %s1165 = smul.addr %s1164, 4
      %s1166 = scalar_lea.vmem %s3, %s1165
      // Predicated region
      $region33: #{forward.5} parent=31 // pred_check
        %p1167 = pneg %p100
      $region34: #{forward.5} parent=31 // pred_check_branch
        %1169 = sbr.rel (%p1167) target = $region36
      $region35: #{forward.5} parent=31 // pred_region
        _
      $region36: #{forward.5} parent=31 // pred_fallthru
        _
    $region32: #{forward.5} parent=5 // pred_fallthru
      _
    %p1170 = scmp.le.s32.totalorder 2, %s9
    // Predicated region
    $region37: #{forward.5} parent=5 // pred_check
      %p1171 = pneg %p1170
    $region38: #{forward.5} parent=5 // pred_check_branch
      %1173 = sbr.rel (%p1171) target = $region40
    $region39: #{forward.5} parent=5 // pred_region
      %s1174 = ssub.s32 %s9, 2
      // Predicated region
      $region41: #{forward.5} parent=39 // pred_check
        %p1175 = pneg %p106
      $region42: #{forward.5} parent=39 // pred_check_branch
        %1177 = sbr.rel (%p1175) target = $region44
      $region43: #{forward.5} parent=39 // pred_region
        %p1178 = scmp.lt.s32.totalorder %s15, 1
        %s1179 = scalar_select %p1178, %s15, 1
        %s1180 = smul.addr %s1179, 3
        %s1181 = smul.addr %s1180, 4
        %s1182 = scalar_lea.vmem %s3, %s1181
      $region44: #{forward.5} parent=39 // pred_fallthru
        _
    $region40: #{forward.5} parent=5 // pred_fallthru
      _
  $region6: #{forward.5} parent=0 // loop_footer
    %s13 = sadd.s32 1, %s9
  $region7: #{forward.5} parent=0 // loop_footer_branch
    %8 = sbr.rel target = $region3
  $region8: #{forward.5} parent=0 // loop_exit
    _

// kernel: forward.7
$region0: #{forward.7}
  #allocation0 [shape = 'u32[]', space=smem, size = 0x4, offset = 0x4, fixed_abs, tag = 'smem constant byte address 0x4 - core index']
  #allocation1 [shape = 'u32[144,128]{1,0:T(1,128)}', space=vmem, size = 0x12000, scoped, tag = 'internal scratch']
  %s0 = inlined_call_operand.vmem [shape: bf16[2,8,488], index: 0, kind: input, shape index: {}]
  %s1 = inlined_call_operand.vmem [shape: bf16[24,200], index: 1, kind: input, shape index: {}]
  %s2 = inlined_call_operand.vmem [shape: f32[24,1], index: 2, kind: input, shape index: {}]
  %s3 = inlined_call_operand.vmem [shape: bf16[2,24,396], index: 3, kind: output, shape index: {}]
  %s4 = sld [smem:[#allocation0]]
  $region45: #{forward.7} parent=0
    _
  %s6 = ssub.s32 1, %s4
  %s7 = scalar_select 0, %s6, %s4
  loop: start=0, step=1, limit=4
  $region2: #{forward.7} parent=0 // loop_pre_header
    _
  $region3: #{forward.7} parent=0 // loop_header
    %s9 = sphi 0, %s13
    %p10 = scmp.ge.s32.totalorder %s9, 4
    %s19 = sphi 0, %s21
    %s22 = sphi 0, %s19
    %s23 = sphi 0, %s22
    %s39 = sphi 0, %s23
    %s43 = sphi 0, %s43
    %s45 = sphi 0, %s43
    %s46 = sphi 0, %s45
    %s60 = sphi 0, %s46
    %s64 = sphi 0, %s64
    %s66 = sphi 0, %s64
    %s67 = sphi 0, %s66
    %s81 = sphi 0, %s67
    %s87 = sphi 0, %s89
    %s90 = sphi 0, %s87
    %s91 = sphi 0, %s90
    %s107 = sphi 0, %s91
  $region4: #{forward.7} parent=0 // loop_header_branch
    %12 = sbr.rel (%p10) target = $region8
  $region5: #{forward.7} parent=0 // loop_body
    %s14 = ssub.s32 %s9, 1
    %s15 = ssub.s32 %s9, 2
    %s16 = sadd.s32 %s9, 1
    %s17 = ssub.s32 %s9, %s16
    %p18 = scmp.eq.s32.totalorder %s17, 0
    %s20 = sadd.s32 %s19, 1
    %s21 = scalar_select %p18, %s19, %s20
    %p24 = pneg %p18
    %p25 = scmp.eq.s32.totalorder %s9, 1
    %p26 = por %p24, %p25
    %p27 = scmp.ne.s32.totalorder %s19, %s22
    %p28 = scmp.eq.s32.totalorder %s9, 0
    %p29 = por %p27, %p28
    %p30 = scmp.ne.s32.totalorder %s19, %s22
    %p31 = scmp.eq.s32.totalorder %s14, 1
    %p32 = por %p30, %p31
    %p33 = scmp.ne.s32.totalorder %s22, %s23
    %p34 = scmp.eq.s32.totalorder %s14, 0
    %p35 = por %p33, %p34
    %p36 = scmp.ne.s32.totalorder %s22, %s23
    %p37 = scmp.eq.s32.totalorder %s15, 1
    %p38 = por %p36, %p37
    %p40 = scmp.ne.s32.totalorder %s23, %s39
    %p41 = scmp.eq.s32.totalorder %s15, 0
    %p42 = por %p40, %p41
    %s44 = sadd.s32 %s43, 1
    %p47 = scmp.eq.s32.totalorder %s9, 1
    %p48 = scmp.ne.s32.totalorder %s43, %s45
    %p49 = scmp.eq.s32.totalorder %s9, 0
    %p50 = por %p48, %p49
    %p51 = scmp.ne.s32.totalorder %s43, %s45
    %p52 = scmp.eq.s32.totalorder %s14, 1
    %p53 = por %p51, %p52
    %p54 = scmp.ne.s32.totalorder %s45, %s46
    %p55 = scmp.eq.s32.totalorder %s14, 0
    %p56 = por %p54, %p55
    %p57 = scmp.ne.s32.totalorder %s45, %s46
    %p58 = scmp.eq.s32.totalorder %s15, 1
    %p59 = por %p57, %p58
    %p61 = scmp.ne.s32.totalorder %s46, %s60
    %p62 = scmp.eq.s32.totalorder %s15, 0
    %p63 = por %p61, %p62
    %s65 = sadd.s32 %s64, 1
    %p68 = scmp.eq.s32.totalorder %s9, 1
    %p69 = scmp.ne.s32.totalorder %s64, %s66
    %p70 = scmp.eq.s32.totalorder %s9, 0
    %p71 = por %p69, %p70
    %p72 = scmp.ne.s32.totalorder %s64, %s66
    %p73 = scmp.eq.s32.totalorder %s14, 1
    %p74 = por %p72, %p73
    %p75 = scmp.ne.s32.totalorder %s66, %s67
    %p76 = scmp.eq.s32.totalorder %s14, 0
    %p77 = por %p75, %p76
    %p78 = scmp.ne.s32.totalorder %s66, %s67
    %p79 = scmp.eq.s32.totalorder %s15, 1
    %p80 = por %p78, %p79
    %p82 = scmp.ne.s32.totalorder %s67, %s81
    %p83 = scmp.eq.s32.totalorder %s15, 0
    %p84 = por %p82, %p83
    %s85 = ssub.s32 %s9, %s16
    %p86 = scmp.eq.s32.totalorder %s85, 0
    %s88 = sadd.s32 %s87, 1
    %s89 = scalar_select %p86, %s87, %s88
    %p92 = pneg %p86
    %p93 = scmp.eq.s32.totalorder %s9, 1
    %p94 = por %p92, %p93
    %p95 = scmp.ne.s32.totalorder %s87, %s90
    %p96 = scmp.eq.s32.totalorder %s9, 0
    %p97 = por %p95, %p96
    %p98 = scmp.ne.s32.totalorder %s87, %s90
    %p99 = scmp.eq.s32.totalorder %s14, 1
    %p100 = por %p98, %p99
    %p101 = scmp.ne.s32.totalorder %s90, %s91
    %p102 = scmp.eq.s32.totalorder %s14, 0
    %p103 = por %p101, %p102
    %p104 = scmp.ne.s32.totalorder %s90, %s91
    %p105 = scmp.eq.s32.totalorder %s15, 1
    %p106 = por %p104, %p105
    %p108 = scmp.ne.s32.totalorder %s91, %s107
    %p109 = scmp.eq.s32.totalorder %s15, 0
    %p110 = por %p108, %p109
    %p111 = scmp.le.s32.totalorder 1, %s9
    %p112 = scmp.lt.s32.totalorder %s9, 3
    %p113 = pnand %p111, %p112
    %p114 = pneg %p113
    // Predicated region
    $region9: #{forward.7} parent=5 // pred_check
      _
    $region10: #{forward.7} parent=5 // pred_check_branch
      %116 = sbr.rel (%p113) target = $region12
    $region11: #{forward.7} parent=5 // pred_region
      %s117 = ssub.s32 %s9, 1
      // Predicated region
      $region13: #{forward.7} parent=11 // pred_check
        %p118 = pneg %p56
      $region14: #{forward.7} parent=11 // pred_check_branch
        %120 = sbr.rel (%p118) target = $region16
      $region15: #{forward.7} parent=11 // pred_region
        _
      $region16: #{forward.7} parent=11 // pred_fallthru
        _
      // Predicated region
      $region17: #{forward.7} parent=11 // pred_check
        %p121 = pneg %p77
      $region18: #{forward.7} parent=11 // pred_check_branch
        %123 = sbr.rel (%p121) target = $region20
      $region19: #{forward.7} parent=11 // pred_region
        _
      $region20: #{forward.7} parent=11 // pred_fallthru
        _
    $region12: #{forward.7} parent=5 // pred_fallthru
      _
    %p124 = scmp.lt.s32.totalorder %s9, 2
    // Predicated region
    $region21: #{forward.7} parent=5 // pred_check
      %p125 = pneg %p124
    $region22: #{forward.7} parent=5 // pred_check_branch
      %127 = sbr.rel (%p125) target = $region24
    $region23: #{forward.7} parent=5 // pred_region
      // Predicated region
      $region25: #{forward.7} parent=23 // pred_check
        %p128 = pneg %p29
      $region26: #{forward.7} parent=23 // pred_check_branch
        %130 = sbr.rel (%p128) target = $region28
      $region27: #{forward.7} parent=23 // pred_region
        %p131 = scmp.lt.s32.totalorder %s9, 1
        %s132 = scalar_select %p131, %s9, 1
        %s133 = smul.addr %s132, 4
        %s134 = smul.addr %s133, 4
        %s135 = scalar_lea.vmem %s0, %s134
      $region28: #{forward.7} parent=23 // pred_fallthru
        _
    $region24: #{forward.7} parent=5 // pred_fallthru
      _
    %p136 = scmp.le.s32.totalorder 1, %s9
    %p137 = scmp.lt.s32.totalorder %s9, 3
    %p138 = pnand %p136, %p137
    %p139 = pneg %p138
    // Predicated region
    $region29: #{forward.7} parent=5 // pred_check
      _
    $region30: #{forward.7} parent=5 // pred_check_branch
      %141 = sbr.rel (%p138) target = $region32
    $region31: #{forward.7} parent=5 // pred_region
      %s142 = ssub.s32 %s9, 1
      %p143 = scmp.lt.s32.totalorder %s14, 1
      %s144 = scalar_select %p143, %s14, 1
      %s145 = smul.addr %s144, 4
      %s146 = smul.addr %s145, 4
      %s147 = scalar_lea.vmem %s0, %s146
      %p148 = pneg %p35
      %p149 = pneg %p32
      %p150 = pneg %p56
      %p151 = pneg %p53
      %p152 = pneg %p77
      %p153 = pneg %p74
      %p154 = pneg %p103
      %p155 = pneg %p100
      %p156 = scmp.lt.s32.totalorder %s14, 1
      %s157 = scalar_select %p156, %s14, 1
      %s158 = smul.addr %s157, 12
      %s159 = smul.addr %s158, 4
      %s160 = scalar_lea.vmem %s3, %s159
      %p161 = scmp.lt.s32.totalorder %s14, 1
      %s162 = scalar_select %p161, %s14, 1
      %s163 = smul.addr %s162, 4
      %s164 = smul.addr %s163, 4
      %s165 = scalar_lea.vmem %s0, %s164
      %p166 = scmp.lt.s32.totalorder %s14, 1
      %s167 = scalar_select %p166, %s14, 1
      %s168 = smul.addr %s167, 12
      %s169 = smul.addr %s168, 4
      %s170 = scalar_lea.vmem %s3, %s169
      %v172 = vld [vmem:[%s165] sm:$0xff]
      %v173 = vld [vmem:[%s165 + $0x8] sm:$0xff]
      %v174 = vld [vmem:[%s1] sm:$0xff]
      %v175 = vld [vmem:[%s1 + $0x8] sm:$0xff]
      %v176 = vld [vmem:[%s1 + $0x10] sm:$0xff]
      %v180 = vunpack.c.l.b16 %v174
      %v181 = vunpack.c.l.b16 %v175
      %v182 = vunpack.c.l.b16 %v176
      %v183 = vpack.c.b16 %v181, %v180
      %v184 = vpack.c.b16 %v182, %v182
      %185 = vrot.lane.b32.xlu0 %v183, 120
      %v186 = vpop.permute.xlu0 %185
      %187 = vrot.lane.b32.xlu0 %v184, 120
      %v188 = vpop.permute.xlu0 %187
      %v191 = vunpack.c.l.b16 %v172
      %v192 = vunpack.c.h.b16 %v172
      %v193 = vunpack.c.l.b16 %v173
      %v194 = vunpack.c.h.b16 %v173
      %v195 = vpack.c.b16 %v191, %v191
      %v196 = vpack.c.b16 %v192, %v192
      %v197 = vpack.c.b16 %v193, %v193
      %v198 = vpack.c.b16 %v194, %v194
      %199 = vrot.lane.b32.xlu0 %v195, 127
      %v200 = vpop.permute.xlu0 %199
      %201 = vrot.lane.b32.xlu0 %v196, 127
      %v202 = vpop.permute.xlu0 %201
      %203 = vrot.lane.b32.xlu0 %v197, 127
      %v204 = vpop.permute.xlu0 %203
      %205 = vrot.lane.b32.xlu0 %v198, 127
      %v206 = vpop.permute.xlu0 %205
      %vm207 = vcmask 1039360
      %v208 = vsel %vm207, %v200, %v202
      %v209 = vsel %vm207, %v202, %v204
      %v210 = vsel %vm207, %v204, %v206
      %vm211 = vcmask 64512
      %v213 = vsel %vm211, %v186, 0
      %v216 = vsel %vm211, %v188, 0
      %vm218 = vcmask 1043456
      %v220 = vsel %vm218, %v208, 0
      %v223 = vsel %vm218, %v209, 0
      %v226 = vsel %vm218, %v210, 0
      %v229 = vsel %vm218, %v206, 0
      %231 = vmatprep.subr.bf16.mxu0 %v223
      %232 = vmatpush1.bf16.msra.mxu0 %v220
      %233 = vmatprep.subr.bf16.mxu0 0
      %234 = vmatpush1.bf16.msra.mxu0 0
      %235 = vmatprep.subr.bf16.mxu0 0
      %236 = vmatpush1.bf16.msra.mxu0 0
      %237 = vmatprep.subr.bf16.mxu0 0
      %238 = vmatpush1.bf16.msra.mxu0 0
      %239 = vmatprep.subr.bf16.mxu0 0
      %240 = vmatpush1.bf16.msra.mxu0 0
      %241 = vmatprep.subr.bf16.mxu0 0
      %242 = vmatpush1.bf16.msra.mxu0 0
      %243 = vmatprep.subr.bf16.mxu0 0
      %244 = vmatpush1.bf16.msra.mxu0 0
      %245 = vmatprep.subr.bf16.mxu0 0
      %246 = vmatpush1.bf16.msra.mxu0 0
      %247 = vmatprep.subr.bf16.mxu0 0
      %248 = vmatpush1.bf16.msra.mxu0 0
      %249 = vmatprep.subr.bf16.mxu0 0
      %250 = vmatpush1.bf16.msra.mxu0 0
      %251 = vmatprep.subr.bf16.mxu0 0
      %252 = vmatpush1.bf16.msra.mxu0 0
      %253 = vmatprep.subr.bf16.mxu0 0
      %254 = vmatpush1.bf16.msra.mxu0 0
      %255 = vmatprep.subr.bf16.mxu0 0
      %256 = vmatpush1.bf16.msra.mxu0 0
      %257 = vmatprep.subr.bf16.mxu0 0
      %258 = vmatpush1.bf16.msra.mxu0 0
      %259 = vmatprep.subr.bf16.mxu0 0
      %260 = vmatpush1.bf16.msra.mxu0 0
      %261 = vmatprep.subr.bf16.mxu0 0
      %262 = vmatpush1.bf16.msra.mxu0 0
      %263 = vmatprep.mubr.bf16.mxu0 0
      %264 = vmatmul.mubr.bf16.gmra.mrb[0].mxu0 %v213
      %v265 = vpop.f32.mrb[0].mxu0
      %v266 = vadd.f32 0.0, %v265
      %v267 = vpop.f32.mrb[0].mxu0
      %v268 = vadd.f32 0.0, %v267
      %v269 = vpop.f32.mrb[0].mxu0
      %v270 = vadd.f32 0.0, %v269
      %v271 = vpop.f32.mrb[0].mxu0
      %v272 = vadd.f32 0.0, %v271
      %273 = vmatprep.mubr.bf16.mxu0 0
      %274 = vmatmul.mubr.bf16.gmra.mrb[0].mxu0 %v216
      %v275 = vpop.f32.mrb[0].mxu0
      %v276 = vadd.f32 0.0, %v275
      %v277 = vpop.f32.mrb[0].mxu0
      %v278 = vadd.f32 0.0, %v277
      %v279 = vpop.f32.mrb[0].mxu0
      %v280 = vpop.f32.mrb[0].mxu0
      %281 = vdwg.mxu0
      %282 = vmatprep.subr.bf16.mxu0 %v229
      %283 = vmatpush1.bf16.msra.mxu0 %v226
      %284 = vmatprep.subr.bf16.mxu0 0
      %285 = vmatpush1.bf16.msra.mxu0 0
      %286 = vmatprep.subr.bf16.mxu0 0
      %287 = vmatpush1.bf16.msra.mxu0 0
      %288 = vmatprep.subr.bf16.mxu0 0
      %289 = vmatpush1.bf16.msra.mxu0 0
      %290 = vmatprep.subr.bf16.mxu0 0
      %291 = vmatpush1.bf16.msra.mxu0 0
      %292 = vmatprep.subr.bf16.mxu0 0
      %293 = vmatpush1.bf16.msra.mxu0 0
      %294 = vmatprep.subr.bf16.mxu0 0
      %295 = vmatpush1.bf16.msra.mxu0 0
      %296 = vmatprep.subr.bf16.mxu0 0
      %297 = vmatpush1.bf16.msra.mxu0 0
      %298 = vmatprep.subr.bf16.mxu0 0
      %299 = vmatpush1.bf16.msra.mxu0 0
      %300 = vmatprep.subr.bf16.mxu0 0
      %301 = vmatpush1.bf16.msra.mxu0 0
      %302 = vmatprep.subr.bf16.mxu0 0
      %303 = vmatpush1.bf16.msra.mxu0 0
      %304 = vmatprep.subr.bf16.mxu0 0
      %305 = vmatpush1.bf16.msra.mxu0 0
      %306 = vmatprep.subr.bf16.mxu0 0
      %307 = vmatpush1.bf16.msra.mxu0 0
      %308 = vmatprep.subr.bf16.mxu0 0
      %309 = vmatpush1.bf16.msra.mxu0 0
      %310 = vmatprep.subr.bf16.mxu0 0
      %311 = vmatpush1.bf16.msra.mxu0 0
      %312 = vmatprep.subr.bf16.mxu0 0
      %313 = vmatpush1.bf16.msra.mxu0 0
      %314 = vmatprep.mubr.bf16.mxu0 0
      %315 = vmatmul.mubr.bf16.gmra.mrb[0].mxu0 %v213
      %v316 = vpop.f32.mrb[0].mxu0
      %v317 = vadd.f32 0.0, %v316
      %v318 = vpop.f32.mrb[0].mxu0
      %v319 = vadd.f32 0.0, %v318
      %v320 = vpop.f32.mrb[0].mxu0
      %v321 = vadd.f32 0.0, %v320
      %v322 = vpop.f32.mrb[0].mxu0
      %v323 = vadd.f32 0.0, %v322
      %324 = vmatprep.mubr.bf16.mxu0 0
      %325 = vmatmul.mubr.bf16.gmra.mrb[0].mxu0 %v216
      %v326 = vpop.f32.mrb[0].mxu0
      %v327 = vadd.f32 0.0, %v326
      %v328 = vpop.f32.mrb[0].mxu0
      %v329 = vadd.f32 0.0, %v328
      %v330 = vpop.f32.mrb[0].mxu0
      %v331 = vpop.f32.mrb[0].mxu0
      %332 = vdwg.mxu0
      %v334 = vsel %vm211, %v183, 0
      %v337 = vsel %vm211, %v184, 0
      %v340 = vsel %vm218, %v195, 0
      %v343 = vsel %vm218, %v196, 0
      %v346 = vsel %vm218, %v197, 0
      %v349 = vsel %vm218, %v198, 0
      %351 = vmatprep.subr.bf16.mxu0 %v343
      %352 = vmatpush1.bf16.msra.mxu0 %v340
      %353 = vmatprep.subr.bf16.mxu0 0
      %354 = vmatpush1.bf16.msra.mxu0 0
      %355 = vmatprep.subr.bf16.mxu0 0
      %356 = vmatpush1.bf16.msra.mxu0 0
      %357 = vmatprep.subr.bf16.mxu0 0
      %358 = vmatpush1.bf16.msra.mxu0 0
      %359 = vmatprep.subr.bf16.mxu0 0
      %360 = vmatpush1.bf16.msra.mxu0 0
      %361 = vmatprep.subr.bf16.mxu0 0
      %362 = vmatpush1.bf16.msra.mxu0 0
      %363 = vmatprep.subr.bf16.mxu0 0
      %364 = vmatpush1.bf16.msra.mxu0 0
      %365 = vmatprep.subr.bf16.mxu0 0
      %366 = vmatpush1.bf16.msra.mxu0 0
      %367 = vmatprep.subr.bf16.mxu0 0
      %368 = vmatpush1.bf16.msra.mxu0 0
      %369 = vmatprep.subr.bf16.mxu0 0
      %370 = vmatpush1.bf16.msra.mxu0 0
      %371 = vmatprep.subr.bf16.mxu0 0
      %372 = vmatpush1.bf16.msra.mxu0 0
      %373 = vmatprep.subr.bf16.mxu0 0
      %374 = vmatpush1.bf16.msra.mxu0 0
      %375 = vmatprep.subr.bf16.mxu0 0
      %376 = vmatpush1.bf16.msra.mxu0 0
      %377 = vmatprep.subr.bf16.mxu0 0
      %378 = vmatpush1.bf16.msra.mxu0 0
      %379 = vmatprep.subr.bf16.mxu0 0
      %380 = vmatpush1.bf16.msra.mxu0 0
      %381 = vmatprep.subr.bf16.mxu0 0
      %382 = vmatpush1.bf16.msra.mxu0 0
      %383 = vmatprep.mubr.bf16.mxu0 0
      %384 = vmatmul.mubr.bf16.gmra.mrb[0].mxu0 %v334
      %v385 = vpop.f32.mrb[0].mxu0
      %v386 = vadd.f32 %v266, %v385
      %v387 = vpop.f32.mrb[0].mxu0
      %v388 = vadd.f32 %v268, %v387
      %v389 = vpop.f32.mrb[0].mxu0
      %v390 = vadd.f32 %v270, %v389
      %v391 = vpop.f32.mrb[0].mxu0
      %v392 = vadd.f32 %v272, %v391
      %393 = vmatprep.mubr.bf16.mxu0 0
      %394 = vmatmul.mubr.bf16.gmra.mrb[0].mxu0 %v337
      %v395 = vpop.f32.mrb[0].mxu0
      %v396 = vadd.f32 %v276, %v395
      %v397 = vpop.f32.mrb[0].mxu0
      %v398 = vadd.f32 %v278, %v397
      %v399 = vpop.f32.mrb[0].mxu0
      %v400 = vpop.f32.mrb[0].mxu0
      %401 = vdwg.mxu0
      %402 = vmatprep.subr.bf16.mxu0 %v349
      %403 = vmatpush1.bf16.msra.mxu0 %v346
      %404 = vmatprep.subr.bf16.mxu0 0
      %405 = vmatpush1.bf16.msra.mxu0 0
      %406 = vmatprep.subr.bf16.mxu0 0
      %407 = vmatpush1.bf16.msra.mxu0 0
      %408 = vmatprep.subr.bf16.mxu0 0
      %409 = vmatpush1.bf16.msra.mxu0 0
      %410 = vmatprep.subr.bf16.mxu0 0
      %411 = vmatpush1.bf16.msra.mxu0 0
      %412 = vmatprep.subr.bf16.mxu0 0
      %413 = vmatpush1.bf16.msra.mxu0 0
      %414 = vmatprep.subr.bf16.mxu0 0
      %415 = vmatpush1.bf16.msra.mxu0 0
      %416 = vmatprep.subr.bf16.mxu0 0
      %417 = vmatpush1.bf16.msra.mxu0 0
      %418 = vmatprep.subr.bf16.mxu0 0
      %419 = vmatpush1.bf16.msra.mxu0 0
      %420 = vmatprep.subr.bf16.mxu0 0
      %421 = vmatpush1.bf16.msra.mxu0 0
      %422 = vmatprep.subr.bf16.mxu0 0
      %423 = vmatpush1.bf16.msra.mxu0 0
      %424 = vmatprep.subr.bf16.mxu0 0
      %425 = vmatpush1.bf16.msra.mxu0 0
      %426 = vmatprep.subr.bf16.mxu0 0
      %427 = vmatpush1.bf16.msra.mxu0 0
      %428 = vmatprep.subr.bf16.mxu0 0
      %429 = vmatpush1.bf16.msra.mxu0 0
      %430 = vmatprep.subr.bf16.mxu0 0
      %431 = vmatpush1.bf16.msra.mxu0 0
      %432 = vmatprep.subr.bf16.mxu0 0
      %433 = vmatpush1.bf16.msra.mxu0 0
      %434 = vmatprep.mubr.bf16.mxu0 0
      %435 = vmatmul.mubr.bf16.gmra.mrb[0].mxu0 %v334
      %v436 = vpop.f32.mrb[0].mxu0
      %v437 = vadd.f32 %v317, %v436
      %v438 = vpop.f32.mrb[0].mxu0
      %v439 = vadd.f32 %v319, %v438
      %v440 = vpop.f32.mrb[0].mxu0
      %v441 = vadd.f32 %v321, %v440
      %v442 = vpop.f32.mrb[0].mxu0
      %v443 = vadd.f32 %v323, %v442
      %444 = vmatprep.mubr.bf16.mxu0 0
      %445 = vmatmul.mubr.bf16.gmra.mrb[0].mxu0 %v337
      %v446 = vpop.f32.mrb[0].mxu0
      %v447 = vadd.f32 %v327, %v446
      %v448 = vpop.f32.mrb[0].mxu0
      %v449 = vadd.f32 %v329, %v448
      %v450 = vpop.f32.mrb[0].mxu0
      %v451 = vpop.f32.mrb[0].mxu0
      %452 = vdwg.mxu0
      %453 = vrot.lane.b32.xlu0 %v183, 112
      %v454 = vpop.permute.xlu0 %453
      %455 = vrot.lane.b32.xlu0 %v184, 112
      %v456 = vpop.permute.xlu0 %455
      %457 = vrot.lane.b32.xlu0 %v195, 126
      %v458 = vpop.permute.xlu0 %457
      %459 = vrot.lane.b32.xlu0 %v196, 126
      %v460 = vpop.permute.xlu0 %459
      %461 = vrot.lane.b32.xlu0 %v197, 126
      %v462 = vpop.permute.xlu0 %461
      %463 = vrot.lane.b32.xlu0 %v198, 126
      %v464 = vpop.permute.xlu0 %463
      %vm465 = vcmask 1031168
      %v466 = vsel %vm465, %v458, %v460
      %v467 = vsel %vm465, %v460, %v462
      %v468 = vsel %vm465, %v462, %v464
      %v470 = vsel %vm211, %v454, 0
      %v473 = vsel %vm211, %v456, 0
      %v476 = vsel %vm218, %v466, 0
      %v479 = vsel %vm218, %v467, 0
      %v482 = vsel %vm218, %v468, 0
      %v485 = vsel %vm218, %v464, 0
      %487 = vmatprep.subr.bf16.mxu0 %v479
      %488 = vmatpush1.bf16.msra.mxu0 %v476
      %489 = vmatprep.subr.bf16.mxu0 0
      %490 = vmatpush1.bf16.msra.mxu0 0
      %491 = vmatprep.subr.bf16.mxu0 0
      %492 = vmatpush1.bf16.msra.mxu0 0
      %493 = vmatprep.subr.bf16.mxu0 0
      %494 = vmatpush1.bf16.msra.mxu0 0
      %495 = vmatprep.subr.bf16.mxu0 0
      %496 = vmatpush1.bf16.msra.mxu0 0
      %497 = vmatprep.subr.bf16.mxu0 0
      %498 = vmatpush1.bf16.msra.mxu0 0
      %499 = vmatprep.subr.bf16.mxu0 0
      %500 = vmatpush1.bf16.msra.mxu0 0
      %501 = vmatprep.subr.bf16.mxu0 0
      %502 = vmatpush1.bf16.msra.mxu0 0
      %503 = vmatprep.subr.bf16.mxu0 0
      %504 = vmatpush1.bf16.msra.mxu0 0
      %505 = vmatprep.subr.bf16.mxu0 0
      %506 = vmatpush1.bf16.msra.mxu0 0
      %507 = vmatprep.subr.bf16.mxu0 0
      %508 = vmatpush1.bf16.msra.mxu0 0
      %509 = vmatprep.subr.bf16.mxu0 0
      %510 = vmatpush1.bf16.msra.mxu0 0
      %511 = vmatprep.subr.bf16.mxu0 0
      %512 = vmatpush1.bf16.msra.mxu0 0
      %513 = vmatprep.subr.bf16.mxu0 0
      %514 = vmatpush1.bf16.msra.mxu0 0
      %515 = vmatprep.subr.bf16.mxu0 0
      %516 = vmatpush1.bf16.msra.mxu0 0
      %517 = vmatprep.subr.bf16.mxu0 0
      %518 = vmatpush1.bf16.msra.mxu0 0
      %519 = vmatprep.mubr.bf16.mxu0 0
      %520 = vmatmul.mubr.bf16.gmra.mrb[0].mxu0 %v470
      %v521 = vpop.f32.mrb[0].mxu0
      %v522 = vadd.f32 0.0, %v521
      %v523 = vpop.f32.mrb[0].mxu0
      %v524 = vadd.f32 0.0, %v523
      %v525 = vpop.f32.mrb[0].mxu0
      %v526 = vadd.f32 0.0, %v525
      %v527 = vpop.f32.mrb[0].mxu0
      %v528 = vadd.f32 0.0, %v527
      %529 = vmatprep.mubr.bf16.mxu0 0
      %530 = vmatmul.mubr.bf16.gmra.mrb[0].mxu0 %v473
      %v531 = vpop.f32.mrb[0].mxu0
      %v532 = vadd.f32 0.0, %v531
      %v533 = vpop.f32.mrb[0].mxu0
      %v534 = vadd.f32 0.0, %v533
      %v535 = vpop.f32.mrb[0].mxu0
      %v536 = vpop.f32.mrb[0].mxu0
      %537 = vdwg.mxu0
      %538 = vmatprep.subr.bf16.mxu0 %v485
      %539 = vmatpush1.bf16.msra.mxu0 %v482
      %540 = vmatprep.subr.bf16.mxu0 0
      %541 = vmatpush1.bf16.msra.mxu0 0
      %542 = vmatprep.subr.bf16.mxu0 0
      %543 = vmatpush1.bf16.msra.mxu0 0
      %544 = vmatprep.subr.bf16.mxu0 0
      %545 = vmatpush1.bf16.msra.mxu0 0
      %546 = vmatprep.subr.bf16.mxu0 0
      %547 = vmatpush1.bf16.msra.mxu0 0
      %548 = vmatprep.subr.bf16.mxu0 0
      %549 = vmatpush1.bf16.msra.mxu0 0
      %550 = vmatprep.subr.bf16.mxu0 0
      %551 = vmatpush1.bf16.msra.mxu0 0
      %552 = vmatprep.subr.bf16.mxu0 0
      %553 = vmatpush1.bf16.msra.mxu0 0
      %554 = vmatprep.subr.bf16.mxu0 0
      %555 = vmatpush1.bf16.msra.mxu0 0
      %556 = vmatprep.subr.bf16.mxu0 0
      %557 = vmatpush1.bf16.msra.mxu0 0
      %558 = vmatprep.subr.bf16.mxu0 0
      %559 = vmatpush1.bf16.msra.mxu0 0
      %560 = vmatprep.subr.bf16.mxu0 0
      %561 = vmatpush1.bf16.msra.mxu0 0
      %562 = vmatprep.subr.bf16.mxu0 0
      %563 = vmatpush1.bf16.msra.mxu0 0
      %564 = vmatprep.subr.bf16.mxu0 0
      %565 = vmatpush1.bf16.msra.mxu0 0
      %566 = vmatprep.subr.bf16.mxu0 0
      %567 = vmatpush1.bf16.msra.mxu0 0
      %568 = vmatprep.subr.bf16.mxu0 0
      %569 = vmatpush1.bf16.msra.mxu0 0
      %570 = vmatprep.mubr.bf16.mxu0 0
      %571 = vmatmul.mubr.bf16.gmra.mrb[0].mxu0 %v470
      %v572 = vpop.f32.mrb[0].mxu0
      %v573 = vadd.f32 0.0, %v572
      %v574 = vpop.f32.mrb[0].mxu0
      %v575 = vadd.f32 0.0, %v574
      %v576 = vpop.f32.mrb[0].mxu0
      %v577 = vadd.f32 0.0, %v576
      %v578 = vpop.f32.mrb[0].mxu0
      %v579 = vadd.f32 0.0, %v578
      %580 = vmatprep.mubr.bf16.mxu0 0
      %581 = vmatmul.mubr.bf16.gmra.mrb[0].mxu0 %v473
      %v582 = vpop.f32.mrb[0].mxu0
      %v583 = vadd.f32 0.0, %v582
      %v584 = vpop.f32.mrb[0].mxu0
      %v585 = vadd.f32 0.0, %v584
      %v586 = vpop.f32.mrb[0].mxu0
      %v587 = vpop.f32.mrb[0].mxu0
      %588 = vdwg.mxu0
      %v589 = vadd.f32 %v386, %v522
      %v590 = vadd.f32 %v388, %v524
      %v591 = vadd.f32 %v437, %v573
      %v592 = vadd.f32 %v439, %v575
      %v593 = vadd.f32 %v390, %v526
      %v594 = vadd.f32 %v392, %v528
      %v595 = vadd.f32 %v441, %v577
      %v596 = vadd.f32 %v443, %v579
      %v597 = vadd.f32 %v396, %v532
      %v598 = vadd.f32 %v398, %v534
      %v599 = vadd.f32 %v447, %v583
      %v600 = vadd.f32 %v449, %v585
      %601 = vrot.lane.b32.xlu0 %v183, 104
      %v602 = vpop.permute.xlu0 %601
      %603 = vrot.lane.b32.xlu0 %v184, 104
      %v604 = vpop.permute.xlu0 %603
      %605 = vrot.lane.b32.xlu0 %v195, 125
      %v606 = vpop.permute.xlu0 %605
      %607 = vrot.lane.b32.xlu0 %v196, 125
      %v608 = vpop.permute.xlu0 %607
      %609 = vrot.lane.b32.xlu0 %v197, 125
      %v610 = vpop.permute.xlu0 %609
      %611 = vrot.lane.b32.xlu0 %v198, 125
      %v612 = vpop.permute.xlu0 %611
      %vm613 = vcmask 1022976
      %v614 = vsel %vm613, %v606, %v608
      %v615 = vsel %vm613, %v608, %v610
      %v616 = vsel %vm613, %v610, %v612
      %v618 = vsel %vm211, %v602, 0
      %v621 = vsel %vm211, %v604, 0
      %v624 = vsel %vm218, %v614, 0
      %v627 = vsel %vm218, %v615, 0
      %v630 = vsel %vm218, %v616, 0
      %v633 = vsel %vm218, %v612, 0
      %635 = vmatprep.subr.bf16.mxu0 %v627
      %636 = vmatpush1.bf16.msra.mxu0 %v624
      %637 = vmatprep.subr.bf16.mxu0 0
      %638 = vmatpush1.bf16.msra.mxu0 0
      %639 = vmatprep.subr.bf16.mxu0 0
      %640 = vmatpush1.bf16.msra.mxu0 0
      %641 = vmatprep.subr.bf16.mxu0 0
      %642 = vmatpush1.bf16.msra.mxu0 0
      %643 = vmatprep.subr.bf16.mxu0 0
      %644 = vmatpush1.bf16.msra.mxu0 0
      %645 = vmatprep.subr.bf16.mxu0 0
      %646 = vmatpush1.bf16.msra.mxu0 0
      %647 = vmatprep.subr.bf16.mxu0 0
      %648 = vmatpush1.bf16.msra.mxu0 0
      %649 = vmatprep.subr.bf16.mxu0 0
      %650 = vmatpush1.bf16.msra.mxu0 0
      %651 = vmatprep.subr.bf16.mxu0 0
      %652 = vmatpush1.bf16.msra.mxu0 0
      %653 = vmatprep.subr.bf16.mxu0 0
      %654 = vmatpush1.bf16.msra.mxu0 0
      %655 = vmatprep.subr.bf16.mxu0 0
      %656 = vmatpush1.bf16.msra.mxu0 0
      %657 = vmatprep.subr.bf16.mxu0 0
      %658 = vmatpush1.bf16.msra.mxu0 0
      %659 = vmatprep.subr.bf16.mxu0 0
      %660 = vmatpush1.bf16.msra.mxu0 0
      %661 = vmatprep.subr.bf16.mxu0 0
      %662 = vmatpush1.bf16.msra.mxu0 0
      %663 = vmatprep.subr.bf16.mxu0 0
      %664 = vmatpush1.bf16.msra.mxu0 0
      %665 = vmatprep.subr.bf16.mxu0 0
      %666 = vmatpush1.bf16.msra.mxu0 0
      %667 = vmatprep.mubr.bf16.mxu0 0
      %668 = vmatmul.mubr.bf16.gmra.mrb[0].mxu0 %v618
      %v669 = vpop.f32.mrb[0].mxu0
      %v670 = vadd.f32 0.0, %v669
      %v671 = vpop.f32.mrb[0].mxu0
      %v672 = vadd.f32 0.0, %v671
      %v673 = vpop.f32.mrb[0].mxu0
      %v674 = vadd.f32 0.0, %v673
      %v675 = vpop.f32.mrb[0].mxu0
      %v676 = vadd.f32 0.0, %v675
      %677 = vmatprep.mubr.bf16.mxu0 0
      %678 = vmatmul.mubr.bf16.gmra.mrb[0].mxu0 %v621
      %v679 = vpop.f32.mrb[0].mxu0
      %v680 = vadd.f32 0.0, %v679
      %v681 = vpop.f32.mrb[0].mxu0
      %v682 = vadd.f32 0.0, %v681
      %v683 = vpop.f32.mrb[0].mxu0
      %v684 = vpop.f32.mrb[0].mxu0
      %685 = vdwg.mxu0
      %686 = vmatprep.subr.bf16.mxu0 %v633
      %687 = vmatpush1.bf16.msra.mxu0 %v630
      %688 = vmatprep.subr.bf16.mxu0 0
      %689 = vmatpush1.bf16.msra.mxu0 0
      %690 = vmatprep.subr.bf16.mxu0 0
      %691 = vmatpush1.bf16.msra.mxu0 0
      %692 = vmatprep.subr.bf16.mxu0 0
      %693 = vmatpush1.bf16.msra.mxu0 0
      %694 = vmatprep.subr.bf16.mxu0 0
      %695 = vmatpush1.bf16.msra.mxu0 0
      %696 = vmatprep.subr.bf16.mxu0 0
      %697 = vmatpush1.bf16.msra.mxu0 0
      %698 = vmatprep.subr.bf16.mxu0 0
      %699 = vmatpush1.bf16.msra.mxu0 0
      %700 = vmatprep.subr.bf16.mxu0 0
      %701 = vmatpush1.bf16.msra.mxu0 0
      %702 = vmatprep.subr.bf16.mxu0 0
      %703 = vmatpush1.bf16.msra.mxu0 0
      %704 = vmatprep.subr.bf16.mxu0 0
      %705 = vmatpush1.bf16.msra.mxu0 0
      %706 = vmatprep.subr.bf16.mxu0 0
      %707 = vmatpush1.bf16.msra.mxu0 0
      %708 = vmatprep.subr.bf16.mxu0 0
      %709 = vmatpush1.bf16.msra.mxu0 0
      %710 = vmatprep.subr.bf16.mxu0 0
      %711 = vmatpush1.bf16.msra.mxu0 0
      %712 = vmatprep.subr.bf16.mxu0 0
      %713 = vmatpush1.bf16.msra.mxu0 0
      %714 = vmatprep.subr.bf16.mxu0 0
      %715 = vmatpush1.bf16.msra.mxu0 0
      %716 = vmatprep.subr.bf16.mxu0 0
      %717 = vmatpush1.bf16.msra.mxu0 0
      %718 = vmatprep.mubr.bf16.mxu0 0
      %719 = vmatmul.mubr.bf16.gmra.mrb[0].mxu0 %v618
      %v720 = vpop.f32.mrb[0].mxu0
      %v721 = vadd.f32 0.0, %v720
      %v722 = vpop.f32.mrb[0].mxu0
      %v723 = vadd.f32 0.0, %v722
      %v724 = vpop.f32.mrb[0].mxu0
      %v725 = vadd.f32 0.0, %v724
      %v726 = vpop.f32.mrb[0].mxu0
      %v727 = vadd.f32 0.0, %v726
      %728 = vmatprep.mubr.bf16.mxu0 0
      %729 = vmatmul.mubr.bf16.gmra.mrb[0].mxu0 %v621
      %v730 = vpop.f32.mrb[0].mxu0
      %v731 = vadd.f32 0.0, %v730
      %v732 = vpop.f32.mrb[0].mxu0
      %v733 = vadd.f32 0.0, %v732
      %v734 = vpop.f32.mrb[0].mxu0
      %v735 = vpop.f32.mrb[0].mxu0
      %736 = vdwg.mxu0
      %v737 = vadd.f32 %v589, %v670
      %v738 = vadd.f32 %v590, %v672
      %v739 = vadd.f32 %v591, %v721
      %v740 = vadd.f32 %v592, %v723
      %v741 = vadd.f32 %v593, %v674
      %v742 = vadd.f32 %v594, %v676
      %v743 = vadd.f32 %v595, %v725
      %v744 = vadd.f32 %v596, %v727
      %v745 = vadd.f32 %v597, %v680
      %v746 = vadd.f32 %v598, %v682
      %v747 = vadd.f32 %v599, %v731
      %v748 = vadd.f32 %v600, %v733
      %749 = vrot.lane.b32.xlu0 %v183, 96
      %v750 = vpop.permute.xlu0 %749
      %751 = vrot.lane.b32.xlu0 %v184, 96
      %v752 = vpop.permute.xlu0 %751
      %753 = vrot.lane.b32.xlu0 %v195, 124
      %v754 = vpop.permute.xlu0 %753
      %755 = vrot.lane.b32.xlu0 %v196, 124
      %v756 = vpop.permute.xlu0 %755
      %757 = vrot.lane.b32.xlu0 %v197, 124
      %v758 = vpop.permute.xlu0 %757
      %759 = vrot.lane.b32.xlu0 %v198, 124
      %v760 = vpop.permute.xlu0 %759
      %vm761 = vcmask 1014784
      %v762 = vsel %vm761, %v754, %v756
      %v763 = vsel %vm761, %v756, %v758
      %v764 = vsel %vm761, %v758, %v760
      %v766 = vsel %vm211, %v750, 0
      %v769 = vsel %vm211, %v752, 0
      %v772 = vsel %vm218, %v762, 0
      %v775 = vsel %vm218, %v763, 0
      %v778 = vsel %vm218, %v764, 0
      %v781 = vsel %vm218, %v760, 0
      %783 = vmatprep.subr.bf16.mxu0 %v775
      %784 = vmatpush1.bf16.msra.mxu0 %v772
      %785 = vmatprep.subr.bf16.mxu0 0
      %786 = vmatpush1.bf16.msra.mxu0 0
      %787 = vmatprep.subr.bf16.mxu0 0
      %788 = vmatpush1.bf16.msra.mxu0 0
      %789 = vmatprep.subr.bf16.mxu0 0
      %790 = vmatpush1.bf16.msra.mxu0 0
      %791 = vmatprep.subr.bf16.mxu0 0
      %792 = vmatpush1.bf16.msra.mxu0 0
      %793 = vmatprep.subr.bf16.mxu0 0
      %794 = vmatpush1.bf16.msra.mxu0 0
      %795 = vmatprep.subr.bf16.mxu0 0
      %796 = vmatpush1.bf16.msra.mxu0 0
      %797 = vmatprep.subr.bf16.mxu0 0
      %798 = vmatpush1.bf16.msra.mxu0 0
      %799 = vmatprep.subr.bf16.mxu0 0
      %800 = vmatpush1.bf16.msra.mxu0 0
      %801 = vmatprep.subr.bf16.mxu0 0
      %802 = vmatpush1.bf16.msra.mxu0 0
      %803 = vmatprep.subr.bf16.mxu0 0
      %804 = vmatpush1.bf16.msra.mxu0 0
      %805 = vmatprep.subr.bf16.mxu0 0
      %806 = vmatpush1.bf16.msra.mxu0 0
      %807 = vmatprep.subr.bf16.mxu0 0
      %808 = vmatpush1.bf16.msra.mxu0 0
      %809 = vmatprep.subr.bf16.mxu0 0
      %810 = vmatpush1.bf16.msra.mxu0 0
      %811 = vmatprep.subr.bf16.mxu0 0
      %812 = vmatpush1.bf16.msra.mxu0 0
      %813 = vmatprep.subr.bf16.mxu0 0
      %814 = vmatpush1.bf16.msra.mxu0 0
      %815 = vmatprep.mubr.bf16.mxu0 0
      %816 = vmatmul.mubr.bf16.gmra.mrb[0].mxu0 %v766
      %v817 = vpop.f32.mrb[0].mxu0
      %v818 = vadd.f32 0.0, %v817
      %v819 = vpop.f32.mrb[0].mxu0
      %v820 = vadd.f32 0.0, %v819
      %v821 = vpop.f32.mrb[0].mxu0
      %v822 = vadd.f32 0.0, %v821
      %v823 = vpop.f32.mrb[0].mxu0
      %v824 = vadd.f32 0.0, %v823
      %825 = vmatprep.mubr.bf16.mxu0 0
      %826 = vmatmul.mubr.bf16.gmra.mrb[0].mxu0 %v769
      %v827 = vpop.f32.mrb[0].mxu0
      %v828 = vadd.f32 0.0, %v827
      %v829 = vpop.f32.mrb[0].mxu0
      %v830 = vadd.f32 0.0, %v829
      %v831 = vpop.f32.mrb[0].mxu0
      %v832 = vpop.f32.mrb[0].mxu0
      %833 = vdwg.mxu0
      %834 = vmatprep.subr.bf16.mxu0 %v781
      %835 = vmatpush1.bf16.msra.mxu0 %v778
      %836 = vmatprep.subr.bf16.mxu0 0
      %837 = vmatpush1.bf16.msra.mxu0 0
      %838 = vmatprep.subr.bf16.mxu0 0
      %839 = vmatpush1.bf16.msra.mxu0 0
      %840 = vmatprep.subr.bf16.mxu0 0
      %841 = vmatpush1.bf16.msra.mxu0 0
      %842 = vmatprep.subr.bf16.mxu0 0
      %843 = vmatpush1.bf16.msra.mxu0 0
      %844 = vmatprep.subr.bf16.mxu0 0
      %845 = vmatpush1.bf16.msra.mxu0 0
      %846 = vmatprep.subr.bf16.mxu0 0
      %847 = vmatpush1.bf16.msra.mxu0 0
      %848 = vmatprep.subr.bf16.mxu0 0
      %849 = vmatpush1.bf16.msra.mxu0 0
      %850 = vmatprep.subr.bf16.mxu0 0
      %851 = vmatpush1.bf16.msra.mxu0 0
      %852 = vmatprep.subr.bf16.mxu0 0
      %853 = vmatpush1.bf16.msra.mxu0 0
      %854 = vmatprep.subr.bf16.mxu0 0
      %855 = vmatpush1.bf16.msra.mxu0 0
      %856 = vmatprep.subr.bf16.mxu0 0
      %857 = vmatpush1.bf16.msra.mxu0 0
      %858 = vmatprep.subr.bf16.mxu0 0
      %859 = vmatpush1.bf16.msra.mxu0 0
      %860 = vmatprep.subr.bf16.mxu0 0
      %861 = vmatpush1.bf16.msra.mxu0 0
      %862 = vmatprep.subr.bf16.mxu0 0
      %863 = vmatpush1.bf16.msra.mxu0 0
      %864 = vmatprep.subr.bf16.mxu0 0
      %865 = vmatpush1.bf16.msra.mxu0 0
      %866 = vmatprep.mubr.bf16.mxu0 0
      %867 = vmatmul.mubr.bf16.gmra.mrb[0].mxu0 %v766
      %v868 = vpop.f32.mrb[0].mxu0
      %v869 = vadd.f32 0.0, %v868
      %v870 = vpop.f32.mrb[0].mxu0
      %v871 = vadd.f32 0.0, %v870
      %v872 = vpop.f32.mrb[0].mxu0
      %v873 = vadd.f32 0.0, %v872
      %v874 = vpop.f32.mrb[0].mxu0
      %v875 = vadd.f32 0.0, %v874
      %876 = vmatprep.mubr.bf16.mxu0 0
      %877 = vmatmul.mubr.bf16.gmra.mrb[0].mxu0 %v769
      %v878 = vpop.f32.mrb[0].mxu0
      %v879 = vadd.f32 0.0, %v878
      %v880 = vpop.f32.mrb[0].mxu0
      %v881 = vadd.f32 0.0, %v880
      %v882 = vpop.f32.mrb[0].mxu0
      %v883 = vpop.f32.mrb[0].mxu0
      %884 = vdwg.mxu0
      %v885 = vadd.f32 %v737, %v818
      %v886 = vadd.f32 %v738, %v820
      %v887 = vadd.f32 %v739, %v869
      %v888 = vadd.f32 %v740, %v871
      %v889 = vadd.f32 %v741, %v822
      %v890 = vadd.f32 %v742, %v824
      %v891 = vadd.f32 %v743, %v873
      %v892 = vadd.f32 %v744, %v875
      %v893 = vadd.f32 %v745, %v828
      %v894 = vadd.f32 %v746, %v830
      %v895 = vadd.f32 %v747, %v879
      %v896 = vadd.f32 %v748, %v881
      %897 = vrot.lane.b32.xlu0 %v183, 88
      %v898 = vpop.permute.xlu0 %897
      %899 = vrot.lane.b32.xlu0 %v184, 88
      %v900 = vpop.permute.xlu0 %899
      %901 = vrot.lane.b32.xlu0 %v195, 106
      %v902 = vpop.permute.xlu0 %901
      %903 = vrot.lane.b32.xlu0 %v196, 106
      %v904 = vpop.permute.xlu0 %903
      %905 = vrot.lane.b32.xlu0 %v197, 106
      %v906 = vpop.permute.xlu0 %905
      %907 = vrot.lane.b32.xlu0 %v198, 106
      %v908 = vpop.permute.xlu0 %907
      %vm909 = vcmask 867328
      %v910 = vsel %vm909, %v902, %v904
      %v911 = vsel %vm909, %v904, %v906
      %v912 = vsel %vm909, %v906, %v908
      %v914 = vsel %vm211, %v898, 0
      %v917 = vsel %vm211, %v900, 0
      %v920 = vsel %vm218, %v910, 0
      %v923 = vsel %vm218, %v911, 0
      %v926 = vsel %vm218, %v912, 0
      %v929 = vsel %vm218, %v908, 0
      %931 = vmatprep.subr.bf16.mxu0 %v923
      %932 = vmatpush1.bf16.msra.mxu0 %v920
      %933 = vmatprep.subr.bf16.mxu0 0
      %934 = vmatpush1.bf16.msra.mxu0 0
      %935 = vmatprep.subr.bf16.mxu0 0
      %936 = vmatpush1.bf16.msra.mxu0 0
      %937 = vmatprep.subr.bf16.mxu0 0
      %938 = vmatpush1.bf16.msra.mxu0 0
      %939 = vmatprep.subr.bf16.mxu0 0
      %940 = vmatpush1.bf16.msra.mxu0 0
      %941 = vmatprep.subr.bf16.mxu0 0
      %942 = vmatpush1.bf16.msra.mxu0 0
      %943 = vmatprep.subr.bf16.mxu0 0
      %944 = vmatpush1.bf16.msra.mxu0 0
      %945 = vmatprep.subr.bf16.mxu0 0
      %946 = vmatpush1.bf16.msra.mxu0 0
      %947 = vmatprep.subr.bf16.mxu0 0
      %948 = vmatpush1.bf16.msra.mxu0 0
      %949 = vmatprep.subr.bf16.mxu0 0
      %950 = vmatpush1.bf16.msra.mxu0 0
      %951 = vmatprep.subr.bf16.mxu0 0
      %952 = vmatpush1.bf16.msra.mxu0 0
      %953 = vmatprep.subr.bf16.mxu0 0
      %954 = vmatpush1.bf16.msra.mxu0 0
      %955 = vmatprep.subr.bf16.mxu0 0
      %956 = vmatpush1.bf16.msra.mxu0 0
      %957 = vmatprep.subr.bf16.mxu0 0
      %958 = vmatpush1.bf16.msra.mxu0 0
      %959 = vmatprep.subr.bf16.mxu0 0
      %960 = vmatpush1.bf16.msra.mxu0 0
      %961 = vmatprep.subr.bf16.mxu0 0
      %962 = vmatpush1.bf16.msra.mxu0 0
      %963 = vmatprep.mubr.bf16.mxu0 0
      %964 = vmatmul.mubr.bf16.gmra.mrb[0].mxu0 %v914
      %v965 = vpop.f32.mrb[0].mxu0
      %v966 = vadd.f32 0.0, %v965
      %v967 = vpop.f32.mrb[0].mxu0
      %v968 = vadd.f32 0.0, %v967
      %v969 = vpop.f32.mrb[0].mxu0
      %v970 = vadd.f32 0.0, %v969
      %v971 = vpop.f32.mrb[0].mxu0
      %v972 = vadd.f32 0.0, %v971
      %973 = vmatprep.mubr.bf16.mxu0 0
      %974 = vmatmul.mubr.bf16.gmra.mrb[0].mxu0 %v917
      %v975 = vpop.f32.mrb[0].mxu0
      %v976 = vadd.f32 0.0, %v975
      %v977 = vpop.f32.mrb[0].mxu0
      %v978 = vadd.f32 0.0, %v977
      %v979 = vpop.f32.mrb[0].mxu0
      %v980 = vpop.f32.mrb[0].mxu0
      %981 = vdwg.mxu0
      %982 = vmatprep.subr.bf16.mxu0 %v929
      %983 = vmatpush1.bf16.msra.mxu0 %v926
      %984 = vmatprep.subr.bf16.mxu0 0
      %985 = vmatpush1.bf16.msra.mxu0 0
      %986 = vmatprep.subr.bf16.mxu0 0
      %987 = vmatpush1.bf16.msra.mxu0 0
      %988 = vmatprep.subr.bf16.mxu0 0
      %989 = vmatpush1.bf16.msra.mxu0 0
      %990 = vmatprep.subr.bf16.mxu0 0
      %991 = vmatpush1.bf16.msra.mxu0 0
      %992 = vmatprep.subr.bf16.mxu0 0
      %993 = vmatpush1.bf16.msra.mxu0 0
      %994 = vmatprep.subr.bf16.mxu0 0
      %995 = vmatpush1.bf16.msra.mxu0 0
      %996 = vmatprep.subr.bf16.mxu0 0
      %997 = vmatpush1.bf16.msra.mxu0 0
      %998 = vmatprep.subr.bf16.mxu0 0
      %999 = vmatpush1.bf16.msra.mxu0 0
      %1000 = vmatprep.subr.bf16.mxu0 0
      %1001 = vmatpush1.bf16.msra.mxu0 0
      %1002 = vmatprep.subr.bf16.mxu0 0
      %1003 = vmatpush1.bf16.msra.mxu0 0
      %1004 = vmatprep.subr.bf16.mxu0 0
      %1005 = vmatpush1.bf16.msra.mxu0 0
      %1006 = vmatprep.subr.bf16.mxu0 0
      %1007 = vmatpush1.bf16.msra.mxu0 0
      %1008 = vmatprep.subr.bf16.mxu0 0
      %1009 = vmatpush1.bf16.msra.mxu0 0
      %1010 = vmatprep.subr.bf16.mxu0 0
      %1011 = vmatpush1.bf16.msra.mxu0 0
      %1012 = vmatprep.subr.bf16.mxu0 0
      %1013 = vmatpush1.bf16.msra.mxu0 0
      %1014 = vmatprep.mubr.bf16.mxu0 0
      %1015 = vmatmul.mubr.bf16.gmra.mrb[0].mxu0 %v914
      %v1016 = vpop.f32.mrb[0].mxu0
      %v1017 = vadd.f32 0.0, %v1016
      %v1018 = vpop.f32.mrb[0].mxu0
      %v1019 = vadd.f32 0.0, %v1018
      %v1020 = vpop.f32.mrb[0].mxu0
      %v1021 = vadd.f32 0.0, %v1020
      %v1022 = vpop.f32.mrb[0].mxu0
      %v1023 = vadd.f32 0.0, %v1022
      %1024 = vmatprep.mubr.bf16.mxu0 0
      %1025 = vmatmul.mubr.bf16.gmra.mrb[0].mxu0 %v917
      %v1026 = vpop.f32.mrb[0].mxu0
      %v1027 = vadd.f32 0.0, %v1026
      %v1028 = vpop.f32.mrb[0].mxu0
      %v1029 = vadd.f32 0.0, %v1028
      %v1030 = vpop.f32.mrb[0].mxu0
      %v1031 = vpop.f32.mrb[0].mxu0
      %1032 = vdwg.mxu0
      %v1033 = vadd.f32 %v885, %v966
      %v1034 = vadd.f32 %v886, %v968
      %v1035 = vadd.f32 %v887, %v1017
      %v1036 = vadd.f32 %v888, %v1019
      %v1037 = vadd.f32 %v889, %v970
      %v1038 = vadd.f32 %v890, %v972
      %v1039 = vadd.f32 %v891, %v1021
      %v1040 = vadd.f32 %v892, %v1023
      %v1041 = vadd.f32 %v893, %v976
      %v1042 = vadd.f32 %v894, %v978
      %v1043 = vadd.f32 %v895, %v1027
      %v1044 = vadd.f32 %v896, %v1029
      %1045 = vrot.lane.b32.xlu0 %v183, 80
      %v1046 = vpop.permute.xlu0 %1045
      %1047 = vrot.lane.b32.xlu0 %v184, 80
      %v1048 = vpop.permute.xlu0 %1047
      %1049 = vrot.lane.b32.xlu0 %v195, 105
      %v1050 = vpop.permute.xlu0 %1049
      %1051 = vrot.lane.b32.xlu0 %v196, 105
      %v1052 = vpop.permute.xlu0 %1051
      %1053 = vrot.lane.b32.xlu0 %v197, 105
      %v1054 = vpop.permute.xlu0 %1053
      %1055 = vrot.lane.b32.xlu0 %v198, 105
      %v1056 = vpop.permute.xlu0 %1055
      %vm1057 = vcmask 859136
      %v1058 = vsel %vm1057, %v1050, %v1052
      %v1059 = vsel %vm1057, %v1052, %v1054
      %v1060 = vsel %vm1057, %v1054, %v1056
      %v1062 = vsel %vm211, %v1046, 0
      %v1065 = vsel %vm211, %v1048, 0
      %v1068 = vsel %vm218, %v1058, 0
      %v1071 = vsel %vm218, %v1059, 0
      %v1074 = vsel %vm218, %v1060, 0
      %v1077 = vsel %vm218, %v1056, 0
      %1079 = vmatprep.subr.bf16.mxu0 %v1071
      %1080 = vmatpush1.bf16.msra.mxu0 %v1068
      %1081 = vmatprep.subr.bf16.mxu0 0
      %1082 = vmatpush1.bf16.msra.mxu0 0
      %1083 = vmatprep.subr.bf16.mxu0 0
      %1084 = vmatpush1.bf16.msra.mxu0 0
      %1085 = vmatprep.subr.bf16.mxu0 0
      %1086 = vmatpush1.bf16.msra.mxu0 0
      %1087 = vmatprep.subr.bf16.mxu0 0
      %1088 = vmatpush1.bf16.msra.mxu0 0
      %1089 = vmatprep.subr.bf16.mxu0 0
      %1090 = vmatpush1.bf16.msra.mxu0 0
      %1091 = vmatprep.subr.bf16.mxu0 0
      %1092 = vmatpush1.bf16.msra.mxu0 0
      %1093 = vmatprep.subr.bf16.mxu0 0
      %1094 = vmatpush1.bf16.msra.mxu0 0
      %1095 = vmatprep.subr.bf16.mxu0 0
      %1096 = vmatpush1.bf16.msra.mxu0 0
      %1097 = vmatprep.subr.bf16.mxu0 0
      %1098 = vmatpush1.bf16.msra.mxu0 0
      %1099 = vmatprep.subr.bf16.mxu0 0
      %1100 = vmatpush1.bf16.msra.mxu0 0
      %1101 = vmatprep.subr.bf16.mxu0 0
      %1102 = vmatpush1.bf16.msra.mxu0 0
      %1103 = vmatprep.subr.bf16.mxu0 0
      %1104 = vmatpush1.bf16.msra.mxu0 0
      %1105 = vmatprep.subr.bf16.mxu0 0
      %1106 = vmatpush1.bf16.msra.mxu0 0
      %1107 = vmatprep.subr.bf16.mxu0 0
      %1108 = vmatpush1.bf16.msra.mxu0 0
      %1109 = vmatprep.subr.bf16.mxu0 0
      %1110 = vmatpush1.bf16.msra.mxu0 0
      %1111 = vmatprep.mubr.bf16.mxu0 0
      %1112 = vmatmul.mubr.bf16.gmra.mrb[0].mxu0 %v1062
      %v1113 = vpop.f32.mrb[0].mxu0
      %v1114 = vadd.f32 0.0, %v1113
      %v1115 = vpop.f32.mrb[0].mxu0
      %v1116 = vadd.f32 0.0, %v1115
      %v1117 = vpop.f32.mrb[0].mxu0
      %v1118 = vadd.f32 0.0, %v1117
      %v1119 = vpop.f32.mrb[0].mxu0
      %v1120 = vadd.f32 0.0, %v1119
      %1121 = vmatprep.mubr.bf16.mxu0 0
      %1122 = vmatmul.mubr.bf16.gmra.mrb[0].mxu0 %v1065
      %v1123 = vpop.f32.mrb[0].mxu0
      %v1124 = vadd.f32 0.0, %v1123
      %v1125 = vpop.f32.mrb[0].mxu0
      %v1126 = vadd.f32 0.0, %v1125
      %v1127 = vpop.f32.mrb[0].mxu0
      %v1128 = vpop.f32.mrb[0].mxu0
      %1129 = vdwg.mxu0
      %1130 = vmatprep.subr.bf16.mxu0 %v1077
      %1131 = vmatpush1.bf16.msra.mxu0 %v1074
      %1132 = vmatprep.subr.bf16.mxu0 0
      %1133 = vmatpush1.bf16.msra.mxu0 0
      %1134 = vmatprep.subr.bf16.mxu0 0
      %1135 = vmatpush1.bf16.msra.mxu0 0
      %1136 = vmatprep.subr.bf16.mxu0 0
      %1137 = vmatpush1.bf16.msra.mxu0 0
      %1138 = vmatprep.subr.bf16.mxu0 0
      %1139 = vmatpush1.bf16.msra.mxu0 0
      %1140 = vmatprep.subr.bf16.mxu0 0
      %1141 = vmatpush1.bf16.msra.mxu0 0
      %1142 = vmatprep.subr.bf16.mxu0 0
      %1143 = vmatpush1.bf16.msra.mxu0 0
      %1144 = vmatprep.subr.bf16.mxu0 0
      %1145 = vmatpush1.bf16.msra.mxu0 0
      %1146 = vmatprep.subr.bf16.mxu0 0
      %1147 = vmatpush1.bf16.msra.mxu0 0
      %1148 = vmatprep.subr.bf16.mxu0 0
      %1149 = vmatpush1.bf16.msra.mxu0 0
      %1150 = vmatprep.subr.bf16.mxu0 0
      %1151 = vmatpush1.bf16.msra.mxu0 0
      %1152 = vmatprep.subr.bf16.mxu0 0
      %1153 = vmatpush1.bf16.msra.mxu0 0
      %1154 = vmatprep.subr.bf16.mxu0 0
      %1155 = vmatpush1.bf16.msra.mxu0 0
      %1156 = vmatprep.subr.bf16.mxu0 0
      %1157 = vmatpush1.bf16.msra.mxu0 0
      %1158 = vmatprep.subr.bf16.mxu0 0
      %1159 = vmatpush1.bf16.msra.mxu0 0
      %1160 = vmatprep.subr.bf16.mxu0 0
      %1161 = vmatpush1.bf16.msra.mxu0 0
      %1162 = vmatprep.mubr.bf16.mxu0 0
      %1163 = vmatmul.mubr.bf16.gmra.mrb[0].mxu0 %v1062
      %v1164 = vpop.f32.mrb[0].mxu0
      %v1165 = vadd.f32 0.0, %v1164
      %v1166 = vpop.f32.mrb[0].mxu0
      %v1167 = vadd.f32 0.0, %v1166
      %v1168 = vpop.f32.mrb[0].mxu0
      %v1169 = vadd.f32 0.0, %v1168
      %v1170 = vpop.f32.mrb[0].mxu0
      %v1171 = vadd.f32 0.0, %v1170
      %1172 = vmatprep.mubr.bf16.mxu0 0
      %1173 = vmatmul.mubr.bf16.gmra.mrb[0].mxu0 %v1065
      %v1174 = vpop.f32.mrb[0].mxu0
      %v1175 = vadd.f32 0.0, %v1174
      %v1176 = vpop.f32.mrb[0].mxu0
      %v1177 = vadd.f32 0.0, %v1176
      %v1178 = vpop.f32.mrb[0].mxu0
      %v1179 = vpop.f32.mrb[0].mxu0
      %1180 = vdwg.mxu0
      %v1181 = vadd.f32 %v1033, %v1114
      %v1182 = vadd.f32 %v1034, %v1116
      %v1183 = vadd.f32 %v1035, %v1165
      %v1184 = vadd.f32 %v1036, %v1167
      %v1185 = vadd.f32 %v1037, %v1118
      %v1186 = vadd.f32 %v1038, %v1120
      %v1187 = vadd.f32 %v1039, %v1169
      %v1188 = vadd.f32 %v1040, %v1171
      %v1189 = vadd.f32 %v1041, %v1124
      %v1190 = vadd.f32 %v1042, %v1126
      %v1191 = vadd.f32 %v1043, %v1175
      %v1192 = vadd.f32 %v1044, %v1177
      %1193 = vrot.lane.b32.xlu0 %v183, 72
      %v1194 = vpop.permute.xlu0 %1193
      %1195 = vrot.lane.b32.xlu0 %v184, 72
      %v1196 = vpop.permute.xlu0 %1195
      %1197 = vrot.lane.b32.xlu0 %v195, 104
      %v1198 = vpop.permute.xlu0 %1197
      %1199 = vrot.lane.b32.xlu0 %v196, 104
      %v1200 = vpop.permute.xlu0 %1199
      %1201 = vrot.lane.b32.xlu0 %v197, 104
      %v1202 = vpop.permute.xlu0 %1201
      %1203 = vrot.lane.b32.xlu0 %v198, 104
      %v1204 = vpop.permute.xlu0 %1203
      %vm1205 = vcmask 850944
      %v1206 = vsel %vm1205, %v1198, %v1200
      %v1207 = vsel %vm1205, %v1200, %v1202
      %v1208 = vsel %vm1205, %v1202, %v1204
      %v1210 = vsel %vm211, %v1194, 0
      %v1213 = vsel %vm211, %v1196, 0
      %v1216 = vsel %vm218, %v1206, 0
      %v1219 = vsel %vm218, %v1207, 0
      %v1222 = vsel %vm218, %v1208, 0
      %v1225 = vsel %vm218, %v1204, 0
      %1227 = vmatprep.subr.bf16.mxu0 %v1219
      %1228 = vmatpush1.bf16.msra.mxu0 %v1216
      %1229 = vmatprep.subr.bf16.mxu0 0
      %1230 = vmatpush1.bf16.msra.mxu0 0
      %1231 = vmatprep.subr.bf16.mxu0 0
      %1232 = vmatpush1.bf16.msra.mxu0 0
      %1233 = vmatprep.subr.bf16.mxu0 0
      %1234 = vmatpush1.bf16.msra.mxu0 0
      %1235 = vmatprep.subr.bf16.mxu0 0
      %1236 = vmatpush1.bf16.msra.mxu0 0
      %1237 = vmatprep.subr.bf16.mxu0 0
      %1238 = vmatpush1.bf16.msra.mxu0 0
      %1239 = vmatprep.subr.bf16.mxu0 0
      %1240 = vmatpush1.bf16.msra.mxu0 0
      %1241 = vmatprep.subr.bf16.mxu0 0
      %1242 = vmatpush1.bf16.msra.mxu0 0
      %1243 = vmatprep.subr.bf16.mxu0 0
      %1244 = vmatpush1.bf16.msra.mxu0 0
      %1245 = vmatprep.subr.bf16.mxu0 0
      %1246 = vmatpush1.bf16.msra.mxu0 0
      %1247 = vmatprep.subr.bf16.mxu0 0
      %1248 = vmatpush1.bf16.msra.mxu0 0
      %1249 = vmatprep.subr.bf16.mxu0 0
      %1250 = vmatpush1.bf16.msra.mxu0 0
      %1251 = vmatprep.subr.bf16.mxu0 0
      %1252 = vmatpush1.bf16.msra.mxu0 0
      %1253 = vmatprep.subr.bf16.mxu0 0
      %1254 = vmatpush1.bf16.msra.mxu0 0
      %1255 = vmatprep.subr.bf16.mxu0 0
      %1256 = vmatpush1.bf16.msra.mxu0 0
      %1257 = vmatprep.subr.bf16.mxu0 0
      %1258 = vmatpush1.bf16.msra.mxu0 0
      %1259 = vmatprep.mubr.bf16.mxu0 0
      %1260 = vmatmul.mubr.bf16.gmra.mrb[0].mxu0 %v1210
      %v1261 = vpop.f32.mrb[0].mxu0
      %v1262 = vadd.f32 0.0, %v1261
      %v1263 = vpop.f32.mrb[0].mxu0
      %v1264 = vadd.f32 0.0, %v1263
      %v1265 = vpop.f32.mrb[0].mxu0
      %v1266 = vadd.f32 0.0, %v1265
      %v1267 = vpop.f32.mrb[0].mxu0
      %v1268 = vadd.f32 0.0, %v1267
      %1269 = vmatprep.mubr.bf16.mxu0 0
      %1270 = vmatmul.mubr.bf16.gmra.mrb[0].mxu0 %v1213
      %v1271 = vpop.f32.mrb[0].mxu0
      %v1272 = vadd.f32 0.0, %v1271
      %v1273 = vpop.f32.mrb[0].mxu0
      %v1274 = vadd.f32 0.0, %v1273
      %v1275 = vpop.f32.mrb[0].mxu0
      %v1276 = vpop.f32.mrb[0].mxu0
      %1277 = vdwg.mxu0
      %1278 = vmatprep.subr.bf16.mxu0 %v1225
      %1279 = vmatpush1.bf16.msra.mxu0 %v1222
      %1280 = vmatprep.subr.bf16.mxu0 0
      %1281 = vmatpush1.bf16.msra.mxu0 0
      %1282 = vmatprep.subr.bf16.mxu0 0
      %1283 = vmatpush1.bf16.msra.mxu0 0
      %1284 = vmatprep.subr.bf16.mxu0 0
      %1285 = vmatpush1.bf16.msra.mxu0 0
      %1286 = vmatprep.subr.bf16.mxu0 0
      %1287 = vmatpush1.bf16.msra.mxu0 0
      %1288 = vmatprep.subr.bf16.mxu0 0
      %1289 = vmatpush1.bf16.msra.mxu0 0
      %1290 = vmatprep.subr.bf16.mxu0 0
      %1291 = vmatpush1.bf16.msra.mxu0 0
      %1292 = vmatprep.subr.bf16.mxu0 0
      %1293 = vmatpush1.bf16.msra.mxu0 0
      %1294 = vmatprep.subr.bf16.mxu0 0
      %1295 = vmatpush1.bf16.msra.mxu0 0
      %1296 = vmatprep.subr.bf16.mxu0 0
      %1297 = vmatpush1.bf16.msra.mxu0 0
      %1298 = vmatprep.subr.bf16.mxu0 0
      %1299 = vmatpush1.bf16.msra.mxu0 0
      %1300 = vmatprep.subr.bf16.mxu0 0
      %1301 = vmatpush1.bf16.msra.mxu0 0
      %1302 = vmatprep.subr.bf16.mxu0 0
      %1303 = vmatpush1.bf16.msra.mxu0 0
      %1304 = vmatprep.subr.bf16.mxu0 0
      %1305 = vmatpush1.bf16.msra.mxu0 0
      %1306 = vmatprep.subr.bf16.mxu0 0
      %1307 = vmatpush1.bf16.msra.mxu0 0
      %1308 = vmatprep.subr.bf16.mxu0 0
      %1309 = vmatpush1.bf16.msra.mxu0 0
      %1310 = vmatprep.mubr.bf16.mxu0 0
      %1311 = vmatmul.mubr.bf16.gmra.mrb[0].mxu0 %v1210
      %v1312 = vpop.f32.mrb[0].mxu0
      %v1313 = vadd.f32 0.0, %v1312
      %v1314 = vpop.f32.mrb[0].mxu0
      %v1315 = vadd.f32 0.0, %v1314
      %v1316 = vpop.f32.mrb[0].mxu0
      %v1317 = vadd.f32 0.0, %v1316
      %v1318 = vpop.f32.mrb[0].mxu0
      %v1319 = vadd.f32 0.0, %v1318
      %1320 = vmatprep.mubr.bf16.mxu0 0
      %1321 = vmatmul.mubr.bf16.gmra.mrb[0].mxu0 %v1213
      %v1322 = vpop.f32.mrb[0].mxu0
      %v1323 = vadd.f32 0.0, %v1322
      %v1324 = vpop.f32.mrb[0].mxu0
      %v1325 = vadd.f32 0.0, %v1324
      %v1326 = vpop.f32.mrb[0].mxu0
      %v1327 = vpop.f32.mrb[0].mxu0
      %1328 = vdwg.mxu0
      %v1329 = vadd.f32 %v1181, %v1262
      %v1330 = vadd.f32 %v1182, %v1264
      %v1331 = vadd.f32 %v1183, %v1313
      %v1332 = vadd.f32 %v1184, %v1315
      %v1333 = vadd.f32 %v1185, %v1266
      %v1334 = vadd.f32 %v1186, %v1268
      %v1335 = vadd.f32 %v1187, %v1317
      %v1336 = vadd.f32 %v1188, %v1319
      %v1337 = vadd.f32 %v1189, %v1272
      %v1338 = vadd.f32 %v1190, %v1274
      %v1339 = vadd.f32 %v1191, %v1323
      %v1340 = vadd.f32 %v1192, %v1325
      %1341 = vrot.lane.b32.xlu0 %v183, 64
      %v1342 = vpop.permute.xlu0 %1341
      %1343 = vrot.lane.b32.xlu0 %v184, 64
      %v1344 = vpop.permute.xlu0 %1343
      %1345 = vrot.lane.b32.xlu0 %v195, 103
      %v1346 = vpop.permute.xlu0 %1345
      %1347 = vrot.lane.b32.xlu0 %v196, 103
      %v1348 = vpop.permute.xlu0 %1347
      %1349 = vrot.lane.b32.xlu0 %v197, 103
      %v1350 = vpop.permute.xlu0 %1349
      %1351 = vrot.lane.b32.xlu0 %v198, 103
      %v1352 = vpop.permute.xlu0 %1351
      %vm1353 = vcmask 842752
      %v1354 = vsel %vm1353, %v1346, %v1348
      %v1355 = vsel %vm1353, %v1348, %v1350
      %v1356 = vsel %vm1353, %v1350, %v1352
      %v1358 = vsel %vm211, %v1342, 0
      %v1361 = vsel %vm211, %v1344, 0
      %v1364 = vsel %vm218, %v1354, 0
      %v1367 = vsel %vm218, %v1355, 0
      %v1370 = vsel %vm218, %v1356, 0
      %v1373 = vsel %vm218, %v1352, 0
      %1375 = vmatprep.subr.bf16.mxu0 %v1367
      %1376 = vmatpush1.bf16.msra.mxu0 %v1364
      %1377 = vmatprep.subr.bf16.mxu0 0
      %1378 = vmatpush1.bf16.msra.mxu0 0
      %1379 = vmatprep.subr.bf16.mxu0 0
      %1380 = vmatpush1.bf16.msra.mxu0 0
      %1381 = vmatprep.subr.bf16.mxu0 0
      %1382 = vmatpush1.bf16.msra.mxu0 0
      %1383 = vmatprep.subr.bf16.mxu0 0
      %1384 = vmatpush1.bf16.msra.mxu0 0
      %1385 = vmatprep.subr.bf16.mxu0 0
      %1386 = vmatpush1.bf16.msra.mxu0 0
      %1387 = vmatprep.subr.bf16.mxu0 0
      %1388 = vmatpush1.bf16.msra.mxu0 0
      %1389 = vmatprep.subr.bf16.mxu0 0
      %1390 = vmatpush1.bf16.msra.mxu0 0
      %1391 = vmatprep.subr.bf16.mxu0 0
      %1392 = vmatpush1.bf16.msra.mxu0 0
      %1393 = vmatprep.subr.bf16.mxu0 0
      %1394 = vmatpush1.bf16.msra.mxu0 0
      %1395 = vmatprep.subr.bf16.mxu0 0
      %1396 = vmatpush1.bf16.msra.mxu0 0
      %1397 = vmatprep.subr.bf16.mxu0 0
      %1398 = vmatpush1.bf16.msra.mxu0 0
      %1399 = vmatprep.subr.bf16.mxu0 0
      %1400 = vmatpush1.bf16.msra.mxu0 0
      %1401 = vmatprep.subr.bf16.mxu0 0
      %1402 = vmatpush1.bf16.msra.mxu0 0
      %1403 = vmatprep.subr.bf16.mxu0 0
      %1404 = vmatpush1.bf16.msra.mxu0 0
      %1405 = vmatprep.subr.bf16.mxu0 0
      %1406 = vmatpush1.bf16.msra.mxu0 0
      %1407 = vmatprep.mubr.bf16.mxu0 0
      %1408 = vmatmul.mubr.bf16.gmra.mrb[0].mxu0 %v1358
      %v1409 = vpop.f32.mrb[0].mxu0
      %v1410 = vadd.f32 0.0, %v1409
      %v1411 = vpop.f32.mrb[0].mxu0
      %v1412 = vadd.f32 0.0, %v1411
      %v1413 = vpop.f32.mrb[0].mxu0
      %v1414 = vadd.f32 0.0, %v1413
      %v1415 = vpop.f32.mrb[0].mxu0
      %v1416 = vadd.f32 0.0, %v1415
      %1417 = vmatprep.mubr.bf16.mxu0 0
      %1418 = vmatmul.mubr.bf16.gmra.mrb[0].mxu0 %v1361
      %v1419 = vpop.f32.mrb[0].mxu0
      %v1420 = vadd.f32 0.0, %v1419
      %v1421 = vpop.f32.mrb[0].mxu0
      %v1422 = vadd.f32 0.0, %v1421
      %v1423 = vpop.f32.mrb[0].mxu0
      %v1424 = vpop.f32.mrb[0].mxu0
      %1425 = vdwg.mxu0
      %1426 = vmatprep.subr.bf16.mxu0 %v1373
      %1427 = vmatpush1.bf16.msra.mxu0 %v1370
      %1428 = vmatprep.subr.bf16.mxu0 0
      %1429 = vmatpush1.bf16.msra.mxu0 0
      %1430 = vmatprep.subr.bf16.mxu0 0
      %1431 = vmatpush1.bf16.msra.mxu0 0
      %1432 = vmatprep.subr.bf16.mxu0 0
      %1433 = vmatpush1.bf16.msra.mxu0 0
      %1434 = vmatprep.subr.bf16.mxu0 0
      %1435 = vmatpush1.bf16.msra.mxu0 0
      %1436 = vmatprep.subr.bf16.mxu0 0
      %1437 = vmatpush1.bf16.msra.mxu0 0
      %1438 = vmatprep.subr.bf16.mxu0 0
      %1439 = vmatpush1.bf16.msra.mxu0 0
      %1440 = vmatprep.subr.bf16.mxu0 0
      %1441 = vmatpush1.bf16.msra.mxu0 0
      %1442 = vmatprep.subr.bf16.mxu0 0
      %1443 = vmatpush1.bf16.msra.mxu0 0
      %1444 = vmatprep.subr.bf16.mxu0 0
      %1445 = vmatpush1.bf16.msra.mxu0 0
      %1446 = vmatprep.subr.bf16.mxu0 0
      %1447 = vmatpush1.bf16.msra.mxu0 0
      %1448 = vmatprep.subr.bf16.mxu0 0
      %1449 = vmatpush1.bf16.msra.mxu0 0
      %1450 = vmatprep.subr.bf16.mxu0 0
      %1451 = vmatpush1.bf16.msra.mxu0 0
      %1452 = vmatprep.subr.bf16.mxu0 0
      %1453 = vmatpush1.bf16.msra.mxu0 0
      %1454 = vmatprep.subr.bf16.mxu0 0
      %1455 = vmatpush1.bf16.msra.mxu0 0
      %1456 = vmatprep.subr.bf16.mxu0 0
      %1457 = vmatpush1.bf16.msra.mxu0 0
      %1458 = vmatprep.mubr.bf16.mxu0 0
      %1459 = vmatmul.mubr.bf16.gmra.mrb[0].mxu0 %v1358
      %v1460 = vpop.f32.mrb[0].mxu0
      %v1461 = vadd.f32 0.0, %v1460
      %v1462 = vpop.f32.mrb[0].mxu0
      %v1463 = vadd.f32 0.0, %v1462
      %v1464 = vpop.f32.mrb[0].mxu0
      %v1465 = vadd.f32 0.0, %v1464
      %v1466 = vpop.f32.mrb[0].mxu0
      %v1467 = vadd.f32 0.0, %v1466
      %1468 = vmatprep.mubr.bf16.mxu0 0
      %1469 = vmatmul.mubr.bf16.gmra.mrb[0].mxu0 %v1361
      %v1470 = vpop.f32.mrb[0].mxu0
      %v1471 = vadd.f32 0.0, %v1470
      %v1472 = vpop.f32.mrb[0].mxu0
      %v1473 = vadd.f32 0.0, %v1472
      %v1474 = vpop.f32.mrb[0].mxu0
      %v1475 = vpop.f32.mrb[0].mxu0
      %1476 = vdwg.mxu0
      %v1477 = vadd.f32 %v1329, %v1410
      %v1478 = vadd.f32 %v1330, %v1412
      %v1479 = vadd.f32 %v1331, %v1461
      %v1480 = vadd.f32 %v1332, %v1463
      %v1481 = vadd.f32 %v1333, %v1414
      %v1482 = vadd.f32 %v1334, %v1416
      %v1483 = vadd.f32 %v1335, %v1465
      %v1484 = vadd.f32 %v1336, %v1467
      %v1485 = vadd.f32 %v1337, %v1420
      %v1486 = vadd.f32 %v1338, %v1422
      %v1487 = vadd.f32 %v1339, %v1471
      %v1488 = vadd.f32 %v1340, %v1473
      %1489 = vrot.lane.b32.xlu0 %v183, 56
      %v1490 = vpop.permute.xlu0 %1489
      %1491 = vrot.lane.b32.xlu0 %v184, 56
      %v1492 = vpop.permute.xlu0 %1491
      %1493 = vrot.lane.b32.xlu0 %v195, 102
      %v1494 = vpop.permute.xlu0 %1493
      %1495 = vrot.lane.b32.xlu0 %v196, 102
      %v1496 = vpop.permute.xlu0 %1495
      %1497 = vrot.lane.b32.xlu0 %v197, 102
      %v1498 = vpop.permute.xlu0 %1497
      %1499 = vrot.lane.b32.xlu0 %v198, 102
      %v1500 = vpop.permute.xlu0 %1499
      %vm1501 = vcmask 834560
      %v1502 = vsel %vm1501, %v1494, %v1496
      %v1503 = vsel %vm1501, %v1496, %v1498
      %v1504 = vsel %vm1501, %v1498, %v1500
      %v1506 = vsel %vm211, %v1490, 0
      %v1509 = vsel %vm211, %v1492, 0
      %v1512 = vsel %vm218, %v1502, 0
      %v1515 = vsel %vm218, %v1503, 0
      %v1518 = vsel %vm218, %v1504, 0
      %v1521 = vsel %vm218, %v1500, 0
      %1523 = vmatprep.subr.bf16.mxu0 %v1515
      %1524 = vmatpush1.bf16.msra.mxu0 %v1512
      %1525 = vmatprep.subr.bf16.mxu0 0
      %1526 = vmatpush1.bf16.msra.mxu0 0
      %1527 = vmatprep.subr.bf16.mxu0 0
      %1528 = vmatpush1.bf16.msra.mxu0 0
      %1529 = vmatprep.subr.bf16.mxu0 0
      %1530 = vmatpush1.bf16.msra.mxu0 0
      %1531 = vmatprep.subr.bf16.mxu0 0
      %1532 = vmatpush1.bf16.msra.mxu0 0
      %1533 = vmatprep.subr.bf16.mxu0 0
      %1534 = vmatpush1.bf16.msra.mxu0 0
      %1535 = vmatprep.subr.bf16.mxu0 0
      %1536 = vmatpush1.bf16.msra.mxu0 0
      %1537 = vmatprep.subr.bf16.mxu0 0
      %1538 = vmatpush1.bf16.msra.mxu0 0
      %1539 = vmatprep.subr.bf16.mxu0 0
      %1540 = vmatpush1.bf16.msra.mxu0 0
      %1541 = vmatprep.subr.bf16.mxu0 0
      %1542 = vmatpush1.bf16.msra.mxu0 0
      %1543 = vmatprep.subr.bf16.mxu0 0
      %1544 = vmatpush1.bf16.msra.mxu0 0
      %1545 = vmatprep.subr.bf16.mxu0 0
      %1546 = vmatpush1.bf16.msra.mxu0 0
      %1547 = vmatprep.subr.bf16.mxu0 0
      %1548 = vmatpush1.bf16.msra.mxu0 0
      %1549 = vmatprep.subr.bf16.mxu0 0
      %1550 = vmatpush1.bf16.msra.mxu0 0
      %1551 = vmatprep.subr.bf16.mxu0 0
      %1552 = vmatpush1.bf16.msra.mxu0 0
      %1553 = vmatprep.subr.bf16.mxu0 0
      %1554 = vmatpush1.bf16.msra.mxu0 0
      %1555 = vmatprep.mubr.bf16.mxu0 0
      %1556 = vmatmul.mubr.bf16.gmra.mrb[0].mxu0 %v1506
      %v1557 = vpop.f32.mrb[0].mxu0
      %v1558 = vadd.f32 0.0, %v1557
      %v1559 = vpop.f32.mrb[0].mxu0
      %v1560 = vadd.f32 0.0, %v1559
      %v1561 = vpop.f32.mrb[0].mxu0
      %v1562 = vadd.f32 0.0, %v1561
      %v1563 = vpop.f32.mrb[0].mxu0
      %v1564 = vadd.f32 0.0, %v1563
      %1565 = vmatprep.mubr.bf16.mxu0 0
      %1566 = vmatmul.mubr.bf16.gmra.mrb[0].mxu0 %v1509
      %v1567 = vpop.f32.mrb[0].mxu0
      %v1568 = vadd.f32 0.0, %v1567
      %v1569 = vpop.f32.mrb[0].mxu0
      %v1570 = vadd.f32 0.0, %v1569
      %v1571 = vpop.f32.mrb[0].mxu0
      %v1572 = vpop.f32.mrb[0].mxu0
      %1573 = vdwg.mxu0
      %1574 = vmatprep.subr.bf16.mxu0 %v1521
      %1575 = vmatpush1.bf16.msra.mxu0 %v1518
      %1576 = vmatprep.subr.bf16.mxu0 0
      %1577 = vmatpush1.bf16.msra.mxu0 0
      %1578 = vmatprep.subr.bf16.mxu0 0
      %1579 = vmatpush1.bf16.msra.mxu0 0
      %1580 = vmatprep.subr.bf16.mxu0 0
      %1581 = vmatpush1.bf16.msra.mxu0 0
      %1582 = vmatprep.subr.bf16.mxu0 0
      %1583 = vmatpush1.bf16.msra.mxu0 0
      %1584 = vmatprep.subr.bf16.mxu0 0
      %1585 = vmatpush1.bf16.msra.mxu0 0
      %1586 = vmatprep.subr.bf16.mxu0 0
      %1587 = vmatpush1.bf16.msra.mxu0 0
      %1588 = vmatprep.subr.bf16.mxu0 0
      %1589 = vmatpush1.bf16.msra.mxu0 0
      %1590 = vmatprep.subr.bf16.mxu0 0
      %1591 = vmatpush1.bf16.msra.mxu0 0
      %1592 = vmatprep.subr.bf16.mxu0 0
      %1593 = vmatpush1.bf16.msra.mxu0 0
      %1594 = vmatprep.subr.bf16.mxu0 0
      %1595 = vmatpush1.bf16.msra.mxu0 0
      %1596 = vmatprep.subr.bf16.mxu0 0
      %1597 = vmatpush1.bf16.msra.mxu0 0
      %1598 = vmatprep.subr.bf16.mxu0 0
      %1599 = vmatpush1.bf16.msra.mxu0 0
      %1600 = vmatprep.subr.bf16.mxu0 0
      %1601 = vmatpush1.bf16.msra.mxu0 0
      %1602 = vmatprep.subr.bf16.mxu0 0
      %1603 = vmatpush1.bf16.msra.mxu0 0
      %1604 = vmatprep.subr.bf16.mxu0 0
      %1605 = vmatpush1.bf16.msra.mxu0 0
      %1606 = vmatprep.mubr.bf16.mxu0 0
      %1607 = vmatmul.mubr.bf16.gmra.mrb[0].mxu0 %v1506
      %v1608 = vpop.f32.mrb[0].mxu0
      %v1609 = vadd.f32 0.0, %v1608
      %v1610 = vpop.f32.mrb[0].mxu0
      %v1611 = vadd.f32 0.0, %v1610
      %v1612 = vpop.f32.mrb[0].mxu0
      %v1613 = vadd.f32 0.0, %v1612
      %v1614 = vpop.f32.mrb[0].mxu0
      %v1615 = vadd.f32 0.0, %v1614
      %1616 = vmatprep.mubr.bf16.mxu0 0
      %1617 = vmatmul.mubr.bf16.gmra.mrb[0].mxu0 %v1509
      %v1618 = vpop.f32.mrb[0].mxu0
      %v1619 = vadd.f32 0.0, %v1618
      %v1620 = vpop.f32.mrb[0].mxu0
      %v1621 = vadd.f32 0.0, %v1620
      %v1622 = vpop.f32.mrb[0].mxu0
      %v1623 = vpop.f32.mrb[0].mxu0
      %1624 = vdwg.mxu0
      %v1625 = vadd.f32 %v1477, %v1558
      %v1626 = vadd.f32 %v1478, %v1560
      %v1627 = vadd.f32 %v1479, %v1609
      %v1628 = vadd.f32 %v1480, %v1611
      %v1629 = vadd.f32 %v1481, %v1562
      %v1630 = vadd.f32 %v1482, %v1564
      %v1631 = vadd.f32 %v1483, %v1613
      %v1632 = vadd.f32 %v1484, %v1615
      %v1633 = vadd.f32 %v1485, %v1568
      %v1634 = vadd.f32 %v1486, %v1570
      %v1635 = vadd.f32 %v1487, %v1619
      %v1636 = vadd.f32 %v1488, %v1621
      %1637 = vrot.lane.b32.xlu0 %v183, 48
      %v1638 = vpop.permute.xlu0 %1637
      %1639 = vrot.lane.b32.xlu0 %v184, 48
      %v1640 = vpop.permute.xlu0 %1639
      %1641 = vrot.lane.b32.xlu0 %v195, 84
      %v1642 = vpop.permute.xlu0 %1641
      %1643 = vrot.lane.b32.xlu0 %v196, 84
      %v1644 = vpop.permute.xlu0 %1643
      %1645 = vrot.lane.b32.xlu0 %v197, 84
      %v1646 = vpop.permute.xlu0 %1645
      %1647 = vrot.lane.b32.xlu0 %v198, 84
      %v1648 = vpop.permute.xlu0 %1647
      %vm1649 = vcmask 687104
      %v1650 = vsel %vm1649, %v1642, %v1644
      %v1651 = vsel %vm1649, %v1644, %v1646
      %v1652 = vsel %vm1649, %v1646, %v1648
      %v1654 = vsel %vm211, %v1638, 0
      %v1657 = vsel %vm211, %v1640, 0
      %v1660 = vsel %vm218, %v1650, 0
      %v1663 = vsel %vm218, %v1651, 0
      %v1666 = vsel %vm218, %v1652, 0
      %v1669 = vsel %vm218, %v1648, 0
      %1671 = vmatprep.subr.bf16.mxu0 %v1663
      %1672 = vmatpush1.bf16.msra.mxu0 %v1660
      %1673 = vmatprep.subr.bf16.mxu0 0
      %1674 = vmatpush1.bf16.msra.mxu0 0
      %1675 = vmatprep.subr.bf16.mxu0 0
      %1676 = vmatpush1.bf16.msra.mxu0 0
      %1677 = vmatprep.subr.bf16.mxu0 0
      %1678 = vmatpush1.bf16.msra.mxu0 0
      %1679 = vmatprep.subr.bf16.mxu0 0
      %1680 = vmatpush1.bf16.msra.mxu0 0
      %1681 = vmatprep.subr.bf16.mxu0 0
      %1682 = vmatpush1.bf16.msra.mxu0 0
      %1683 = vmatprep.subr.bf16.mxu0 0
      %1684 = vmatpush1.bf16.msra.mxu0 0
      %1685 = vmatprep.subr.bf16.mxu0 0
      %1686 = vmatpush1.bf16.msra.mxu0 0
      %1687 = vmatprep.subr.bf16.mxu0 0
      %1688 = vmatpush1.bf16.msra.mxu0 0
      %1689 = vmatprep.subr.bf16.mxu0 0
      %1690 = vmatpush1.bf16.msra.mxu0 0
      %1691 = vmatprep.subr.bf16.mxu0 0
      %1692 = vmatpush1.bf16.msra.mxu0 0
      %1693 = vmatprep.subr.bf16.mxu0 0
      %1694 = vmatpush1.bf16.msra.mxu0 0
      %1695 = vmatprep.subr.bf16.mxu0 0
      %1696 = vmatpush1.bf16.msra.mxu0 0
      %1697 = vmatprep.subr.bf16.mxu0 0
      %1698 = vmatpush1.bf16.msra.mxu0 0
      %1699 = vmatprep.subr.bf16.mxu0 0
      %1700 = vmatpush1.bf16.msra.mxu0 0
      %1701 = vmatprep.subr.bf16.mxu0 0
      %1702 = vmatpush1.bf16.msra.mxu0 0
      %1703 = vmatprep.mubr.bf16.mxu0 0
      %1704 = vmatmul.mubr.bf16.gmra.mrb[0].mxu0 %v1654
      %v1705 = vpop.f32.mrb[0].mxu0
      %v1706 = vadd.f32 0.0, %v1705
      %v1707 = vpop.f32.mrb[0].mxu0
      %v1708 = vadd.f32 0.0, %v1707
      %v1709 = vpop.f32.mrb[0].mxu0
      %v1710 = vadd.f32 0.0, %v1709
      %v1711 = vpop.f32.mrb[0].mxu0
      %v1712 = vadd.f32 0.0, %v1711
      %1713 = vmatprep.mubr.bf16.mxu0 0
      %1714 = vmatmul.mubr.bf16.gmra.mrb[0].mxu0 %v1657
      %v1715 = vpop.f32.mrb[0].mxu0
      %v1716 = vadd.f32 0.0, %v1715
      %v1717 = vpop.f32.mrb[0].mxu0
      %v1718 = vadd.f32 0.0, %v1717
      %v1719 = vpop.f32.mrb[0].mxu0
      %v1720 = vpop.f32.mrb[0].mxu0
      %1721 = vdwg.mxu0
      %1722 = vmatprep.subr.bf16.mxu0 %v1669
      %1723 = vmatpush1.bf16.msra.mxu0 %v1666
      %1724 = vmatprep.subr.bf16.mxu0 0
      %1725 = vmatpush1.bf16.msra.mxu0 0
      %1726 = vmatprep.subr.bf16.mxu0 0
      %1727 = vmatpush1.bf16.msra.mxu0 0
      %1728 = vmatprep.subr.bf16.mxu0 0
      %1729 = vmatpush1.bf16.msra.mxu0 0
      %1730 = vmatprep.subr.bf16.mxu0 0
      %1731 = vmatpush1.bf16.msra.mxu0 0
      %1732 = vmatprep.subr.bf16.mxu0 0
      %1733 = vmatpush1.bf16.msra.mxu0 0
      %1734 = vmatprep.subr.bf16.mxu0 0
      %1735 = vmatpush1.bf16.msra.mxu0 0
      %1736 = vmatprep.subr.bf16.mxu0 0
      %1737 = vmatpush1.bf16.msra.mxu0 0
      %1738 = vmatprep.subr.bf16.mxu0 0
      %1739 = vmatpush1.bf16.msra.mxu0 0
      %1740 = vmatprep.subr.bf16.mxu0 0
      %1741 = vmatpush1.bf16.msra.mxu0 0
      %1742 = vmatprep.subr.bf16.mxu0 0
      %1743 = vmatpush1.bf16.msra.mxu0 0
      %1744 = vmatprep.subr.bf16.mxu0 0
      %1745 = vmatpush1.bf16.msra.mxu0 0
      %1746 = vmatprep.subr.bf16.mxu0 0
      %1747 = vmatpush1.bf16.msra.mxu0 0
      %1748 = vmatprep.subr.bf16.mxu0 0
      %1749 = vmatpush1.bf16.msra.mxu0 0
      %1750 = vmatprep.subr.bf16.mxu0 0
      %1751 = vmatpush1.bf16.msra.mxu0 0
      %1752 = vmatprep.subr.bf16.mxu0 0
      %1753 = vmatpush1.bf16.msra.mxu0 0
      %1754 = vmatprep.mubr.bf16.mxu0 0
      %1755 = vmatmul.mubr.bf16.gmra.mrb[0].mxu0 %v1654
      %v1756 = vpop.f32.mrb[0].mxu0
      %v1757 = vadd.f32 0.0, %v1756
      %v1758 = vpop.f32.mrb[0].mxu0
      %v1759 = vadd.f32 0.0, %v1758
      %v1760 = vpop.f32.mrb[0].mxu0
      %v1761 = vadd.f32 0.0, %v1760
      %v1762 = vpop.f32.mrb[0].mxu0
      %v1763 = vadd.f32 0.0, %v1762
      %1764 = vmatprep.mubr.bf16.mxu0 0
      %1765 = vmatmul.mubr.bf16.gmra.mrb[0].mxu0 %v1657
      %v1766 = vpop.f32.mrb[0].mxu0
      %v1767 = vadd.f32 0.0, %v1766
      %v1768 = vpop.f32.mrb[0].mxu0
      %v1769 = vadd.f32 0.0, %v1768
      %v1770 = vpop.f32.mrb[0].mxu0
      %v1771 = vpop.f32.mrb[0].mxu0
      %1772 = vdwg.mxu0
      %v1773 = vadd.f32 %v1625, %v1706
      %v1774 = vadd.f32 %v1626, %v1708
      %v1775 = vadd.f32 %v1627, %v1757
      %v1776 = vadd.f32 %v1628, %v1759
      %v1777 = vadd.f32 %v1629, %v1710
      %v1778 = vadd.f32 %v1630, %v1712
      %v1779 = vadd.f32 %v1631, %v1761
      %v1780 = vadd.f32 %v1632, %v1763
      %v1781 = vadd.f32 %v1633, %v1716
      %v1782 = vadd.f32 %v1634, %v1718
      %v1783 = vadd.f32 %v1635, %v1767
      %v1784 = vadd.f32 %v1636, %v1769
      %1785 = vrot.lane.b32.xlu0 %v183, 40
      %v1786 = vpop.permute.xlu0 %1785
      %1787 = vrot.lane.b32.xlu0 %v184, 40
      %v1788 = vpop.permute.xlu0 %1787
      %1789 = vrot.lane.b32.xlu0 %v195, 83
      %v1790 = vpop.permute.xlu0 %1789
      %1791 = vrot.lane.b32.xlu0 %v196, 83
      %v1792 = vpop.permute.xlu0 %1791
      %1793 = vrot.lane.b32.xlu0 %v197, 83
      %v1794 = vpop.permute.xlu0 %1793
      %1795 = vrot.lane.b32.xlu0 %v198, 83
      %v1796 = vpop.permute.xlu0 %1795
      %vm1797 = vcmask 678912
      %v1798 = vsel %vm1797, %v1790, %v1792
      %v1799 = vsel %vm1797, %v1792, %v1794
      %v1800 = vsel %vm1797, %v1794, %v1796
      %v1802 = vsel %vm211, %v1786, 0
      %v1805 = vsel %vm211, %v1788, 0
      %v1808 = vsel %vm218, %v1798, 0
      %v1811 = vsel %vm218, %v1799, 0
      %v1814 = vsel %vm218, %v1800, 0
      %v1817 = vsel %vm218, %v1796, 0
      %1819 = vmatprep.subr.bf16.mxu0 %v1811
      %1820 = vmatpush1.bf16.msra.mxu0 %v1808
      %1821 = vmatprep.subr.bf16.mxu0 0
      %1822 = vmatpush1.bf16.msra.mxu0 0
      %1823 = vmatprep.subr.bf16.mxu0 0
      %1824 = vmatpush1.bf16.msra.mxu0 0
      %1825 = vmatprep.subr.bf16.mxu0 0
      %1826 = vmatpush1.bf16.msra.mxu0 0
      %1827 = vmatprep.subr.bf16.mxu0 0
      %1828 = vmatpush1.bf16.msra.mxu0 0
      %1829 = vmatprep.subr.bf16.mxu0 0
      %1830 = vmatpush1.bf16.msra.mxu0 0
      %1831 = vmatprep.subr.bf16.mxu0 0
      %1832 = vmatpush1.bf16.msra.mxu0 0
      %1833 = vmatprep.subr.bf16.mxu0 0
      %1834 = vmatpush1.bf16.msra.mxu0 0
      %1835 = vmatprep.subr.bf16.mxu0 0
      %1836 = vmatpush1.bf16.msra.mxu0 0
      %1837 = vmatprep.subr.bf16.mxu0 0
      %1838 = vmatpush1.bf16.msra.mxu0 0
      %1839 = vmatprep.subr.bf16.mxu0 0
      %1840 = vmatpush1.bf16.msra.mxu0 0
      %1841 = vmatprep.subr.bf16.mxu0 0
      %1842 = vmatpush1.bf16.msra.mxu0 0
      %1843 = vmatprep.subr.bf16.mxu0 0
      %1844 = vmatpush1.bf16.msra.mxu0 0
      %1845 = vmatprep.subr.bf16.mxu0 0
      %1846 = vmatpush1.bf16.msra.mxu0 0
      %1847 = vmatprep.subr.bf16.mxu0 0
      %1848 = vmatpush1.bf16.msra.mxu0 0
      %1849 = vmatprep.subr.bf16.mxu0 0
      %1850 = vmatpush1.bf16.msra.mxu0 0
      %1851 = vmatprep.mubr.bf16.mxu0 0
      %1852 = vmatmul.mubr.bf16.gmra.mrb[0].mxu0 %v1802
      %v1853 = vpop.f32.mrb[0].mxu0
      %v1854 = vadd.f32 0.0, %v1853
      %v1855 = vpop.f32.mrb[0].mxu0
      %v1856 = vadd.f32 0.0, %v1855
      %v1857 = vpop.f32.mrb[0].mxu0
      %v1858 = vadd.f32 0.0, %v1857
      %v1859 = vpop.f32.mrb[0].mxu0
      %v1860 = vadd.f32 0.0, %v1859
      %1861 = vmatprep.mubr.bf16.mxu0 0
      %1862 = vmatmul.mubr.bf16.gmra.mrb[0].mxu0 %v1805
      %v1863 = vpop.f32.mrb[0].mxu0
      %v1864 = vadd.f32 0.0, %v1863
      %v1865 = vpop.f32.mrb[0].mxu0
      %v1866 = vadd.f32 0.0, %v1865
      %v1867 = vpop.f32.mrb[0].mxu0
      %v1868 = vpop.f32.mrb[0].mxu0
      %1869 = vdwg.mxu0
      %1870 = vmatprep.subr.bf16.mxu0 %v1817
      %1871 = vmatpush1.bf16.msra.mxu0 %v1814
      %1872 = vmatprep.subr.bf16.mxu0 0
      %1873 = vmatpush1.bf16.msra.mxu0 0
      %1874 = vmatprep.subr.bf16.mxu0 0
      %1875 = vmatpush1.bf16.msra.mxu0 0
      %1876 = vmatprep.subr.bf16.mxu0 0
      %1877 = vmatpush1.bf16.msra.mxu0 0
      %1878 = vmatprep.subr.bf16.mxu0 0
      %1879 = vmatpush1.bf16.msra.mxu0 0
      %1880 = vmatprep.subr.bf16.mxu0 0
      %1881 = vmatpush1.bf16.msra.mxu0 0
      %1882 = vmatprep.subr.bf16.mxu0 0
      %1883 = vmatpush1.bf16.msra.mxu0 0
      %1884 = vmatprep.subr.bf16.mxu0 0
      %1885 = vmatpush1.bf16.msra.mxu0 0
      %1886 = vmatprep.subr.bf16.mxu0 0
      %1887 = vmatpush1.bf16.msra.mxu0 0
      %1888 = vmatprep.subr.bf16.mxu0 0
      %1889 = vmatpush1.bf16.msra.mxu0 0
      %1890 = vmatprep.subr.bf16.mxu0 0
      %1891 = vmatpush1.bf16.msra.mxu0 0
      %1892 = vmatprep.subr.bf16.mxu0 0
      %1893 = vmatpush1.bf16.msra.mxu0 0
      %1894 = vmatprep.subr.bf16.mxu0 0
      %1895 = vmatpush1.bf16.msra.mxu0 0
      %1896 = vmatprep.subr.bf16.mxu0 0
      %1897 = vmatpush1.bf16.msra.mxu0 0
      %1898 = vmatprep.subr.bf16.mxu0 0
      %1899 = vmatpush1.bf16.msra.mxu0 0
      %1900 = vmatprep.subr.bf16.mxu0 0
      %1901 = vmatpush1.bf16.msra.mxu0 0
      %1902 = vmatprep.mubr.bf16.mxu0 0
      %1903 = vmatmul.mubr.bf16.gmra.mrb[0].mxu0 %v1802
      %v1904 = vpop.f32.mrb[0].mxu0
      %v1905 = vadd.f32 0.0, %v1904
      %v1906 = vpop.f32.mrb[0].mxu0
      %v1907 = vadd.f32 0.0, %v1906
      %v1908 = vpop.f32.mrb[0].mxu0
      %v1909 = vadd.f32 0.0, %v1908
      %v1910 = vpop.f32.mrb[0].mxu0
      %v1911 = vadd.f32 0.0, %v1910
      %1912 = vmatprep.mubr.bf16.mxu0 0
      %1913 = vmatmul.mubr.bf16.gmra.mrb[0].mxu0 %v1805
      %v1914 = vpop.f32.mrb[0].mxu0
      %v1915 = vadd.f32 0.0, %v1914
      %v1916 = vpop.f32.mrb[0].mxu0
      %v1917 = vadd.f32 0.0, %v1916
      %v1918 = vpop.f32.mrb[0].mxu0
      %v1919 = vpop.f32.mrb[0].mxu0
      %1920 = vdwg.mxu0
      %v1921 = vadd.f32 %v1773, %v1854
      %v1922 = vadd.f32 %v1774, %v1856
      %v1923 = vadd.f32 %v1775, %v1905
      %v1924 = vadd.f32 %v1776, %v1907
      %v1925 = vadd.f32 %v1777, %v1858
      %v1926 = vadd.f32 %v1778, %v1860
      %v1927 = vadd.f32 %v1779, %v1909
      %v1928 = vadd.f32 %v1780, %v1911
      %v1929 = vadd.f32 %v1781, %v1864
      %v1930 = vadd.f32 %v1782, %v1866
      %v1931 = vadd.f32 %v1783, %v1915
      %v1932 = vadd.f32 %v1784, %v1917
      %1933 = vrot.lane.b32.xlu0 %v183, 32
      %v1934 = vpop.permute.xlu0 %1933
      %1935 = vrot.lane.b32.xlu0 %v184, 32
      %v1936 = vpop.permute.xlu0 %1935
      %1937 = vrot.lane.b32.xlu0 %v195, 82
      %v1938 = vpop.permute.xlu0 %1937
      %1939 = vrot.lane.b32.xlu0 %v196, 82
      %v1940 = vpop.permute.xlu0 %1939
      %1941 = vrot.lane.b32.xlu0 %v197, 82
      %v1942 = vpop.permute.xlu0 %1941
      %1943 = vrot.lane.b32.xlu0 %v198, 82
      %v1944 = vpop.permute.xlu0 %1943
      %vm1945 = vcmask 670720
      %v1946 = vsel %vm1945, %v1938, %v1940
      %v1947 = vsel %vm1945, %v1940, %v1942
      %v1948 = vsel %vm1945, %v1942, %v1944
      %v1950 = vsel %vm211, %v1934, 0
      %v1953 = vsel %vm211, %v1936, 0
      %v1956 = vsel %vm218, %v1946, 0
      %v1959 = vsel %vm218, %v1947, 0
      %v1962 = vsel %vm218, %v1948, 0
      %v1965 = vsel %vm218, %v1944, 0
      %1967 = vmatprep.subr.bf16.mxu0 %v1959
      %1968 = vmatpush1.bf16.msra.mxu0 %v1956
      %1969 = vmatprep.subr.bf16.mxu0 0
      %1970 = vmatpush1.bf16.msra.mxu0 0
      %1971 = vmatprep.subr.bf16.mxu0 0
      %1972 = vmatpush1.bf16.msra.mxu0 0
      %1973 = vmatprep.subr.bf16.mxu0 0
      %1974 = vmatpush1.bf16.msra.mxu0 0
      %1975 = vmatprep.subr.bf16.mxu0 0
      %1976 = vmatpush1.bf16.msra.mxu0 0
      %1977 = vmatprep.subr.bf16.mxu0 0
      %1978 = vmatpush1.bf16.msra.mxu0 0
      %1979 = vmatprep.subr.bf16.mxu0 0
      %1980 = vmatpush1.bf16.msra.mxu0 0
      %1981 = vmatprep.subr.bf16.mxu0 0
      %1982 = vmatpush1.bf16.msra.mxu0 0
      %1983 = vmatprep.subr.bf16.mxu0 0
      %1984 = vmatpush1.bf16.msra.mxu0 0
      %1985 = vmatprep.subr.bf16.mxu0 0
      %1986 = vmatpush1.bf16.msra.mxu0 0
      %1987 = vmatprep.subr.bf16.mxu0 0
      %1988 = vmatpush1.bf16.msra.mxu0 0
      %1989 = vmatprep.subr.bf16.mxu0 0
      %1990 = vmatpush1.bf16.msra.mxu0 0
      %1991 = vmatprep.subr.bf16.mxu0 0
      %1992 = vmatpush1.bf16.msra.mxu0 0
      %1993 = vmatprep.subr.bf16.mxu0 0
      %1994 = vmatpush1.bf16.msra.mxu0 0
      %1995 = vmatprep.subr.bf16.mxu0 0
      %1996 = vmatpush1.bf16.msra.mxu0 0
      %1997 = vmatprep.subr.bf16.mxu0 0
      %1998 = vmatpush1.bf16.msra.mxu0 0
      %1999 = vmatprep.mubr.bf16.mxu0 0
      %2000 = vmatmul.mubr.bf16.gmra.mrb[0].mxu0 %v1950
      %v2001 = vpop.f32.mrb[0].mxu0
      %v2002 = vadd.f32 0.0, %v2001
      %v2003 = vpop.f32.mrb[0].mxu0
      %v2004 = vadd.f32 0.0, %v2003
      %v2005 = vpop.f32.mrb[0].mxu0
      %v2006 = vadd.f32 0.0, %v2005
      %v2007 = vpop.f32.mrb[0].mxu0
      %v2008 = vadd.f32 0.0, %v2007
      %2009 = vmatprep.mubr.bf16.mxu0 0
      %2010 = vmatmul.mubr.bf16.gmra.mrb[0].mxu0 %v1953
      %v2011 = vpop.f32.mrb[0].mxu0
      %v2012 = vadd.f32 0.0, %v2011
      %v2013 = vpop.f32.mrb[0].mxu0
      %v2014 = vadd.f32 0.0, %v2013
      %v2015 = vpop.f32.mrb[0].mxu0
      %v2016 = vpop.f32.mrb[0].mxu0
      %2017 = vdwg.mxu0
      %2018 = vmatprep.subr.bf16.mxu0 %v1965
      %2019 = vmatpush1.bf16.msra.mxu0 %v1962
      %2020 = vmatprep.subr.bf16.mxu0 0
      %2021 = vmatpush1.bf16.msra.mxu0 0
      %2022 = vmatprep.subr.bf16.mxu0 0
      %2023 = vmatpush1.bf16.msra.mxu0 0
      %2024 = vmatprep.subr.bf16.mxu0 0
      %2025 = vmatpush1.bf16.msra.mxu0 0
      %2026 = vmatprep.subr.bf16.mxu0 0
      %2027 = vmatpush1.bf16.msra.mxu0 0
      %2028 = vmatprep.subr.bf16.mxu0 0
      %2029 = vmatpush1.bf16.msra.mxu0 0
      %2030 = vmatprep.subr.bf16.mxu0 0
      %2031 = vmatpush1.bf16.msra.mxu0 0
      %2032 = vmatprep.subr.bf16.mxu0 0
      %2033 = vmatpush1.bf16.msra.mxu0 0
      %2034 = vmatprep.subr.bf16.mxu0 0
      %2035 = vmatpush1.bf16.msra.mxu0 0
      %2036 = vmatprep.subr.bf16.mxu0 0
      %2037 = vmatpush1.bf16.msra.mxu0 0
      %2038 = vmatprep.subr.bf16.mxu0 0
      %2039 = vmatpush1.bf16.msra.mxu0 0
      %2040 = vmatprep.subr.bf16.mxu0 0
      %2041 = vmatpush1.bf16.msra.mxu0 0
      %2042 = vmatprep.subr.bf16.mxu0 0
      %2043 = vmatpush1.bf16.msra.mxu0 0
      %2044 = vmatprep.subr.bf16.mxu0 0
      %2045 = vmatpush1.bf16.msra.mxu0 0
      %2046 = vmatprep.subr.bf16.mxu0 0
      %2047 = vmatpush1.bf16.msra.mxu0 0
      %2048 = vmatprep.subr.bf16.mxu0 0
      %2049 = vmatpush1.bf16.msra.mxu0 0
      %2050 = vmatprep.mubr.bf16.mxu0 0
      %2051 = vmatmul.mubr.bf16.gmra.mrb[0].mxu0 %v1950
      %v2052 = vpop.f32.mrb[0].mxu0
      %v2053 = vadd.f32 0.0, %v2052
      %v2054 = vpop.f32.mrb[0].mxu0
      %v2055 = vadd.f32 0.0, %v2054
      %v2056 = vpop.f32.mrb[0].mxu0
      %v2057 = vadd.f32 0.0, %v2056
      %v2058 = vpop.f32.mrb[0].mxu0
      %v2059 = vadd.f32 0.0, %v2058
      %2060 = vmatprep.mubr.bf16.mxu0 0
      %2061 = vmatmul.mubr.bf16.gmra.mrb[0].mxu0 %v1953
      %v2062 = vpop.f32.mrb[0].mxu0
      %v2063 = vadd.f32 0.0, %v2062
      %v2064 = vpop.f32.mrb[0].mxu0
      %v2065 = vadd.f32 0.0, %v2064
      %v2066 = vpop.f32.mrb[0].mxu0
      %v2067 = vpop.f32.mrb[0].mxu0
      %2068 = vdwg.mxu0
      %v2069 = vadd.f32 %v1921, %v2002
      %v2070 = vadd.f32 %v1922, %v2004
      %v2071 = vadd.f32 %v1923, %v2053
      %v2072 = vadd.f32 %v1924, %v2055
      %v2073 = vadd.f32 %v1925, %v2006
      %v2074 = vadd.f32 %v1926, %v2008
      %v2075 = vadd.f32 %v1927, %v2057
      %v2076 = vadd.f32 %v1928, %v2059
      %v2077 = vadd.f32 %v1929, %v2012
      %v2078 = vadd.f32 %v1930, %v2014
      %v2079 = vadd.f32 %v1931, %v2063
      %v2080 = vadd.f32 %v1932, %v2065
      %2081 = vrot.lane.b32.xlu0 %v183, 24
      %v2082 = vpop.permute.xlu0 %2081
      %2083 = vrot.lane.b32.xlu0 %v184, 24
      %v2084 = vpop.permute.xlu0 %2083
      %2085 = vrot.lane.b32.xlu0 %v195, 81
      %v2086 = vpop.permute.xlu0 %2085
      %2087 = vrot.lane.b32.xlu0 %v196, 81
      %v2088 = vpop.permute.xlu0 %2087
      %2089 = vrot.lane.b32.xlu0 %v197, 81
      %v2090 = vpop.permute.xlu0 %2089
      %2091 = vrot.lane.b32.xlu0 %v198, 81
      %v2092 = vpop.permute.xlu0 %2091
      %vm2093 = vcmask 662528
      %v2094 = vsel %vm2093, %v2086, %v2088
      %v2095 = vsel %vm2093, %v2088, %v2090
      %v2096 = vsel %vm2093, %v2090, %v2092
      %v2098 = vsel %vm211, %v2082, 0
      %v2101 = vsel %vm211, %v2084, 0
      %v2104 = vsel %vm218, %v2094, 0
      %v2107 = vsel %vm218, %v2095, 0
      %v2110 = vsel %vm218, %v2096, 0
      %v2113 = vsel %vm218, %v2092, 0
      %2115 = vmatprep.subr.bf16.mxu0 %v2107
      %2116 = vmatpush1.bf16.msra.mxu0 %v2104
      %2117 = vmatprep.subr.bf16.mxu0 0
      %2118 = vmatpush1.bf16.msra.mxu0 0
      %2119 = vmatprep.subr.bf16.mxu0 0
      %2120 = vmatpush1.bf16.msra.mxu0 0
      %2121 = vmatprep.subr.bf16.mxu0 0
      %2122 = vmatpush1.bf16.msra.mxu0 0
      %2123 = vmatprep.subr.bf16.mxu0 0
      %2124 = vmatpush1.bf16.msra.mxu0 0
      %2125 = vmatprep.subr.bf16.mxu0 0
      %2126 = vmatpush1.bf16.msra.mxu0 0
      %2127 = vmatprep.subr.bf16.mxu0 0
      %2128 = vmatpush1.bf16.msra.mxu0 0
      %2129 = vmatprep.subr.bf16.mxu0 0
      %2130 = vmatpush1.bf16.msra.mxu0 0
      %2131 = vmatprep.subr.bf16.mxu0 0
      %2132 = vmatpush1.bf16.msra.mxu0 0
      %2133 = vmatprep.subr.bf16.mxu0 0
      %2134 = vmatpush1.bf16.msra.mxu0 0
      %2135 = vmatprep.subr.bf16.mxu0 0
      %2136 = vmatpush1.bf16.msra.mxu0 0
      %2137 = vmatprep.subr.bf16.mxu0 0
      %2138 = vmatpush1.bf16.msra.mxu0 0
      %2139 = vmatprep.subr.bf16.mxu0 0
      %2140 = vmatpush1.bf16.msra.mxu0 0
      %2141 = vmatprep.subr.bf16.mxu0 0
      %2142 = vmatpush1.bf16.msra.mxu0 0
      %2143 = vmatprep.subr.bf16.mxu0 0
      %2144 = vmatpush1.bf16.msra.mxu0 0
      %2145 = vmatprep.subr.bf16.mxu0 0
      %2146 = vmatpush1.bf16.msra.mxu0 0
      %2147 = vmatprep.mubr.bf16.mxu0 0
      %2148 = vmatmul.mubr.bf16.gmra.mrb[0].mxu0 %v2098
      %v2149 = vpop.f32.mrb[0].mxu0
      %v2150 = vadd.f32 0.0, %v2149
      %v2151 = vpop.f32.mrb[0].mxu0
      %v2152 = vadd.f32 0.0, %v2151
      %v2153 = vpop.f32.mrb[0].mxu0
      %v2154 = vadd.f32 0.0, %v2153
      %v2155 = vpop.f32.mrb[0].mxu0
      %v2156 = vadd.f32 0.0, %v2155
      %2157 = vmatprep.mubr.bf16.mxu0 0
      %2158 = vmatmul.mubr.bf16.gmra.mrb[0].mxu0 %v2101
      %v2159 = vpop.f32.mrb[0].mxu0
      %v2160 = vadd.f32 0.0, %v2159
      %v2161 = vpop.f32.mrb[0].mxu0
      %v2162 = vadd.f32 0.0, %v2161
      %v2163 = vpop.f32.mrb[0].mxu0
      %v2164 = vpop.f32.mrb[0].mxu0
      %2165 = vdwg.mxu0
      %2166 = vmatprep.subr.bf16.mxu0 %v2113
      %2167 = vmatpush1.bf16.msra.mxu0 %v2110
      %2168 = vmatprep.subr.bf16.mxu0 0
      %2169 = vmatpush1.bf16.msra.mxu0 0
      %2170 = vmatprep.subr.bf16.mxu0 0
      %2171 = vmatpush1.bf16.msra.mxu0 0
      %2172 = vmatprep.subr.bf16.mxu0 0
      %2173 = vmatpush1.bf16.msra.mxu0 0
      %2174 = vmatprep.subr.bf16.mxu0 0
      %2175 = vmatpush1.bf16.msra.mxu0 0
      %2176 = vmatprep.subr.bf16.mxu0 0
      %2177 = vmatpush1.bf16.msra.mxu0 0
      %2178 = vmatprep.subr.bf16.mxu0 0
      %2179 = vmatpush1.bf16.msra.mxu0 0
      %2180 = vmatprep.subr.bf16.mxu0 0
      %2181 = vmatpush1.bf16.msra.mxu0 0
      %2182 = vmatprep.subr.bf16.mxu0 0
      %2183 = vmatpush1.bf16.msra.mxu0 0
      %2184 = vmatprep.subr.bf16.mxu0 0
      %2185 = vmatpush1.bf16.msra.mxu0 0
      %2186 = vmatprep.subr.bf16.mxu0 0
      %2187 = vmatpush1.bf16.msra.mxu0 0
      %2188 = vmatprep.subr.bf16.mxu0 0
      %2189 = vmatpush1.bf16.msra.mxu0 0
      %2190 = vmatprep.subr.bf16.mxu0 0
      %2191 = vmatpush1.bf16.msra.mxu0 0
      %2192 = vmatprep.subr.bf16.mxu0 0
      %2193 = vmatpush1.bf16.msra.mxu0 0
      %2194 = vmatprep.subr.bf16.mxu0 0
      %2195 = vmatpush1.bf16.msra.mxu0 0
      %2196 = vmatprep.subr.bf16.mxu0 0
      %2197 = vmatpush1.bf16.msra.mxu0 0
      %2198 = vmatprep.mubr.bf16.mxu0 0
      %2199 = vmatmul.mubr.bf16.gmra.mrb[0].mxu0 %v2098
      %v2200 = vpop.f32.mrb[0].mxu0
      %v2201 = vadd.f32 0.0, %v2200
      %v2202 = vpop.f32.mrb[0].mxu0
      %v2203 = vadd.f32 0.0, %v2202
      %v2204 = vpop.f32.mrb[0].mxu0
      %v2205 = vadd.f32 0.0, %v2204
      %v2206 = vpop.f32.mrb[0].mxu0
      %v2207 = vadd.f32 0.0, %v2206
      %2208 = vmatprep.mubr.bf16.mxu0 0
      %2209 = vmatmul.mubr.bf16.gmra.mrb[0].mxu0 %v2101
      %v2210 = vpop.f32.mrb[0].mxu0
      %v2211 = vadd.f32 0.0, %v2210
      %v2212 = vpop.f32.mrb[0].mxu0
      %v2213 = vadd.f32 0.0, %v2212
      %v2214 = vpop.f32.mrb[0].mxu0
      %v2215 = vpop.f32.mrb[0].mxu0
      %2216 = vdwg.mxu0
      %v2217 = vadd.f32 %v2069, %v2150
      %v2218 = vadd.f32 %v2070, %v2152
      %v2219 = vadd.f32 %v2071, %v2201
      %v2220 = vadd.f32 %v2072, %v2203
      %v2221 = vadd.f32 %v2073, %v2154
      %v2222 = vadd.f32 %v2074, %v2156
      %v2223 = vadd.f32 %v2075, %v2205
      %v2224 = vadd.f32 %v2076, %v2207
      %v2225 = vadd.f32 %v2077, %v2160
      %v2226 = vadd.f32 %v2078, %v2162
      %v2227 = vadd.f32 %v2079, %v2211
      %v2228 = vadd.f32 %v2080, %v2213
      %2229 = vrot.lane.b32.xlu0 %v183, 16
      %v2230 = vpop.permute.xlu0 %2229
      %2231 = vrot.lane.b32.xlu0 %v184, 16
      %v2232 = vpop.permute.xlu0 %2231
      %2233 = vrot.lane.b32.xlu0 %v195, 80
      %v2234 = vpop.permute.xlu0 %2233
      %2235 = vrot.lane.b32.xlu0 %v196, 80
      %v2236 = vpop.permute.xlu0 %2235
      %2237 = vrot.lane.b32.xlu0 %v197, 80
      %v2238 = vpop.permute.xlu0 %2237
      %2239 = vrot.lane.b32.xlu0 %v198, 80
      %v2240 = vpop.permute.xlu0 %2239
      %vm2241 = vcmask 654336
      %v2242 = vsel %vm2241, %v2234, %v2236
      %v2243 = vsel %vm2241, %v2236, %v2238
      %v2244 = vsel %vm2241, %v2238, %v2240
      %v2246 = vsel %vm211, %v2230, 0
      %v2249 = vsel %vm211, %v2232, 0
      %v2252 = vsel %vm218, %v2242, 0
      %v2255 = vsel %vm218, %v2243, 0
      %v2258 = vsel %vm218, %v2244, 0
      %v2261 = vsel %vm218, %v2240, 0
      %2263 = vmatprep.subr.bf16.mxu0 %v2255
      %2264 = vmatpush1.bf16.msra.mxu0 %v2252
      %2265 = vmatprep.subr.bf16.mxu0 0
      %2266 = vmatpush1.bf16.msra.mxu0 0
      %2267 = vmatprep.subr.bf16.mxu0 0
      %2268 = vmatpush1.bf16.msra.mxu0 0
      %2269 = vmatprep.subr.bf16.mxu0 0
      %2270 = vmatpush1.bf16.msra.mxu0 0
      %2271 = vmatprep.subr.bf16.mxu0 0
      %2272 = vmatpush1.bf16.msra.mxu0 0
      %2273 = vmatprep.subr.bf16.mxu0 0
      %2274 = vmatpush1.bf16.msra.mxu0 0
      %2275 = vmatprep.subr.bf16.mxu0 0
      %2276 = vmatpush1.bf16.msra.mxu0 0
      %2277 = vmatprep.subr.bf16.mxu0 0
      %2278 = vmatpush1.bf16.msra.mxu0 0
      %2279 = vmatprep.subr.bf16.mxu0 0
      %2280 = vmatpush1.bf16.msra.mxu0 0
      %2281 = vmatprep.subr.bf16.mxu0 0
      %2282 = vmatpush1.bf16.msra.mxu0 0
      %2283 = vmatprep.subr.bf16.mxu0 0
      %2284 = vmatpush1.bf16.msra.mxu0 0
      %2285 = vmatprep.subr.bf16.mxu0 0
      %2286 = vmatpush1.bf16.msra.mxu0 0
      %2287 = vmatprep.subr.bf16.mxu0 0
      %2288 = vmatpush1.bf16.msra.mxu0 0
      %2289 = vmatprep.subr.bf16.mxu0 0
      %2290 = vmatpush1.bf16.msra.mxu0 0
      %2291 = vmatprep.subr.bf16.mxu0 0
      %2292 = vmatpush1.bf16.msra.mxu0 0
      %2293 = vmatprep.subr.bf16.mxu0 0
      %2294 = vmatpush1.bf16.msra.mxu0 0
      %2295 = vmatprep.mubr.bf16.mxu0 0
      %2296 = vmatmul.mubr.bf16.gmra.mrb[0].mxu0 %v2246
      %v2297 = vpop.f32.mrb[0].mxu0
      %v2298 = vadd.f32 0.0, %v2297
      %v2299 = vpop.f32.mrb[0].mxu0
      %v2300 = vadd.f32 0.0, %v2299
      %v2301 = vpop.f32.mrb[0].mxu0
      %v2302 = vadd.f32 0.0, %v2301
      %v2303 = vpop.f32.mrb[0].mxu0
      %v2304 = vadd.f32 0.0, %v2303
      %2305 = vmatprep.mubr.bf16.mxu0 0
      %2306 = vmatmul.mubr.bf16.gmra.mrb[0].mxu0 %v2249
      %v2307 = vpop.f32.mrb[0].mxu0
      %v2308 = vadd.f32 0.0, %v2307
      %v2309 = vpop.f32.mrb[0].mxu0
      %v2310 = vadd.f32 0.0, %v2309
      %v2311 = vpop.f32.mrb[0].mxu0
      %v2312 = vpop.f32.mrb[0].mxu0
      %2313 = vdwg.mxu0
      %2314 = vmatprep.subr.bf16.mxu0 %v2261
      %2315 = vmatpush1.bf16.msra.mxu0 %v2258
      %2316 = vmatprep.subr.bf16.mxu0 0
      %2317 = vmatpush1.bf16.msra.mxu0 0
      %2318 = vmatprep.subr.bf16.mxu0 0
      %2319 = vmatpush1.bf16.msra.mxu0 0
      %2320 = vmatprep.subr.bf16.mxu0 0
      %2321 = vmatpush1.bf16.msra.mxu0 0
      %2322 = vmatprep.subr.bf16.mxu0 0
      %2323 = vmatpush1.bf16.msra.mxu0 0
      %2324 = vmatprep.subr.bf16.mxu0 0
      %2325 = vmatpush1.bf16.msra.mxu0 0
      %2326 = vmatprep.subr.bf16.mxu0 0
      %2327 = vmatpush1.bf16.msra.mxu0 0
      %2328 = vmatprep.subr.bf16.mxu0 0
      %2329 = vmatpush1.bf16.msra.mxu0 0
      %2330 = vmatprep.subr.bf16.mxu0 0
      %2331 = vmatpush1.bf16.msra.mxu0 0
      %2332 = vmatprep.subr.bf16.mxu0 0
      %2333 = vmatpush1.bf16.msra.mxu0 0
      %2334 = vmatprep.subr.bf16.mxu0 0
      %2335 = vmatpush1.bf16.msra.mxu0 0
      %2336 = vmatprep.subr.bf16.mxu0 0
      %2337 = vmatpush1.bf16.msra.mxu0 0
      %2338 = vmatprep.subr.bf16.mxu0 0
      %2339 = vmatpush1.bf16.msra.mxu0 0
      %2340 = vmatprep.subr.bf16.mxu0 0
      %2341 = vmatpush1.bf16.msra.mxu0 0
      %2342 = vmatprep.subr.bf16.mxu0 0
      %2343 = vmatpush1.bf16.msra.mxu0 0
      %2344 = vmatprep.subr.bf16.mxu0 0
      %2345 = vmatpush1.bf16.msra.mxu0 0
      %2346 = vmatprep.mubr.bf16.mxu0 0
      %2347 = vmatmul.mubr.bf16.gmra.mrb[0].mxu0 %v2246
      %v2348 = vpop.f32.mrb[0].mxu0
      %v2349 = vadd.f32 0.0, %v2348
      %v2350 = vpop.f32.mrb[0].mxu0
      %v2351 = vadd.f32 0.0, %v2350
      %v2352 = vpop.f32.mrb[0].mxu0
      %v2353 = vadd.f32 0.0, %v2352
      %v2354 = vpop.f32.mrb[0].mxu0
      %v2355 = vadd.f32 0.0, %v2354
      %2356 = vmatprep.mubr.bf16.mxu0 0
      %2357 = vmatmul.mubr.bf16.gmra.mrb[0].mxu0 %v2249
      %v2358 = vpop.f32.mrb[0].mxu0
      %v2359 = vadd.f32 0.0, %v2358
      %v2360 = vpop.f32.mrb[0].mxu0
      %v2361 = vadd.f32 0.0, %v2360
      %v2362 = vpop.f32.mrb[0].mxu0
      %v2363 = vpop.f32.mrb[0].mxu0
      %2364 = vdwg.mxu0
      %v2365 = vadd.f32 %v2217, %v2298
      %v2366 = vadd.f32 %v2218, %v2300
      %v2367 = vadd.f32 %v2219, %v2349
      %v2368 = vadd.f32 %v2220, %v2351
      %v2369 = vadd.f32 %v2221, %v2302
      %v2370 = vadd.f32 %v2222, %v2304
      %v2371 = vadd.f32 %v2223, %v2353
      %v2372 = vadd.f32 %v2224, %v2355
      %v2373 = vadd.f32 %v2225, %v2308
      %v2374 = vadd.f32 %v2226, %v2310
      %v2375 = vadd.f32 %v2227, %v2359
      %v2376 = vadd.f32 %v2228, %v2361
      %2377 = vrot.lane.b32.xlu0 %v183, 8
      %v2378 = vpop.permute.xlu0 %2377
      %2379 = vrot.lane.b32.xlu0 %v184, 8
      %v2380 = vpop.permute.xlu0 %2379
      %2381 = vrot.lane.b32.xlu0 %v195, 62
      %v2382 = vpop.permute.xlu0 %2381
      %2383 = vrot.lane.b32.xlu0 %v196, 62
      %v2384 = vpop.permute.xlu0 %2383
      %2385 = vrot.lane.b32.xlu0 %v197, 62
      %v2386 = vpop.permute.xlu0 %2385
      %2387 = vrot.lane.b32.xlu0 %v198, 62
      %v2388 = vpop.permute.xlu0 %2387
      %vm2389 = vcmask 506880
      %v2390 = vsel %vm2389, %v2382, %v2384
      %v2391 = vsel %vm2389, %v2384, %v2386
      %v2392 = vsel %vm2389, %v2386, %v2388
      %v2394 = vsel %vm211, %v2378, 0
      %v2397 = vsel %vm211, %v2380, 0
      %v2400 = vsel %vm218, %v2390, 0
      %v2403 = vsel %vm218, %v2391, 0
      %v2406 = vsel %vm218, %v2392, 0
      %v2409 = vsel %vm218, %v2388, 0
      %2411 = vmatprep.subr.bf16.mxu0 %v2403
      %2412 = vmatpush1.bf16.msra.mxu0 %v2400
      %2413 = vmatprep.subr.bf16.mxu0 0
      %2414 = vmatpush1.bf16.msra.mxu0 0
      %2415 = vmatprep.subr.bf16.mxu0 0
      %2416 = vmatpush1.bf16.msra.mxu0 0
      %2417 = vmatprep.subr.bf16.mxu0 0
      %2418 = vmatpush1.bf16.msra.mxu0 0
      %2419 = vmatprep.subr.bf16.mxu0 0
      %2420 = vmatpush1.bf16.msra.mxu0 0
      %2421 = vmatprep.subr.bf16.mxu0 0
      %2422 = vmatpush1.bf16.msra.mxu0 0
      %2423 = vmatprep.subr.bf16.mxu0 0
      %2424 = vmatpush1.bf16.msra.mxu0 0
      %2425 = vmatprep.subr.bf16.mxu0 0
      %2426 = vmatpush1.bf16.msra.mxu0 0
      %2427 = vmatprep.subr.bf16.mxu0 0
      %2428 = vmatpush1.bf16.msra.mxu0 0
      %2429 = vmatprep.subr.bf16.mxu0 0
      %2430 = vmatpush1.bf16.msra.mxu0 0
      %2431 = vmatprep.subr.bf16.mxu0 0
      %2432 = vmatpush1.bf16.msra.mxu0 0
      %2433 = vmatprep.subr.bf16.mxu0 0
      %2434 = vmatpush1.bf16.msra.mxu0 0
      %2435 = vmatprep.subr.bf16.mxu0 0
      %2436 = vmatpush1.bf16.msra.mxu0 0
      %2437 = vmatprep.subr.bf16.mxu0 0
      %2438 = vmatpush1.bf16.msra.mxu0 0
      %2439 = vmatprep.subr.bf16.mxu0 0
      %2440 = vmatpush1.bf16.msra.mxu0 0
      %2441 = vmatprep.subr.bf16.mxu0 0
      %2442 = vmatpush1.bf16.msra.mxu0 0
      %2443 = vmatprep.mubr.bf16.mxu0 0
      %2444 = vmatmul.mubr.bf16.gmra.mrb[0].mxu0 %v2394
      %v2445 = vpop.f32.mrb[0].mxu0
      %v2446 = vadd.f32 0.0, %v2445
      %v2447 = vpop.f32.mrb[0].mxu0
      %v2448 = vadd.f32 0.0, %v2447
      %v2449 = vpop.f32.mrb[0].mxu0
      %v2450 = vadd.f32 0.0, %v2449
      %v2451 = vpop.f32.mrb[0].mxu0
      %v2452 = vadd.f32 0.0, %v2451
      %2453 = vmatprep.mubr.bf16.mxu0 0
      %2454 = vmatmul.mubr.bf16.gmra.mrb[0].mxu0 %v2397
      %v2455 = vpop.f32.mrb[0].mxu0
      %v2456 = vadd.f32 0.0, %v2455
      %v2457 = vpop.f32.mrb[0].mxu0
      %v2458 = vadd.f32 0.0, %v2457
      %v2459 = vpop.f32.mrb[0].mxu0
      %v2460 = vpop.f32.mrb[0].mxu0
      %2461 = vdwg.mxu0
      %2462 = vmatprep.subr.bf16.mxu0 %v2409
      %2463 = vmatpush1.bf16.msra.mxu0 %v2406
      %2464 = vmatprep.subr.bf16.mxu0 0
      %2465 = vmatpush1.bf16.msra.mxu0 0
      %2466 = vmatprep.subr.bf16.mxu0 0
      %2467 = vmatpush1.bf16.msra.mxu0 0
      %2468 = vmatprep.subr.bf16.mxu0 0
      %2469 = vmatpush1.bf16.msra.mxu0 0
      %2470 = vmatprep.subr.bf16.mxu0 0
      %2471 = vmatpush1.bf16.msra.mxu0 0
      %2472 = vmatprep.subr.bf16.mxu0 0
      %2473 = vmatpush1.bf16.msra.mxu0 0
      %2474 = vmatprep.subr.bf16.mxu0 0
      %2475 = vmatpush1.bf16.msra.mxu0 0
      %2476 = vmatprep.subr.bf16.mxu0 0
      %2477 = vmatpush1.bf16.msra.mxu0 0
      %2478 = vmatprep.subr.bf16.mxu0 0
      %2479 = vmatpush1.bf16.msra.mxu0 0
      %2480 = vmatprep.subr.bf16.mxu0 0
      %2481 = vmatpush1.bf16.msra.mxu0 0
      %2482 = vmatprep.subr.bf16.mxu0 0
      %2483 = vmatpush1.bf16.msra.mxu0 0
      %2484 = vmatprep.subr.bf16.mxu0 0
      %2485 = vmatpush1.bf16.msra.mxu0 0
      %2486 = vmatprep.subr.bf16.mxu0 0
      %2487 = vmatpush1.bf16.msra.mxu0 0
      %2488 = vmatprep.subr.bf16.mxu0 0
      %2489 = vmatpush1.bf16.msra.mxu0 0
      %2490 = vmatprep.subr.bf16.mxu0 0
      %2491 = vmatpush1.bf16.msra.mxu0 0
      %2492 = vmatprep.subr.bf16.mxu0 0
      %2493 = vmatpush1.bf16.msra.mxu0 0
      %2494 = vmatprep.mubr.bf16.mxu0 0
      %2495 = vmatmul.mubr.bf16.gmra.mrb[0].mxu0 %v2394
      %v2496 = vpop.f32.mrb[0].mxu0
      %v2497 = vadd.f32 0.0, %v2496
      %v2498 = vpop.f32.mrb[0].mxu0
      %v2499 = vadd.f32 0.0, %v2498
      %v2500 = vpop.f32.mrb[0].mxu0
      %v2501 = vadd.f32 0.0, %v2500
      %v2502 = vpop.f32.mrb[0].mxu0
      %v2503 = vadd.f32 0.0, %v2502
      %2504 = vmatprep.mubr.bf16.mxu0 0
      %2505 = vmatmul.mubr.bf16.gmra.mrb[0].mxu0 %v2397
      %v2506 = vpop.f32.mrb[0].mxu0
      %v2507 = vadd.f32 0.0, %v2506
      %v2508 = vpop.f32.mrb[0].mxu0
      %v2509 = vadd.f32 0.0, %v2508
      %v2510 = vpop.f32.mrb[0].mxu0
      %v2511 = vpop.f32.mrb[0].mxu0
      %2512 = vdwg.mxu0
      %v2513 = vadd.f32 %v2365, %v2446
      %v2514 = vadd.f32 %v2366, %v2448
      %v2515 = vadd.f32 %v2367, %v2497
      %v2516 = vadd.f32 %v2368, %v2499
      %v2517 = vadd.f32 %v2369, %v2450
      %v2518 = vadd.f32 %v2370, %v2452
      %v2519 = vadd.f32 %v2371, %v2501
      %v2520 = vadd.f32 %v2372, %v2503
      %v2521 = vadd.f32 %v2373, %v2456
      %v2522 = vadd.f32 %v2374, %v2458
      %v2523 = vadd.f32 %v2375, %v2507
      %v2524 = vadd.f32 %v2376, %v2509
      %v2525 = vunpack.c.h.b16 %v174
      %v2526 = vunpack.c.h.b16 %v175
      %v2527 = vunpack.c.h.b16 %v176
      %v2528 = vpack.c.b16 %v2526, %v2525
      %v2529 = vpack.c.b16 %v2527, %v2527
      %2530 = vrot.lane.b32.xlu0 %v195, 61
      %v2531 = vpop.permute.xlu0 %2530
      %2532 = vrot.lane.b32.xlu0 %v196, 61
      %v2533 = vpop.permute.xlu0 %2532
      %2534 = vrot.lane.b32.xlu0 %v197, 61
      %v2535 = vpop.permute.xlu0 %2534
      %2536 = vrot.lane.b32.xlu0 %v198, 61
      %v2537 = vpop.permute.xlu0 %2536
      %vm2538 = vcmask 498688
      %v2539 = vsel %vm2538, %v2531, %v2533
      %v2540 = vsel %vm2538, %v2533, %v2535
      %v2541 = vsel %vm2538, %v2535, %v2537
      %v2543 = vsel %vm211, %v2528, 0
      %v2546 = vsel %vm211, %v2529, 0
      %v2549 = vsel %vm218, %v2539, 0
      %v2552 = vsel %vm218, %v2540, 0
      %v2555 = vsel %vm218, %v2541, 0
      %v2558 = vsel %vm218, %v2537, 0
      %2560 = vmatprep.subr.bf16.mxu0 %v2552
      %2561 = vmatpush1.bf16.msra.mxu0 %v2549
      %2562 = vmatprep.subr.bf16.mxu0 0
      %2563 = vmatpush1.bf16.msra.mxu0 0
      %2564 = vmatprep.subr.bf16.mxu0 0
      %2565 = vmatpush1.bf16.msra.mxu0 0
      %2566 = vmatprep.subr.bf16.mxu0 0
      %2567 = vmatpush1.bf16.msra.mxu0 0
      %2568 = vmatprep.subr.bf16.mxu0 0
      %2569 = vmatpush1.bf16.msra.mxu0 0
      %2570 = vmatprep.subr.bf16.mxu0 0
      %2571 = vmatpush1.bf16.msra.mxu0 0
      %2572 = vmatprep.subr.bf16.mxu0 0
      %2573 = vmatpush1.bf16.msra.mxu0 0
      %2574 = vmatprep.subr.bf16.mxu0 0
      %2575 = vmatpush1.bf16.msra.mxu0 0
      %2576 = vmatprep.subr.bf16.mxu0 0
      %2577 = vmatpush1.bf16.msra.mxu0 0
      %2578 = vmatprep.subr.bf16.mxu0 0
      %2579 = vmatpush1.bf16.msra.mxu0 0
      %2580 = vmatprep.subr.bf16.mxu0 0
      %2581 = vmatpush1.bf16.msra.mxu0 0
      %2582 = vmatprep.subr.bf16.mxu0 0
      %2583 = vmatpush1.bf16.msra.mxu0 0
      %2584 = vmatprep.subr.bf16.mxu0 0
      %2585 = vmatpush1.bf16.msra.mxu0 0
      %2586 = vmatprep.subr.bf16.mxu0 0
      %2587 = vmatpush1.bf16.msra.mxu0 0
      %2588 = vmatprep.subr.bf16.mxu0 0
      %2589 = vmatpush1.bf16.msra.mxu0 0
      %2590 = vmatprep.subr.bf16.mxu0 0
      %2591 = vmatpush1.bf16.msra.mxu0 0
      %2592 = vmatprep.mubr.bf16.mxu0 0
      %2593 = vmatmul.mubr.bf16.gmra.mrb[0].mxu0 %v2543
      %v2594 = vpop.f32.mrb[0].mxu0
      %v2595 = vadd.f32 0.0, %v2594
      %v2596 = vpop.f32.mrb[0].mxu0
      %v2597 = vadd.f32 0.0, %v2596
      %v2598 = vpop.f32.mrb[0].mxu0
      %v2599 = vadd.f32 0.0, %v2598
      %v2600 = vpop.f32.mrb[0].mxu0
      %v2601 = vadd.f32 0.0, %v2600
      %2602 = vmatprep.mubr.bf16.mxu0 0
      %2603 = vmatmul.mubr.bf16.gmra.mrb[0].mxu0 %v2546
      %v2604 = vpop.f32.mrb[0].mxu0
      %v2605 = vadd.f32 0.0, %v2604
      %v2606 = vpop.f32.mrb[0].mxu0
      %v2607 = vadd.f32 0.0, %v2606
      %v2608 = vpop.f32.mrb[0].mxu0
      %v2609 = vpop.f32.mrb[0].mxu0
      %2610 = vdwg.mxu0
      %2611 = vmatprep.subr.bf16.mxu0 %v2558
      %2612 = vmatpush1.bf16.msra.mxu0 %v2555
      %2613 = vmatprep.subr.bf16.mxu0 0
      %2614 = vmatpush1.bf16.msra.mxu0 0
      %2615 = vmatprep.subr.bf16.mxu0 0
      %2616 = vmatpush1.bf16.msra.mxu0 0
      %2617 = vmatprep.subr.bf16.mxu0 0
      %2618 = vmatpush1.bf16.msra.mxu0 0
      %2619 = vmatprep.subr.bf16.mxu0 0
      %2620 = vmatpush1.bf16.msra.mxu0 0
      %2621 = vmatprep.subr.bf16.mxu0 0
      %2622 = vmatpush1.bf16.msra.mxu0 0
      %2623 = vmatprep.subr.bf16.mxu0 0
      %2624 = vmatpush1.bf16.msra.mxu0 0
      %2625 = vmatprep.subr.bf16.mxu0 0
      %2626 = vmatpush1.bf16.msra.mxu0 0
      %2627 = vmatprep.subr.bf16.mxu0 0
      %2628 = vmatpush1.bf16.msra.mxu0 0
      %2629 = vmatprep.subr.bf16.mxu0 0
      %2630 = vmatpush1.bf16.msra.mxu0 0
      %2631 = vmatprep.subr.bf16.mxu0 0
      %2632 = vmatpush1.bf16.msra.mxu0 0
      %2633 = vmatprep.subr.bf16.mxu0 0
      %2634 = vmatpush1.bf16.msra.mxu0 0
      %2635 = vmatprep.subr.bf16.mxu0 0
      %2636 = vmatpush1.bf16.msra.mxu0 0
      %2637 = vmatprep.subr.bf16.mxu0 0
      %2638 = vmatpush1.bf16.msra.mxu0 0
      %2639 = vmatprep.subr.bf16.mxu0 0
      %2640 = vmatpush1.bf16.msra.mxu0 0
      %2641 = vmatprep.subr.bf16.mxu0 0
      %2642 = vmatpush1.bf16.msra.mxu0 0
      %2643 = vmatprep.mubr.bf16.mxu0 0
      %2644 = vmatmul.mubr.bf16.gmra.mrb[0].mxu0 %v2543
      %v2645 = vpop.f32.mrb[0].mxu0
      %v2646 = vadd.f32 0.0, %v2645
      %v2647 = vpop.f32.mrb[0].mxu0
      %v2648 = vadd.f32 0.0, %v2647
      %v2649 = vpop.f32.mrb[0].mxu0
      %v2650 = vadd.f32 0.0, %v2649
      %v2651 = vpop.f32.mrb[0].mxu0
      %v2652 = vadd.f32 0.0, %v2651
      %2653 = vmatprep.mubr.bf16.mxu0 0
      %2654 = vmatmul.mubr.bf16.gmra.mrb[0].mxu0 %v2546
      %v2655 = vpop.f32.mrb[0].mxu0
      %v2656 = vadd.f32 0.0, %v2655
      %v2657 = vpop.f32.mrb[0].mxu0
      %v2658 = vadd.f32 0.0, %v2657
      %v2659 = vpop.f32.mrb[0].mxu0
      %v2660 = vpop.f32.mrb[0].mxu0
      %2661 = vdwg.mxu0
      %v2662 = vadd.f32 %v2513, %v2595
      %v2663 = vadd.f32 %v2514, %v2597
      %v2664 = vadd.f32 %v2515, %v2646
      %v2665 = vadd.f32 %v2516, %v2648
      %v2666 = vadd.f32 %v2517, %v2599
      %v2667 = vadd.f32 %v2518, %v2601
      %v2668 = vadd.f32 %v2519, %v2650
      %v2669 = vadd.f32 %v2520, %v2652
      %v2670 = vadd.f32 %v2521, %v2605
      %v2671 = vadd.f32 %v2522, %v2607
      %v2672 = vadd.f32 %v2523, %v2656
      %v2673 = vadd.f32 %v2524, %v2658
      %2674 = vrot.lane.b32.xlu0 %v2528, 120
      %v2675 = vpop.permute.xlu0 %2674
      %2676 = vrot.lane.b32.xlu0 %v2529, 120
      %v2677 = vpop.permute.xlu0 %2676
      %2678 = vrot.lane.b32.xlu0 %v195, 60
      %v2679 = vpop.permute.xlu0 %2678
      %2680 = vrot.lane.b32.xlu0 %v196, 60
      %v2681 = vpop.permute.xlu0 %2680
      %2682 = vrot.lane.b32.xlu0 %v197, 60
      %v2683 = vpop.permute.xlu0 %2682
      %2684 = vrot.lane.b32.xlu0 %v198, 60
      %v2685 = vpop.permute.xlu0 %2684
      %vm2686 = vcmask 490496
      %v2687 = vsel %vm2686, %v2679, %v2681
      %v2688 = vsel %vm2686, %v2681, %v2683
      %v2689 = vsel %vm2686, %v2683, %v2685
      %v2691 = vsel %vm211, %v2675, 0
      %v2694 = vsel %vm211, %v2677, 0
      %v2697 = vsel %vm218, %v2687, 0
      %v2700 = vsel %vm218, %v2688, 0
      %v2703 = vsel %vm218, %v2689, 0
      %v2706 = vsel %vm218, %v2685, 0
      %2708 = vmatprep.subr.bf16.mxu0 %v2700
      %2709 = vmatpush1.bf16.msra.mxu0 %v2697
      %2710 = vmatprep.subr.bf16.mxu0 0
      %2711 = vmatpush1.bf16.msra.mxu0 0
      %2712 = vmatprep.subr.bf16.mxu0 0
      %2713 = vmatpush1.bf16.msra.mxu0 0
      %2714 = vmatprep.subr.bf16.mxu0 0
      %2715 = vmatpush1.bf16.msra.mxu0 0
      %2716 = vmatprep.subr.bf16.mxu0 0
      %2717 = vmatpush1.bf16.msra.mxu0 0
      %2718 = vmatprep.subr.bf16.mxu0 0
      %2719 = vmatpush1.bf16.msra.mxu0 0
      %2720 = vmatprep.subr.bf16.mxu0 0
      %2721 = vmatpush1.bf16.msra.mxu0 0
      %2722 = vmatprep.subr.bf16.mxu0 0
      %2723 = vmatpush1.bf16.msra.mxu0 0
      %2724 = vmatprep.subr.bf16.mxu0 0
      %2725 = vmatpush1.bf16.msra.mxu0 0
      %2726 = vmatprep.subr.bf16.mxu0 0
      %2727 = vmatpush1.bf16.msra.mxu0 0
      %2728 = vmatprep.subr.bf16.mxu0 0
      %2729 = vmatpush1.bf16.msra.mxu0 0
      %2730 = vmatprep.subr.bf16.mxu0 0
      %2731 = vmatpush1.bf16.msra.mxu0 0
      %2732 = vmatprep.subr.bf16.mxu0 0
      %2733 = vmatpush1.bf16.msra.mxu0 0
      %2734 = vmatprep.subr.bf16.mxu0 0
      %2735 = vmatpush1.bf16.msra.mxu0 0
      %2736 = vmatprep.subr.bf16.mxu0 0
      %2737 = vmatpush1.bf16.msra.mxu0 0
      %2738 = vmatprep.subr.bf16.mxu0 0
      %2739 = vmatpush1.bf16.msra.mxu0 0
      %2740 = vmatprep.mubr.bf16.mxu0 0
      %2741 = vmatmul.mubr.bf16.gmra.mrb[0].mxu0 %v2691
      %v2742 = vpop.f32.mrb[0].mxu0
      %v2743 = vadd.f32 0.0, %v2742
      %v2744 = vpop.f32.mrb[0].mxu0
      %v2745 = vadd.f32 0.0, %v2744
      %v2746 = vpop.f32.mrb[0].mxu0
      %v2747 = vadd.f32 0.0, %v2746
      %v2748 = vpop.f32.mrb[0].mxu0
      %v2749 = vadd.f32 0.0, %v2748
      %2750 = vmatprep.mubr.bf16.mxu0 0
      %2751 = vmatmul.mubr.bf16.gmra.mrb[0].mxu0 %v2694
      %v2752 = vpop.f32.mrb[0].mxu0
      %v2753 = vadd.f32 0.0, %v2752
      %v2754 = vpop.f32.mrb[0].mxu0
      %v2755 = vadd.f32 0.0, %v2754
      %v2756 = vpop.f32.mrb[0].mxu0
      %v2757 = vpop.f32.mrb[0].mxu0
      %2758 = vdwg.mxu0
      %2759 = vmatprep.subr.bf16.mxu0 %v2706
      %2760 = vmatpush1.bf16.msra.mxu0 %v2703
      %2761 = vmatprep.subr.bf16.mxu0 0
      %2762 = vmatpush1.bf16.msra.mxu0 0
      %2763 = vmatprep.subr.bf16.mxu0 0
      %2764 = vmatpush1.bf16.msra.mxu0 0
      %2765 = vmatprep.subr.bf16.mxu0 0
      %2766 = vmatpush1.bf16.msra.mxu0 0
      %2767 = vmatprep.subr.bf16.mxu0 0
      %2768 = vmatpush1.bf16.msra.mxu0 0
      %2769 = vmatprep.subr.bf16.mxu0 0
      %2770 = vmatpush1.bf16.msra.mxu0 0
      %2771 = vmatprep.subr.bf16.mxu0 0
      %2772 = vmatpush1.bf16.msra.mxu0 0
      %2773 = vmatprep.subr.bf16.mxu0 0
      %2774 = vmatpush1.bf16.msra.mxu0 0
      %2775 = vmatprep.subr.bf16.mxu0 0
      %2776 = vmatpush1.bf16.msra.mxu0 0
      %2777 = vmatprep.subr.bf16.mxu0 0
      %2778 = vmatpush1.bf16.msra.mxu0 0
      %2779 = vmatprep.subr.bf16.mxu0 0
      %2780 = vmatpush1.bf16.msra.mxu0 0
      %2781 = vmatprep.subr.bf16.mxu0 0
      %2782 = vmatpush1.bf16.msra.mxu0 0
      %2783 = vmatprep.subr.bf16.mxu0 0
      %2784 = vmatpush1.bf16.msra.mxu0 0
      %2785 = vmatprep.subr.bf16.mxu0 0
      %2786 = vmatpush1.bf16.msra.mxu0 0
      %2787 = vmatprep.subr.bf16.mxu0 0
      %2788 = vmatpush1.bf16.msra.mxu0 0
      %2789 = vmatprep.subr.bf16.mxu0 0
      %2790 = vmatpush1.bf16.msra.mxu0 0
      %2791 = vmatprep.mubr.bf16.mxu0 0
      %2792 = vmatmul.mubr.bf16.gmra.mrb[0].mxu0 %v2691
      %v2793 = vpop.f32.mrb[0].mxu0
      %v2794 = vadd.f32 0.0, %v2793
      %v2795 = vpop.f32.mrb[0].mxu0
      %v2796 = vadd.f32 0.0, %v2795
      %v2797 = vpop.f32.mrb[0].mxu0
      %v2798 = vadd.f32 0.0, %v2797
      %v2799 = vpop.f32.mrb[0].mxu0
      %v2800 = vadd.f32 0.0, %v2799
      %2801 = vmatprep.mubr.bf16.mxu0 0
      %2802 = vmatmul.mubr.bf16.gmra.mrb[0].mxu0 %v2694
      %v2803 = vpop.f32.mrb[0].mxu0
      %v2804 = vadd.f32 0.0, %v2803
      %v2805 = vpop.f32.mrb[0].mxu0
      %v2806 = vadd.f32 0.0, %v2805
      %v2807 = vpop.f32.mrb[0].mxu0
      %v2808 = vpop.f32.mrb[0].mxu0
      %2809 = vdwg.mxu0
      %v2810 = vadd.f32 %v2662, %v2743
      %v2811 = vadd.f32 %v2663, %v2745
      %v2812 = vadd.f32 %v2664, %v2794
      %v2813 = vadd.f32 %v2665, %v2796
      %v2814 = vadd.f32 %v2666, %v2747
      %v2815 = vadd.f32 %v2667, %v2749
      %v2816 = vadd.f32 %v2668, %v2798
      %v2817 = vadd.f32 %v2669, %v2800
      %v2818 = vadd.f32 %v2670, %v2753
      %v2819 = vadd.f32 %v2671, %v2755
      %v2820 = vadd.f32 %v2672, %v2804
      %v2821 = vadd.f32 %v2673, %v2806
      %2822 = vrot.lane.b32.xlu0 %v2528, 112
      %v2823 = vpop.permute.xlu0 %2822
      %2824 = vrot.lane.b32.xlu0 %v2529, 112
      %v2825 = vpop.permute.xlu0 %2824
      %2826 = vrot.lane.b32.xlu0 %v195, 59
      %v2827 = vpop.permute.xlu0 %2826
      %2828 = vrot.lane.b32.xlu0 %v196, 59
      %v2829 = vpop.permute.xlu0 %2828
      %2830 = vrot.lane.b32.xlu0 %v197, 59
      %v2831 = vpop.permute.xlu0 %2830
      %2832 = vrot.lane.b32.xlu0 %v198, 59
      %v2833 = vpop.permute.xlu0 %2832
      %vm2834 = vcmask 482304
      %v2835 = vsel %vm2834, %v2827, %v2829
      %v2836 = vsel %vm2834, %v2829, %v2831
      %v2837 = vsel %vm2834, %v2831, %v2833
      %v2839 = vsel %vm211, %v2823, 0
      %v2842 = vsel %vm211, %v2825, 0
      %v2845 = vsel %vm218, %v2835, 0
      %v2848 = vsel %vm218, %v2836, 0
      %v2851 = vsel %vm218, %v2837, 0
      %v2854 = vsel %vm218, %v2833, 0
      %2856 = vmatprep.subr.bf16.mxu0 %v2848
      %2857 = vmatpush1.bf16.msra.mxu0 %v2845
      %2858 = vmatprep.subr.bf16.mxu0 0
      %2859 = vmatpush1.bf16.msra.mxu0 0
      %2860 = vmatprep.subr.bf16.mxu0 0
      %2861 = vmatpush1.bf16.msra.mxu0 0
      %2862 = vmatprep.subr.bf16.mxu0 0
      %2863 = vmatpush1.bf16.msra.mxu0 0
      %2864 = vmatprep.subr.bf16.mxu0 0
      %2865 = vmatpush1.bf16.msra.mxu0 0
      %2866 = vmatprep.subr.bf16.mxu0 0
      %2867 = vmatpush1.bf16.msra.mxu0 0
      %2868 = vmatprep.subr.bf16.mxu0 0
      %2869 = vmatpush1.bf16.msra.mxu0 0
      %2870 = vmatprep.subr.bf16.mxu0 0
      %2871 = vmatpush1.bf16.msra.mxu0 0
      %2872 = vmatprep.subr.bf16.mxu0 0
      %2873 = vmatpush1.bf16.msra.mxu0 0
      %2874 = vmatprep.subr.bf16.mxu0 0
      %2875 = vmatpush1.bf16.msra.mxu0 0
      %2876 = vmatprep.subr.bf16.mxu0 0
      %2877 = vmatpush1.bf16.msra.mxu0 0
      %2878 = vmatprep.subr.bf16.mxu0 0
      %2879 = vmatpush1.bf16.msra.mxu0 0
      %2880 = vmatprep.subr.bf16.mxu0 0
      %2881 = vmatpush1.bf16.msra.mxu0 0
      %2882 = vmatprep.subr.bf16.mxu0 0
      %2883 = vmatpush1.bf16.msra.mxu0 0
      %2884 = vmatprep.subr.bf16.mxu0 0
      %2885 = vmatpush1.bf16.msra.mxu0 0
      %2886 = vmatprep.subr.bf16.mxu0 0
      %2887 = vmatpush1.bf16.msra.mxu0 0
      %2888 = vmatprep.mubr.bf16.mxu0 0
      %2889 = vmatmul.mubr.bf16.gmra.mrb[0].mxu0 %v2839
      %v2890 = vpop.f32.mrb[0].mxu0
      %v2891 = vadd.f32 0.0, %v2890
      %v2892 = vpop.f32.mrb[0].mxu0
      %v2893 = vadd.f32 0.0, %v2892
      %v2894 = vpop.f32.mrb[0].mxu0
      %v2895 = vadd.f32 0.0, %v2894
      %v2896 = vpop.f32.mrb[0].mxu0
      %v2897 = vadd.f32 0.0, %v2896
      %2898 = vmatprep.mubr.bf16.mxu0 0
      %2899 = vmatmul.mubr.bf16.gmra.mrb[0].mxu0 %v2842
      %v2900 = vpop.f32.mrb[0].mxu0
      %v2901 = vadd.f32 0.0, %v2900
      %v2902 = vpop.f32.mrb[0].mxu0
      %v2903 = vadd.f32 0.0, %v2902
      %v2904 = vpop.f32.mrb[0].mxu0
      %v2905 = vpop.f32.mrb[0].mxu0
      %2906 = vdwg.mxu0
      %2907 = vmatprep.subr.bf16.mxu0 %v2854
      %2908 = vmatpush1.bf16.msra.mxu0 %v2851
      %2909 = vmatprep.subr.bf16.mxu0 0
      %2910 = vmatpush1.bf16.msra.mxu0 0
      %2911 = vmatprep.subr.bf16.mxu0 0
      %2912 = vmatpush1.bf16.msra.mxu0 0
      %2913 = vmatprep.subr.bf16.mxu0 0
      %2914 = vmatpush1.bf16.msra.mxu0 0
      %2915 = vmatprep.subr.bf16.mxu0 0
      %2916 = vmatpush1.bf16.msra.mxu0 0
      %2917 = vmatprep.subr.bf16.mxu0 0
      %2918 = vmatpush1.bf16.msra.mxu0 0
      %2919 = vmatprep.subr.bf16.mxu0 0
      %2920 = vmatpush1.bf16.msra.mxu0 0
      %2921 = vmatprep.subr.bf16.mxu0 0
      %2922 = vmatpush1.bf16.msra.mxu0 0
      %2923 = vmatprep.subr.bf16.mxu0 0
      %2924 = vmatpush1.bf16.msra.mxu0 0
      %2925 = vmatprep.subr.bf16.mxu0 0
      %2926 = vmatpush1.bf16.msra.mxu0 0
      %2927 = vmatprep.subr.bf16.mxu0 0
      %2928 = vmatpush1.bf16.msra.mxu0 0
      %2929 = vmatprep.subr.bf16.mxu0 0
      %2930 = vmatpush1.bf16.msra.mxu0 0
      %2931 = vmatprep.subr.bf16.mxu0 0
      %2932 = vmatpush1.bf16.msra.mxu0 0
      %2933 = vmatprep.subr.bf16.mxu0 0
      %2934 = vmatpush1.bf16.msra.mxu0 0
      %2935 = vmatprep.subr.bf16.mxu0 0
      %2936 = vmatpush1.bf16.msra.mxu0 0
      %2937 = vmatprep.subr.bf16.mxu0 0
      %2938 = vmatpush1.bf16.msra.mxu0 0
      %2939 = vmatprep.mubr.bf16.mxu0 0
      %2940 = vmatmul.mubr.bf16.gmra.mrb[0].mxu0 %v2839
      %v2941 = vpop.f32.mrb[0].mxu0
      %v2942 = vadd.f32 0.0, %v2941
      %v2943 = vpop.f32.mrb[0].mxu0
      %v2944 = vadd.f32 0.0, %v2943
      %v2945 = vpop.f32.mrb[0].mxu0
      %v2946 = vadd.f32 0.0, %v2945
      %v2947 = vpop.f32.mrb[0].mxu0
      %v2948 = vadd.f32 0.0, %v2947
      %2949 = vmatprep.mubr.bf16.mxu0 0
      %2950 = vmatmul.mubr.bf16.gmra.mrb[0].mxu0 %v2842
      %v2951 = vpop.f32.mrb[0].mxu0
      %v2952 = vadd.f32 0.0, %v2951
      %v2953 = vpop.f32.mrb[0].mxu0
      %v2954 = vadd.f32 0.0, %v2953
      %v2955 = vpop.f32.mrb[0].mxu0
      %v2956 = vpop.f32.mrb[0].mxu0
      %2957 = vdwg.mxu0
      %v2958 = vadd.f32 %v2810, %v2891
      %v2959 = vadd.f32 %v2811, %v2893
      %v2960 = vadd.f32 %v2812, %v2942
      %v2961 = vadd.f32 %v2813, %v2944
      %v2962 = vadd.f32 %v2814, %v2895
      %v2963 = vadd.f32 %v2815, %v2897
      %v2964 = vadd.f32 %v2816, %v2946
      %v2965 = vadd.f32 %v2817, %v2948
      %v2966 = vadd.f32 %v2818, %v2901
      %v2967 = vadd.f32 %v2819, %v2903
      %v2968 = vadd.f32 %v2820, %v2952
      %v2969 = vadd.f32 %v2821, %v2954
      %2970 = vrot.lane.b32.xlu0 %v2528, 104
      %v2971 = vpop.permute.xlu0 %2970
      %2972 = vrot.lane.b32.xlu0 %v2529, 104
      %v2973 = vpop.permute.xlu0 %2972
      %2974 = vrot.lane.b32.xlu0 %v195, 58
      %v2975 = vpop.permute.xlu0 %2974
      %2976 = vrot.lane.b32.xlu0 %v196, 58
      %v2977 = vpop.permute.xlu0 %2976
      %2978 = vrot.lane.b32.xlu0 %v197, 58
      %v2979 = vpop.permute.xlu0 %2978
      %2980 = vrot.lane.b32.xlu0 %v198, 58
      %v2981 = vpop.permute.xlu0 %2980
      %vm2982 = vcmask 474112
      %v2983 = vsel %vm2982, %v2975, %v2977
      %v2984 = vsel %vm2982, %v2977, %v2979
      %v2985 = vsel %vm2982, %v2979, %v2981
      %v2987 = vsel %vm211, %v2971, 0
      %v2990 = vsel %vm211, %v2973, 0
      %v2993 = vsel %vm218, %v2983, 0
      %v2996 = vsel %vm218, %v2984, 0
      %v2999 = vsel %vm218, %v2985, 0
      %v3002 = vsel %vm218, %v2981, 0
      %3004 = vmatprep.subr.bf16.mxu0 %v2996
      %3005 = vmatpush1.bf16.msra.mxu0 %v2993
      %3006 = vmatprep.subr.bf16.mxu0 0
      %3007 = vmatpush1.bf16.msra.mxu0 0
      %3008 = vmatprep.subr.bf16.mxu0 0
      %3009 = vmatpush1.bf16.msra.mxu0 0
      %3010 = vmatprep.subr.bf16.mxu0 0
      %3011 = vmatpush1.bf16.msra.mxu0 0
      %3012 = vmatprep.subr.bf16.mxu0 0
      %3013 = vmatpush1.bf16.msra.mxu0 0
      %3014 = vmatprep.subr.bf16.mxu0 0
      %3015 = vmatpush1.bf16.msra.mxu0 0
      %3016 = vmatprep.subr.bf16.mxu0 0
      %3017 = vmatpush1.bf16.msra.mxu0 0
      %3018 = vmatprep.subr.bf16.mxu0 0
      %3019 = vmatpush1.bf16.msra.mxu0 0
      %3020 = vmatprep.subr.bf16.mxu0 0
      %3021 = vmatpush1.bf16.msra.mxu0 0
      %3022 = vmatprep.subr.bf16.mxu0 0
      %3023 = vmatpush1.bf16.msra.mxu0 0
      %3024 = vmatprep.subr.bf16.mxu0 0
      %3025 = vmatpush1.bf16.msra.mxu0 0
      %3026 = vmatprep.subr.bf16.mxu0 0
      %3027 = vmatpush1.bf16.msra.mxu0 0
      %3028 = vmatprep.subr.bf16.mxu0 0
      %3029 = vmatpush1.bf16.msra.mxu0 0
      %3030 = vmatprep.subr.bf16.mxu0 0
      %3031 = vmatpush1.bf16.msra.mxu0 0
      %3032 = vmatprep.subr.bf16.mxu0 0
      %3033 = vmatpush1.bf16.msra.mxu0 0
      %3034 = vmatprep.subr.bf16.mxu0 0
      %3035 = vmatpush1.bf16.msra.mxu0 0
      %3036 = vmatprep.mubr.bf16.mxu0 0
      %3037 = vmatmul.mubr.bf16.gmra.mrb[0].mxu0 %v2987
      %v3038 = vpop.f32.mrb[0].mxu0
      %v3039 = vadd.f32 0.0, %v3038
      %v3040 = vpop.f32.mrb[0].mxu0
      %v3041 = vadd.f32 0.0, %v3040
      %v3042 = vpop.f32.mrb[0].mxu0
      %v3043 = vadd.f32 0.0, %v3042
      %v3044 = vpop.f32.mrb[0].mxu0
      %v3045 = vadd.f32 0.0, %v3044
      %3046 = vmatprep.mubr.bf16.mxu0 0
      %3047 = vmatmul.mubr.bf16.gmra.mrb[0].mxu0 %v2990
      %v3048 = vpop.f32.mrb[0].mxu0
      %v3049 = vadd.f32 0.0, %v3048
      %v3050 = vpop.f32.mrb[0].mxu0
      %v3051 = vadd.f32 0.0, %v3050
      %v3052 = vpop.f32.mrb[0].mxu0
      %v3053 = vpop.f32.mrb[0].mxu0
      %3054 = vdwg.mxu0
      %3055 = vmatprep.subr.bf16.mxu0 %v3002
      %3056 = vmatpush1.bf16.msra.mxu0 %v2999
      %3057 = vmatprep.subr.bf16.mxu0 0
      %3058 = vmatpush1.bf16.msra.mxu0 0
      %3059 = vmatprep.subr.bf16.mxu0 0
      %3060 = vmatpush1.bf16.msra.mxu0 0
      %3061 = vmatprep.subr.bf16.mxu0 0
      %3062 = vmatpush1.bf16.msra.mxu0 0
      %3063 = vmatprep.subr.bf16.mxu0 0
      %3064 = vmatpush1.bf16.msra.mxu0 0
      %3065 = vmatprep.subr.bf16.mxu0 0
      %3066 = vmatpush1.bf16.msra.mxu0 0
      %3067 = vmatprep.subr.bf16.mxu0 0
      %3068 = vmatpush1.bf16.msra.mxu0 0
      %3069 = vmatprep.subr.bf16.mxu0 0
      %3070 = vmatpush1.bf16.msra.mxu0 0
      %3071 = vmatprep.subr.bf16.mxu0 0
      %3072 = vmatpush1.bf16.msra.mxu0 0
      %3073 = vmatprep.subr.bf16.mxu0 0
      %3074 = vmatpush1.bf16.msra.mxu0 0
      %3075 = vmatprep.subr.bf16.mxu0 0
      %3076 = vmatpush1.bf16.msra.mxu0 0
      %3077 = vmatprep.subr.bf16.mxu0 0
      %3078 = vmatpush1.bf16.msra.mxu0 0
      %3079 = vmatprep.subr.bf16.mxu0 0
      %3080 = vmatpush1.bf16.msra.mxu0 0
      %3081 = vmatprep.subr.bf16.mxu0 0
      %3082 = vmatpush1.bf16.msra.mxu0 0
      %3083 = vmatprep.subr.bf16.mxu0 0
      %3084 = vmatpush1.bf16.msra.mxu0 0
      %3085 = vmatprep.subr.bf16.mxu0 0
      %3086 = vmatpush1.bf16.msra.mxu0 0
      %3087 = vmatprep.mubr.bf16.mxu0 0
      %3088 = vmatmul.mubr.bf16.gmra.mrb[0].mxu0 %v2987
      %v3089 = vpop.f32.mrb[0].mxu0
      %v3090 = vadd.f32 0.0, %v3089
      %v3091 = vpop.f32.mrb[0].mxu0
      %v3092 = vadd.f32 0.0, %v3091
      %v3093 = vpop.f32.mrb[0].mxu0
      %v3094 = vadd.f32 0.0, %v3093
      %v3095 = vpop.f32.mrb[0].mxu0
      %v3096 = vadd.f32 0.0, %v3095
      %3097 = vmatprep.mubr.bf16.mxu0 0
      %3098 = vmatmul.mubr.bf16.gmra.mrb[0].mxu0 %v2990
      %v3099 = vpop.f32.mrb[0].mxu0
      %v3100 = vadd.f32 0.0, %v3099
      %v3101 = vpop.f32.mrb[0].mxu0
      %v3102 = vadd.f32 0.0, %v3101
      %v3103 = vpop.f32.mrb[0].mxu0
      %v3104 = vpop.f32.mrb[0].mxu0
      %3105 = vdwg.mxu0
      %v3106 = vadd.f32 %v2958, %v3039
      %v3107 = vadd.f32 %v2959, %v3041
      %v3108 = vadd.f32 %v2960, %v3090
      %v3109 = vadd.f32 %v2961, %v3092
      %v3110 = vadd.f32 %v2962, %v3043
      %v3111 = vadd.f32 %v2963, %v3045
      %v3112 = vadd.f32 %v2964, %v3094
      %v3113 = vadd.f32 %v2965, %v3096
      %v3114 = vadd.f32 %v2966, %v3049
      %v3115 = vadd.f32 %v2967, %v3051
      %v3116 = vadd.f32 %v2968, %v3100
      %v3117 = vadd.f32 %v2969, %v3102
      %3118 = vrot.lane.b32.xlu0 %v2528, 96
      %v3119 = vpop.permute.xlu0 %3118
      %3120 = vrot.lane.b32.xlu0 %v2529, 96
      %v3121 = vpop.permute.xlu0 %3120
      %3122 = vrot.lane.b32.xlu0 %v195, 40
      %v3123 = vpop.permute.xlu0 %3122
      %3124 = vrot.lane.b32.xlu0 %v196, 40
      %v3125 = vpop.permute.xlu0 %3124
      %3126 = vrot.lane.b32.xlu0 %v197, 40
      %v3127 = vpop.permute.xlu0 %3126
      %3128 = vrot.lane.b32.xlu0 %v198, 40
      %v3129 = vpop.permute.xlu0 %3128
      %vm3130 = vcmask 326656
      %v3131 = vsel %vm3130, %v3123, %v3125
      %v3132 = vsel %vm3130, %v3125, %v3127
      %v3133 = vsel %vm3130, %v3127, %v3129
      %v3135 = vsel %vm211, %v3119, 0
      %v3138 = vsel %vm211, %v3121, 0
      %v3141 = vsel %vm218, %v3131, 0
      %v3144 = vsel %vm218, %v3132, 0
      %v3147 = vsel %vm218, %v3133, 0
      %v3150 = vsel %vm218, %v3129, 0
      %3152 = vmatprep.subr.bf16.mxu0 %v3144
      %3153 = vmatpush1.bf16.msra.mxu0 %v3141
      %3154 = vmatprep.subr.bf16.mxu0 0
      %3155 = vmatpush1.bf16.msra.mxu0 0
      %3156 = vmatprep.subr.bf16.mxu0 0
      %3157 = vmatpush1.bf16.msra.mxu0 0
      %3158 = vmatprep.subr.bf16.mxu0 0
      %3159 = vmatpush1.bf16.msra.mxu0 0
      %3160 = vmatprep.subr.bf16.mxu0 0
      %3161 = vmatpush1.bf16.msra.mxu0 0
      %3162 = vmatprep.subr.bf16.mxu0 0
      %3163 = vmatpush1.bf16.msra.mxu0 0
      %3164 = vmatprep.subr.bf16.mxu0 0
      %3165 = vmatpush1.bf16.msra.mxu0 0
      %3166 = vmatprep.subr.bf16.mxu0 0
      %3167 = vmatpush1.bf16.msra.mxu0 0
      %3168 = vmatprep.subr.bf16.mxu0 0
      %3169 = vmatpush1.bf16.msra.mxu0 0
      %3170 = vmatprep.subr.bf16.mxu0 0
      %3171 = vmatpush1.bf16.msra.mxu0 0
      %3172 = vmatprep.subr.bf16.mxu0 0
      %3173 = vmatpush1.bf16.msra.mxu0 0
      %3174 = vmatprep.subr.bf16.mxu0 0
      %3175 = vmatpush1.bf16.msra.mxu0 0
      %3176 = vmatprep.subr.bf16.mxu0 0
      %3177 = vmatpush1.bf16.msra.mxu0 0
      %3178 = vmatprep.subr.bf16.mxu0 0
      %3179 = vmatpush1.bf16.msra.mxu0 0
      %3180 = vmatprep.subr.bf16.mxu0 0
      %3181 = vmatpush1.bf16.msra.mxu0 0
      %3182 = vmatprep.subr.bf16.mxu0 0
      %3183 = vmatpush1.bf16.msra.mxu0 0
      %3184 = vmatprep.mubr.bf16.mxu0 0
      %3185 = vmatmul.mubr.bf16.gmra.mrb[0].mxu0 %v3135
      %v3186 = vpop.f32.mrb[0].mxu0
      %v3187 = vadd.f32 0.0, %v3186
      %v3188 = vpop.f32.mrb[0].mxu0
      %v3189 = vadd.f32 0.0, %v3188
      %v3190 = vpop.f32.mrb[0].mxu0
      %v3191 = vadd.f32 0.0, %v3190
      %v3192 = vpop.f32.mrb[0].mxu0
      %v3193 = vadd.f32 0.0, %v3192
      %3194 = vmatprep.mubr.bf16.mxu0 0
      %3195 = vmatmul.mubr.bf16.gmra.mrb[0].mxu0 %v3138
      %v3196 = vpop.f32.mrb[0].mxu0
      %v3197 = vadd.f32 0.0, %v3196
      %v3198 = vpop.f32.mrb[0].mxu0
      %v3199 = vadd.f32 0.0, %v3198
      %v3200 = vpop.f32.mrb[0].mxu0
      %v3201 = vpop.f32.mrb[0].mxu0
      %3202 = vdwg.mxu0
      %3203 = vmatprep.subr.bf16.mxu0 %v3150
      %3204 = vmatpush1.bf16.msra.mxu0 %v3147
      %3205 = vmatprep.subr.bf16.mxu0 0
      %3206 = vmatpush1.bf16.msra.mxu0 0
      %3207 = vmatprep.subr.bf16.mxu0 0
      %3208 = vmatpush1.bf16.msra.mxu0 0
      %3209 = vmatprep.subr.bf16.mxu0 0
      %3210 = vmatpush1.bf16.msra.mxu0 0
      %3211 = vmatprep.subr.bf16.mxu0 0
      %3212 = vmatpush1.bf16.msra.mxu0 0
      %3213 = vmatprep.subr.bf16.mxu0 0
      %3214 = vmatpush1.bf16.msra.mxu0 0
      %3215 = vmatprep.subr.bf16.mxu0 0
      %3216 = vmatpush1.bf16.msra.mxu0 0
      %3217 = vmatprep.subr.bf16.mxu0 0
      %3218 = vmatpush1.bf16.msra.mxu0 0
      %3219 = vmatprep.subr.bf16.mxu0 0
      %3220 = vmatpush1.bf16.msra.mxu0 0
      %3221 = vmatprep.subr.bf16.mxu0 0
      %3222 = vmatpush1.bf16.msra.mxu0 0
      %3223 = vmatprep.subr.bf16.mxu0 0
      %3224 = vmatpush1.bf16.msra.mxu0 0
      %3225 = vmatprep.subr.bf16.mxu0 0
      %3226 = vmatpush1.bf16.msra.mxu0 0
      %3227 = vmatprep.subr.bf16.mxu0 0
      %3228 = vmatpush1.bf16.msra.mxu0 0
      %3229 = vmatprep.subr.bf16.mxu0 0
      %3230 = vmatpush1.bf16.msra.mxu0 0
      %3231 = vmatprep.subr.bf16.mxu0 0
      %3232 = vmatpush1.bf16.msra.mxu0 0
      %3233 = vmatprep.subr.bf16.mxu0 0
      %3234 = vmatpush1.bf16.msra.mxu0 0
      %3235 = vmatprep.mubr.bf16.mxu0 0
      %3236 = vmatmul.mubr.bf16.gmra.mrb[0].mxu0 %v3135
      %v3237 = vpop.f32.mrb[0].mxu0
      %v3238 = vadd.f32 0.0, %v3237
      %v3239 = vpop.f32.mrb[0].mxu0
      %v3240 = vadd.f32 0.0, %v3239
      %v3241 = vpop.f32.mrb[0].mxu0
      %v3242 = vadd.f32 0.0, %v3241
      %v3243 = vpop.f32.mrb[0].mxu0
      %v3244 = vadd.f32 0.0, %v3243
      %3245 = vmatprep.mubr.bf16.mxu0 0
      %3246 = vmatmul.mubr.bf16.gmra.mrb[0].mxu0 %v3138
      %v3247 = vpop.f32.mrb[0].mxu0
      %v3248 = vadd.f32 0.0, %v3247
      %v3249 = vpop.f32.mrb[0].mxu0
      %v3250 = vadd.f32 0.0, %v3249
      %v3251 = vpop.f32.mrb[0].mxu0
      %v3252 = vpop.f32.mrb[0].mxu0
      %3253 = vdwg.mxu0
      %v3254 = vadd.f32 %v3106, %v3187
      %v3255 = vadd.f32 %v3107, %v3189
      %v3256 = vadd.f32 %v3108, %v3238
      %v3257 = vadd.f32 %v3109, %v3240
      %v3258 = vadd.f32 %v3110, %v3191
      %v3259 = vadd.f32 %v3111, %v3193
      %v3260 = vadd.f32 %v3112, %v3242
      %v3261 = vadd.f32 %v3113, %v3244
      %v3262 = vadd.f32 %v3114, %v3197
      %v3263 = vadd.f32 %v3115, %v3199
      %v3264 = vadd.f32 %v3116, %v3248
      %v3265 = vadd.f32 %v3117, %v3250
      %3266 = vrot.lane.b32.xlu0 %v2528, 88
      %v3267 = vpop.permute.xlu0 %3266
      %3268 = vrot.lane.b32.xlu0 %v2529, 88
      %v3269 = vpop.permute.xlu0 %3268
      %3270 = vrot.lane.b32.xlu0 %v195, 39
      %v3271 = vpop.permute.xlu0 %3270
      %3272 = vrot.lane.b32.xlu0 %v196, 39
      %v3273 = vpop.permute.xlu0 %3272
      %3274 = vrot.lane.b32.xlu0 %v197, 39
      %v3275 = vpop.permute.xlu0 %3274
      %3276 = vrot.lane.b32.xlu0 %v198, 39
      %v3277 = vpop.permute.xlu0 %3276
      %vm3278 = vcmask 318464
      %v3279 = vsel %vm3278, %v3271, %v3273
      %v3280 = vsel %vm3278, %v3273, %v3275
      %v3281 = vsel %vm3278, %v3275, %v3277
      %v3283 = vsel %vm211, %v3267, 0
      %v3286 = vsel %vm211, %v3269, 0
      %v3289 = vsel %vm218, %v3279, 0
      %v3292 = vsel %vm218, %v3280, 0
      %v3295 = vsel %vm218, %v3281, 0
      %v3298 = vsel %vm218, %v3277, 0
      %3300 = vmatprep.subr.bf16.mxu0 %v3292
      %3301 = vmatpush1.bf16.msra.mxu0 %v3289
      %3302 = vmatprep.subr.bf16.mxu0 0
      %3303 = vmatpush1.bf16.msra.mxu0 0
      %3304 = vmatprep.subr.bf16.mxu0 0
      %3305 = vmatpush1.bf16.msra.mxu0 0
      %3306 = vmatprep.subr.bf16.mxu0 0
      %3307 = vmatpush1.bf16.msra.mxu0 0
      %3308 = vmatprep.subr.bf16.mxu0 0
      %3309 = vmatpush1.bf16.msra.mxu0 0
      %3310 = vmatprep.subr.bf16.mxu0 0
      %3311 = vmatpush1.bf16.msra.mxu0 0
      %3312 = vmatprep.subr.bf16.mxu0 0
      %3313 = vmatpush1.bf16.msra.mxu0 0
      %3314 = vmatprep.subr.bf16.mxu0 0
      %3315 = vmatpush1.bf16.msra.mxu0 0
      %3316 = vmatprep.subr.bf16.mxu0 0
      %3317 = vmatpush1.bf16.msra.mxu0 0
      %3318 = vmatprep.subr.bf16.mxu0 0
      %3319 = vmatpush1.bf16.msra.mxu0 0
      %3320 = vmatprep.subr.bf16.mxu0 0
      %3321 = vmatpush1.bf16.msra.mxu0 0
      %3322 = vmatprep.subr.bf16.mxu0 0
      %3323 = vmatpush1.bf16.msra.mxu0 0
      %3324 = vmatprep.subr.bf16.mxu0 0
      %3325 = vmatpush1.bf16.msra.mxu0 0
      %3326 = vmatprep.subr.bf16.mxu0 0
      %3327 = vmatpush1.bf16.msra.mxu0 0
      %3328 = vmatprep.subr.bf16.mxu0 0
      %3329 = vmatpush1.bf16.msra.mxu0 0
      %3330 = vmatprep.subr.bf16.mxu0 0
      %3331 = vmatpush1.bf16.msra.mxu0 0
      %3332 = vmatprep.mubr.bf16.mxu0 0
      %3333 = vmatmul.mubr.bf16.gmra.mrb[0].mxu0 %v3283
      %v3334 = vpop.f32.mrb[0].mxu0
      %v3335 = vadd.f32 0.0, %v3334
      %v3336 = vpop.f32.mrb[0].mxu0
      %v3337 = vadd.f32 0.0, %v3336
      %v3338 = vpop.f32.mrb[0].mxu0
      %v3339 = vadd.f32 0.0, %v3338
      %v3340 = vpop.f32.mrb[0].mxu0
      %v3341 = vadd.f32 0.0, %v3340
      %3342 = vmatprep.mubr.bf16.mxu0 0
      %3343 = vmatmul.mubr.bf16.gmra.mrb[0].mxu0 %v3286
      %v3344 = vpop.f32.mrb[0].mxu0
      %v3345 = vadd.f32 0.0, %v3344
      %v3346 = vpop.f32.mrb[0].mxu0
      %v3347 = vadd.f32 0.0, %v3346
      %v3348 = vpop.f32.mrb[0].mxu0
      %v3349 = vpop.f32.mrb[0].mxu0
      %3350 = vdwg.mxu0
      %3351 = vmatprep.subr.bf16.mxu0 %v3298
      %3352 = vmatpush1.bf16.msra.mxu0 %v3295
      %3353 = vmatprep.subr.bf16.mxu0 0
      %3354 = vmatpush1.bf16.msra.mxu0 0
      %3355 = vmatprep.subr.bf16.mxu0 0
      %3356 = vmatpush1.bf16.msra.mxu0 0
      %3357 = vmatprep.subr.bf16.mxu0 0
      %3358 = vmatpush1.bf16.msra.mxu0 0
      %3359 = vmatprep.subr.bf16.mxu0 0
      %3360 = vmatpush1.bf16.msra.mxu0 0
      %3361 = vmatprep.subr.bf16.mxu0 0
      %3362 = vmatpush1.bf16.msra.mxu0 0
      %3363 = vmatprep.subr.bf16.mxu0 0
      %3364 = vmatpush1.bf16.msra.mxu0 0
      %3365 = vmatprep.subr.bf16.mxu0 0
      %3366 = vmatpush1.bf16.msra.mxu0 0
      %3367 = vmatprep.subr.bf16.mxu0 0
      %3368 = vmatpush1.bf16.msra.mxu0 0
      %3369 = vmatprep.subr.bf16.mxu0 0
      %3370 = vmatpush1.bf16.msra.mxu0 0
      %3371 = vmatprep.subr.bf16.mxu0 0
      %3372 = vmatpush1.bf16.msra.mxu0 0
      %3373 = vmatprep.subr.bf16.mxu0 0
      %3374 = vmatpush1.bf16.msra.mxu0 0
      %3375 = vmatprep.subr.bf16.mxu0 0
      %3376 = vmatpush1.bf16.msra.mxu0 0
      %3377 = vmatprep.subr.bf16.mxu0 0
      %3378 = vmatpush1.bf16.msra.mxu0 0
      %3379 = vmatprep.subr.bf16.mxu0 0
      %3380 = vmatpush1.bf16.msra.mxu0 0
      %3381 = vmatprep.subr.bf16.mxu0 0
      %3382 = vmatpush1.bf16.msra.mxu0 0
      %3383 = vmatprep.mubr.bf16.mxu0 0
      %3384 = vmatmul.mubr.bf16.gmra.mrb[0].mxu0 %v3283
      %v3385 = vpop.f32.mrb[0].mxu0
      %v3386 = vadd.f32 0.0, %v3385
      %v3387 = vpop.f32.mrb[0].mxu0
      %v3388 = vadd.f32 0.0, %v3387
      %v3389 = vpop.f32.mrb[0].mxu0
      %v3390 = vadd.f32 0.0, %v3389
      %v3391 = vpop.f32.mrb[0].mxu0
      %v3392 = vadd.f32 0.0, %v3391
      %3393 = vmatprep.mubr.bf16.mxu0 0
      %3394 = vmatmul.mubr.bf16.gmra.mrb[0].mxu0 %v3286
      %v3395 = vpop.f32.mrb[0].mxu0
      %v3396 = vadd.f32 0.0, %v3395
      %v3397 = vpop.f32.mrb[0].mxu0
      %v3398 = vadd.f32 0.0, %v3397
      %v3399 = vpop.f32.mrb[0].mxu0
      %v3400 = vpop.f32.mrb[0].mxu0
      %3401 = vdwg.mxu0
      %v3402 = vadd.f32 %v3254, %v3335
      %v3403 = vadd.f32 %v3255, %v3337
      %v3404 = vadd.f32 %v3256, %v3386
      %v3405 = vadd.f32 %v3257, %v3388
      %v3406 = vadd.f32 %v3258, %v3339
      %v3407 = vadd.f32 %v3259, %v3341
      %v3408 = vadd.f32 %v3260, %v3390
      %v3409 = vadd.f32 %v3261, %v3392
      %v3410 = vadd.f32 %v3262, %v3345
      %v3411 = vadd.f32 %v3263, %v3347
      %v3412 = vadd.f32 %v3264, %v3396
      %v3413 = vadd.f32 %v3265, %v3398
      %3414 = vrot.lane.b32.xlu0 %v2528, 80
      %v3415 = vpop.permute.xlu0 %3414
      %3416 = vrot.lane.b32.xlu0 %v2529, 80
      %v3417 = vpop.permute.xlu0 %3416
      %3418 = vrot.lane.b32.xlu0 %v195, 38
      %v3419 = vpop.permute.xlu0 %3418
      %3420 = vrot.lane.b32.xlu0 %v196, 38
      %v3421 = vpop.permute.xlu0 %3420
      %3422 = vrot.lane.b32.xlu0 %v197, 38
      %v3423 = vpop.permute.xlu0 %3422
      %3424 = vrot.lane.b32.xlu0 %v198, 38
      %v3425 = vpop.permute.xlu0 %3424
      %vm3426 = vcmask 310272
      %v3427 = vsel %vm3426, %v3419, %v3421
      %v3428 = vsel %vm3426, %v3421, %v3423
      %v3429 = vsel %vm3426, %v3423, %v3425
      %v3431 = vsel %vm211, %v3415, 0
      %v3434 = vsel %vm211, %v3417, 0
      %v3437 = vsel %vm218, %v3427, 0
      %v3440 = vsel %vm218, %v3428, 0
      %v3443 = vsel %vm218, %v3429, 0
      %v3446 = vsel %vm218, %v3425, 0
      %3448 = vmatprep.subr.bf16.mxu0 %v3440
      %3449 = vmatpush1.bf16.msra.mxu0 %v3437
      %3450 = vmatprep.subr.bf16.mxu0 0
      %3451 = vmatpush1.bf16.msra.mxu0 0
      %3452 = vmatprep.subr.bf16.mxu0 0
      %3453 = vmatpush1.bf16.msra.mxu0 0
      %3454 = vmatprep.subr.bf16.mxu0 0
      %3455 = vmatpush1.bf16.msra.mxu0 0
      %3456 = vmatprep.subr.bf16.mxu0 0
      %3457 = vmatpush1.bf16.msra.mxu0 0
      %3458 = vmatprep.subr.bf16.mxu0 0
      %3459 = vmatpush1.bf16.msra.mxu0 0
      %3460 = vmatprep.subr.bf16.mxu0 0
      %3461 = vmatpush1.bf16.msra.mxu0 0
      %3462 = vmatprep.subr.bf16.mxu0 0
      %3463 = vmatpush1.bf16.msra.mxu0 0
      %3464 = vmatprep.subr.bf16.mxu0 0
      %3465 = vmatpush1.bf16.msra.mxu0 0
      %3466 = vmatprep.subr.bf16.mxu0 0
      %3467 = vmatpush1.bf16.msra.mxu0 0
      %3468 = vmatprep.subr.bf16.mxu0 0
      %3469 = vmatpush1.bf16.msra.mxu0 0
      %3470 = vmatprep.subr.bf16.mxu0 0
      %3471 = vmatpush1.bf16.msra.mxu0 0
      %3472 = vmatprep.subr.bf16.mxu0 0
      %3473 = vmatpush1.bf16.msra.mxu0 0
      %3474 = vmatprep.subr.bf16.mxu0 0
      %3475 = vmatpush1.bf16.msra.mxu0 0
      %3476 = vmatprep.subr.bf16.mxu0 0
      %3477 = vmatpush1.bf16.msra.mxu0 0
      %3478 = vmatprep.subr.bf16.mxu0 0
      %3479 = vmatpush1.bf16.msra.mxu0 0
      %3480 = vmatprep.mubr.bf16.mxu0 0
      %3481 = vmatmul.mubr.bf16.gmra.mrb[0].mxu0 %v3431
      %v3482 = vpop.f32.mrb[0].mxu0
      %v3483 = vadd.f32 0.0, %v3482
      %v3484 = vpop.f32.mrb[0].mxu0
      %v3485 = vadd.f32 0.0, %v3484
      %v3486 = vpop.f32.mrb[0].mxu0
      %v3487 = vadd.f32 0.0, %v3486
      %v3488 = vpop.f32.mrb[0].mxu0
      %v3489 = vadd.f32 0.0, %v3488
      %3490 = vmatprep.mubr.bf16.mxu0 0
      %3491 = vmatmul.mubr.bf16.gmra.mrb[0].mxu0 %v3434
      %v3492 = vpop.f32.mrb[0].mxu0
      %v3493 = vadd.f32 0.0, %v3492
      %v3494 = vpop.f32.mrb[0].mxu0
      %v3495 = vadd.f32 0.0, %v3494
      %v3496 = vpop.f32.mrb[0].mxu0
      %v3497 = vpop.f32.mrb[0].mxu0
      %3498 = vdwg.mxu0
      %3499 = vmatprep.subr.bf16.mxu0 %v3446
      %3500 = vmatpush1.bf16.msra.mxu0 %v3443
      %3501 = vmatprep.subr.bf16.mxu0 0
      %3502 = vmatpush1.bf16.msra.mxu0 0
      %3503 = vmatprep.subr.bf16.mxu0 0
      %3504 = vmatpush1.bf16.msra.mxu0 0
      %3505 = vmatprep.subr.bf16.mxu0 0
      %3506 = vmatpush1.bf16.msra.mxu0 0
      %3507 = vmatprep.subr.bf16.mxu0 0
      %3508 = vmatpush1.bf16.msra.mxu0 0
      %3509 = vmatprep.subr.bf16.mxu0 0
      %3510 = vmatpush1.bf16.msra.mxu0 0
      %3511 = vmatprep.subr.bf16.mxu0 0
      %3512 = vmatpush1.bf16.msra.mxu0 0
      %3513 = vmatprep.subr.bf16.mxu0 0
      %3514 = vmatpush1.bf16.msra.mxu0 0
      %3515 = vmatprep.subr.bf16.mxu0 0
      %3516 = vmatpush1.bf16.msra.mxu0 0
      %3517 = vmatprep.subr.bf16.mxu0 0
      %3518 = vmatpush1.bf16.msra.mxu0 0
      %3519 = vmatprep.subr.bf16.mxu0 0
      %3520 = vmatpush1.bf16.msra.mxu0 0
      %3521 = vmatprep.subr.bf16.mxu0 0
      %3522 = vmatpush1.bf16.msra.mxu0 0
      %3523 = vmatprep.subr.bf16.mxu0 0
      %3524 = vmatpush1.bf16.msra.mxu0 0
      %3525 = vmatprep.subr.bf16.mxu0 0
      %3526 = vmatpush1.bf16.msra.mxu0 0
      %3527 = vmatprep.subr.bf16.mxu0 0
      %3528 = vmatpush1.bf16.msra.mxu0 0
      %3529 = vmatprep.subr.bf16.mxu0 0
      %3530 = vmatpush1.bf16.msra.mxu0 0
      %3531 = vmatprep.mubr.bf16.mxu0 0
      %3532 = vmatmul.mubr.bf16.gmra.mrb[0].mxu0 %v3431
      %v3533 = vpop.f32.mrb[0].mxu0
      %v3534 = vadd.f32 0.0, %v3533
      %v3535 = vpop.f32.mrb[0].mxu0
      %v3536 = vadd.f32 0.0, %v3535
      %v3537 = vpop.f32.mrb[0].mxu0
      %v3538 = vadd.f32 0.0, %v3537
      %v3539 = vpop.f32.mrb[0].mxu0
      %v3540 = vadd.f32 0.0, %v3539
      %3541 = vmatprep.mubr.bf16.mxu0 0
      %3542 = vmatmul.mubr.bf16.gmra.mrb[0].mxu0 %v3434
      %v3543 = vpop.f32.mrb[0].mxu0
      %v3544 = vadd.f32 0.0, %v3543
      %v3545 = vpop.f32.mrb[0].mxu0
      %v3546 = vadd.f32 0.0, %v3545
      %v3547 = vpop.f32.mrb[0].mxu0
      %v3548 = vpop.f32.mrb[0].mxu0
      %3549 = vdwg.mxu0
      %v3550 = vadd.f32 %v3402, %v3483
      %v3551 = vadd.f32 %v3403, %v3485
      %v3552 = vadd.f32 %v3404, %v3534
      %v3553 = vadd.f32 %v3405, %v3536
      %v3554 = vadd.f32 %v3406, %v3487
      %v3555 = vadd.f32 %v3407, %v3489
      %v3556 = vadd.f32 %v3408, %v3538
      %v3557 = vadd.f32 %v3409, %v3540
      %v3558 = vadd.f32 %v3410, %v3493
      %v3559 = vadd.f32 %v3411, %v3495
      %v3560 = vadd.f32 %v3412, %v3544
      %v3561 = vadd.f32 %v3413, %v3546
      %3562 = vrot.lane.b32.xlu0 %v2528, 72
      %v3563 = vpop.permute.xlu0 %3562
      %3564 = vrot.lane.b32.xlu0 %v2529, 72
      %v3565 = vpop.permute.xlu0 %3564
      %3566 = vrot.lane.b32.xlu0 %v195, 37
      %v3567 = vpop.permute.xlu0 %3566
      %3568 = vrot.lane.b32.xlu0 %v196, 37
      %v3569 = vpop.permute.xlu0 %3568
      %3570 = vrot.lane.b32.xlu0 %v197, 37
      %v3571 = vpop.permute.xlu0 %3570
      %3572 = vrot.lane.b32.xlu0 %v198, 37
      %v3573 = vpop.permute.xlu0 %3572
      %vm3574 = vcmask 302080
      %v3575 = vsel %vm3574, %v3567, %v3569
      %v3576 = vsel %vm3574, %v3569, %v3571
      %v3577 = vsel %vm3574, %v3571, %v3573
      %v3579 = vsel %vm211, %v3563, 0
      %v3582 = vsel %vm211, %v3565, 0
      %v3585 = vsel %vm218, %v3575, 0
      %v3588 = vsel %vm218, %v3576, 0
      %v3591 = vsel %vm218, %v3577, 0
      %v3594 = vsel %vm218, %v3573, 0
      %3596 = vmatprep.subr.bf16.mxu0 %v3588
      %3597 = vmatpush1.bf16.msra.mxu0 %v3585
      %3598 = vmatprep.subr.bf16.mxu0 0
      %3599 = vmatpush1.bf16.msra.mxu0 0
      %3600 = vmatprep.subr.bf16.mxu0 0
      %3601 = vmatpush1.bf16.msra.mxu0 0
      %3602 = vmatprep.subr.bf16.mxu0 0
      %3603 = vmatpush1.bf16.msra.mxu0 0
      %3604 = vmatprep.subr.bf16.mxu0 0
      %3605 = vmatpush1.bf16.msra.mxu0 0
      %3606 = vmatprep.subr.bf16.mxu0 0
      %3607 = vmatpush1.bf16.msra.mxu0 0
      %3608 = vmatprep.subr.bf16.mxu0 0
      %3609 = vmatpush1.bf16.msra.mxu0 0
      %3610 = vmatprep.subr.bf16.mxu0 0
      %3611 = vmatpush1.bf16.msra.mxu0 0
      %3612 = vmatprep.subr.bf16.mxu0 0
      %3613 = vmatpush1.bf16.msra.mxu0 0
      %3614 = vmatprep.subr.bf16.mxu0 0
      %3615 = vmatpush1.bf16.msra.mxu0 0
      %3616 = vmatprep.subr.bf16.mxu0 0
      %3617 = vmatpush1.bf16.msra.mxu0 0
      %3618 = vmatprep.subr.bf16.mxu0 0
      %3619 = vmatpush1.bf16.msra.mxu0 0
      %3620 = vmatprep.subr.bf16.mxu0 0
      %3621 = vmatpush1.bf16.msra.mxu0 0
      %3622 = vmatprep.subr.bf16.mxu0 0
      %3623 = vmatpush1.bf16.msra.mxu0 0
      %3624 = vmatprep.subr.bf16.mxu0 0
      %3625 = vmatpush1.bf16.msra.mxu0 0
      %3626 = vmatprep.subr.bf16.mxu0 0
      %3627 = vmatpush1.bf16.msra.mxu0 0
      %3628 = vmatprep.mubr.bf16.mxu0 0
      %3629 = vmatmul.mubr.bf16.gmra.mrb[0].mxu0 %v3579
      %v3630 = vpop.f32.mrb[0].mxu0
      %v3631 = vadd.f32 0.0, %v3630
      %v3632 = vpop.f32.mrb[0].mxu0
      %v3633 = vadd.f32 0.0, %v3632
      %v3634 = vpop.f32.mrb[0].mxu0
      %v3635 = vadd.f32 0.0, %v3634
      %v3636 = vpop.f32.mrb[0].mxu0
      %v3637 = vadd.f32 0.0, %v3636
      %3638 = vmatprep.mubr.bf16.mxu0 0
      %3639 = vmatmul.mubr.bf16.gmra.mrb[0].mxu0 %v3582
      %v3640 = vpop.f32.mrb[0].mxu0
      %v3641 = vadd.f32 0.0, %v3640
      %v3642 = vpop.f32.mrb[0].mxu0
      %v3643 = vadd.f32 0.0, %v3642
      %v3644 = vpop.f32.mrb[0].mxu0
      %v3645 = vpop.f32.mrb[0].mxu0
      %3646 = vdwg.mxu0
      %3647 = vmatprep.subr.bf16.mxu0 %v3594
      %3648 = vmatpush1.bf16.msra.mxu0 %v3591
      %3649 = vmatprep.subr.bf16.mxu0 0
      %3650 = vmatpush1.bf16.msra.mxu0 0
      %3651 = vmatprep.subr.bf16.mxu0 0
      %3652 = vmatpush1.bf16.msra.mxu0 0
      %3653 = vmatprep.subr.bf16.mxu0 0
      %3654 = vmatpush1.bf16.msra.mxu0 0
      %3655 = vmatprep.subr.bf16.mxu0 0
      %3656 = vmatpush1.bf16.msra.mxu0 0
      %3657 = vmatprep.subr.bf16.mxu0 0
      %3658 = vmatpush1.bf16.msra.mxu0 0
      %3659 = vmatprep.subr.bf16.mxu0 0
      %3660 = vmatpush1.bf16.msra.mxu0 0
      %3661 = vmatprep.subr.bf16.mxu0 0
      %3662 = vmatpush1.bf16.msra.mxu0 0
      %3663 = vmatprep.subr.bf16.mxu0 0
      %3664 = vmatpush1.bf16.msra.mxu0 0
      %3665 = vmatprep.subr.bf16.mxu0 0
      %3666 = vmatpush1.bf16.msra.mxu0 0
      %3667 = vmatprep.subr.bf16.mxu0 0
      %3668 = vmatpush1.bf16.msra.mxu0 0
      %3669 = vmatprep.subr.bf16.mxu0 0
      %3670 = vmatpush1.bf16.msra.mxu0 0
      %3671 = vmatprep.subr.bf16.mxu0 0
      %3672 = vmatpush1.bf16.msra.mxu0 0
      %3673 = vmatprep.subr.bf16.mxu0 0
      %3674 = vmatpush1.bf16.msra.mxu0 0
      %3675 = vmatprep.subr.bf16.mxu0 0
      %3676 = vmatpush1.bf16.msra.mxu0 0
      %3677 = vmatprep.subr.bf16.mxu0 0
      %3678 = vmatpush1.bf16.msra.mxu0 0
      %3679 = vmatprep.mubr.bf16.mxu0 0
      %3680 = vmatmul.mubr.bf16.gmra.mrb[0].mxu0 %v3579
      %v3681 = vpop.f32.mrb[0].mxu0
      %v3682 = vadd.f32 0.0, %v3681
      %v3683 = vpop.f32.mrb[0].mxu0
      %v3684 = vadd.f32 0.0, %v3683
      %v3685 = vpop.f32.mrb[0].mxu0
      %v3686 = vadd.f32 0.0, %v3685
      %v3687 = vpop.f32.mrb[0].mxu0
      %v3688 = vadd.f32 0.0, %v3687
      %3689 = vmatprep.mubr.bf16.mxu0 0
      %3690 = vmatmul.mubr.bf16.gmra.mrb[0].mxu0 %v3582
      %v3691 = vpop.f32.mrb[0].mxu0
      %v3692 = vadd.f32 0.0, %v3691
      %v3693 = vpop.f32.mrb[0].mxu0
      %v3694 = vadd.f32 0.0, %v3693
      %v3695 = vpop.f32.mrb[0].mxu0
      %v3696 = vpop.f32.mrb[0].mxu0
      %3697 = vdwg.mxu0
      %v3698 = vadd.f32 %v3550, %v3631
      %v3699 = vadd.f32 %v3551, %v3633
      %v3700 = vadd.f32 %v3552, %v3682
      %v3701 = vadd.f32 %v3553, %v3684
      %v3702 = vadd.f32 %v3554, %v3635
      %v3703 = vadd.f32 %v3555, %v3637
      %v3704 = vadd.f32 %v3556, %v3686
      %v3705 = vadd.f32 %v3557, %v3688
      %v3706 = vadd.f32 %v3558, %v3641
      %v3707 = vadd.f32 %v3559, %v3643
      %v3708 = vadd.f32 %v3560, %v3692
      %v3709 = vadd.f32 %v3561, %v3694
      %3710 = vrot.lane.b32.xlu0 %v2528, 64
      %v3711 = vpop.permute.xlu0 %3710
      %3712 = vrot.lane.b32.xlu0 %v2529, 64
      %v3713 = vpop.permute.xlu0 %3712
      %3714 = vrot.lane.b32.xlu0 %v195, 36
      %v3715 = vpop.permute.xlu0 %3714
      %3716 = vrot.lane.b32.xlu0 %v196, 36
      %v3717 = vpop.permute.xlu0 %3716
      %3718 = vrot.lane.b32.xlu0 %v197, 36
      %v3719 = vpop.permute.xlu0 %3718
      %3720 = vrot.lane.b32.xlu0 %v198, 36
      %v3721 = vpop.permute.xlu0 %3720
      %vm3722 = vcmask 293888
      %v3723 = vsel %vm3722, %v3715, %v3717
      %v3724 = vsel %vm3722, %v3717, %v3719
      %v3725 = vsel %vm3722, %v3719, %v3721
      %v3727 = vsel %vm211, %v3711, 0
      %v3730 = vsel %vm211, %v3713, 0
      %v3733 = vsel %vm218, %v3723, 0
      %v3736 = vsel %vm218, %v3724, 0
      %v3739 = vsel %vm218, %v3725, 0
      %v3742 = vsel %vm218, %v3721, 0
      %3744 = vmatprep.subr.bf16.mxu0 %v3736
      %3745 = vmatpush1.bf16.msra.mxu0 %v3733
      %3746 = vmatprep.subr.bf16.mxu0 0
      %3747 = vmatpush1.bf16.msra.mxu0 0
      %3748 = vmatprep.subr.bf16.mxu0 0
      %3749 = vmatpush1.bf16.msra.mxu0 0
      %3750 = vmatprep.subr.bf16.mxu0 0
      %3751 = vmatpush1.bf16.msra.mxu0 0
      %3752 = vmatprep.subr.bf16.mxu0 0
      %3753 = vmatpush1.bf16.msra.mxu0 0
      %3754 = vmatprep.subr.bf16.mxu0 0
      %3755 = vmatpush1.bf16.msra.mxu0 0
      %3756 = vmatprep.subr.bf16.mxu0 0
      %3757 = vmatpush1.bf16.msra.mxu0 0
      %3758 = vmatprep.subr.bf16.mxu0 0
      %3759 = vmatpush1.bf16.msra.mxu0 0
      %3760 = vmatprep.subr.bf16.mxu0 0
      %3761 = vmatpush1.bf16.msra.mxu0 0
      %3762 = vmatprep.subr.bf16.mxu0 0
      %3763 = vmatpush1.bf16.msra.mxu0 0
      %3764 = vmatprep.subr.bf16.mxu0 0
      %3765 = vmatpush1.bf16.msra.mxu0 0
      %3766 = vmatprep.subr.bf16.mxu0 0
      %3767 = vmatpush1.bf16.msra.mxu0 0
      %3768 = vmatprep.subr.bf16.mxu0 0
      %3769 = vmatpush1.bf16.msra.mxu0 0
      %3770 = vmatprep.subr.bf16.mxu0 0
      %3771 = vmatpush1.bf16.msra.mxu0 0
      %3772 = vmatprep.subr.bf16.mxu0 0
      %3773 = vmatpush1.bf16.msra.mxu0 0
      %3774 = vmatprep.subr.bf16.mxu0 0
      %3775 = vmatpush1.bf16.msra.mxu0 0
      %3776 = vmatprep.mubr.bf16.mxu0 0
      %3777 = vmatmul.mubr.bf16.gmra.mrb[0].mxu0 %v3727
      %v3778 = vpop.f32.mrb[0].mxu0
      %v3779 = vadd.f32 0.0, %v3778
      %v3780 = vpop.f32.mrb[0].mxu0
      %v3781 = vadd.f32 0.0, %v3780
      %v3782 = vpop.f32.mrb[0].mxu0
      %v3783 = vadd.f32 0.0, %v3782
      %v3784 = vpop.f32.mrb[0].mxu0
      %v3785 = vadd.f32 0.0, %v3784
      %3786 = vmatprep.mubr.bf16.mxu0 0
      %3787 = vmatmul.mubr.bf16.gmra.mrb[0].mxu0 %v3730
      %v3788 = vpop.f32.mrb[0].mxu0
      %v3789 = vadd.f32 0.0, %v3788
      %v3790 = vpop.f32.mrb[0].mxu0
      %v3791 = vadd.f32 0.0, %v3790
      %v3792 = vpop.f32.mrb[0].mxu0
      %v3793 = vpop.f32.mrb[0].mxu0
      %3794 = vdwg.mxu0
      %3795 = vmatprep.subr.bf16.mxu0 %v3742
      %3796 = vmatpush1.bf16.msra.mxu0 %v3739
      %3797 = vmatprep.subr.bf16.mxu0 0
      %3798 = vmatpush1.bf16.msra.mxu0 0
      %3799 = vmatprep.subr.bf16.mxu0 0
      %3800 = vmatpush1.bf16.msra.mxu0 0
      %3801 = vmatprep.subr.bf16.mxu0 0
      %3802 = vmatpush1.bf16.msra.mxu0 0
      %3803 = vmatprep.subr.bf16.mxu0 0
      %3804 = vmatpush1.bf16.msra.mxu0 0
      %3805 = vmatprep.subr.bf16.mxu0 0
      %3806 = vmatpush1.bf16.msra.mxu0 0
      %3807 = vmatprep.subr.bf16.mxu0 0
      %3808 = vmatpush1.bf16.msra.mxu0 0
      %3809 = vmatprep.subr.bf16.mxu0 0
      %3810 = vmatpush1.bf16.msra.mxu0 0
      %3811 = vmatprep.subr.bf16.mxu0 0
      %3812 = vmatpush1.bf16.msra.mxu0 0
      %3813 = vmatprep.subr.bf16.mxu0 0
      %3814 = vmatpush1.bf16.msra.mxu0 0
      %3815 = vmatprep.subr.bf16.mxu0 0
      %3816 = vmatpush1.bf16.msra.mxu0 0
      %3817 = vmatprep.subr.bf16.mxu0 0
      %3818 = vmatpush1.bf16.msra.mxu0 0
      %3819 = vmatprep.subr.bf16.mxu0 0
      %3820 = vmatpush1.bf16.msra.mxu0 0
      %3821 = vmatprep.subr.bf16.mxu0 0
      %3822 = vmatpush1.bf16.msra.mxu0 0
      %3823 = vmatprep.subr.bf16.mxu0 0
      %3824 = vmatpush1.bf16.msra.mxu0 0
      %3825 = vmatprep.subr.bf16.mxu0 0
      %3826 = vmatpush1.bf16.msra.mxu0 0
      %3827 = vmatprep.mubr.bf16.mxu0 0
      %3828 = vmatmul.mubr.bf16.gmra.mrb[0].mxu0 %v3727
      %v3829 = vpop.f32.mrb[0].mxu0
      %v3830 = vadd.f32 0.0, %v3829
      %v3831 = vpop.f32.mrb[0].mxu0
      %v3832 = vadd.f32 0.0, %v3831
      %v3833 = vpop.f32.mrb[0].mxu0
      %v3834 = vadd.f32 0.0, %v3833
      %v3835 = vpop.f32.mrb[0].mxu0
      %v3836 = vadd.f32 0.0, %v3835
      %3837 = vmatprep.mubr.bf16.mxu0 0
      %3838 = vmatmul.mubr.bf16.gmra.mrb[0].mxu0 %v3730
      %v3839 = vpop.f32.mrb[0].mxu0
      %v3840 = vadd.f32 0.0, %v3839
      %v3841 = vpop.f32.mrb[0].mxu0
      %v3842 = vadd.f32 0.0, %v3841
      %v3843 = vpop.f32.mrb[0].mxu0
      %v3844 = vpop.f32.mrb[0].mxu0
      %3845 = vdwg.mxu0
      %v3846 = vadd.f32 %v3698, %v3779
      %v3847 = vadd.f32 %v3699, %v3781
      %v3848 = vadd.f32 %v3700, %v3830
      %v3849 = vadd.f32 %v3701, %v3832
      %v3850 = vadd.f32 %v3702, %v3783
      %v3851 = vadd.f32 %v3703, %v3785
      %v3852 = vadd.f32 %v3704, %v3834
      %v3853 = vadd.f32 %v3705, %v3836
      %v3854 = vadd.f32 %v3706, %v3789
      %v3855 = vadd.f32 %v3707, %v3791
      %v3856 = vadd.f32 %v3708, %v3840
      %v3857 = vadd.f32 %v3709, %v3842
      %v3858 = vld [vmem:[%s2] sm:$0xff]
      %v3859 = vld [vmem:[%s2 + $0x8] sm:$0xff]
      %v3860 = vld [vmem:[%s2 + $0x10] sm:$0xff]
      %3862 = vset.pattern.permute.xlu0 0
      %3863 = vperm.xlu0 %3862, %v3858
      %v3864 = vpop.permute.xlu0 %3863
      %3867 = vset.pattern.permute.xlu0 0
      %3868 = vperm.xlu0 %3867, %v3859
      %v3869 = vpop.permute.xlu0 %3868
      %3872 = vset.pattern.permute.xlu0 0
      %3873 = vperm.xlu0 %3872, %v3860
      %v3874 = vpop.permute.xlu0 %3873
      %v3876 = vadd.f32 %v3846, %v3864
      %v3877 = vadd.f32 %v3847, %v3864
      %v3878 = vadd.f32 %v3848, %v3864
      %v3879 = vadd.f32 %v3849, %v3864
      %v3880 = vadd.f32 %v3850, %v3869
      %v3881 = vadd.f32 %v3851, %v3869
      %v3882 = vadd.f32 %v3852, %v3869
      %v3883 = vadd.f32 %v3853, %v3869
      %v3884 = vadd.f32 %v3854, %v3874
      %v3885 = vadd.f32 %v3855, %v3874
      %v3886 = vadd.f32 %v3856, %v3874
      %v3887 = vadd.f32 %v3857, %v3874
      %v3888 = vpack.c.bf16 %v3880, %v3876
      %v3889 = vpack.c.bf16 %v3881, %v3877
      %v3890 = vpack.c.bf16 %v3882, %v3878
      %v3891 = vpack.c.bf16 %v3883, %v3879
      %v3892 = vpack.c.bf16 %v3884, %v3884
      %v3893 = vpack.c.bf16 %v3885, %v3885
      %v3894 = vpack.c.bf16 %v3886, %v3886
      %v3895 = vpack.c.bf16 %v3887, %v3887
      %v3904 = vunpack.c.l.b16 %v3888
      %v3905 = vunpack.c.l.b16 %v3889
      %v3906 = vunpack.c.l.b16 %v3890
      %v3907 = vunpack.c.l.b16 %v3891
      %v3908 = vunpack.c.h.b16 %v3888
      %v3909 = vunpack.c.h.b16 %v3889
      %v3910 = vunpack.c.h.b16 %v3890
      %v3911 = vunpack.c.h.b16 %v3891
      %v3912 = vunpack.c.l.b16 %v3892
      %v3913 = vunpack.c.l.b16 %v3893
      %v3914 = vunpack.c.l.b16 %v3894
      %v3915 = vunpack.c.l.b16 %v3895
      %v3916 = vpack.c.b16 %v3905, %v3904
      %v3917 = vpack.c.b16 %v3907, %v3906
      %v3918 = vpack.c.b16 %v3909, %v3908
      %v3919 = vpack.c.b16 %v3911, %v3910
      %v3920 = vpack.c.b16 %v3913, %v3912
      %v3921 = vpack.c.b16 %v3915, %v3914
      %3928 = vst [vmem:[%s170] sm:$0xff] %v3916
      %vm3929 = vcmask 97284
      %vm3930 = vmor %vm3929, %vm218
      %3931 = vst.msk [vmem:[%s170 + $0x8] sm:$0xff] %vm3930, %v3917
      %3932 = vst [vmem:[%s170 + $0x10] sm:$0xff] %v3918
      %3933 = vst.msk [vmem:[%s170 + $0x18] sm:$0xff] %vm3930, %v3919
      %3934 = vst [vmem:[%s170 + $0x20] sm:$0xff] %v3920
      %3935 = vst.msk [vmem:[%s170 + $0x28] sm:$0xff] %vm3930, %v3921
      %p3936 = scmp.lt.s32.totalorder %s14, 1
      %s3937 = scalar_select %p3936, %s14, 1
      %s3938 = smul.addr %s3937, 12
      %s3939 = smul.addr %s3938, 4
      %s3940 = scalar_lea.vmem %s3, %s3939
      // Predicated region
      $region33: #{forward.7} parent=31 // pred_check
        %p3941 = pneg %p100
      $region34: #{forward.7} parent=31 // pred_check_branch
        %3943 = sbr.rel (%p3941) target = $region36
      $region35: #{forward.7} parent=31 // pred_region
        _
      $region36: #{forward.7} parent=31 // pred_fallthru
        _
    $region32: #{forward.7} parent=5 // pred_fallthru
      _
    %p3944 = scmp.le.s32.totalorder 2, %s9
    // Predicated region
    $region37: #{forward.7} parent=5 // pred_check
      %p3945 = pneg %p3944
    $region38: #{forward.7} parent=5 // pred_check_branch
      %3947 = sbr.rel (%p3945) target = $region40
    $region39: #{forward.7} parent=5 // pred_region
      %s3948 = ssub.s32 %s9, 2
      // Predicated region
      $region41: #{forward.7} parent=39 // pred_check
        %p3949 = pneg %p106
      $region42: #{forward.7} parent=39 // pred_check_branch
        %3951 = sbr.rel (%p3949) target = $region44
      $region43: #{forward.7} parent=39 // pred_region
        %p3952 = scmp.lt.s32.totalorder %s15, 1
        %s3953 = scalar_select %p3952, %s15, 1
        %s3954 = smul.addr %s3953, 12
        %s3955 = smul.addr %s3954, 4
        %s3956 = scalar_lea.vmem %s3, %s3955
      $region44: #{forward.7} parent=39 // pred_fallthru
        _
    $region40: #{forward.7} parent=5 // pred_fallthru
      _
  $region6: #{forward.7} parent=0 // loop_footer
    %s13 = sadd.s32 1, %s9
  $region7: #{forward.7} parent=0 // loop_footer_branch
    %8 = sbr.rel target = $region3
  $region8: #{forward.7} parent=0 // loop_exit
    _

// kernel: forward.8
$region0: #{forward.8}
  #allocation0 [shape = 'u32[]', space=smem, size = 0x4, offset = 0x4, fixed_abs, tag = 'smem constant byte address 0x4 - core index']
  #allocation1 [shape = 'u32[144,128]{1,0:T(1,128)}', space=vmem, size = 0x12000, scoped, tag = 'internal scratch']
  %s0 = inlined_call_operand.vmem [shape: bf16[24,36], index: 0, kind: input, shape index: {}]
  %s1 = inlined_call_operand.vmem [shape: bf16[36,512], index: 1, kind: input, shape index: {}]
  %s2 = inlined_call_operand.vmem [shape: f32[24,1], index: 2, kind: input, shape index: {}]
  %s3 = inlined_call_operand.vmem [shape: bf16[24,512], index: 3, kind: output, shape index: {}]
  %s4 = sld [smem:[#allocation0]]
  $region117: #{forward.8} parent=0
    _
  %s6 = ssub.s32 1, %s4
  %s7 = scalar_select 0, %s6, %s4
  $region1: #{forward.8} parent=0
    #allocation2 [shape = 'u8[40960]{0}', space=vmem, size = 0xa000, scoped, tag = 'input window, operand 1']
    #allocation3 [shape = 'u8[24576]{0}', space=vmem, size = 0x6000, scoped, tag = 'output window, operand 0']
    loop: start=0, step=1, limit=4
    $region2: #{forward.8} parent=1 // loop_pre_header
      _
    $region3: #{forward.8} parent=1 // loop_header
      %s9 = sphi 0, %s13
      %p10 = scmp.ge.s32.totalorder %s9, 4
      %s17 = sphi 0, %s17
      %s19 = sphi 0, %s17
      %s20 = sphi 0, %s19
      %s34 = sphi 0, %s20
      %s40 = sphi 0, %s42
      %s43 = sphi 0, %s40
      %s44 = sphi 0, %s43
      %s60 = sphi 0, %s44
      %s64 = sphi 0, %s64
      %s66 = sphi 0, %s64
      %s67 = sphi 0, %s66
      %s81 = sphi 0, %s67
      %s87 = sphi 0, %s89
      %s90 = sphi 0, %s87
      %s91 = sphi 0, %s90
      %s107 = sphi 0, %s91
    $region4: #{forward.8} parent=1 // loop_header_branch
      %12 = sbr.rel (%p10) target = $region8
    $region5: #{forward.8} parent=1 // loop_body
      %s14 = ssub.s32 %s9, 1
      %s15 = ssub.s32 %s9, 2
      %s16 = sadd.s32 %s9, 1
      %s18 = sadd.s32 %s17, 1
      %p21 = scmp.eq.s32.totalorder %s9, 1
      %p22 = scmp.ne.s32.totalorder %s17, %s19
      %p23 = scmp.eq.s32.totalorder %s9, 0
      %p24 = por %p22, %p23
      %p25 = scmp.ne.s32.totalorder %s17, %s19
      %p26 = scmp.eq.s32.totalorder %s14, 1
      %p27 = por %p25, %p26
      %p28 = scmp.ne.s32.totalorder %s19, %s20
      %p29 = scmp.eq.s32.totalorder %s14, 0
      %p30 = por %p28, %p29
      %p31 = scmp.ne.s32.totalorder %s19, %s20
      %p32 = scmp.eq.s32.totalorder %s15, 1
      %p33 = por %p31, %p32
      %p35 = scmp.ne.s32.totalorder %s20, %s34
      %p36 = scmp.eq.s32.totalorder %s15, 0
      %p37 = por %p35, %p36
      %s38 = ssub.s32 %s9, %s16
      %p39 = scmp.eq.s32.totalorder %s38, 0
      %s41 = sadd.s32 %s40, 1
      %s42 = scalar_select %p39, %s40, %s41
      %p45 = pneg %p39
      %p46 = scmp.eq.s32.totalorder %s9, 1
      %p47 = por %p45, %p46
      %p48 = scmp.ne.s32.totalorder %s40, %s43
      %p49 = scmp.eq.s32.totalorder %s9, 0
      %p50 = por %p48, %p49
      %p51 = scmp.ne.s32.totalorder %s40, %s43
      %p52 = scmp.eq.s32.totalorder %s14, 1
      %p53 = por %p51, %p52
      %p54 = scmp.ne.s32.totalorder %s43, %s44
      %p55 = scmp.eq.s32.totalorder %s14, 0
      %p56 = por %p54, %p55
      %p57 = scmp.ne.s32.totalorder %s43, %s44
      %p58 = scmp.eq.s32.totalorder %s15, 1
      %p59 = por %p57, %p58
      %p61 = scmp.ne.s32.totalorder %s44, %s60
      %p62 = scmp.eq.s32.totalorder %s15, 0
      %p63 = por %p61, %p62
      %s65 = sadd.s32 %s64, 1
      %p68 = scmp.eq.s32.totalorder %s9, 1
      %p69 = scmp.ne.s32.totalorder %s64, %s66
      %p70 = scmp.eq.s32.totalorder %s9, 0
      %p71 = por %p69, %p70
      %p72 = scmp.ne.s32.totalorder %s64, %s66
      %p73 = scmp.eq.s32.totalorder %s14, 1
      %p74 = por %p72, %p73
      %p75 = scmp.ne.s32.totalorder %s66, %s67
      %p76 = scmp.eq.s32.totalorder %s14, 0
      %p77 = por %p75, %p76
      %p78 = scmp.ne.s32.totalorder %s66, %s67
      %p79 = scmp.eq.s32.totalorder %s15, 1
      %p80 = por %p78, %p79
      %p82 = scmp.ne.s32.totalorder %s67, %s81
      %p83 = scmp.eq.s32.totalorder %s15, 0
      %p84 = por %p82, %p83
      %s85 = ssub.s32 %s9, %s16
      %p86 = scmp.eq.s32.totalorder %s85, 0
      %s88 = sadd.s32 %s87, 1
      %s89 = scalar_select %p86, %s87, %s88
      %p92 = pneg %p86
      %p93 = scmp.eq.s32.totalorder %s9, 1
      %p94 = por %p92, %p93
      %p95 = scmp.ne.s32.totalorder %s87, %s90
      %p96 = scmp.eq.s32.totalorder %s9, 0
      %p97 = por %p95, %p96
      %p98 = scmp.ne.s32.totalorder %s87, %s90
      %p99 = scmp.eq.s32.totalorder %s14, 1
      %p100 = por %p98, %p99
      %p101 = scmp.ne.s32.totalorder %s90, %s91
      %p102 = scmp.eq.s32.totalorder %s14, 0
      %p103 = por %p101, %p102
      %p104 = scmp.ne.s32.totalorder %s90, %s91
      %p105 = scmp.eq.s32.totalorder %s15, 1
      %p106 = por %p104, %p105
      %p108 = scmp.ne.s32.totalorder %s91, %s107
      %p109 = scmp.eq.s32.totalorder %s15, 0
      %p110 = por %p108, %p109
      %p111 = scmp.le.s32.totalorder 1, %s9
      %p112 = scmp.lt.s32.totalorder %s9, 3
      %p113 = pnand %p111, %p112
      %p114 = pneg %p113
      // Predicated region
      $region9: #{forward.8} parent=5 // pred_check
        _
      $region10: #{forward.8} parent=5 // pred_check_branch
        %116 = sbr.rel (%p113) target = $region12
      $region11: #{forward.8} parent=5 // pred_region
        %s117 = ssub.s32 %s9, 1
        // Predicated region
        $region13: #{forward.8} parent=11 // pred_check
          %p118 = pneg %p30
        $region14: #{forward.8} parent=11 // pred_check_branch
          %120 = sbr.rel (%p118) target = $region16
        $region15: #{forward.8} parent=11 // pred_region
          _
        $region16: #{forward.8} parent=11 // pred_fallthru
          _
        // Predicated region
        $region17: #{forward.8} parent=11 // pred_check
          %p121 = pneg %p77
        $region18: #{forward.8} parent=11 // pred_check_branch
          %123 = sbr.rel (%p121) target = $region20
        $region19: #{forward.8} parent=11 // pred_region
          _
        $region20: #{forward.8} parent=11 // pred_fallthru
          _
      $region12: #{forward.8} parent=5 // pred_fallthru
        _
      %p124 = scmp.lt.s32.totalorder %s9, 2
      // Predicated region
      $region21: #{forward.8} parent=5 // pred_check
        %p125 = pneg %p124
      $region22: #{forward.8} parent=5 // pred_check_branch
        %127 = sbr.rel (%p125) target = $region24
      $region23: #{forward.8} parent=5 // pred_region
        // Predicated region
        $region25: #{forward.8} parent=23 // pred_check
          %p128 = pneg %p50
        $region26: #{forward.8} parent=23 // pred_check_branch
          %130 = sbr.rel (%p128) target = $region28
        $region27: #{forward.8} parent=23 // pred_region
          %s131 = sand.u32 %s40, 1
          %s132 = sand.u32 %s40, 1
          %s133 = smul.addr %s132, 40
          %s134 = scalar_lea.vmem [#allocation2], %s133
          %s135 = smul.u32 2, %s9
          %s136 = smul.addr %s135, 4
          %s137 = scalar_lea.vmem %s1, %s136
          // Predicated region
          $region29: #{forward.8} parent=27 // pred_check
            _
          $region30: #{forward.8} parent=27 // pred_check_branch
            %139 = sbr.rel (0) target = $region32
          $region31: #{forward.8} parent=27 // pred_region
            // Predicated region
            $region33: #{forward.8} parent=31 // pred_check
              _
            $region34: #{forward.8} parent=31 // pred_check_branch
              %141 = sbr.rel (0) target = $region36
            $region35: #{forward.8} parent=31 // pred_region
              // Predicated region
              $region48: #{forward.8} parent=35 // pred_check
                _
              $region49: #{forward.8} parent=35 // pred_check_branch
                %164 = sbr.rel (0) target = $region51
              $region50: #{forward.8} parent=35 // pred_region
                loop: start=0, step=1, limit=1
                $region52: #{forward.8} parent=50 // loop_pre_header
                  _
                $region53: #{forward.8} parent=50 // loop_header
                  %s166 = sphi 0, %s170
                  %p167 = scmp.ge.s32.totalorder %s166, 1
                  %s171 = sphi %s137, %s137
                  %s172 = sphi %s134, %s134
                $region54: #{forward.8} parent=50 // loop_header_branch
                  %169 = sbr.rel (%p167) target = $region58
                $region55: #{forward.8} parent=50 // loop_body
                  %v173 = vld [vmem:[%s171] sm:$0xff]
                  %174 = vst [vmem:[%s172] sm:$0xff] %v173
                  %v175 = vld [vmem:[%s171 + $0x10] sm:$0xff]
                  %176 = vst [vmem:[%s172 + $0x8] sm:$0xff] %v175
                  %v177 = vld [vmem:[%s171 + $0x20] sm:$0xff]
                  %178 = vst [vmem:[%s172 + $0x10] sm:$0xff] %v177
                  %v179 = vld [vmem:[%s171 + $0x30] sm:$0xff]
                  %180 = vst [vmem:[%s172 + $0x18] sm:$0xff] %v179
                  %v181 = vld [vmem:[%s171 + $0x40] sm:$0xff]
                  %182 = vst [vmem:[%s172 + $0x20] sm:$0xff] %v181
                $region56: #{forward.8} parent=50 // loop_footer
                  %s170 = sadd.s32 1, %s166
                $region57: #{forward.8} parent=50 // loop_footer_branch
                  %165 = sbr.rel target = $region53
                $region58: #{forward.8} parent=50 // loop_exit
                  _
              $region51: #{forward.8} parent=35 // pred_fallthru
                _
              // Predicated region
              $region59: #{forward.8} parent=35 // pred_check
                _
              $region60: #{forward.8} parent=35 // pred_check_branch
                %184 = sbr.rel target = $region62
              $region61: #{forward.8} parent=35 // pred_region
                _
              $region62: #{forward.8} parent=35 // pred_fallthru
                _
            $region36: #{forward.8} parent=31 // pred_fallthru
              _
            // Predicated region
            $region37: #{forward.8} parent=31 // pred_check
              _
            $region38: #{forward.8} parent=31 // pred_check_branch
              %143 = sbr.rel target = $region40
            $region39: #{forward.8} parent=31 // pred_region
              loop: start=0, step=1, limit=1
              $region41: #{forward.8} parent=39 // loop_pre_header
                _
              $region42: #{forward.8} parent=39 // loop_header
                %s146 = sphi 0, %s150
                %p147 = scmp.ge.s32.totalorder %s146, 1
                %s151 = sphi %s137, %s137
                %s152 = sphi %s134, %s134
              $region43: #{forward.8} parent=39 // loop_header_branch
                %149 = sbr.rel (%p147) target = $region47
              $region44: #{forward.8} parent=39 // loop_body
                %v153 = vld [vmem:[%s151] sm:$0xff]
                %154 = vst [vmem:[%s152] sm:$0xff] %v153
                %v155 = vld [vmem:[%s151 + $0x10] sm:$0xff]
                %156 = vst [vmem:[%s152 + $0x8] sm:$0xff] %v155
                %v157 = vld [vmem:[%s151 + $0x20] sm:$0xff]
                %158 = vst [vmem:[%s152 + $0x10] sm:$0xff] %v157
                %v159 = vld [vmem:[%s151 + $0x30] sm:$0xff]
                %160 = vst [vmem:[%s152 + $0x18] sm:$0xff] %v159
                %v161 = vld [vmem:[%s151 + $0x40] sm:$0xff]
                %162 = vst [vmem:[%s152 + $0x20] sm:$0xff] %v161
              $region45: #{forward.8} parent=39 // loop_footer
                %s150 = sadd.s32 1, %s146
              $region46: #{forward.8} parent=39 // loop_footer_branch
                %145 = sbr.rel target = $region42
              $region47: #{forward.8} parent=39 // loop_exit
                _
            $region40: #{forward.8} parent=31 // pred_fallthru
              _
          $region32: #{forward.8} parent=27 // pred_fallthru
            _
          %185 = vnop
        $region28: #{forward.8} parent=23 // pred_fallthru
          _
      $region24: #{forward.8} parent=5 // pred_fallthru
        _
      %p186 = scmp.le.s32.totalorder 1, %s9
      %p187 = scmp.lt.s32.totalorder %s9, 3
      %p188 = pnand %p186, %p187
      %p189 = pneg %p188
      // Predicated region
      $region63: #{forward.8} parent=5 // pred_check
        _
      $region64: #{forward.8} parent=5 // pred_check_branch
        %191 = sbr.rel (%p188) target = $region66
      $region65: #{forward.8} parent=5 // pred_region
        %s192 = ssub.s32 %s9, 1
        %s193 = sand.u32 %s43, 1
        %s194 = sand.u32 %s43, 1
        %s195 = smul.addr %s194, 40
        %s196 = scalar_lea.vmem [#allocation2], %s195
        // Predicated region
        $region67: #{forward.8} parent=65 // pred_check
          %p197 = pneg %p56
        $region68: #{forward.8} parent=65 // pred_check_branch
          %199 = sbr.rel (%p197) target = $region70
        $region69: #{forward.8} parent=65 // pred_region
          _
        $region70: #{forward.8} parent=65 // pred_fallthru
          _
        %p200 = pneg %p30
        %p201 = pneg %p27
        %s202 = sand.u32 %s43, 1
        %s203 = sand.u32 %s43, 1
        %s204 = smul.addr %s203, 40
        %s205 = scalar_lea.vmem [#allocation2], %s204
        %p206 = pneg %p56
        %p207 = pneg %p53
        %p208 = pneg %p77
        %p209 = pneg %p74
        %p210 = pneg %p103
        %p211 = pneg %p100
        %s212 = sand.u32 %s90, 1
        %s213 = sand.u32 %s90, 1
        %s214 = smul.addr %s213, 24
        %s215 = scalar_lea.vmem [#allocation3], %s214
        %s216 = smul.u32 2, %s14
        %s217 = smul.u32 2, %s14
        %v219 = vld [vmem:[%s0] sm:$0xf]
        %v220 = vld [vmem:[%s0 + $0x4] sm:$0xf]
        %v221 = vld [vmem:[%s0 + $0x8] sm:$0xf]
        %v222 = vld [vmem:[%s196] sm:$0xff]
        %v223 = vld [vmem:[%s196 + $0x8] sm:$0xff]
        %v224 = vld [vmem:[%s196 + $0x10] sm:$0xff]
        %v225 = vld [vmem:[%s196 + $0x18] sm:$0xff]
        %v226 = vld [vmem:[%s196 + $0x20] sm:$0x33]
        %v227 = vld [vmem:[%s2] sm:$0xff]
        %v228 = vld [vmem:[%s2 + $0x8] sm:$0xff]
        %v229 = vld [vmem:[%s2 + $0x10] sm:$0xff]
        %231 = vset.pattern.permute.xlu0 0
        %232 = vperm.xlu0 %231, %v227
        %v233 = vpop.permute.xlu0 %232
        %236 = vset.pattern.permute.xlu0 0
        %237 = vperm.xlu0 %236, %v228
        %v238 = vpop.permute.xlu0 %237
        %241 = vset.pattern.permute.xlu0 0
        %242 = vperm.xlu0 %241, %v229
        %v243 = vpop.permute.xlu0 %242
        %v248 = vunpack.c.l.b16 %v219
        %v249 = vunpack.c.l.b16 %v220
        %v250 = vunpack.c.l.b16 %v221
        %v251 = vpack.c.b16 %v249, %v248
        %v252 = vpack.c.b16 %v250, %v250
        %v258 = vunpack.c.l.b16 %v222
        %v259 = vunpack.c.h.b16 %v222
        %v260 = vunpack.c.l.b16 %v223
        %v261 = vunpack.c.h.b16 %v223
        %v262 = vunpack.c.l.b16 %v224
        %v263 = vunpack.c.h.b16 %v224
        %v264 = vunpack.c.l.b16 %v225
        %v265 = vunpack.c.h.b16 %v225
        %v266 = vunpack.c.l.b16 %v226
        %v267 = vunpack.c.h.b16 %v226
        %v268 = vpack.c.b16 %v260, %v258
        %v269 = vpack.c.b16 %v261, %v259
        %v270 = vpack.c.b16 %v264, %v262
        %v271 = vpack.c.b16 %v265, %v263
        %v272 = vpack.c.b16 %v266, %v266
        %v273 = vpack.c.b16 %v267, %v267
        %vm278 = vcmask 293888
        %v280 = vsel %vm278, %v251, 0
        %v283 = vsel %vm278, %v252, 0
        %vm285 = vcmask 1041408
        %v287 = vsel %vm285, %v272, 0
        %v290 = vsel %vm285, %v273, 0
        %292 = vmatprep.subr.bf16.mxu0 %v269
        %293 = vmatpush1.bf16.msra.mxu0 %v268
        %294 = vmatprep.subr.bf16.mxu0 %v271
        %295 = vmatpush1.bf16.msra.mxu0 %v270
        %296 = vmatprep.subr.bf16.mxu0 %v290
        %297 = vmatpush1.bf16.msra.mxu0 %v287
        %298 = vmatprep.subr.bf16.mxu0 0
        %299 = vmatpush1.bf16.msra.mxu0 0
        %300 = vmatprep.subr.bf16.mxu0 0
        %301 = vmatpush1.bf16.msra.mxu0 0
        %302 = vmatprep.subr.bf16.mxu0 0
        %303 = vmatpush1.bf16.msra.mxu0 0
        %304 = vmatprep.subr.bf16.mxu0 0
        %305 = vmatpush1.bf16.msra.mxu0 0
        %306 = vmatprep.subr.bf16.mxu0 0
        %307 = vmatpush1.bf16.msra.mxu0 0
        %308 = vmatprep.subr.bf16.mxu0 0
        %309 = vmatpush1.bf16.msra.mxu0 0
        %310 = vmatprep.subr.bf16.mxu0 0
        %311 = vmatpush1.bf16.msra.mxu0 0
        %312 = vmatprep.subr.bf16.mxu0 0
        %313 = vmatpush1.bf16.msra.mxu0 0
        %314 = vmatprep.subr.bf16.mxu0 0
        %315 = vmatpush1.bf16.msra.mxu0 0
        %316 = vmatprep.subr.bf16.mxu0 0
        %317 = vmatpush1.bf16.msra.mxu0 0
        %318 = vmatprep.subr.bf16.mxu0 0
        %319 = vmatpush1.bf16.msra.mxu0 0
        %320 = vmatprep.subr.bf16.mxu0 0
        %321 = vmatpush1.bf16.msra.mxu0 0
        %322 = vmatprep.subr.bf16.mxu0 0
        %323 = vmatpush1.bf16.msra.mxu0 0
        %324 = vmatprep.mubr.bf16.mxu0 0
        %325 = vmatmul.mubr.bf16.gmra.mrb[0].mxu0 %v280
        %v326 = vpop.f32.mrb[0].mxu0
        %v327 = vadd.f32 %v233, %v326
        %v328 = vpop.f32.mrb[0].mxu0
        %v329 = vadd.f32 %v233, %v328
        %v330 = vpop.f32.mrb[0].mxu0
        %v331 = vadd.f32 %v238, %v330
        %v332 = vpop.f32.mrb[0].mxu0
        %v333 = vadd.f32 %v238, %v332
        %334 = vmatprep.mubr.bf16.mxu0 0
        %335 = vmatmul.mubr.bf16.gmra.mrb[0].mxu0 %v283
        %v336 = vpop.f32.mrb[0].mxu0
        %v337 = vadd.f32 %v243, %v336
        %v338 = vpop.f32.mrb[0].mxu0
        %v339 = vadd.f32 %v243, %v338
        %v340 = vpop.f32.mrb[0].mxu0
        %v341 = vpop.f32.mrb[0].mxu0
        %342 = vdwg.mxu0
        %v343 = vpack.c.bf16 %v331, %v327
        %v344 = vpack.c.bf16 %v333, %v329
        %v345 = vpack.c.bf16 %v337, %v337
        %v346 = vpack.c.bf16 %v339, %v339
        %v351 = vunpack.c.l.b16 %v343
        %v352 = vunpack.c.l.b16 %v344
        %v353 = vunpack.c.h.b16 %v343
        %v354 = vunpack.c.h.b16 %v344
        %v355 = vunpack.c.l.b16 %v345
        %v356 = vunpack.c.l.b16 %v346
        %v357 = vpack.c.b16 %v352, %v351
        %v358 = vpack.c.b16 %v354, %v353
        %v359 = vpack.c.b16 %v356, %v355
        %363 = vst [vmem:[%s215] sm:$0xff] %v357
        %364 = vst [vmem:[%s215 + $0x8] sm:$0xff] %v358
        %365 = vst [vmem:[%s215 + $0x10] sm:$0xff] %v359
        %s366 = sand.u32 %s90, 1
        %s367 = sand.u32 %s90, 1
        %s368 = smul.addr %s367, 24
        %s369 = scalar_lea.vmem [#allocation3], %s368
        // Predicated region
        $region71: #{forward.8} parent=65 // pred_check
          %p370 = pneg %p100
        $region72: #{forward.8} parent=65 // pred_check_branch
          %372 = sbr.rel (%p370) target = $region74
        $region73: #{forward.8} parent=65 // pred_region
          %s373 = smul.u32 2, %s14
          %s374 = smul.addr %s373, 4
          %s375 = scalar_lea.vmem %s3, %s374
          // Predicated region
          $region75: #{forward.8} parent=73 // pred_check
            _
          $region76: #{forward.8} parent=73 // pred_check_branch
            %377 = sbr.rel (0) target = $region78
          $region77: #{forward.8} parent=73 // pred_region
            // Predicated region
            $region79: #{forward.8} parent=77 // pred_check
              _
            $region80: #{forward.8} parent=77 // pred_check_branch
              %379 = sbr.rel (0) target = $region82
            $region81: #{forward.8} parent=77 // pred_region
              // Predicated region
              $region94: #{forward.8} parent=81 // pred_check
                _
              $region95: #{forward.8} parent=81 // pred_check_branch
                %398 = sbr.rel (0) target = $region97
              $region96: #{forward.8} parent=81 // pred_region
                loop: start=0, step=1, limit=1
                $region98: #{forward.8} parent=96 // loop_pre_header
                  _
                $region99: #{forward.8} parent=96 // loop_header
                  %s400 = sphi 0, %s404
                  %p401 = scmp.ge.s32.totalorder %s400, 1
                  %s405 = sphi %s369, %s369
                  %s406 = sphi %s375, %s375
                $region100: #{forward.8} parent=96 // loop_header_branch
                  %403 = sbr.rel (%p401) target = $region104
                $region101: #{forward.8} parent=96 // loop_body
                  %v407 = vld [vmem:[%s405] sm:$0xff]
                  %408 = vst [vmem:[%s406] sm:$0xff] %v407
                  %v409 = vld [vmem:[%s405 + $0x8] sm:$0xff]
                  %410 = vst [vmem:[%s406 + $0x10] sm:$0xff] %v409
                  %v411 = vld [vmem:[%s405 + $0x10] sm:$0xff]
                  %412 = vst [vmem:[%s406 + $0x20] sm:$0xff] %v411
                $region102: #{forward.8} parent=96 // loop_footer
                  %s404 = sadd.s32 1, %s400
                $region103: #{forward.8} parent=96 // loop_footer_branch
                  %399 = sbr.rel target = $region99
                $region104: #{forward.8} parent=96 // loop_exit
                  _
              $region97: #{forward.8} parent=81 // pred_fallthru
                _
              // Predicated region
              $region105: #{forward.8} parent=81 // pred_check
                _
              $region106: #{forward.8} parent=81 // pred_check_branch
                %414 = sbr.rel target = $region108
              $region107: #{forward.8} parent=81 // pred_region
                _
              $region108: #{forward.8} parent=81 // pred_fallthru
                _
            $region82: #{forward.8} parent=77 // pred_fallthru
              _
            // Predicated region
            $region83: #{forward.8} parent=77 // pred_check
              _
            $region84: #{forward.8} parent=77 // pred_check_branch
              %381 = sbr.rel target = $region86
            $region85: #{forward.8} parent=77 // pred_region
              loop: start=0, step=1, limit=1
              $region87: #{forward.8} parent=85 // loop_pre_header
                _
              $region88: #{forward.8} parent=85 // loop_header
                %s384 = sphi 0, %s388
                %p385 = scmp.ge.s32.totalorder %s384, 1
                %s389 = sphi %s369, %s369
                %s390 = sphi %s375, %s375
              $region89: #{forward.8} parent=85 // loop_header_branch
                %387 = sbr.rel (%p385) target = $region93
              $region90: #{forward.8} parent=85 // loop_body
                %v391 = vld [vmem:[%s389] sm:$0xff]
                %392 = vst [vmem:[%s390] sm:$0xff] %v391
                %v393 = vld [vmem:[%s389 + $0x8] sm:$0xff]
                %394 = vst [vmem:[%s390 + $0x10] sm:$0xff] %v393
                %v395 = vld [vmem:[%s389 + $0x10] sm:$0xff]
                %396 = vst [vmem:[%s390 + $0x20] sm:$0xff] %v395
              $region91: #{forward.8} parent=85 // loop_footer
                %s388 = sadd.s32 1, %s384
              $region92: #{forward.8} parent=85 // loop_footer_branch
                %383 = sbr.rel target = $region88
              $region93: #{forward.8} parent=85 // loop_exit
                _
            $region86: #{forward.8} parent=77 // pred_fallthru
              _
          $region78: #{forward.8} parent=73 // pred_fallthru
            _
          %415 = vnop
        $region74: #{forward.8} parent=65 // pred_fallthru
          _
      $region66: #{forward.8} parent=5 // pred_fallthru
        _
      %p416 = scmp.le.s32.totalorder 2, %s9
      // Predicated region
      $region109: #{forward.8} parent=5 // pred_check
        %p417 = pneg %p416
      $region110: #{forward.8} parent=5 // pred_check_branch
        %419 = sbr.rel (%p417) target = $region112
      $region111: #{forward.8} parent=5 // pred_region
        %s420 = ssub.s32 %s9, 2
        // Predicated region
        $region113: #{forward.8} parent=111 // pred_check
          %p421 = pneg %p106
        $region114: #{forward.8} parent=111 // pred_check_branch
          %423 = sbr.rel (%p421) target = $region116
        $region115: #{forward.8} parent=111 // pred_region
          %s424 = sand.u32 %s91, 1
          %s425 = sand.u32 %s91, 1
          %s426 = smul.addr %s425, 24
          %s427 = scalar_lea.vmem [#allocation3], %s426
        $region116: #{forward.8} parent=111 // pred_fallthru
          _
      $region112: #{forward.8} parent=5 // pred_fallthru
        _
    $region6: #{forward.8} parent=1 // loop_footer
      %s13 = sadd.s32 1, %s9
    $region7: #{forward.8} parent=1 // loop_footer_branch
      %8 = sbr.rel target = $region3
    $region8: #{forward.8} parent=1 // loop_exit
      _

// kernel: forward.9
$region0: #{forward.9}
  #allocation0 [shape = 'u32[]', space=smem, size = 0x4, offset = 0x4, fixed_abs, tag = 'smem constant byte address 0x4 - core index']
  #allocation1 [shape = 'u32[144,128]{1,0:T(1,128)}', space=vmem, size = 0x12000, scoped, tag = 'internal scratch']
  %s0 = inlined_call_operand.vmem [shape: bf16[24,36], index: 0, kind: input, shape index: {}]
  %s1 = inlined_call_operand.vmem [shape: bf16[36,512], index: 1, kind: input, shape index: {}]
  %s2 = inlined_call_operand.vmem [shape: f32[24,1], index: 2, kind: input, shape index: {}]
  %s3 = inlined_call_operand.vmem [shape: f32[24,512], index: 3, kind: output, shape index: {}]
  %s4 = sld [smem:[#allocation0]]
  $region102: #{forward.9} parent=0
    _
  %s6 = ssub.s32 1, %s4
  %s7 = scalar_select 0, %s6, %s4
  $region1: #{forward.9} parent=0
    #allocation2 [shape = 'u8[40960]{0}', space=vmem, size = 0xa000, scoped, tag = 'input window, operand 1']
    #allocation3 [shape = 'u8[49152]{0}', space=vmem, size = 0xc000, scoped, tag = 'output window, operand 0']
    loop: start=0, step=1, limit=4
    $region2: #{forward.9} parent=1 // loop_pre_header
      _
    $region3: #{forward.9} parent=1 // loop_header
      %s9 = sphi 0, %s13
      %p10 = scmp.ge.s32.totalorder %s9, 4
      %s17 = sphi 0, %s17
      %s19 = sphi 0, %s17
      %s20 = sphi 0, %s19
      %s34 = sphi 0, %s20
      %s40 = sphi 0, %s42
      %s43 = sphi 0, %s40
      %s44 = sphi 0, %s43
      %s60 = sphi 0, %s44
      %s64 = sphi 0, %s64
      %s66 = sphi 0, %s64
      %s67 = sphi 0, %s66
      %s81 = sphi 0, %s67
      %s87 = sphi 0, %s89
      %s90 = sphi 0, %s87
      %s91 = sphi 0, %s90
      %s107 = sphi 0, %s91
    $region4: #{forward.9} parent=1 // loop_header_branch
      %12 = sbr.rel (%p10) target = $region8
    $region5: #{forward.9} parent=1 // loop_body
      %s14 = ssub.s32 %s9, 1
      %s15 = ssub.s32 %s9, 2
      %s16 = sadd.s32 %s9, 1
      %s18 = sadd.s32 %s17, 1
      %p21 = scmp.eq.s32.totalorder %s9, 1
      %p22 = scmp.ne.s32.totalorder %s17, %s19
      %p23 = scmp.eq.s32.totalorder %s9, 0
      %p24 = por %p22, %p23
      %p25 = scmp.ne.s32.totalorder %s17, %s19
      %p26 = scmp.eq.s32.totalorder %s14, 1
      %p27 = por %p25, %p26
      %p28 = scmp.ne.s32.totalorder %s19, %s20
      %p29 = scmp.eq.s32.totalorder %s14, 0
      %p30 = por %p28, %p29
      %p31 = scmp.ne.s32.totalorder %s19, %s20
      %p32 = scmp.eq.s32.totalorder %s15, 1
      %p33 = por %p31, %p32
      %p35 = scmp.ne.s32.totalorder %s20, %s34
      %p36 = scmp.eq.s32.totalorder %s15, 0
      %p37 = por %p35, %p36
      %s38 = ssub.s32 %s9, %s16
      %p39 = scmp.eq.s32.totalorder %s38, 0
      %s41 = sadd.s32 %s40, 1
      %s42 = scalar_select %p39, %s40, %s41
      %p45 = pneg %p39
      %p46 = scmp.eq.s32.totalorder %s9, 1
      %p47 = por %p45, %p46
      %p48 = scmp.ne.s32.totalorder %s40, %s43
      %p49 = scmp.eq.s32.totalorder %s9, 0
      %p50 = por %p48, %p49
      %p51 = scmp.ne.s32.totalorder %s40, %s43
      %p52 = scmp.eq.s32.totalorder %s14, 1
      %p53 = por %p51, %p52
      %p54 = scmp.ne.s32.totalorder %s43, %s44
      %p55 = scmp.eq.s32.totalorder %s14, 0
      %p56 = por %p54, %p55
      %p57 = scmp.ne.s32.totalorder %s43, %s44
      %p58 = scmp.eq.s32.totalorder %s15, 1
      %p59 = por %p57, %p58
      %p61 = scmp.ne.s32.totalorder %s44, %s60
      %p62 = scmp.eq.s32.totalorder %s15, 0
      %p63 = por %p61, %p62
      %s65 = sadd.s32 %s64, 1
      %p68 = scmp.eq.s32.totalorder %s9, 1
      %p69 = scmp.ne.s32.totalorder %s64, %s66
      %p70 = scmp.eq.s32.totalorder %s9, 0
      %p71 = por %p69, %p70
      %p72 = scmp.ne.s32.totalorder %s64, %s66
      %p73 = scmp.eq.s32.totalorder %s14, 1
      %p74 = por %p72, %p73
      %p75 = scmp.ne.s32.totalorder %s66, %s67
      %p76 = scmp.eq.s32.totalorder %s14, 0
      %p77 = por %p75, %p76
      %p78 = scmp.ne.s32.totalorder %s66, %s67
      %p79 = scmp.eq.s32.totalorder %s15, 1
      %p80 = por %p78, %p79
      %p82 = scmp.ne.s32.totalorder %s67, %s81
      %p83 = scmp.eq.s32.totalorder %s15, 0
      %p84 = por %p82, %p83
      %s85 = ssub.s32 %s9, %s16
      %p86 = scmp.eq.s32.totalorder %s85, 0
      %s88 = sadd.s32 %s87, 1
      %s89 = scalar_select %p86, %s87, %s88
      %p92 = pneg %p86
      %p93 = scmp.eq.s32.totalorder %s9, 1
      %p94 = por %p92, %p93
      %p95 = scmp.ne.s32.totalorder %s87, %s90
      %p96 = scmp.eq.s32.totalorder %s9, 0
      %p97 = por %p95, %p96
      %p98 = scmp.ne.s32.totalorder %s87, %s90
      %p99 = scmp.eq.s32.totalorder %s14, 1
      %p100 = por %p98, %p99
      %p101 = scmp.ne.s32.totalorder %s90, %s91
      %p102 = scmp.eq.s32.totalorder %s14, 0
      %p103 = por %p101, %p102
      %p104 = scmp.ne.s32.totalorder %s90, %s91
      %p105 = scmp.eq.s32.totalorder %s15, 1
      %p106 = por %p104, %p105
      %p108 = scmp.ne.s32.totalorder %s91, %s107
      %p109 = scmp.eq.s32.totalorder %s15, 0
      %p110 = por %p108, %p109
      %p111 = scmp.le.s32.totalorder 1, %s9
      %p112 = scmp.lt.s32.totalorder %s9, 3
      %p113 = pnand %p111, %p112
      %p114 = pneg %p113
      // Predicated region
      $region9: #{forward.9} parent=5 // pred_check
        _
      $region10: #{forward.9} parent=5 // pred_check_branch
        %116 = sbr.rel (%p113) target = $region12
      $region11: #{forward.9} parent=5 // pred_region
        %s117 = ssub.s32 %s9, 1
        // Predicated region
        $region13: #{forward.9} parent=11 // pred_check
          %p118 = pneg %p30
        $region14: #{forward.9} parent=11 // pred_check_branch
          %120 = sbr.rel (%p118) target = $region16
        $region15: #{forward.9} parent=11 // pred_region
          _
        $region16: #{forward.9} parent=11 // pred_fallthru
          _
        // Predicated region
        $region17: #{forward.9} parent=11 // pred_check
          %p121 = pneg %p77
        $region18: #{forward.9} parent=11 // pred_check_branch
          %123 = sbr.rel (%p121) target = $region20
        $region19: #{forward.9} parent=11 // pred_region
          _
        $region20: #{forward.9} parent=11 // pred_fallthru
          _
      $region12: #{forward.9} parent=5 // pred_fallthru
        _
      %p124 = scmp.lt.s32.totalorder %s9, 2
      // Predicated region
      $region21: #{forward.9} parent=5 // pred_check
        %p125 = pneg %p124
      $region22: #{forward.9} parent=5 // pred_check_branch
        %127 = sbr.rel (%p125) target = $region24
      $region23: #{forward.9} parent=5 // pred_region
        // Predicated region
        $region25: #{forward.9} parent=23 // pred_check
          %p128 = pneg %p50
        $region26: #{forward.9} parent=23 // pred_check_branch
          %130 = sbr.rel (%p128) target = $region28
        $region27: #{forward.9} parent=23 // pred_region
          %s131 = sand.u32 %s40, 1
          %s132 = sand.u32 %s40, 1
          %s133 = smul.addr %s132, 40
          %s134 = scalar_lea.vmem [#allocation2], %s133
          %s135 = smul.u32 2, %s9
          %s136 = smul.addr %s135, 4
          %s137 = scalar_lea.vmem %s1, %s136
          // Predicated region
          $region29: #{forward.9} parent=27 // pred_check
            _
          $region30: #{forward.9} parent=27 // pred_check_branch
            %139 = sbr.rel (0) target = $region32
          $region31: #{forward.9} parent=27 // pred_region
            // Predicated region
            $region33: #{forward.9} parent=31 // pred_check
              _
            $region34: #{forward.9} parent=31 // pred_check_branch
              %141 = sbr.rel (0) target = $region36
            $region35: #{forward.9} parent=31 // pred_region
              // Predicated region
              $region48: #{forward.9} parent=35 // pred_check
                _
              $region49: #{forward.9} parent=35 // pred_check_branch
                %164 = sbr.rel (0) target = $region51
              $region50: #{forward.9} parent=35 // pred_region
                loop: start=0, step=1, limit=1
                $region52: #{forward.9} parent=50 // loop_pre_header
                  _
                $region53: #{forward.9} parent=50 // loop_header
                  %s166 = sphi 0, %s170
                  %p167 = scmp.ge.s32.totalorder %s166, 1
                  %s171 = sphi %s137, %s137
                  %s172 = sphi %s134, %s134
                $region54: #{forward.9} parent=50 // loop_header_branch
                  %169 = sbr.rel (%p167) target = $region58
                $region55: #{forward.9} parent=50 // loop_body
                  %v173 = vld [vmem:[%s171] sm:$0xff]
                  %174 = vst [vmem:[%s172] sm:$0xff] %v173
                  %v175 = vld [vmem:[%s171 + $0x10] sm:$0xff]
                  %176 = vst [vmem:[%s172 + $0x8] sm:$0xff] %v175
                  %v177 = vld [vmem:[%s171 + $0x20] sm:$0xff]
                  %178 = vst [vmem:[%s172 + $0x10] sm:$0xff] %v177
                  %v179 = vld [vmem:[%s171 + $0x30] sm:$0xff]
                  %180 = vst [vmem:[%s172 + $0x18] sm:$0xff] %v179
                  %v181 = vld [vmem:[%s171 + $0x40] sm:$0xff]
                  %182 = vst [vmem:[%s172 + $0x20] sm:$0xff] %v181
                $region56: #{forward.9} parent=50 // loop_footer
                  %s170 = sadd.s32 1, %s166
                $region57: #{forward.9} parent=50 // loop_footer_branch
                  %165 = sbr.rel target = $region53
                $region58: #{forward.9} parent=50 // loop_exit
                  _
              $region51: #{forward.9} parent=35 // pred_fallthru
                _
              // Predicated region
              $region59: #{forward.9} parent=35 // pred_check
                _
              $region60: #{forward.9} parent=35 // pred_check_branch
                %184 = sbr.rel target = $region62
              $region61: #{forward.9} parent=35 // pred_region
                _
              $region62: #{forward.9} parent=35 // pred_fallthru
                _
            $region36: #{forward.9} parent=31 // pred_fallthru
              _
            // Predicated region
            $region37: #{forward.9} parent=31 // pred_check
              _
            $region38: #{forward.9} parent=31 // pred_check_branch
              %143 = sbr.rel target = $region40
            $region39: #{forward.9} parent=31 // pred_region
              loop: start=0, step=1, limit=1
              $region41: #{forward.9} parent=39 // loop_pre_header
                _
              $region42: #{forward.9} parent=39 // loop_header
                %s146 = sphi 0, %s150
                %p147 = scmp.ge.s32.totalorder %s146, 1
                %s151 = sphi %s137, %s137
                %s152 = sphi %s134, %s134
              $region43: #{forward.9} parent=39 // loop_header_branch
                %149 = sbr.rel (%p147) target = $region47
              $region44: #{forward.9} parent=39 // loop_body
                %v153 = vld [vmem:[%s151] sm:$0xff]
                %154 = vst [vmem:[%s152] sm:$0xff] %v153
                %v155 = vld [vmem:[%s151 + $0x10] sm:$0xff]
                %156 = vst [vmem:[%s152 + $0x8] sm:$0xff] %v155
                %v157 = vld [vmem:[%s151 + $0x20] sm:$0xff]
                %158 = vst [vmem:[%s152 + $0x10] sm:$0xff] %v157
                %v159 = vld [vmem:[%s151 + $0x30] sm:$0xff]
                %160 = vst [vmem:[%s152 + $0x18] sm:$0xff] %v159
                %v161 = vld [vmem:[%s151 + $0x40] sm:$0xff]
                %162 = vst [vmem:[%s152 + $0x20] sm:$0xff] %v161
              $region45: #{forward.9} parent=39 // loop_footer
                %s150 = sadd.s32 1, %s146
              $region46: #{forward.9} parent=39 // loop_footer_branch
                %145 = sbr.rel target = $region42
              $region47: #{forward.9} parent=39 // loop_exit
                _
            $region40: #{forward.9} parent=31 // pred_fallthru
              _
          $region32: #{forward.9} parent=27 // pred_fallthru
            _
          %185 = vnop
        $region28: #{forward.9} parent=23 // pred_fallthru
          _
      $region24: #{forward.9} parent=5 // pred_fallthru
        _
      %p186 = scmp.le.s32.totalorder 1, %s9
      %p187 = scmp.lt.s32.totalorder %s9, 3
      %p188 = pnand %p186, %p187
      %p189 = pneg %p188
      // Predicated region
      $region63: #{forward.9} parent=5 // pred_check
        _
      $region64: #{forward.9} parent=5 // pred_check_branch
        %191 = sbr.rel (%p188) target = $region66
      $region65: #{forward.9} parent=5 // pred_region
        %s192 = ssub.s32 %s9, 1
        %s193 = sand.u32 %s43, 1
        %s194 = sand.u32 %s43, 1
        %s195 = smul.addr %s194, 40
        %s196 = scalar_lea.vmem [#allocation2], %s195
        // Predicated region
        $region67: #{forward.9} parent=65 // pred_check
          %p197 = pneg %p56
        $region68: #{forward.9} parent=65 // pred_check_branch
          %199 = sbr.rel (%p197) target = $region70
        $region69: #{forward.9} parent=65 // pred_region
          _
        $region70: #{forward.9} parent=65 // pred_fallthru
          _
        %p200 = pneg %p30
        %p201 = pneg %p27
        %s202 = sand.u32 %s43, 1
        %s203 = sand.u32 %s43, 1
        %s204 = smul.addr %s203, 40
        %s205 = scalar_lea.vmem [#allocation2], %s204
        %p206 = pneg %p56
        %p207 = pneg %p53
        %p208 = pneg %p77
        %p209 = pneg %p74
        %p210 = pneg %p103
        %p211 = pneg %p100
        %s212 = sand.u32 %s90, 1
        %s213 = sand.u32 %s90, 1
        %s214 = smul.addr %s213, 48
        %s215 = scalar_lea.vmem [#allocation3], %s214
        %s216 = smul.u32 2, %s14
        %s217 = smul.u32 2, %s14
        %v219 = vld [vmem:[%s0] sm:$0xf]
        %v220 = vld [vmem:[%s0 + $0x4] sm:$0xf]
        %v221 = vld [vmem:[%s0 + $0x8] sm:$0xf]
        %v222 = vld [vmem:[%s196] sm:$0xff]
        %v223 = vld [vmem:[%s196 + $0x8] sm:$0xff]
        %v224 = vld [vmem:[%s196 + $0x10] sm:$0xff]
        %v225 = vld [vmem:[%s196 + $0x18] sm:$0xff]
        %v226 = vld [vmem:[%s196 + $0x20] sm:$0x33]
        %v227 = vld [vmem:[%s2] sm:$0xff]
        %v228 = vld [vmem:[%s2 + $0x8] sm:$0xff]
        %v229 = vld [vmem:[%s2 + $0x10] sm:$0xff]
        %231 = vset.pattern.permute.xlu0 0
        %232 = vperm.xlu0 %231, %v227
        %v233 = vpop.permute.xlu0 %232
        %236 = vset.pattern.permute.xlu0 0
        %237 = vperm.xlu0 %236, %v228
        %v238 = vpop.permute.xlu0 %237
        %241 = vset.pattern.permute.xlu0 0
        %242 = vperm.xlu0 %241, %v229
        %v243 = vpop.permute.xlu0 %242
        %v248 = vunpack.c.l.b16 %v219
        %v249 = vunpack.c.l.b16 %v220
        %v250 = vunpack.c.l.b16 %v221
        %v251 = vpack.c.b16 %v249, %v248
        %v252 = vpack.c.b16 %v250, %v250
        %v258 = vunpack.c.l.b16 %v222
        %v259 = vunpack.c.h.b16 %v222
        %v260 = vunpack.c.l.b16 %v223
        %v261 = vunpack.c.h.b16 %v223
        %v262 = vunpack.c.l.b16 %v224
        %v263 = vunpack.c.h.b16 %v224
        %v264 = vunpack.c.l.b16 %v225
        %v265 = vunpack.c.h.b16 %v225
        %v266 = vunpack.c.l.b16 %v226
        %v267 = vunpack.c.h.b16 %v226
        %v268 = vpack.c.b16 %v260, %v258
        %v269 = vpack.c.b16 %v261, %v259
        %v270 = vpack.c.b16 %v264, %v262
        %v271 = vpack.c.b16 %v265, %v263
        %v272 = vpack.c.b16 %v266, %v266
        %v273 = vpack.c.b16 %v267, %v267
        %vm278 = vcmask 293888
        %v280 = vsel %vm278, %v251, 0
        %v283 = vsel %vm278, %v252, 0
        %vm285 = vcmask 1041408
        %v287 = vsel %vm285, %v272, 0
        %v290 = vsel %vm285, %v273, 0
        %292 = vmatprep.subr.bf16.mxu0 %v269
        %293 = vmatpush1.bf16.msra.mxu0 %v268
        %294 = vmatprep.subr.bf16.mxu0 %v271
        %295 = vmatpush1.bf16.msra.mxu0 %v270
        %296 = vmatprep.subr.bf16.mxu0 %v290
        %297 = vmatpush1.bf16.msra.mxu0 %v287
        %298 = vmatprep.subr.bf16.mxu0 0
        %299 = vmatpush1.bf16.msra.mxu0 0
        %300 = vmatprep.subr.bf16.mxu0 0
        %301 = vmatpush1.bf16.msra.mxu0 0
        %302 = vmatprep.subr.bf16.mxu0 0
        %303 = vmatpush1.bf16.msra.mxu0 0
        %304 = vmatprep.subr.bf16.mxu0 0
        %305 = vmatpush1.bf16.msra.mxu0 0
        %306 = vmatprep.subr.bf16.mxu0 0
        %307 = vmatpush1.bf16.msra.mxu0 0
        %308 = vmatprep.subr.bf16.mxu0 0
        %309 = vmatpush1.bf16.msra.mxu0 0
        %310 = vmatprep.subr.bf16.mxu0 0
        %311 = vmatpush1.bf16.msra.mxu0 0
        %312 = vmatprep.subr.bf16.mxu0 0
        %313 = vmatpush1.bf16.msra.mxu0 0
        %314 = vmatprep.subr.bf16.mxu0 0
        %315 = vmatpush1.bf16.msra.mxu0 0
        %316 = vmatprep.subr.bf16.mxu0 0
        %317 = vmatpush1.bf16.msra.mxu0 0
        %318 = vmatprep.subr.bf16.mxu0 0
        %319 = vmatpush1.bf16.msra.mxu0 0
        %320 = vmatprep.subr.bf16.mxu0 0
        %321 = vmatpush1.bf16.msra.mxu0 0
        %322 = vmatprep.subr.bf16.mxu0 0
        %323 = vmatpush1.bf16.msra.mxu0 0
        %324 = vmatprep.mubr.bf16.mxu0 0
        %325 = vmatmul.mubr.bf16.gmra.mrb[0].mxu0 %v280
        %v326 = vpop.f32.mrb[0].mxu0
        %v327 = vadd.f32 %v233, %v326
        %v328 = vpop.f32.mrb[0].mxu0
        %v329 = vadd.f32 %v233, %v328
        %v330 = vpop.f32.mrb[0].mxu0
        %v331 = vadd.f32 %v238, %v330
        %v332 = vpop.f32.mrb[0].mxu0
        %v333 = vadd.f32 %v238, %v332
        %334 = vmatprep.mubr.bf16.mxu0 0
        %335 = vmatmul.mubr.bf16.gmra.mrb[0].mxu0 %v283
        %v336 = vpop.f32.mrb[0].mxu0
        %v337 = vadd.f32 %v243, %v336
        %v338 = vpop.f32.mrb[0].mxu0
        %v339 = vadd.f32 %v243, %v338
        %v340 = vpop.f32.mrb[0].mxu0
        %v341 = vpop.f32.mrb[0].mxu0
        %342 = vdwg.mxu0
        %343 = vst [vmem:[%s215] sm:$0xff] %v327
        %344 = vst [vmem:[%s215 + $0x8] sm:$0xff] %v329
        %345 = vst [vmem:[%s215 + $0x10] sm:$0xff] %v331
        %346 = vst [vmem:[%s215 + $0x18] sm:$0xff] %v333
        %347 = vst [vmem:[%s215 + $0x20] sm:$0xff] %v337
        %348 = vst [vmem:[%s215 + $0x28] sm:$0xff] %v339
        %s349 = sand.u32 %s90, 1
        %s350 = sand.u32 %s90, 1
        %s351 = smul.addr %s350, 48
        %s352 = scalar_lea.vmem [#allocation3], %s351
        // Predicated region
        $region71: #{forward.9} parent=65 // pred_check
          %p353 = pneg %p100
        $region72: #{forward.9} parent=65 // pred_check_branch
          %355 = sbr.rel (%p353) target = $region74
        $region73: #{forward.9} parent=65 // pred_region
          %s356 = smul.u32 2, %s14
          %s357 = smul.addr %s356, 8
          %s358 = scalar_lea.vmem %s3, %s357
          // Predicated region
          $region75: #{forward.9} parent=73 // pred_check
            _
          $region76: #{forward.9} parent=73 // pred_check_branch
            %360 = sbr.rel (0) target = $region78
          $region77: #{forward.9} parent=73 // pred_region
            // Predicated region
            $region79: #{forward.9} parent=77 // pred_check
              _
            $region80: #{forward.9} parent=77 // pred_check_branch
              %362 = sbr.rel (0) target = $region82
            $region81: #{forward.9} parent=77 // pred_region
              loop: start=0, step=1, limit=1
              $region83: #{forward.9} parent=81 // loop_pre_header
                _
              $region84: #{forward.9} parent=81 // loop_header
                %s364 = sphi 0, %s368
                %p365 = scmp.ge.s32.totalorder %s364, 1
                %s369 = sphi %s352, %s352
                %s370 = sphi %s358, %s358
              $region85: #{forward.9} parent=81 // loop_header_branch
                %367 = sbr.rel (%p365) target = $region89
              $region86: #{forward.9} parent=81 // loop_body
                %v371 = vld [vmem:[%s369] sm:$0xff]
                %372 = vst [vmem:[%s370] sm:$0xff] %v371
                %v373 = vld [vmem:[%s369 + $0x8] sm:$0xff]
                %374 = vst [vmem:[%s370 + $0x8] sm:$0xff] %v373
                %v375 = vld [vmem:[%s369 + $0x10] sm:$0xff]
                %376 = vst [vmem:[%s370 + $0x20] sm:$0xff] %v375
                %v377 = vld [vmem:[%s369 + $0x18] sm:$0xff]
                %378 = vst [vmem:[%s370 + $0x28] sm:$0xff] %v377
                %v379 = vld [vmem:[%s369 + $0x20] sm:$0xff]
                %380 = vst [vmem:[%s370 + $0x40] sm:$0xff] %v379
                %v381 = vld [vmem:[%s369 + $0x28] sm:$0xff]
                %382 = vst [vmem:[%s370 + $0x48] sm:$0xff] %v381
              $region87: #{forward.9} parent=81 // loop_footer
                %s368 = sadd.s32 1, %s364
              $region88: #{forward.9} parent=81 // loop_footer_branch
                %363 = sbr.rel target = $region84
              $region89: #{forward.9} parent=81 // loop_exit
                _
            $region82: #{forward.9} parent=77 // pred_fallthru
              _
            // Predicated region
            $region90: #{forward.9} parent=77 // pred_check
              _
            $region91: #{forward.9} parent=77 // pred_check_branch
              %384 = sbr.rel target = $region93
            $region92: #{forward.9} parent=77 // pred_region
              _
            $region93: #{forward.9} parent=77 // pred_fallthru
              _
          $region78: #{forward.9} parent=73 // pred_fallthru
            _
          %385 = vnop
        $region74: #{forward.9} parent=65 // pred_fallthru
          _
      $region66: #{forward.9} parent=5 // pred_fallthru
        _
      %p386 = scmp.le.s32.totalorder 2, %s9
      // Predicated region
      $region94: #{forward.9} parent=5 // pred_check
        %p387 = pneg %p386
      $region95: #{forward.9} parent=5 // pred_check_branch
        %389 = sbr.rel (%p387) target = $region97
      $region96: #{forward.9} parent=5 // pred_region
        %s390 = ssub.s32 %s9, 2
        // Predicated region
        $region98: #{forward.9} parent=96 // pred_check
          %p391 = pneg %p106
        $region99: #{forward.9} parent=96 // pred_check_branch
          %393 = sbr.rel (%p391) target = $region101
        $region100: #{forward.9} parent=96 // pred_region
          %s394 = sand.u32 %s91, 1
          %s395 = sand.u32 %s91, 1
          %s396 = smul.addr %s395, 48
          %s397 = scalar_lea.vmem [#allocation3], %s396
        $region101: #{forward.9} parent=96 // pred_fallthru
          _
      $region97: #{forward.9} parent=5 // pred_fallthru
        _
    $region6: #{forward.9} parent=1 // loop_footer
      %s13 = sadd.s32 1, %s9
    $region7: #{forward.9} parent=1 // loop_footer_branch
      %8 = sbr.rel target = $region3
    $region8: #{forward.9} parent=1 // loop_exit
      _

</llo_original>
